<compile_context>
chip_gen: v7x
topology: tpu7x:2x2x1
jax: 0.10.0
libtpu: 0.0.40
codegen_flags: <defaults>
</compile_context>

<pallas_src>
import math
from collections import namedtuple

import jax
import jax.numpy as jnp
from jax.experimental import pallas as pl
from jax.experimental.pallas import tpu as pltpu

MAX_TILE = 512        # rows per grid step (multiple of 8); sweep 256-1024
_LN_EPS = 1e-5        # torch.nn.LayerNorm default eps
_NORM_EPS = 1e-8      # _norm_no_nan eps
# TODO(synk): on v6e/v7x, casting dot inputs to bf16 (keeping f32 accumulation) halves
# DMA bytes and doubles MXU rate; kept f32 here for parity with the PyTorch reference.

GVPCfg = namedtuple("GVPCfg", "si vi so vo h layernorm relu vsig")


def _round_up(x, m):
    return (x + m - 1) // m * m


def _pick_tile(n):
    return min(MAX_TILE, _round_up(n, 8))


def _row_spec(tile, c):
    return pl.BlockSpec((tile, c), lambda i: (i, 0))


def _vec_spec(tile, c):
    return pl.BlockSpec((3, tile, c), lambda i: (0, i, 0))


def _w_spec(w):
    # whole-array block, constant index map -> loaded into VMEM once, never re-fetched
    return pl.BlockSpec(w.shape, lambda i, nd=w.ndim: (0,) * nd)


# ----------------------------------------------------------------------------
# In-kernel math helpers (operate on plain arrays, used by all fused kernels)
# ----------------------------------------------------------------------------
def _dot3(v3, w):
    """Stacked x/y/z matmul: (3, M, Cin) @ (Cin, Cout) -> (3, M, Cout) as one MXU dot."""
    three, m, cin = v3.shape
    out = jnp.dot(v3.reshape(three * m, cin), w, preferred_element_type=jnp.float32)
    return out.reshape(three, m, w.shape[1])


def _sq_norm3(v3):
    """Per-channel squared L2 norm over the xyz axis: (3, M, C) -> (M, C)."""
    return v3[0] * v3[0] + v3[1] * v3[1] + v3[2] * v3[2]


def _tuple_ln(s, v3, gamma, beta):
    """Tuple LayerNorm (matches gvp.LayerNorm)."""
    mu = jnp.mean(s, axis=-1, keepdims=True)
    var = jnp.mean(jnp.square(s - mu), axis=-1, keepdims=True)
    s = (s - mu) * jax.lax.rsqrt(var + _LN_EPS) * gamma + beta
    vsq = jnp.maximum(_sq_norm3(v3), _NORM_EPS)                   # (M, C)
    inv = jax.lax.rsqrt(jnp.mean(vsq, axis=-1, keepdims=True))    # (M, 1)
    return s, v3 * inv[None]


def _gvp_apply(s_parts, v_parts, w, cfg):
    """One GVP on in-register arrays.
    s_parts: list of (M, si_k); v_parts: list of (3, M, vi_k).
    w['wh'] / w['ws_s'] are matching lists (concat-free split matmuls)."""
    vh = None
    for vp, whp in zip(v_parts, w["wh"]):
        t = _dot3(vp, whp)
        vh = t if vh is None else vh + t
    vhn = jnp.sqrt(jnp.maximum(_sq_norm3(vh), _NORM_EPS))          # (M, h)
    s_out = w["b"]
    for sp, wsp in zip(s_parts, w["ws_s"]):
        s_out = s_out + jnp.dot(sp, wsp, preferred_element_type=jnp.float32)
    s_out = s_out + jnp.dot(vhn, w["ws_v"], preferred_element_type=jnp.float32)
    v_out = None
    if cfg.vo > 0:
        u = _dot3(vh, w["wv"])                                     # (3, M, vo)
        if cfg.vsig:   # vector_act = sigmoid of per-channel norm (vector_gate=False)
            un = jnp.sqrt(jnp.maximum(_sq_norm3(u), _NORM_EPS))
            u = u * jax.nn.sigmoid(un)[None]
        v_out = u
    if cfg.relu:
        s_out = jnp.maximum(s_out, 0.0)
    return s_out, v_out


def _gvp_weight_list(p, cfg):
    ws = list(p["wh"]) + list(p["ws_s"]) + [p["ws_v"], p["b"]]
    if cfg.vo > 0:
        ws.append(p["wv"])
    return ws


def _read_gvp_weights(refs, start, n_vparts, n_sparts, has_vo):
    idx = start
    wh = [refs[idx + k][...] for k in range(n_vparts)]
    idx += n_vparts
    ws_s = [refs[idx + k][...] for k in range(n_sparts)]
    idx += n_sparts
    ws_v = refs[idx][...]
    b = refs[idx + 1][...]
    idx += 2
    wv = None
    if has_vo:
        wv = refs[idx][...]
        idx += 1
    return {"wh": wh, "ws_s": ws_s, "ws_v": ws_v, "b": b, "wv": wv}, idx


# ----------------------------------------------------------------------------
# Fused kernel 1: LayerNorm + GVP  (W_v, W_e, W_out)
# ----------------------------------------------------------------------------
def ln_gvp_pallas(s, v, p, cfg, tile):
    np_rows = s.shape[0]
    has_vo = cfg.vo > 0
    wlist = _gvp_weight_list(p, cfg)
    ins = [s, v, p["gamma"], p["beta"]] + wlist
    in_specs = ([_row_spec(tile, cfg.si), _vec_spec(tile, cfg.vi)]
                + [_w_spec(w) for w in ins[2:]])
    out_shape = [jax.ShapeDtypeStruct((np_rows, cfg.so), jnp.float32)]
    out_specs = [_row_spec(tile, cfg.so)]
    if has_vo:
        out_shape.append(jax.ShapeDtypeStruct((3, np_rows, cfg.vo), jnp.float32))
        out_specs.append(_vec_spec(tile, cfg.vo))
    n_in = len(ins)

    def kernel(*refs):
        s_in = refs[0][...]
        v_in = refs[1][...]
        gamma, beta = refs[2][...], refs[3][...]
        w, _ = _read_gvp_weights(refs, 4, 1, 1, has_vo)
        s_n, v_n = _tuple_ln(s_in, v_in, gamma, beta)
        s_out, v_out = _gvp_apply([s_n], [v_n], w, cfg)
        refs[n_in][...] = s_out
        if has_vo:
            refs[n_in + 1][...] = v_out

    outs = pl.pallas_call(
        kernel,
        out_shape=out_shape,
        grid_spec=pltpu.PrefetchScalarGridSpec(
            num_scalar_prefetch=0,
            grid=(np_rows // tile,),
            in_specs=in_specs,
            out_specs=out_specs,
        ),
        compiler_params=pltpu.CompilerParams(dimension_semantics=("parallel",)),
    )(*ins)
    return (outs[0], outs[1]) if has_vo else outs[0]


# ----------------------------------------------------------------------------
# Fused kernel 2: 3-GVP message chain over edges (concat-free first GVP)
# ----------------------------------------------------------------------------
def msg_chain_pallas(s_j, s_e, s_i, v_j, v_e, v_i, plist, cfgs, n_valid, tile):
    ep = s_j.shape[0]
    ns, es_dim = s_j.shape[1], s_e.shape[1]
    nv, ev_dim = v_j.shape[2], v_e.shape[2]
    cfg0, cfg1, cfg2 = cfgs
    w0 = _gvp_weight_list(plist[0], cfg0)
    w1 = _gvp_weight_list(plist[1], cfg1)
    w2 = _gvp_weight_list(plist[2], cfg2)
    ins = [s_j, s_e, s_i, v_j, v_e, v_i] + w0 + w1 + w2
    in_specs = ([_row_spec(tile, ns), _row_spec(tile, es_dim), _row_spec(tile, ns),
                 _vec_spec(tile, nv), _vec_spec(tile, ev_dim), _vec_spec(tile, nv)]
                + [_w_spec(w) for w in (w0 + w1 + w2)])
    out_shape = [jax.ShapeDtypeStruct((ep, cfg2.so), jnp.float32),
                 jax.ShapeDtypeStruct((3, ep, cfg2.vo), jnp.float32)]
    out_specs = [_row_spec(tile, cfg2.so), _vec_spec(tile, cfg2.vo)]
    n_in = len(ins)
    needs_mask = n_valid < ep   # padded edge rows must contribute 0 to scatter-mean

    def kernel(*refs):
        sj, se, si_ = refs[0][...], refs[1][...], refs[2][...]
        vj, ve, vi_ = refs[3][...], refs[4][...], refs[5][...]
        wd0, idx = _read_gvp_weights(refs, 6, 3, 3, cfg0.vo > 0)
        wd1, idx = _read_gvp_weights(refs, idx, 1, 1, cfg1.vo > 0)
        wd2, idx = _read_gvp_weights(refs, idx, 1, 1, cfg2.vo > 0)

        s, v = _gvp_apply([sj, se, si_], [vj, ve, vi_], wd0, cfg0)
        s, v = _gvp_apply([s], [v], wd1, cfg1)
        s, v = _gvp_apply([s], [v], wd2, cfg2)

        if needs_mask:
            base = pl.program_id(0) * tile
            row_s = jax.lax.broadcasted_iota(jnp.int32, s.shape, 0) + base
            s = jnp.where(row_s < n_valid, s, 0.0)
            row_v = jax.lax.broadcasted_iota(jnp.int32, v.shape, 1) + base
            v = jnp.where(row_v < n_valid, v, 0.0)

        refs[n_in][...] = s
        refs[n_in + 1][...] = v

    ms, mv = pl.pallas_call(
        kernel,
        out_shape=out_shape,
        grid_spec=pltpu.PrefetchScalarGridSpec(
            num_scalar_prefetch=0,
            grid=(ep // tile,),
            in_specs=in_specs,
            out_specs=out_specs,
        ),
        compiler_params=pltpu.CompilerParams(dimension_semantics=("parallel",)),
    )(*ins)
    return ms, mv


# ----------------------------------------------------------------------------
# Fused kernel 3: residual + LN0 + feed-forward (2 GVPs) + residual + LN1
# ----------------------------------------------------------------------------
def node_update_pallas(s, dh_s, v, dh_v, lp, cfg_ff, tile):
    np_rows, ns = s.shape
    nv = v.shape[2]
    cfg0, cfg1 = cfg_ff
    wf0 = _gvp_weight_list(lp["ff"][0], cfg0)
    wf1 = _gvp_weight_list(lp["ff"][1], cfg1)
    ins = ([s, dh_s, v, dh_v, lp["ln0"]["gamma"], lp["ln0"]["beta"]]
           + wf0 + wf1 + [lp["ln1"]["gamma"], lp["ln1"]["beta"]])
    in_specs = ([_row_spec(tile, ns), _row_spec(tile, ns),
                 _vec_spec(tile, nv), _vec_spec(tile, nv)]
                + [_w_spec(w) for w in ins[4:]])
    out_shape = [jax.ShapeDtypeStruct((np_rows, ns), jnp.float32),
                 jax.ShapeDtypeStruct((3, np_rows, nv), jnp.float32)]
    out_specs = [_row_spec(tile, ns), _vec_spec(tile, nv)]
    n_in = len(ins)

    def kernel(*refs):
        g0, b0 = refs[4][...], refs[5][...]
        w0, idx = _read_gvp_weights(refs, 6, 1, 1, cfg0.vo > 0)
        w1, idx = _read_gvp_weights(refs, idx, 1, 1, cfg1.vo > 0)
        g1, b1 = refs[idx][...], refs[idx + 1][...]

        x_s = refs[0][...] + refs[1][...]                    # x + dh  (Dropout = identity)
        x_v = refs[2][...] + refs[3][...]
        x_s, x_v = _tuple_ln(x_s, x_v, g0, b0)               # norm[0]
        f_s, f_v = _gvp_apply([x_s], [x_v], w0, cfg0)        # feed-forward GVP 1
        f_s, f_v = _gvp_apply([f_s], [f_v], w1, cfg1)        # feed-forward GVP 2
        y_s, y_v = _tuple_ln(x_s + f_s, x_v + f_v, g1, b1)   # norm[1]
        refs[n_in][...] = y_s
        refs[n_in + 1][...] = y_v

    s_o, v_o = pl.pallas_call(
        kernel,
        out_shape=out_shape,
        grid_spec=pltpu.PrefetchScalarGridSpec(
            num_scalar_prefetch=0,
            grid=(np_rows // tile,),
            in_specs=in_specs,
            out_specs=out_specs,
        ),
        compiler_params=pltpu.CompilerParams(dimension_semantics=("parallel",)),
    )(*ins)
    return s_o, v_o


# ----------------------------------------------------------------------------
# Parameter init (deterministic, synthetic)
# ----------------------------------------------------------------------------
def _split_rows(w, sizes):
    parts, off = [], 0
    for sz in sizes:
        parts.append(w[off:off + sz])
        off += sz
    return tuple(parts)


def _init_gvp(key, cfg, s_split=None, v_split=None):
    k = jax.random.split(key, 5)
    p = {}
    if cfg.layernorm:
        p["gamma"] = jnp.ones((1, cfg.si), jnp.float32)
        p["beta"] = jnp.zeros((1, cfg.si), jnp.float32)
    wh = jax.random.normal(k[0], (cfg.vi, cfg.h), jnp.float32) / math.sqrt(cfg.vi)
    fan_in = cfg.si + cfg.h
    ws_s = jax.random.normal(k[1], (cfg.si, cfg.so), jnp.float32) / math.sqrt(fan_in)
    p["ws_v"] = jax.random.normal(k[2], (cfg.h, cfg.so), jnp.float32) / math.sqrt(fan_in)
    p["b"] = jax.random.normal(k[3], (1, cfg.so), jnp.float32) * 0.01
    if cfg.vo > 0:
        p["wv"] = jax.random.normal(k[4], (cfg.h, cfg.vo), jnp.float32) / math.sqrt(cfg.h)
    # store wh / ws_s pre-split by input blocks so the kernel never has to concat
    p["wh"] = _split_rows(wh, v_split) if v_split else (wh,)
    p["ws_s"] = _split_rows(ws_s, s_split) if s_split else (ws_s,)
    return p


def _init_ln(si):
    return {"gamma": jnp.ones((1, si), jnp.float32),
            "beta": jnp.zeros((1, si), jnp.float32)}


# ----------------------------------------------------------------------------
# Model
# ----------------------------------------------------------------------------
class GVPModelPallas:
    def __init__(self, node_in_dim, node_h_dim, edge_in_dim, edge_h_dim,
                 num_layers=3, drop_rate=0.1, key=None):
        ns_i, nv_i = node_in_dim
        ns, nv = node_h_dim
        es_i, ev_i = edge_in_dim
        es, ev = edge_h_dim
        self.num_layers = num_layers
        # TODO(synk): drop_rate unused — forward implemented in eval mode (Dropout = identity).

        self.cfg_wv = GVPCfg(ns_i, nv_i, ns, nv, max(nv_i, nv), True, False, False)
        self.cfg_we = GVPCfg(es_i, ev_i, es, ev, max(ev_i, ev), True, False, False)
        msg_si, msg_vi = 2 * ns + es, 2 * nv + ev
        self.cfg_msg = [
            GVPCfg(msg_si, msg_vi, ns, nv, max(msg_vi, nv), False, True, True),
            GVPCfg(ns, nv, ns, nv, nv, False, True, True),
            GVPCfg(ns, nv, ns, nv, nv, False, False, False),
        ]
        ffs, ffv = 4 * ns, 2 * nv
        self.cfg_ff = [
            GVPCfg(ns, nv, ffs, ffv, max(nv, ffv), False, True, True),
            GVPCfg(ffs, ffv, ns, nv, max(ffv, nv), False, False, False),
        ]
        self.cfg_out = GVPCfg(ns, nv, ns, 0, nv, True, True, False)

        key = jax.random.PRNGKey(0) if key is None else key
        keys = jax.random.split(key, 3 + num_layers)
        params = {
            "W_v": _init_gvp(keys[0], self.cfg_wv),
            "W_e": _init_gvp(keys[1], self.cfg_we),
            "W_out": _init_gvp(keys[2], self.cfg_out),
            "layers": [],
        }
        for l in range(num_layers):
            lk = jax.random.split(keys[3 + l], 5)
            params["layers"].append({
                "msg": [
                    _init_gvp(lk[0], self.cfg_msg[0],
                              s_split=(ns, es, ns), v_split=(nv, ev, nv)),
                    _init_gvp(lk[1], self.cfg_msg[1]),
                    _init_gvp(lk[2], self.cfg_msg[2]),
                ],
                "ff": [_init_gvp(lk[3], self.cfg_ff[0]),
                       _init_gvp(lk[4], self.cfg_ff[1])],
                "ln0": _init_ln(ns),
                "ln1": _init_ln(ns),
            })
        self.params = params

    def _conv_layer(self, s, v, src, dst, es, ev, cnt, n_edges, lp,
                    node_tile, edge_tile):
        np_rows = s.shape[0]
        # TODO(synk): graph gather (s[src]) and scatter-mean aggregation stay in XLA
        # (data-dependent indices); could move in-kernel with scalar-prefetched CSR
        # offsets if edges are pre-sorted by dst.
        s_j = jnp.take(s, src, axis=0)
        s_i = jnp.take(s, dst, axis=0)
        v_j = jnp.take(v, src, axis=1)
        v_i = jnp.take(v, dst, axis=1)
        ms, mv = msg_chain_pallas(s_j, es, s_i, v_j, ev, v_i,
                                  lp["msg"], self.cfg_msg, n_edges, edge_tile)
        dh_s = jax.ops.segment_sum(ms, dst, num_segments=np_rows) / cnt[:, None]
        dh_v = jnp.transpose(
            jax.ops.segment_sum(jnp.transpose(mv, (1, 0, 2)), dst, num_segments=np_rows),
            (1, 0, 2)) / cnt[None, :, None]
        return node_update_pallas(s, dh_s, v, dh_v, lp, self.cfg_ff, node_tile)

    def __call__(self, h_Vs, h_Vv, edge_index, h_Es, h_Ev):
        p = self.params
        n_nodes, n_edges = h_Vs.shape[0], edge_index.shape[1]
        node_tile = _pick_tile(n_nodes)
        edge_tile = _pick_tile(n_edges)
        np_rows = _round_up(n_nodes, node_tile)
        ep_rows = _round_up(n_edges, edge_tile)

        # Pad rows once at model entry; padded rows stay finite through every kernel,
        # padded-edge messages are zeroed in-kernel before the scatter-mean, and real
        # rows are sliced out only at the very end.
        s = jnp.pad(h_Vs, ((0, np_rows - n_nodes), (0, 0)))
        v = jnp.pad(h_Vv, ((0, 0), (0, np_rows - n_nodes), (0, 0)))
        es = jnp.pad(h_Es, ((0, ep_rows - n_edges), (0, 0)))
        ev = jnp.pad(h_Ev, ((0, 0), (0, ep_rows - n_edges), (0, 0)))
        src = jnp.pad(edge_index[0], (0, ep_rows - n_edges))
        dst = jnp.pad(edge_index[1], (0, ep_rows - n_edges))
        valid = (jnp.arange(ep_rows) < n_edges).astype(jnp.float32)
        cnt = jnp.maximum(jax.ops.segment_sum(valid, dst, num_segments=np_rows), 1.0)

        s, v = ln_gvp_pallas(s, v, p["W_v"], self.cfg_wv, node_tile)
        es, ev = ln_gvp_pallas(es, ev, p["W_e"], self.cfg_we, edge_tile)

        if p["layers"]:
            # lax.scan over stacked per-layer weights: the message-chain and
            # node-update Mosaic kernels are compiled exactly once, independent of
            # num_layers (all layers share identical shapes/configs).
            stacked = jax.tree_util.tree_map(
                lambda *xs: jnp.stack(xs, axis=0),
                p["layers"][0], *p["layers"][1:])

            def body(carry, lp):
                cs, cv = carry
                cs, cv = self._conv_layer(cs, cv, src, dst, es, ev, cnt, n_edges,
                                          lp, node_tile, edge_tile)
                return (cs, cv), None

            (s, v), _ = jax.lax.scan(body, (s, v), stacked)

        out = ln_gvp_pallas(s, v, p["W_out"], self.cfg_out, node_tile)  # scalar-only
        return out[:n_nodes]


# ----------------------------------------------------------------------------
if __name__ == "__main__":
    key = jax.random.PRNGKey(0)
    k1, k2, k3, k4, k5 = jax.random.split(key, 5)

    node_in_dim, node_h_dim = (6, 3), (32, 4)
    edge_in_dim, edge_h_dim = (8, 1), (16, 2)
    num_layers = 3

    N = 12
    h_Vs = jax.random.normal(k1, (N, node_in_dim[0]), jnp.float32)        # node scalars
    h_Vv = jax.random.normal(k2, (3, N, node_in_dim[1]), jnp.float32)     # node vectors [3,N,nv]

    idx = jnp.arange(N)
    src = jnp.concatenate([idx, idx]).astype(jnp.int32)
    dst = jnp.concatenate([(idx + 1) % N, (idx + 2) % N]).astype(jnp.int32)
    edge_index = jnp.stack([src, dst])                                    # [2, E]
    E = edge_index.shape[1]

    h_Es = jax.random.normal(k3, (E, edge_in_dim[0]), jnp.float32)        # edge scalars
    h_Ev = jax.random.normal(k4, (3, E, edge_in_dim[1]), jnp.float32)     # edge vectors

    model = GVPModelPallas(node_in_dim, node_h_dim, edge_in_dim, edge_h_dim,
                           num_layers=num_layers, key=k5)
    fwd = jax.jit(lambda a, b, c, d, e: model(a, b, c, d, e))
    out = fwd(h_Vs, h_Vv, edge_index, h_Es, h_Ev)
    jax.block_until_ready(out)

    assert out.shape == (N, node_h_dim[0]) and out.dtype == jnp.float32
    assert bool(jnp.all(jnp.isfinite(out)))
    print("KERNEL_OK")
</pallas_src>

<mosaic_0001>
module attributes {stable_mosaic.version = 11 : i64} {
  func.func @kernel(%arg0: i32, %arg1: memref<16x6xf32, #tpu.memory_space<vmem>>, %arg2: memref<3x16x3xf32, #tpu.memory_space<vmem>>, %arg3: memref<1x6xf32, #tpu.memory_space<vmem>>, %arg4: memref<1x6xf32, #tpu.memory_space<vmem>>, %arg5: memref<3x4xf32, #tpu.memory_space<vmem>>, %arg6: memref<6x32xf32, #tpu.memory_space<vmem>>, %arg7: memref<4x32xf32, #tpu.memory_space<vmem>>, %arg8: memref<1x32xf32, #tpu.memory_space<vmem>>, %arg9: memref<4x4xf32, #tpu.memory_space<vmem>>, %arg10: memref<16x32xf32, #tpu.memory_space<vmem>>, %arg11: memref<3x16x4xf32, #tpu.memory_space<vmem>>) attributes {dimension_semantics = [#tpu.dimension_semantics<parallel>], iteration_bounds = array<i64: 1>, scalar_prefetch = 0 : i64, scratch_operands = 0 : i64, tpu.core_type = #tpu.core_type<tc>, window_params = [{transform_indices = @transform_0, window_bounds = array<i64: 16, 6>}, {transform_indices = @transform_1, window_bounds = array<i64: 3, 16, 3>}, {pipeline_mode = #tpu.pipeline_mode<synchronous>, transform_indices = @transform_2, window_bounds = array<i64: 1, 6>}, {pipeline_mode = #tpu.pipeline_mode<synchronous>, transform_indices = @transform_3, window_bounds = array<i64: 1, 6>}, {pipeline_mode = #tpu.pipeline_mode<synchronous>, transform_indices = @transform_4, window_bounds = array<i64: 3, 4>}, {pipeline_mode = #tpu.pipeline_mode<synchronous>, transform_indices = @transform_5, window_bounds = array<i64: 6, 32>}, {pipeline_mode = #tpu.pipeline_mode<synchronous>, transform_indices = @transform_6, window_bounds = array<i64: 4, 32>}, {pipeline_mode = #tpu.pipeline_mode<synchronous>, transform_indices = @transform_7, window_bounds = array<i64: 1, 32>}, {pipeline_mode = #tpu.pipeline_mode<synchronous>, transform_indices = @transform_8, window_bounds = array<i64: 4, 4>}, {transform_indices = @transform_9, window_bounds = array<i64: 16, 32>}, {transform_indices = @transform_10, window_bounds = array<i64: 3, 16, 4>}]} {
    %c0 = arith.constant 0 : index
    %c0_0 = arith.constant 0 : index
    %0 = vector.load %arg1[%c0, %c0_0] : memref<16x6xf32, #tpu.memory_space<vmem>>, vector<16x6xf32>
    %c0_1 = arith.constant 0 : index
    %c0_2 = arith.constant 0 : index
    %c0_3 = arith.constant 0 : index
    %1 = vector.load %arg2[%c0_1, %c0_2, %c0_3] : memref<3x16x3xf32, #tpu.memory_space<vmem>>, vector<3x16x3xf32>
    %c0_4 = arith.constant 0 : index
    %c0_5 = arith.constant 0 : index
    %2 = vector.load %arg3[%c0_4, %c0_5] : memref<1x6xf32, #tpu.memory_space<vmem>>, vector<1x6xf32>
    %c0_6 = arith.constant 0 : index
    %c0_7 = arith.constant 0 : index
    %3 = vector.load %arg4[%c0_6, %c0_7] : memref<1x6xf32, #tpu.memory_space<vmem>>, vector<1x6xf32>
    %c0_8 = arith.constant 0 : index
    %c0_9 = arith.constant 0 : index
    %4 = vector.load %arg5[%c0_8, %c0_9] : memref<3x4xf32, #tpu.memory_space<vmem>>, vector<3x4xf32>
    %c0_10 = arith.constant 0 : index
    %c0_11 = arith.constant 0 : index
    %5 = vector.load %arg6[%c0_10, %c0_11] : memref<6x32xf32, #tpu.memory_space<vmem>>, vector<6x32xf32>
    %c0_12 = arith.constant 0 : index
    %c0_13 = arith.constant 0 : index
    %6 = vector.load %arg7[%c0_12, %c0_13] : memref<4x32xf32, #tpu.memory_space<vmem>>, vector<4x32xf32>
    %c0_14 = arith.constant 0 : index
    %c0_15 = arith.constant 0 : index
    %7 = vector.load %arg8[%c0_14, %c0_15] : memref<1x32xf32, #tpu.memory_space<vmem>>, vector<1x32xf32>
    %c0_16 = arith.constant 0 : index
    %c0_17 = arith.constant 0 : index
    %8 = vector.load %arg9[%c0_16, %c0_17] : memref<4x4xf32, #tpu.memory_space<vmem>>, vector<4x4xf32>
    %cst = arith.constant dense<0.000000e+00> : vector<16xf32>
    %9 = vector.multi_reduction <add>, %0, %cst [1] : vector<16x6xf32> to vector<16xf32>
    %10 = vector.shape_cast %9 : vector<16xf32> to vector<16x1xf32>
    %cst_18 = arith.constant 6.000000e+00 : f32
    %11 = vector.broadcast %cst_18 : f32 to vector<16x1xf32>
    %12 = arith.divf %10, %11 : vector<16x1xf32>
    %13 = vector.broadcast %12 : vector<16x1xf32> to vector<16x6xf32>
    %14 = arith.subf %0, %13 : vector<16x6xf32>
    %15 = arith.mulf %14, %14 : vector<16x6xf32>
    %cst_19 = arith.constant dense<0.000000e+00> : vector<16xf32>
    %16 = vector.multi_reduction <add>, %15, %cst_19 [1] : vector<16x6xf32> to vector<16xf32>
    %17 = vector.shape_cast %16 : vector<16xf32> to vector<16x1xf32>
    %cst_20 = arith.constant 6.000000e+00 : f32
    %18 = vector.broadcast %cst_20 : f32 to vector<16x1xf32>
    %19 = arith.divf %17, %18 : vector<16x1xf32>
    %20 = vector.broadcast %12 : vector<16x1xf32> to vector<16x6xf32>
    %21 = arith.subf %0, %20 : vector<16x6xf32>
    %cst_21 = arith.constant 9.99999974E-6 : f32
    %22 = vector.broadcast %cst_21 : f32 to vector<16x1xf32>
    %23 = arith.addf %19, %22 : vector<16x1xf32>
    %24 = math.rsqrt %23 : vector<16x1xf32>
    %25 = vector.broadcast %24 : vector<16x1xf32> to vector<16x6xf32>
    %26 = arith.mulf %21, %25 : vector<16x6xf32>
    %27 = vector.broadcast %2 : vector<1x6xf32> to vector<16x6xf32>
    %28 = arith.mulf %26, %27 : vector<16x6xf32>
    %29 = vector.broadcast %3 : vector<1x6xf32> to vector<16x6xf32>
    %30 = arith.addf %28, %29 : vector<16x6xf32>
    %31 = vector.extract_strided_slice %1 {offsets = [0, 0, 0], sizes = [1, 16, 3], strides = [1, 1, 1]} : vector<3x16x3xf32> to vector<1x16x3xf32>
    %32 = vector.shape_cast %31 : vector<1x16x3xf32> to vector<16x3xf32>
    %33 = vector.extract_strided_slice %1 {offsets = [0, 0, 0], sizes = [1, 16, 3], strides = [1, 1, 1]} : vector<3x16x3xf32> to vector<1x16x3xf32>
    %34 = vector.shape_cast %33 : vector<1x16x3xf32> to vector<16x3xf32>
    %35 = arith.mulf %32, %34 : vector<16x3xf32>
    %36 = vector.extract_strided_slice %1 {offsets = [1, 0, 0], sizes = [1, 16, 3], strides = [1, 1, 1]} : vector<3x16x3xf32> to vector<1x16x3xf32>
    %37 = vector.shape_cast %36 : vector<1x16x3xf32> to vector<16x3xf32>
    %38 = vector.extract_strided_slice %1 {offsets = [1, 0, 0], sizes = [1, 16, 3], strides = [1, 1, 1]} : vector<3x16x3xf32> to vector<1x16x3xf32>
    %39 = vector.shape_cast %38 : vector<1x16x3xf32> to vector<16x3xf32>
    %40 = arith.mulf %37, %39 : vector<16x3xf32>
    %41 = arith.addf %35, %40 : vector<16x3xf32>
    %42 = vector.extract_strided_slice %1 {offsets = [2, 0, 0], sizes = [1, 16, 3], strides = [1, 1, 1]} : vector<3x16x3xf32> to vector<1x16x3xf32>
    %43 = vector.shape_cast %42 : vector<1x16x3xf32> to vector<16x3xf32>
    %44 = vector.extract_strided_slice %1 {offsets = [2, 0, 0], sizes = [1, 16, 3], strides = [1, 1, 1]} : vector<3x16x3xf32> to vector<1x16x3xf32>
    %45 = vector.shape_cast %44 : vector<1x16x3xf32> to vector<16x3xf32>
    %46 = arith.mulf %43, %45 : vector<16x3xf32>
    %47 = arith.addf %41, %46 : vector<16x3xf32>
    %cst_22 = arith.constant 9.99999993E-9 : f32
    %48 = vector.broadcast %cst_22 : f32 to vector<16x3xf32>
    %49 = arith.maximumf %47, %48 : vector<16x3xf32>
    %cst_23 = arith.constant dense<0.000000e+00> : vector<16xf32>
    %50 = vector.multi_reduction <add>, %49, %cst_23 [1] : vector<16x3xf32> to vector<16xf32>
    %51 = vector.shape_cast %50 : vector<16xf32> to vector<16x1xf32>
    %cst_24 = arith.constant 3.000000e+00 : f32
    %52 = vector.broadcast %cst_24 : f32 to vector<16x1xf32>
    %53 = arith.divf %51, %52 : vector<16x1xf32>
    %54 = math.rsqrt %53 : vector<16x1xf32>
    %55 = vector.shape_cast %54 : vector<16x1xf32> to vector<1x16x1xf32>
    %56 = vector.broadcast %55 : vector<1x16x1xf32> to vector<3x16x3xf32>
    %57 = arith.mulf %1, %56 : vector<3x16x3xf32>
    %58 = vector.shape_cast %57 : vector<3x16x3xf32> to vector<48x3xf32>
    %cst_25 = arith.constant dense<0.000000e+00> : vector<48x4xf32>
    %59 = tpu.matmul %58, %4, %cst_25 {dimension_numbers = #tpu.dot_dimension_numbers<[1], [0], [0], [1], [0, 0, 1, 1], [], []>} : vector<48x3xf32>, vector<3x4xf32>, vector<48x4xf32> -> vector<48x4xf32>
    %60 = vector.shape_cast %59 : vector<48x4xf32> to vector<3x16x4xf32>
    %61 = vector.extract_strided_slice %60 {offsets = [0, 0, 0], sizes = [1, 16, 4], strides = [1, 1, 1]} : vector<3x16x4xf32> to vector<1x16x4xf32>
    %62 = vector.shape_cast %61 : vector<1x16x4xf32> to vector<16x4xf32>
    %63 = vector.extract_strided_slice %60 {offsets = [0, 0, 0], sizes = [1, 16, 4], strides = [1, 1, 1]} : vector<3x16x4xf32> to vector<1x16x4xf32>
    %64 = vector.shape_cast %63 : vector<1x16x4xf32> to vector<16x4xf32>
    %65 = arith.mulf %62, %64 : vector<16x4xf32>
    %66 = vector.extract_strided_slice %60 {offsets = [1, 0, 0], sizes = [1, 16, 4], strides = [1, 1, 1]} : vector<3x16x4xf32> to vector<1x16x4xf32>
    %67 = vector.shape_cast %66 : vector<1x16x4xf32> to vector<16x4xf32>
    %68 = vector.extract_strided_slice %60 {offsets = [1, 0, 0], sizes = [1, 16, 4], strides = [1, 1, 1]} : vector<3x16x4xf32> to vector<1x16x4xf32>
    %69 = vector.shape_cast %68 : vector<1x16x4xf32> to vector<16x4xf32>
    %70 = arith.mulf %67, %69 : vector<16x4xf32>
    %71 = arith.addf %65, %70 : vector<16x4xf32>
    %72 = vector.extract_strided_slice %60 {offsets = [2, 0, 0], sizes = [1, 16, 4], strides = [1, 1, 1]} : vector<3x16x4xf32> to vector<1x16x4xf32>
    %73 = vector.shape_cast %72 : vector<1x16x4xf32> to vector<16x4xf32>
    %74 = vector.extract_strided_slice %60 {offsets = [2, 0, 0], sizes = [1, 16, 4], strides = [1, 1, 1]} : vector<3x16x4xf32> to vector<1x16x4xf32>
    %75 = vector.shape_cast %74 : vector<1x16x4xf32> to vector<16x4xf32>
    %76 = arith.mulf %73, %75 : vector<16x4xf32>
    %77 = arith.addf %71, %76 : vector<16x4xf32>
    %cst_26 = arith.constant 9.99999993E-9 : f32
    %78 = vector.broadcast %cst_26 : f32 to vector<16x4xf32>
    %79 = arith.maximumf %77, %78 : vector<16x4xf32>
    %80 = math.sqrt %79 : vector<16x4xf32>
    %cst_27 = arith.constant dense<0.000000e+00> : vector<16x32xf32>
    %81 = tpu.matmul %30, %5, %cst_27 {dimension_numbers = #tpu.dot_dimension_numbers<[1], [0], [0], [1], [0, 0, 1, 1], [], []>} : vector<16x6xf32>, vector<6x32xf32>, vector<16x32xf32> -> vector<16x32xf32>
    %82 = vector.broadcast %7 : vector<1x32xf32> to vector<16x32xf32>
    %83 = arith.addf %82, %81 : vector<16x32xf32>
    %cst_28 = arith.constant dense<0.000000e+00> : vector<16x32xf32>
    %84 = tpu.matmul %80, %6, %cst_28 {dimension_numbers = #tpu.dot_dimension_numbers<[1], [0], [0], [1], [0, 0, 1, 1], [], []>} : vector<16x4xf32>, vector<4x32xf32>, vector<16x32xf32> -> vector<16x32xf32>
    %85 = arith.addf %83, %84 : vector<16x32xf32>
    %86 = vector.shape_cast %60 : vector<3x16x4xf32> to vector<48x4xf32>
    %cst_29 = arith.constant dense<0.000000e+00> : vector<48x4xf32>
    %87 = tpu.matmul %86, %8, %cst_29 {dimension_numbers = #tpu.dot_dimension_numbers<[1], [0], [0], [1], [0, 0, 1, 1], [], []>} : vector<48x4xf32>, vector<4x4xf32>, vector<48x4xf32> -> vector<48x4xf32>
    %88 = vector.shape_cast %87 : vector<48x4xf32> to vector<3x16x4xf32>
    %c0_30 = arith.constant 0 : index
    %c0_31 = arith.constant 0 : index
    %89 = vector.load %arg10[%c0_30, %c0_31] : memref<16x32xf32, #tpu.memory_space<vmem>>, vector<16x32xf32>
    tpu.vector_store %arg10[%c0_30, %c0_31], %85 {strides = array<i32>} : memref<16x32xf32, #tpu.memory_space<vmem>>, vector<16x32xf32>,
    %c0_32 = arith.constant 0 : index
    %c0_33 = arith.constant 0 : index
    %c0_34 = arith.constant 0 : index
    %90 = vector.load %arg11[%c0_32, %c0_33, %c0_34] : memref<3x16x4xf32, #tpu.memory_space<vmem>>, vector<3x16x4xf32>
    tpu.vector_store %arg11[%c0_32, %c0_33, %c0_34], %88 {strides = array<i32>} : memref<3x16x4xf32, #tpu.memory_space<vmem>>, vector<3x16x4xf32>,
    return
  }
  func.func @transform_0(%arg0: i32) -> (i32, i32) {
    %c0_i32 = arith.constant 0 : i32
    %c0_i32_0 = arith.constant 0 : i32
    return %arg0, %c0_i32 : i32, i32
  }
  func.func @transform_1(%arg0: i32) -> (i32, i32, i32) {
    %c0_i32 = arith.constant 0 : i32
    %c0_i32_0 = arith.constant 0 : i32
    %c0_i32_1 = arith.constant 0 : i32
    return %c0_i32, %arg0, %c0_i32_0 : i32, i32, i32
  }
  func.func @transform_2(%arg0: i32) -> (i32, i32) {
    %c0_i32 = arith.constant 0 : i32
    %c0_i32_0 = arith.constant 0 : i32
    %c0_i32_1 = arith.constant 0 : i32
    return %c0_i32, %c0_i32_0 : i32, i32
  }
  func.func @transform_3(%arg0: i32) -> (i32, i32) {
    %c0_i32 = arith.constant 0 : i32
    %c0_i32_0 = arith.constant 0 : i32
    %c0_i32_1 = arith.constant 0 : i32
    return %c0_i32, %c0_i32_0 : i32, i32
  }
  func.func @transform_4(%arg0: i32) -> (i32, i32) {
    %c0_i32 = arith.constant 0 : i32
    %c0_i32_0 = arith.constant 0 : i32
    %c0_i32_1 = arith.constant 0 : i32
    return %c0_i32, %c0_i32_0 : i32, i32
  }
  func.func @transform_5(%arg0: i32) -> (i32, i32) {
    %c0_i32 = arith.constant 0 : i32
    %c0_i32_0 = arith.constant 0 : i32
    %c0_i32_1 = arith.constant 0 : i32
    return %c0_i32, %c0_i32_0 : i32, i32
  }
  func.func @transform_6(%arg0: i32) -> (i32, i32) {
    %c0_i32 = arith.constant 0 : i32
    %c0_i32_0 = arith.constant 0 : i32
    %c0_i32_1 = arith.constant 0 : i32
    return %c0_i32, %c0_i32_0 : i32, i32
  }
  func.func @transform_7(%arg0: i32) -> (i32, i32) {
    %c0_i32 = arith.constant 0 : i32
    %c0_i32_0 = arith.constant 0 : i32
    %c0_i32_1 = arith.constant 0 : i32
    return %c0_i32, %c0_i32_0 : i32, i32
  }
  func.func @transform_8(%arg0: i32) -> (i32, i32) {
    %c0_i32 = arith.constant 0 : i32
    %c0_i32_0 = arith.constant 0 : i32
    %c0_i32_1 = arith.constant 0 : i32
    return %c0_i32, %c0_i32_0 : i32, i32
  }
  func.func @transform_9(%arg0: i32) -> (i32, i32) {
    %c0_i32 = arith.constant 0 : i32
    %c0_i32_0 = arith.constant 0 : i32
    return %arg0, %c0_i32 : i32, i32
  }
  func.func @transform_10(%arg0: i32) -> (i32, i32, i32) {
    %c0_i32 = arith.constant 0 : i32
    %c0_i32_0 = arith.constant 0 : i32
    %c0_i32_1 = arith.constant 0 : i32
    return %c0_i32, %arg0, %c0_i32_0 : i32, i32, i32
  }
}

module attributes {stable_mosaic.version = 11 : i64} {
  func.func @kernel(%arg0: i32, %arg1: memref<24x8xf32, #tpu.memory_space<vmem>>, %arg2: memref<3x24x1xf32, #tpu.memory_space<vmem>>, %arg3: memref<1x8xf32, #tpu.memory_space<vmem>>, %arg4: memref<1x8xf32, #tpu.memory_space<vmem>>, %arg5: memref<1x2xf32, #tpu.memory_space<vmem>>, %arg6: memref<8x16xf32, #tpu.memory_space<vmem>>, %arg7: memref<2x16xf32, #tpu.memory_space<vmem>>, %arg8: memref<1x16xf32, #tpu.memory_space<vmem>>, %arg9: memref<2x2xf32, #tpu.memory_space<vmem>>, %arg10: memref<24x16xf32, #tpu.memory_space<vmem>>, %arg11: memref<3x24x2xf32, #tpu.memory_space<vmem>>) attributes {dimension_semantics = [#tpu.dimension_semantics<parallel>], iteration_bounds = array<i64: 1>, scalar_prefetch = 0 : i64, scratch_operands = 0 : i64, tpu.core_type = #tpu.core_type<tc>, window_params = [{transform_indices = @transform_0, window_bounds = array<i64: 24, 8>}, {transform_indices = @transform_1, window_bounds = array<i64: 3, 24, 1>}, {pipeline_mode = #tpu.pipeline_mode<synchronous>, transform_indices = @transform_2, window_bounds = array<i64: 1, 8>}, {pipeline_mode = #tpu.pipeline_mode<synchronous>, transform_indices = @transform_3, window_bounds = array<i64: 1, 8>}, {pipeline_mode = #tpu.pipeline_mode<synchronous>, transform_indices = @transform_4, window_bounds = array<i64: 1, 2>}, {pipeline_mode = #tpu.pipeline_mode<synchronous>, transform_indices = @transform_5, window_bounds = array<i64: 8, 16>}, {pipeline_mode = #tpu.pipeline_mode<synchronous>, transform_indices = @transform_6, window_bounds = array<i64: 2, 16>}, {pipeline_mode = #tpu.pipeline_mode<synchronous>, transform_indices = @transform_7, window_bounds = array<i64: 1, 16>}, {pipeline_mode = #tpu.pipeline_mode<synchronous>, transform_indices = @transform_8, window_bounds = array<i64: 2, 2>}, {transform_indices = @transform_9, window_bounds = array<i64: 24, 16>}, {transform_indices = @transform_10, window_bounds = array<i64: 3, 24, 2>}]} {
    %c0 = arith.constant 0 : index
    %c0_0 = arith.constant 0 : index
    %0 = vector.load %arg1[%c0, %c0_0] : memref<24x8xf32, #tpu.memory_space<vmem>>, vector<24x8xf32>
    %c0_1 = arith.constant 0 : index
    %c0_2 = arith.constant 0 : index
    %c0_3 = arith.constant 0 : index
    %1 = vector.load %arg2[%c0_1, %c0_2, %c0_3] : memref<3x24x1xf32, #tpu.memory_space<vmem>>, vector<3x24x1xf32>
    %c0_4 = arith.constant 0 : index
    %c0_5 = arith.constant 0 : index
    %2 = vector.load %arg3[%c0_4, %c0_5] : memref<1x8xf32, #tpu.memory_space<vmem>>, vector<1x8xf32>
    %c0_6 = arith.constant 0 : index
    %c0_7 = arith.constant 0 : index
    %3 = vector.load %arg4[%c0_6, %c0_7] : memref<1x8xf32, #tpu.memory_space<vmem>>, vector<1x8xf32>
    %c0_8 = arith.constant 0 : index
    %c0_9 = arith.constant 0 : index
    %4 = vector.load %arg5[%c0_8, %c0_9] : memref<1x2xf32, #tpu.memory_space<vmem>>, vector<1x2xf32>
    %c0_10 = arith.constant 0 : index
    %c0_11 = arith.constant 0 : index
    %5 = vector.load %arg6[%c0_10, %c0_11] : memref<8x16xf32, #tpu.memory_space<vmem>>, vector<8x16xf32>
    %c0_12 = arith.constant 0 : index
    %c0_13 = arith.constant 0 : index
    %6 = vector.load %arg7[%c0_12, %c0_13] : memref<2x16xf32, #tpu.memory_space<vmem>>, vector<2x16xf32>
    %c0_14 = arith.constant 0 : index
    %c0_15 = arith.constant 0 : index
    %7 = vector.load %arg8[%c0_14, %c0_15] : memref<1x16xf32, #tpu.memory_space<vmem>>, vector<1x16xf32>
    %c0_16 = arith.constant 0 : index
    %c0_17 = arith.constant 0 : index
    %8 = vector.load %arg9[%c0_16, %c0_17] : memref<2x2xf32, #tpu.memory_space<vmem>>, vector<2x2xf32>
    %cst = arith.constant dense<0.000000e+00> : vector<24xf32>
    %9 = vector.multi_reduction <add>, %0, %cst [1] : vector<24x8xf32> to vector<24xf32>
    %10 = vector.shape_cast %9 : vector<24xf32> to vector<24x1xf32>
    %cst_18 = arith.constant 8.000000e+00 : f32
    %11 = vector.broadcast %cst_18 : f32 to vector<24x1xf32>
    %12 = arith.divf %10, %11 : vector<24x1xf32>
    %13 = vector.broadcast %12 : vector<24x1xf32> to vector<24x8xf32>
    %14 = arith.subf %0, %13 : vector<24x8xf32>
    %15 = arith.mulf %14, %14 : vector<24x8xf32>
    %cst_19 = arith.constant dense<0.000000e+00> : vector<24xf32>
    %16 = vector.multi_reduction <add>, %15, %cst_19 [1] : vector<24x8xf32> to vector<24xf32>
    %17 = vector.shape_cast %16 : vector<24xf32> to vector<24x1xf32>
    %cst_20 = arith.constant 8.000000e+00 : f32
    %18 = vector.broadcast %cst_20 : f32 to vector<24x1xf32>
    %19 = arith.divf %17, %18 : vector<24x1xf32>
    %20 = vector.broadcast %12 : vector<24x1xf32> to vector<24x8xf32>
    %21 = arith.subf %0, %20 : vector<24x8xf32>
    %cst_21 = arith.constant 9.99999974E-6 : f32
    %22 = vector.broadcast %cst_21 : f32 to vector<24x1xf32>
    %23 = arith.addf %19, %22 : vector<24x1xf32>
    %24 = math.rsqrt %23 : vector<24x1xf32>
    %25 = vector.broadcast %24 : vector<24x1xf32> to vector<24x8xf32>
    %26 = arith.mulf %21, %25 : vector<24x8xf32>
    %27 = vector.broadcast %2 : vector<1x8xf32> to vector<24x8xf32>
    %28 = arith.mulf %26, %27 : vector<24x8xf32>
    %29 = vector.broadcast %3 : vector<1x8xf32> to vector<24x8xf32>
    %30 = arith.addf %28, %29 : vector<24x8xf32>
    %31 = vector.extract_strided_slice %1 {offsets = [0, 0, 0], sizes = [1, 24, 1], strides = [1, 1, 1]} : vector<3x24x1xf32> to vector<1x24x1xf32>
    %32 = vector.shape_cast %31 : vector<1x24x1xf32> to vector<24x1xf32>
    %33 = vector.extract_strided_slice %1 {offsets = [0, 0, 0], sizes = [1, 24, 1], strides = [1, 1, 1]} : vector<3x24x1xf32> to vector<1x24x1xf32>
    %34 = vector.shape_cast %33 : vector<1x24x1xf32> to vector<24x1xf32>
    %35 = arith.mulf %32, %34 : vector<24x1xf32>
    %36 = vector.extract_strided_slice %1 {offsets = [1, 0, 0], sizes = [1, 24, 1], strides = [1, 1, 1]} : vector<3x24x1xf32> to vector<1x24x1xf32>
    %37 = vector.shape_cast %36 : vector<1x24x1xf32> to vector<24x1xf32>
    %38 = vector.extract_strided_slice %1 {offsets = [1, 0, 0], sizes = [1, 24, 1], strides = [1, 1, 1]} : vector<3x24x1xf32> to vector<1x24x1xf32>
    %39 = vector.shape_cast %38 : vector<1x24x1xf32> to vector<24x1xf32>
    %40 = arith.mulf %37, %39 : vector<24x1xf32>
    %41 = arith.addf %35, %40 : vector<24x1xf32>
    %42 = vector.extract_strided_slice %1 {offsets = [2, 0, 0], sizes = [1, 24, 1], strides = [1, 1, 1]} : vector<3x24x1xf32> to vector<1x24x1xf32>
    %43 = vector.shape_cast %42 : vector<1x24x1xf32> to vector<24x1xf32>
    %44 = vector.extract_strided_slice %1 {offsets = [2, 0, 0], sizes = [1, 24, 1], strides = [1, 1, 1]} : vector<3x24x1xf32> to vector<1x24x1xf32>
    %45 = vector.shape_cast %44 : vector<1x24x1xf32> to vector<24x1xf32>
    %46 = arith.mulf %43, %45 : vector<24x1xf32>
    %47 = arith.addf %41, %46 : vector<24x1xf32>
    %cst_22 = arith.constant 9.99999993E-9 : f32
    %48 = vector.broadcast %cst_22 : f32 to vector<24x1xf32>
    %49 = arith.maximumf %47, %48 : vector<24x1xf32>
    %cst_23 = arith.constant dense<0.000000e+00> : vector<24xf32>
    %50 = vector.multi_reduction <add>, %49, %cst_23 [1] : vector<24x1xf32> to vector<24xf32>
    %51 = vector.shape_cast %50 : vector<24xf32> to vector<24x1xf32>
    %cst_24 = arith.constant 1.000000e+00 : f32
    %52 = vector.broadcast %cst_24 : f32 to vector<24x1xf32>
    %53 = arith.divf %51, %52 : vector<24x1xf32>
    %54 = math.rsqrt %53 : vector<24x1xf32>
    %55 = vector.shape_cast %54 : vector<24x1xf32> to vector<1x24x1xf32>
    %56 = vector.broadcast %55 : vector<1x24x1xf32> to vector<3x24x1xf32>
    %57 = arith.mulf %1, %56 : vector<3x24x1xf32>
    %58 = vector.shape_cast %57 : vector<3x24x1xf32> to vector<72x1xf32>
    %cst_25 = arith.constant dense<0.000000e+00> : vector<72x2xf32>
    %59 = tpu.matmul %58, %4, %cst_25 {dimension_numbers = #tpu.dot_dimension_numbers<[1], [0], [0], [1], [0, 0, 1, 1], [], []>} : vector<72x1xf32>, vector<1x2xf32>, vector<72x2xf32> -> vector<72x2xf32>
    %60 = vector.shape_cast %59 : vector<72x2xf32> to vector<3x24x2xf32>
    %61 = vector.extract_strided_slice %60 {offsets = [0, 0, 0], sizes = [1, 24, 2], strides = [1, 1, 1]} : vector<3x24x2xf32> to vector<1x24x2xf32>
    %62 = vector.shape_cast %61 : vector<1x24x2xf32> to vector<24x2xf32>
    %63 = vector.extract_strided_slice %60 {offsets = [0, 0, 0], sizes = [1, 24, 2], strides = [1, 1, 1]} : vector<3x24x2xf32> to vector<1x24x2xf32>
    %64 = vector.shape_cast %63 : vector<1x24x2xf32> to vector<24x2xf32>
    %65 = arith.mulf %62, %64 : vector<24x2xf32>
    %66 = vector.extract_strided_slice %60 {offsets = [1, 0, 0], sizes = [1, 24, 2], strides = [1, 1, 1]} : vector<3x24x2xf32> to vector<1x24x2xf32>
    %67 = vector.shape_cast %66 : vector<1x24x2xf32> to vector<24x2xf32>
    %68 = vector.extract_strided_slice %60 {offsets = [1, 0, 0], sizes = [1, 24, 2], strides = [1, 1, 1]} : vector<3x24x2xf32> to vector<1x24x2xf32>
    %69 = vector.shape_cast %68 : vector<1x24x2xf32> to vector<24x2xf32>
    %70 = arith.mulf %67, %69 : vector<24x2xf32>
    %71 = arith.addf %65, %70 : vector<24x2xf32>
    %72 = vector.extract_strided_slice %60 {offsets = [2, 0, 0], sizes = [1, 24, 2], strides = [1, 1, 1]} : vector<3x24x2xf32> to vector<1x24x2xf32>
    %73 = vector.shape_cast %72 : vector<1x24x2xf32> to vector<24x2xf32>
    %74 = vector.extract_strided_slice %60 {offsets = [2, 0, 0], sizes = [1, 24, 2], strides = [1, 1, 1]} : vector<3x24x2xf32> to vector<1x24x2xf32>
    %75 = vector.shape_cast %74 : vector<1x24x2xf32> to vector<24x2xf32>
    %76 = arith.mulf %73, %75 : vector<24x2xf32>
    %77 = arith.addf %71, %76 : vector<24x2xf32>
    %cst_26 = arith.constant 9.99999993E-9 : f32
    %78 = vector.broadcast %cst_26 : f32 to vector<24x2xf32>
    %79 = arith.maximumf %77, %78 : vector<24x2xf32>
    %80 = math.sqrt %79 : vector<24x2xf32>
    %cst_27 = arith.constant dense<0.000000e+00> : vector<24x16xf32>
    %81 = tpu.matmul %30, %5, %cst_27 {dimension_numbers = #tpu.dot_dimension_numbers<[1], [0], [0], [1], [0, 0, 1, 1], [], []>} : vector<24x8xf32>, vector<8x16xf32>, vector<24x16xf32> -> vector<24x16xf32>
    %82 = vector.broadcast %7 : vector<1x16xf32> to vector<24x16xf32>
    %83 = arith.addf %82, %81 : vector<24x16xf32>
    %cst_28 = arith.constant dense<0.000000e+00> : vector<24x16xf32>
    %84 = tpu.matmul %80, %6, %cst_28 {dimension_numbers = #tpu.dot_dimension_numbers<[1], [0], [0], [1], [0, 0, 1, 1], [], []>} : vector<24x2xf32>, vector<2x16xf32>, vector<24x16xf32> -> vector<24x16xf32>
    %85 = arith.addf %83, %84 : vector<24x16xf32>
    %86 = vector.shape_cast %60 : vector<3x24x2xf32> to vector<72x2xf32>
    %cst_29 = arith.constant dense<0.000000e+00> : vector<72x2xf32>
    %87 = tpu.matmul %86, %8, %cst_29 {dimension_numbers = #tpu.dot_dimension_numbers<[1], [0], [0], [1], [0, 0, 1, 1], [], []>} : vector<72x2xf32>, vector<2x2xf32>, vector<72x2xf32> -> vector<72x2xf32>
    %88 = vector.shape_cast %87 : vector<72x2xf32> to vector<3x24x2xf32>
    %c0_30 = arith.constant 0 : index
    %c0_31 = arith.constant 0 : index
    %89 = vector.load %arg10[%c0_30, %c0_31] : memref<24x16xf32, #tpu.memory_space<vmem>>, vector<24x16xf32>
    tpu.vector_store %arg10[%c0_30, %c0_31], %85 {strides = array<i32>} : memref<24x16xf32, #tpu.memory_space<vmem>>, vector<24x16xf32>,
    %c0_32 = arith.constant 0 : index
    %c0_33 = arith.constant 0 : index
    %c0_34 = arith.constant 0 : index
    %90 = vector.load %arg11[%c0_32, %c0_33, %c0_34] : memref<3x24x2xf32, #tpu.memory_space<vmem>>, vector<3x24x2xf32>
    tpu.vector_store %arg11[%c0_32, %c0_33, %c0_34], %88 {strides = array<i32>} : memref<3x24x2xf32, #tpu.memory_space<vmem>>, vector<3x24x2xf32>,
    return
  }
  func.func @transform_0(%arg0: i32) -> (i32, i32) {
    %c0_i32 = arith.constant 0 : i32
    %c0_i32_0 = arith.constant 0 : i32
    return %arg0, %c0_i32 : i32, i32
  }
  func.func @transform_1(%arg0: i32) -> (i32, i32, i32) {
    %c0_i32 = arith.constant 0 : i32
    %c0_i32_0 = arith.constant 0 : i32
    %c0_i32_1 = arith.constant 0 : i32
    return %c0_i32, %arg0, %c0_i32_0 : i32, i32, i32
  }
  func.func @transform_2(%arg0: i32) -> (i32, i32) {
    %c0_i32 = arith.constant 0 : i32
    %c0_i32_0 = arith.constant 0 : i32
    %c0_i32_1 = arith.constant 0 : i32
    return %c0_i32, %c0_i32_0 : i32, i32
  }
  func.func @transform_3(%arg0: i32) -> (i32, i32) {
    %c0_i32 = arith.constant 0 : i32
    %c0_i32_0 = arith.constant 0 : i32
    %c0_i32_1 = arith.constant 0 : i32
    return %c0_i32, %c0_i32_0 : i32, i32
  }
  func.func @transform_4(%arg0: i32) -> (i32, i32) {
    %c0_i32 = arith.constant 0 : i32
    %c0_i32_0 = arith.constant 0 : i32
    %c0_i32_1 = arith.constant 0 : i32
    return %c0_i32, %c0_i32_0 : i32, i32
  }
  func.func @transform_5(%arg0: i32) -> (i32, i32) {
    %c0_i32 = arith.constant 0 : i32
    %c0_i32_0 = arith.constant 0 : i32
    %c0_i32_1 = arith.constant 0 : i32
    return %c0_i32, %c0_i32_0 : i32, i32
  }
  func.func @transform_6(%arg0: i32) -> (i32, i32) {
    %c0_i32 = arith.constant 0 : i32
    %c0_i32_0 = arith.constant 0 : i32
    %c0_i32_1 = arith.constant 0 : i32
    return %c0_i32, %c0_i32_0 : i32, i32
  }
  func.func @transform_7(%arg0: i32) -> (i32, i32) {
    %c0_i32 = arith.constant 0 : i32
    %c0_i32_0 = arith.constant 0 : i32
    %c0_i32_1 = arith.constant 0 : i32
    return %c0_i32, %c0_i32_0 : i32, i32
  }
  func.func @transform_8(%arg0: i32) -> (i32, i32) {
    %c0_i32 = arith.constant 0 : i32
    %c0_i32_0 = arith.constant 0 : i32
    %c0_i32_1 = arith.constant 0 : i32
    return %c0_i32, %c0_i32_0 : i32, i32
  }
  func.func @transform_9(%arg0: i32) -> (i32, i32) {
    %c0_i32 = arith.constant 0 : i32
    %c0_i32_0 = arith.constant 0 : i32
    return %arg0, %c0_i32 : i32, i32
  }
  func.func @transform_10(%arg0: i32) -> (i32, i32, i32) {
    %c0_i32 = arith.constant 0 : i32
    %c0_i32_0 = arith.constant 0 : i32
    %c0_i32_1 = arith.constant 0 : i32
    return %c0_i32, %arg0, %c0_i32_0 : i32, i32, i32
  }
}

module attributes {stable_mosaic.version = 11 : i64} {
  func.func @kernel(%arg0: i32, %arg1: memref<24x32xf32, #tpu.memory_space<vmem>>, %arg2: memref<24x16xf32, #tpu.memory_space<vmem>>, %arg3: memref<24x32xf32, #tpu.memory_space<vmem>>, %arg4: memref<3x24x4xf32, #tpu.memory_space<vmem>>, %arg5: memref<3x24x2xf32, #tpu.memory_space<vmem>>, %arg6: memref<3x24x4xf32, #tpu.memory_space<vmem>>, %arg7: memref<4x10xf32, #tpu.memory_space<vmem>>, %arg8: memref<2x10xf32, #tpu.memory_space<vmem>>, %arg9: memref<4x10xf32, #tpu.memory_space<vmem>>, %arg10: memref<32x32xf32, #tpu.memory_space<vmem>>, %arg11: memref<16x32xf32, #tpu.memory_space<vmem>>, %arg12: memref<32x32xf32, #tpu.memory_space<vmem>>, %arg13: memref<10x32xf32, #tpu.memory_space<vmem>>, %arg14: memref<1x32xf32, #tpu.memory_space<vmem>>, %arg15: memref<10x4xf32, #tpu.memory_space<vmem>>, %arg16: memref<4x4xf32, #tpu.memory_space<vmem>>, %arg17: memref<32x32xf32, #tpu.memory_space<vmem>>, %arg18: memref<4x32xf32, #tpu.memory_space<vmem>>, %arg19: memref<1x32xf32, #tpu.memory_space<vmem>>, %arg20: memref<4x4xf32, #tpu.memory_space<vmem>>, %arg21: memref<4x4xf32, #tpu.memory_space<vmem>>, %arg22: memref<32x32xf32, #tpu.memory_space<vmem>>, %arg23: memref<4x32xf32, #tpu.memory_space<vmem>>, %arg24: memref<1x32xf32, #tpu.memory_space<vmem>>, %arg25: memref<4x4xf32, #tpu.memory_space<vmem>>, %arg26: memref<24x32xf32, #tpu.memory_space<vmem>>, %arg27: memref<3x24x4xf32, #tpu.memory_space<vmem>>) attributes {dimension_semantics = [#tpu.dimension_semantics<parallel>], iteration_bounds = array<i64: 1>, scalar_prefetch = 0 : i64, scratch_operands = 0 : i64, tpu.core_type = #tpu.core_type<tc>, window_params = [{transform_indices = @transform_0, window_bounds = array<i64: 24, 32>}, {transform_indices = @transform_1, window_bounds = array<i64: 24, 16>}, {transform_indices = @transform_2, window_bounds = array<i64: 24, 32>}, {transform_indices = @transform_3, window_bounds = array<i64: 3, 24, 4>}, {transform_indices = @transform_4, window_bounds = array<i64: 3, 24, 2>}, {transform_indices = @transform_5, window_bounds = array<i64: 3, 24, 4>}, {pipeline_mode = #tpu.pipeline_mode<synchronous>, transform_indices = @transform_6, window_bounds = array<i64: 4, 10>}, {pipeline_mode = #tpu.pipeline_mode<synchronous>, transform_indices = @transform_7, window_bounds = array<i64: 2, 10>}, {pipeline_mode = #tpu.pipeline_mode<synchronous>, transform_indices = @transform_8, window_bounds = array<i64: 4, 10>}, {pipeline_mode = #tpu.pipeline_mode<synchronous>, transform_indices = @transform_9, window_bounds = array<i64: 32, 32>}, {pipeline_mode = #tpu.pipeline_mode<synchronous>, transform_indices = @transform_10, window_bounds = array<i64: 16, 32>}, {pipeline_mode = #tpu.pipeline_mode<synchronous>, transform_indices = @transform_11, window_bounds = array<i64: 32, 32>}, {pipeline_mode = #tpu.pipeline_mode<synchronous>, transform_indices = @transform_12, window_bounds = array<i64: 10, 32>}, {pipeline_mode = #tpu.pipeline_mode<synchronous>, transform_indices = @transform_13, window_bounds = array<i64: 1, 32>}, {pipeline_mode = #tpu.pipeline_mode<synchronous>, transform_indices = @transform_14, window_bounds = array<i64: 10, 4>}, {pipeline_mode = #tpu.pipeline_mode<synchronous>, transform_indices = @transform_15, window_bounds = array<i64: 4, 4>}, {pipeline_mode = #tpu.pipeline_mode<synchronous>, transform_indices = @transform_16, window_bounds = array<i64: 32, 32>}, {pipeline_mode = #tpu.pipeline_mode<synchronous>, transform_indices = @transform_17, window_bounds = array<i64: 4, 32>}, {pipeline_mode = #tpu.pipeline_mode<synchronous>, transform_indices = @transform_18, window_bounds = array<i64: 1, 32>}, {pipeline_mode = #tpu.pipeline_mode<synchronous>, transform_indices = @transform_19, window_bounds = array<i64: 4, 4>}, {pipeline_mode = #tpu.pipeline_mode<synchronous>, transform_indices = @transform_20, window_bounds = array<i64: 4, 4>}, {pipeline_mode = #tpu.pipeline_mode<synchronous>, transform_indices = @transform_21, window_bounds = array<i64: 32, 32>}, {pipeline_mode = #tpu.pipeline_mode<synchronous>, transform_indices = @transform_22, window_bounds = array<i64: 4, 32>}, {pipeline_mode = #tpu.pipeline_mode<synchronous>, transform_indices = @transform_23, window_bounds = array<i64: 1, 32>}, {pipeline_mode = #tpu.pipeline_mode<synchronous>, transform_indices = @transform_24, window_bounds = array<i64: 4, 4>}, {transform_indices = @transform_25, window_bounds = array<i64: 24, 32>}, {transform_indices = @transform_26, window_bounds = array<i64: 3, 24, 4>}]} {
    %c0 = arith.constant 0 : index
    %c0_0 = arith.constant 0 : index
    %0 = vector.load %arg1[%c0, %c0_0] : memref<24x32xf32, #tpu.memory_space<vmem>>, vector<24x32xf32>
    %c0_1 = arith.constant 0 : index
    %c0_2 = arith.constant 0 : index
    %1 = vector.load %arg2[%c0_1, %c0_2] : memref<24x16xf32, #tpu.memory_space<vmem>>, vector<24x16xf32>
    %c0_3 = arith.constant 0 : index
    %c0_4 = arith.constant 0 : index
    %2 = vector.load %arg3[%c0_3, %c0_4] : memref<24x32xf32, #tpu.memory_space<vmem>>, vector<24x32xf32>
    %c0_5 = arith.constant 0 : index
    %c0_6 = arith.constant 0 : index
    %c0_7 = arith.constant 0 : index
    %3 = vector.load %arg4[%c0_5, %c0_6, %c0_7] : memref<3x24x4xf32, #tpu.memory_space<vmem>>, vector<3x24x4xf32>
    %c0_8 = arith.constant 0 : index
    %c0_9 = arith.constant 0 : index
    %c0_10 = arith.constant 0 : index
    %4 = vector.load %arg5[%c0_8, %c0_9, %c0_10] : memref<3x24x2xf32, #tpu.memory_space<vmem>>, vector<3x24x2xf32>
    %c0_11 = arith.constant 0 : index
    %c0_12 = arith.constant 0 : index
    %c0_13 = arith.constant 0 : index
    %5 = vector.load %arg6[%c0_11, %c0_12, %c0_13] : memref<3x24x4xf32, #tpu.memory_space<vmem>>, vector<3x24x4xf32>
    %c0_14 = arith.constant 0 : index
    %c0_15 = arith.constant 0 : index
    %6 = vector.load %arg7[%c0_14, %c0_15] : memref<4x10xf32, #tpu.memory_space<vmem>>, vector<4x10xf32>
    %c0_16 = arith.constant 0 : index
    %c0_17 = arith.constant 0 : index
    %7 = vector.load %arg8[%c0_16, %c0_17] : memref<2x10xf32, #tpu.memory_space<vmem>>, vector<2x10xf32>
    %c0_18 = arith.constant 0 : index
    %c0_19 = arith.constant 0 : index
    %8 = vector.load %arg9[%c0_18, %c0_19] : memref<4x10xf32, #tpu.memory_space<vmem>>, vector<4x10xf32>
    %c0_20 = arith.constant 0 : index
    %c0_21 = arith.constant 0 : index
    %9 = vector.load %arg10[%c0_20, %c0_21] : memref<32x32xf32, #tpu.memory_space<vmem>>, vector<32x32xf32>
    %c0_22 = arith.constant 0 : index
    %c0_23 = arith.constant 0 : index
    %10 = vector.load %arg11[%c0_22, %c0_23] : memref<16x32xf32, #tpu.memory_space<vmem>>, vector<16x32xf32>
    %c0_24 = arith.constant 0 : index
    %c0_25 = arith.constant 0 : index
    %11 = vector.load %arg12[%c0_24, %c0_25] : memref<32x32xf32, #tpu.memory_space<vmem>>, vector<32x32xf32>
    %c0_26 = arith.constant 0 : index
    %c0_27 = arith.constant 0 : index
    %12 = vector.load %arg13[%c0_26, %c0_27] : memref<10x32xf32, #tpu.memory_space<vmem>>, vector<10x32xf32>
    %c0_28 = arith.constant 0 : index
    %c0_29 = arith.constant 0 : index
    %13 = vector.load %arg14[%c0_28, %c0_29] : memref<1x32xf32, #tpu.memory_space<vmem>>, vector<1x32xf32>
    %c0_30 = arith.constant 0 : index
    %c0_31 = arith.constant 0 : index
    %14 = vector.load %arg15[%c0_30, %c0_31] : memref<10x4xf32, #tpu.memory_space<vmem>>, vector<10x4xf32>
    %c0_32 = arith.constant 0 : index
    %c0_33 = arith.constant 0 : index
    %15 = vector.load %arg16[%c0_32, %c0_33] : memref<4x4xf32, #tpu.memory_space<vmem>>, vector<4x4xf32>
    %c0_34 = arith.constant 0 : index
    %c0_35 = arith.constant 0 : index
    %16 = vector.load %arg17[%c0_34, %c0_35] : memref<32x32xf32, #tpu.memory_space<vmem>>, vector<32x32xf32>
    %c0_36 = arith.constant 0 : index
    %c0_37 = arith.constant 0 : index
    %17 = vector.load %arg18[%c0_36, %c0_37] : memref<4x32xf32, #tpu.memory_space<vmem>>, vector<4x32xf32>
    %c0_38 = arith.constant 0 : index
    %c0_39 = arith.constant 0 : index
    %18 = vector.load %arg19[%c0_38, %c0_39] : memref<1x32xf32, #tpu.memory_space<vmem>>, vector<1x32xf32>
    %c0_40 = arith.constant 0 : index
    %c0_41 = arith.constant 0 : index
    %19 = vector.load %arg20[%c0_40, %c0_41] : memref<4x4xf32, #tpu.memory_space<vmem>>, vector<4x4xf32>
    %c0_42 = arith.constant 0 : index
    %c0_43 = arith.constant 0 : index
    %20 = vector.load %arg21[%c0_42, %c0_43] : memref<4x4xf32, #tpu.memory_space<vmem>>, vector<4x4xf32>
    %c0_44 = arith.constant 0 : index
    %c0_45 = arith.constant 0 : index
    %21 = vector.load %arg22[%c0_44, %c0_45] : memref<32x32xf32, #tpu.memory_space<vmem>>, vector<32x32xf32>
    %c0_46 = arith.constant 0 : index
    %c0_47 = arith.constant 0 : index
    %22 = vector.load %arg23[%c0_46, %c0_47] : memref<4x32xf32, #tpu.memory_space<vmem>>, vector<4x32xf32>
    %c0_48 = arith.constant 0 : index
    %c0_49 = arith.constant 0 : index
    %23 = vector.load %arg24[%c0_48, %c0_49] : memref<1x32xf32, #tpu.memory_space<vmem>>, vector<1x32xf32>
    %c0_50 = arith.constant 0 : index
    %c0_51 = arith.constant 0 : index
    %24 = vector.load %arg25[%c0_50, %c0_51] : memref<4x4xf32, #tpu.memory_space<vmem>>, vector<4x4xf32>
    %25 = vector.shape_cast %3 : vector<3x24x4xf32> to vector<72x4xf32>
    %cst = arith.constant dense<0.000000e+00> : vector<72x10xf32>
    %26 = tpu.matmul %25, %6, %cst {dimension_numbers = #tpu.dot_dimension_numbers<[1], [0], [0], [1], [0, 0, 1, 1], [], []>} : vector<72x4xf32>, vector<4x10xf32>, vector<72x10xf32> -> vector<72x10xf32>
    %27 = vector.shape_cast %26 : vector<72x10xf32> to vector<3x24x10xf32>
    %28 = vector.shape_cast %4 : vector<3x24x2xf32> to vector<72x2xf32>
    %cst_52 = arith.constant dense<0.000000e+00> : vector<72x10xf32>
    %29 = tpu.matmul %28, %7, %cst_52 {dimension_numbers = #tpu.dot_dimension_numbers<[1], [0], [0], [1], [0, 0, 1, 1], [], []>} : vector<72x2xf32>, vector<2x10xf32>, vector<72x10xf32> -> vector<72x10xf32>
    %30 = vector.shape_cast %29 : vector<72x10xf32> to vector<3x24x10xf32>
    %31 = arith.addf %27, %30 : vector<3x24x10xf32>
    %32 = vector.shape_cast %5 : vector<3x24x4xf32> to vector<72x4xf32>
    %cst_53 = arith.constant dense<0.000000e+00> : vector<72x10xf32>
    %33 = tpu.matmul %32, %8, %cst_53 {dimension_numbers = #tpu.dot_dimension_numbers<[1], [0], [0], [1], [0, 0, 1, 1], [], []>} : vector<72x4xf32>, vector<4x10xf32>, vector<72x10xf32> -> vector<72x10xf32>
    %34 = vector.shape_cast %33 : vector<72x10xf32> to vector<3x24x10xf32>
    %35 = arith.addf %31, %34 : vector<3x24x10xf32>
    %36 = vector.extract_strided_slice %35 {offsets = [0, 0, 0], sizes = [1, 24, 10], strides = [1, 1, 1]} : vector<3x24x10xf32> to vector<1x24x10xf32>
    %37 = vector.shape_cast %36 : vector<1x24x10xf32> to vector<24x10xf32>
    %38 = vector.extract_strided_slice %35 {offsets = [0, 0, 0], sizes = [1, 24, 10], strides = [1, 1, 1]} : vector<3x24x10xf32> to vector<1x24x10xf32>
    %39 = vector.shape_cast %38 : vector<1x24x10xf32> to vector<24x10xf32>
    %40 = arith.mulf %37, %39 : vector<24x10xf32>
    %41 = vector.extract_strided_slice %35 {offsets = [1, 0, 0], sizes = [1, 24, 10], strides = [1, 1, 1]} : vector<3x24x10xf32> to vector<1x24x10xf32>
    %42 = vector.shape_cast %41 : vector<1x24x10xf32> to vector<24x10xf32>
    %43 = vector.extract_strided_slice %35 {offsets = [1, 0, 0], sizes = [1, 24, 10], strides = [1, 1, 1]} : vector<3x24x10xf32> to vector<1x24x10xf32>
    %44 = vector.shape_cast %43 : vector<1x24x10xf32> to vector<24x10xf32>
    %45 = arith.mulf %42, %44 : vector<24x10xf32>
    %46 = arith.addf %40, %45 : vector<24x10xf32>
    %47 = vector.extract_strided_slice %35 {offsets = [2, 0, 0], sizes = [1, 24, 10], strides = [1, 1, 1]} : vector<3x24x10xf32> to vector<1x24x10xf32>
    %48 = vector.shape_cast %47 : vector<1x24x10xf32> to vector<24x10xf32>
    %49 = vector.extract_strided_slice %35 {offsets = [2, 0, 0], sizes = [1, 24, 10], strides = [1, 1, 1]} : vector<3x24x10xf32> to vector<1x24x10xf32>
    %50 = vector.shape_cast %49 : vector<1x24x10xf32> to vector<24x10xf32>
    %51 = arith.mulf %48, %50 : vector<24x10xf32>
    %52 = arith.addf %46, %51 : vector<24x10xf32>
    %cst_54 = arith.constant 9.99999993E-9 : f32
    %53 = vector.broadcast %cst_54 : f32 to vector<24x10xf32>
    %54 = arith.maximumf %52, %53 : vector<24x10xf32>
    %55 = math.sqrt %54 : vector<24x10xf32>
    %cst_55 = arith.constant dense<0.000000e+00> : vector<24x32xf32>
    %56 = tpu.matmul %0, %9, %cst_55 {dimension_numbers = #tpu.dot_dimension_numbers<[1], [0], [0], [1], [0, 0, 1, 1], [], []>} : vector<24x32xf32>, vector<32x32xf32>, vector<24x32xf32> -> vector<24x32xf32>
    %57 = vector.broadcast %13 : vector<1x32xf32> to vector<24x32xf32>
    %58 = arith.addf %57, %56 : vector<24x32xf32>
    %cst_56 = arith.constant dense<0.000000e+00> : vector<24x32xf32>
    %59 = tpu.matmul %1, %10, %cst_56 {dimension_numbers = #tpu.dot_dimension_numbers<[1], [0], [0], [1], [0, 0, 1, 1], [], []>} : vector<24x16xf32>, vector<16x32xf32>, vector<24x32xf32> -> vector<24x32xf32>
    %60 = arith.addf %58, %59 : vector<24x32xf32>
    %cst_57 = arith.constant dense<0.000000e+00> : vector<24x32xf32>
    %61 = tpu.matmul %2, %11, %cst_57 {dimension_numbers = #tpu.dot_dimension_numbers<[1], [0], [0], [1], [0, 0, 1, 1], [], []>} : vector<24x32xf32>, vector<32x32xf32>, vector<24x32xf32> -> vector<24x32xf32>
    %62 = arith.addf %60, %61 : vector<24x32xf32>
    %cst_58 = arith.constant dense<0.000000e+00> : vector<24x32xf32>
    %63 = tpu.matmul %55, %12, %cst_58 {dimension_numbers = #tpu.dot_dimension_numbers<[1], [0], [0], [1], [0, 0, 1, 1], [], []>} : vector<24x10xf32>, vector<10x32xf32>, vector<24x32xf32> -> vector<24x32xf32>
    %64 = arith.addf %62, %63 : vector<24x32xf32>
    %65 = vector.shape_cast %35 : vector<3x24x10xf32> to vector<72x10xf32>
    %cst_59 = arith.constant dense<0.000000e+00> : vector<72x4xf32>
    %66 = tpu.matmul %65, %14, %cst_59 {dimension_numbers = #tpu.dot_dimension_numbers<[1], [0], [0], [1], [0, 0, 1, 1], [], []>} : vector<72x10xf32>, vector<10x4xf32>, vector<72x4xf32> -> vector<72x4xf32>
    %67 = vector.shape_cast %66 : vector<72x4xf32> to vector<3x24x4xf32>
    %68 = vector.extract_strided_slice %67 {offsets = [0, 0, 0], sizes = [1, 24, 4], strides = [1, 1, 1]} : vector<3x24x4xf32> to vector<1x24x4xf32>
    %69 = vector.shape_cast %68 : vector<1x24x4xf32> to vector<24x4xf32>
    %70 = vector.extract_strided_slice %67 {offsets = [0, 0, 0], sizes = [1, 24, 4], strides = [1, 1, 1]} : vector<3x24x4xf32> to vector<1x24x4xf32>
    %71 = vector.shape_cast %70 : vector<1x24x4xf32> to vector<24x4xf32>
    %72 = arith.mulf %69, %71 : vector<24x4xf32>
    %73 = vector.extract_strided_slice %67 {offsets = [1, 0, 0], sizes = [1, 24, 4], strides = [1, 1, 1]} : vector<3x24x4xf32> to vector<1x24x4xf32>
    %74 = vector.shape_cast %73 : vector<1x24x4xf32> to vector<24x4xf32>
    %75 = vector.extract_strided_slice %67 {offsets = [1, 0, 0], sizes = [1, 24, 4], strides = [1, 1, 1]} : vector<3x24x4xf32> to vector<1x24x4xf32>
    %76 = vector.shape_cast %75 : vector<1x24x4xf32> to vector<24x4xf32>
    %77 = arith.mulf %74, %76 : vector<24x4xf32>
    %78 = arith.addf %72, %77 : vector<24x4xf32>
    %79 = vector.extract_strided_slice %67 {offsets = [2, 0, 0], sizes = [1, 24, 4], strides = [1, 1, 1]} : vector<3x24x4xf32> to vector<1x24x4xf32>
    %80 = vector.shape_cast %79 : vector<1x24x4xf32> to vector<24x4xf32>
    %81 = vector.extract_strided_slice %67 {offsets = [2, 0, 0], sizes = [1, 24, 4], strides = [1, 1, 1]} : vector<3x24x4xf32> to vector<1x24x4xf32>
    %82 = vector.shape_cast %81 : vector<1x24x4xf32> to vector<24x4xf32>
    %83 = arith.mulf %80, %82 : vector<24x4xf32>
    %84 = arith.addf %78, %83 : vector<24x4xf32>
    %cst_60 = arith.constant 9.99999993E-9 : f32
    %85 = vector.broadcast %cst_60 : f32 to vector<24x4xf32>
    %86 = arith.maximumf %84, %85 : vector<24x4xf32>
    %87 = math.sqrt %86 : vector<24x4xf32>
    %88 = arith.negf %87 : vector<24x4xf32>
    %89 = math.exp %88 : vector<24x4xf32>
    %cst_61 = arith.constant 1.000000e+00 : f32
    %90 = vector.broadcast %cst_61 : f32 to vector<24x4xf32>
    %91 = arith.addf %90, %89 : vector<24x4xf32>
    %92 = arith.divf %90, %91 : vector<24x4xf32>
    %93 = vector.shape_cast %92 : vector<24x4xf32> to vector<1x24x4xf32>
    %94 = vector.broadcast %93 : vector<1x24x4xf32> to vector<3x24x4xf32>
    %95 = arith.mulf %67, %94 : vector<3x24x4xf32>
    %cst_62 = arith.constant 0.000000e+00 : f32
    %96 = vector.broadcast %cst_62 : f32 to vector<24x32xf32>
    %97 = arith.maximumf %64, %96 : vector<24x32xf32>
    %98 = vector.shape_cast %95 : vector<3x24x4xf32> to vector<72x4xf32>
    %cst_63 = arith.constant dense<0.000000e+00> : vector<72x4xf32>
    %99 = tpu.matmul %98, %15, %cst_63 {dimension_numbers = #tpu.dot_dimension_numbers<[1], [0], [0], [1], [0, 0, 1, 1], [], []>} : vector<72x4xf32>, vector<4x4xf32>, vector<72x4xf32> -> vector<72x4xf32>
    %100 = vector.shape_cast %99 : vector<72x4xf32> to vector<3x24x4xf32>
    %101 = vector.extract_strided_slice %100 {offsets = [0, 0, 0], sizes = [1, 24, 4], strides = [1, 1, 1]} : vector<3x24x4xf32> to vector<1x24x4xf32>
    %102 = vector.shape_cast %101 : vector<1x24x4xf32> to vector<24x4xf32>
    %103 = vector.extract_strided_slice %100 {offsets = [0, 0, 0], sizes = [1, 24, 4], strides = [1, 1, 1]} : vector<3x24x4xf32> to vector<1x24x4xf32>
    %104 = vector.shape_cast %103 : vector<1x24x4xf32> to vector<24x4xf32>
    %105 = arith.mulf %102, %104 : vector<24x4xf32>
    %106 = vector.extract_strided_slice %100 {offsets = [1, 0, 0], sizes = [1, 24, 4], strides = [1, 1, 1]} : vector<3x24x4xf32> to vector<1x24x4xf32>
    %107 = vector.shape_cast %106 : vector<1x24x4xf32> to vector<24x4xf32>
    %108 = vector.extract_strided_slice %100 {offsets = [1, 0, 0], sizes = [1, 24, 4], strides = [1, 1, 1]} : vector<3x24x4xf32> to vector<1x24x4xf32>
    %109 = vector.shape_cast %108 : vector<1x24x4xf32> to vector<24x4xf32>
    %110 = arith.mulf %107, %109 : vector<24x4xf32>
    %111 = arith.addf %105, %110 : vector<24x4xf32>
    %112 = vector.extract_strided_slice %100 {offsets = [2, 0, 0], sizes = [1, 24, 4], strides = [1, 1, 1]} : vector<3x24x4xf32> to vector<1x24x4xf32>
    %113 = vector.shape_cast %112 : vector<1x24x4xf32> to vector<24x4xf32>
    %114 = vector.extract_strided_slice %100 {offsets = [2, 0, 0], sizes = [1, 24, 4], strides = [1, 1, 1]} : vector<3x24x4xf32> to vector<1x24x4xf32>
    %115 = vector.shape_cast %114 : vector<1x24x4xf32> to vector<24x4xf32>
    %116 = arith.mulf %113, %115 : vector<24x4xf32>
    %117 = arith.addf %111, %116 : vector<24x4xf32>
    %cst_64 = arith.constant 9.99999993E-9 : f32
    %118 = vector.broadcast %cst_64 : f32 to vector<24x4xf32>
    %119 = arith.maximumf %117, %118 : vector<24x4xf32>
    %120 = math.sqrt %119 : vector<24x4xf32>
    %cst_65 = arith.constant dense<0.000000e+00> : vector<24x32xf32>
    %121 = tpu.matmul %97, %16, %cst_65 {dimension_numbers = #tpu.dot_dimension_numbers<[1], [0], [0], [1], [0, 0, 1, 1], [], []>} : vector<24x32xf32>, vector<32x32xf32>, vector<24x32xf32> -> vector<24x32xf32>
    %122 = vector.broadcast %18 : vector<1x32xf32> to vector<24x32xf32>
    %123 = arith.addf %122, %121 : vector<24x32xf32>
    %cst_66 = arith.constant dense<0.000000e+00> : vector<24x32xf32>
    %124 = tpu.matmul %120, %17, %cst_66 {dimension_numbers = #tpu.dot_dimension_numbers<[1], [0], [0], [1], [0, 0, 1, 1], [], []>} : vector<24x4xf32>, vector<4x32xf32>, vector<24x32xf32> -> vector<24x32xf32>
    %125 = arith.addf %123, %124 : vector<24x32xf32>
    %126 = vector.shape_cast %100 : vector<3x24x4xf32> to vector<72x4xf32>
    %cst_67 = arith.constant dense<0.000000e+00> : vector<72x4xf32>
    %127 = tpu.matmul %126, %19, %cst_67 {dimension_numbers = #tpu.dot_dimension_numbers<[1], [0], [0], [1], [0, 0, 1, 1], [], []>} : vector<72x4xf32>, vector<4x4xf32>, vector<72x4xf32> -> vector<72x4xf32>
    %128 = vector.shape_cast %127 : vector<72x4xf32> to vector<3x24x4xf32>
    %129 = vector.extract_strided_slice %128 {offsets = [0, 0, 0], sizes = [1, 24, 4], strides = [1, 1, 1]} : vector<3x24x4xf32> to vector<1x24x4xf32>
    %130 = vector.shape_cast %129 : vector<1x24x4xf32> to vector<24x4xf32>
    %131 = vector.extract_strided_slice %128 {offsets = [0, 0, 0], sizes = [1, 24, 4], strides = [1, 1, 1]} : vector<3x24x4xf32> to vector<1x24x4xf32>
    %132 = vector.shape_cast %131 : vector<1x24x4xf32> to vector<24x4xf32>
    %133 = arith.mulf %130, %132 : vector<24x4xf32>
    %134 = vector.extract_strided_slice %128 {offsets = [1, 0, 0], sizes = [1, 24, 4], strides = [1, 1, 1]} : vector<3x24x4xf32> to vector<1x24x4xf32>
    %135 = vector.shape_cast %134 : vector<1x24x4xf32> to vector<24x4xf32>
    %136 = vector.extract_strided_slice %128 {offsets = [1, 0, 0], sizes = [1, 24, 4], strides = [1, 1, 1]} : vector<3x24x4xf32> to vector<1x24x4xf32>
    %137 = vector.shape_cast %136 : vector<1x24x4xf32> to vector<24x4xf32>
    %138 = arith.mulf %135, %137 : vector<24x4xf32>
    %139 = arith.addf %133, %138 : vector<24x4xf32>
    %140 = vector.extract_strided_slice %128 {offsets = [2, 0, 0], sizes = [1, 24, 4], strides = [1, 1, 1]} : vector<3x24x4xf32> to vector<1x24x4xf32>
    %141 = vector.shape_cast %140 : vector<1x24x4xf32> to vector<24x4xf32>
    %142 = vector.extract_strided_slice %128 {offsets = [2, 0, 0], sizes = [1, 24, 4], strides = [1, 1, 1]} : vector<3x24x4xf32> to vector<1x24x4xf32>
    %143 = vector.shape_cast %142 : vector<1x24x4xf32> to vector<24x4xf32>
    %144 = arith.mulf %141, %143 : vector<24x4xf32>
    %145 = arith.addf %139, %144 : vector<24x4xf32>
    %cst_68 = arith.constant 9.99999993E-9 : f32
    %146 = vector.broadcast %cst_68 : f32 to vector<24x4xf32>
    %147 = arith.maximumf %145, %146 : vector<24x4xf32>
    %148 = math.sqrt %147 : vector<24x4xf32>
    %149 = arith.negf %148 : vector<24x4xf32>
    %150 = math.exp %149 : vector<24x4xf32>
    %cst_69 = arith.constant 1.000000e+00 : f32
    %151 = vector.broadcast %cst_69 : f32 to vector<24x4xf32>
    %152 = arith.addf %151, %150 : vector<24x4xf32>
    %153 = arith.divf %151, %152 : vector<24x4xf32>
    %154 = vector.shape_cast %153 : vector<24x4xf32> to vector<1x24x4xf32>
    %155 = vector.broadcast %154 : vector<1x24x4xf32> to vector<3x24x4xf32>
    %156 = arith.mulf %128, %155 : vector<3x24x4xf32>
    %cst_70 = arith.constant 0.000000e+00 : f32
    %157 = vector.broadcast %cst_70 : f32 to vector<24x32xf32>
    %158 = arith.maximumf %125, %157 : vector<24x32xf32>
    %159 = vector.shape_cast %156 : vector<3x24x4xf32> to vector<72x4xf32>
    %cst_71 = arith.constant dense<0.000000e+00> : vector<72x4xf32>
    %160 = tpu.matmul %159, %20, %cst_71 {dimension_numbers = #tpu.dot_dimension_numbers<[1], [0], [0], [1], [0, 0, 1, 1], [], []>} : vector<72x4xf32>, vector<4x4xf32>, vector<72x4xf32> -> vector<72x4xf32>
    %161 = vector.shape_cast %160 : vector<72x4xf32> to vector<3x24x4xf32>
    %162 = vector.extract_strided_slice %161 {offsets = [0, 0, 0], sizes = [1, 24, 4], strides = [1, 1, 1]} : vector<3x24x4xf32> to vector<1x24x4xf32>
    %163 = vector.shape_cast %162 : vector<1x24x4xf32> to vector<24x4xf32>
    %164 = vector.extract_strided_slice %161 {offsets = [0, 0, 0], sizes = [1, 24, 4], strides = [1, 1, 1]} : vector<3x24x4xf32> to vector<1x24x4xf32>
    %165 = vector.shape_cast %164 : vector<1x24x4xf32> to vector<24x4xf32>
    %166 = arith.mulf %163, %165 : vector<24x4xf32>
    %167 = vector.extract_strided_slice %161 {offsets = [1, 0, 0], sizes = [1, 24, 4], strides = [1, 1, 1]} : vector<3x24x4xf32> to vector<1x24x4xf32>
    %168 = vector.shape_cast %167 : vector<1x24x4xf32> to vector<24x4xf32>
    %169 = vector.extract_strided_slice %161 {offsets = [1, 0, 0], sizes = [1, 24, 4], strides = [1, 1, 1]} : vector<3x24x4xf32> to vector<1x24x4xf32>
    %170 = vector.shape_cast %169 : vector<1x24x4xf32> to vector<24x4xf32>
    %171 = arith.mulf %168, %170 : vector<24x4xf32>
    %172 = arith.addf %166, %171 : vector<24x4xf32>
    %173 = vector.extract_strided_slice %161 {offsets = [2, 0, 0], sizes = [1, 24, 4], strides = [1, 1, 1]} : vector<3x24x4xf32> to vector<1x24x4xf32>
    %174 = vector.shape_cast %173 : vector<1x24x4xf32> to vector<24x4xf32>
    %175 = vector.extract_strided_slice %161 {offsets = [2, 0, 0], sizes = [1, 24, 4], strides = [1, 1, 1]} : vector<3x24x4xf32> to vector<1x24x4xf32>
    %176 = vector.shape_cast %175 : vector<1x24x4xf32> to vector<24x4xf32>
    %177 = arith.mulf %174, %176 : vector<24x4xf32>
    %178 = arith.addf %172, %177 : vector<24x4xf32>
    %cst_72 = arith.constant 9.99999993E-9 : f32
    %179 = vector.broadcast %cst_72 : f32 to vector<24x4xf32>
    %180 = arith.maximumf %178, %179 : vector<24x4xf32>
    %181 = math.sqrt %180 : vector<24x4xf32>
    %cst_73 = arith.constant dense<0.000000e+00> : vector<24x32xf32>
    %182 = tpu.matmul %158, %21, %cst_73 {dimension_numbers = #tpu.dot_dimension_numbers<[1], [0], [0], [1], [0, 0, 1, 1], [], []>} : vector<24x32xf32>, vector<32x32xf32>, vector<24x32xf32> -> vector<24x32xf32>
    %183 = vector.broadcast %23 : vector<1x32xf32> to vector<24x32xf32>
    %184 = arith.addf %183, %182 : vector<24x32xf32>
    %cst_74 = arith.constant dense<0.000000e+00> : vector<24x32xf32>
    %185 = tpu.matmul %181, %22, %cst_74 {dimension_numbers = #tpu.dot_dimension_numbers<[1], [0], [0], [1], [0, 0, 1, 1], [], []>} : vector<24x4xf32>, vector<4x32xf32>, vector<24x32xf32> -> vector<24x32xf32>
    %186 = arith.addf %184, %185 : vector<24x32xf32>
    %187 = vector.shape_cast %161 : vector<3x24x4xf32> to vector<72x4xf32>
    %cst_75 = arith.constant dense<0.000000e+00> : vector<72x4xf32>
    %188 = tpu.matmul %187, %24, %cst_75 {dimension_numbers = #tpu.dot_dimension_numbers<[1], [0], [0], [1], [0, 0, 1, 1], [], []>} : vector<72x4xf32>, vector<4x4xf32>, vector<72x4xf32> -> vector<72x4xf32>
    %189 = vector.shape_cast %188 : vector<72x4xf32> to vector<3x24x4xf32>
    %c0_76 = arith.constant 0 : index
    %c0_77 = arith.constant 0 : index
    %190 = vector.load %arg26[%c0_76, %c0_77] : memref<24x32xf32, #tpu.memory_space<vmem>>, vector<24x32xf32>
    tpu.vector_store %arg26[%c0_76, %c0_77], %186 {strides = array<i32>} : memref<24x32xf32, #tpu.memory_space<vmem>>, vector<24x32xf32>,
    %c0_78 = arith.constant 0 : index
    %c0_79 = arith.constant 0 : index
    %c0_80 = arith.constant 0 : index
    %191 = vector.load %arg27[%c0_78, %c0_79, %c0_80] : memref<3x24x4xf32, #tpu.memory_space<vmem>>, vector<3x24x4xf32>
    tpu.vector_store %arg27[%c0_78, %c0_79, %c0_80], %189 {strides = array<i32>} : memref<3x24x4xf32, #tpu.memory_space<vmem>>, vector<3x24x4xf32>,
    return
  }
  func.func @transform_0(%arg0: i32) -> (i32, i32) {
    %c0_i32 = arith.constant 0 : i32
    %c0_i32_0 = arith.constant 0 : i32
    return %arg0, %c0_i32 : i32, i32
  }
  func.func @transform_1(%arg0: i32) -> (i32, i32) {
    %c0_i32 = arith.constant 0 : i32
    %c0_i32_0 = arith.constant 0 : i32
    return %arg0, %c0_i32 : i32, i32
  }
  func.func @transform_2(%arg0: i32) -> (i32, i32) {
    %c0_i32 = arith.constant 0 : i32
    %c0_i32_0 = arith.constant 0 : i32
    return %arg0, %c0_i32 : i32, i32
  }
  func.func @transform_3(%arg0: i32) -> (i32, i32, i32) {
    %c0_i32 = arith.constant 0 : i32
    %c0_i32_0 = arith.constant 0 : i32
    %c0_i32_1 = arith.constant 0 : i32
    return %c0_i32, %arg0, %c0_i32_0 : i32, i32, i32
  }
  func.func @transform_4(%arg0: i32) -> (i32, i32, i32) {
    %c0_i32 = arith.constant 0 : i32
    %c0_i32_0 = arith.constant 0 : i32
    %c0_i32_1 = arith.constant 0 : i32
    return %c0_i32, %arg0, %c0_i32_0 : i32, i32, i32
  }
  func.func @transform_5(%arg0: i32) -> (i32, i32, i32) {
    %c0_i32 = arith.constant 0 : i32
    %c0_i32_0 = arith.constant 0 : i32
    %c0_i32_1 = arith.constant 0 : i32
    return %c0_i32, %arg0, %c0_i32_0 : i32, i32, i32
  }
  func.func @transform_6(%arg0: i32) -> (i32, i32) {
    %c0_i32 = arith.constant 0 : i32
    %c0_i32_0 = arith.constant 0 : i32
    %c0_i32_1 = arith.constant 0 : i32
    return %c0_i32, %c0_i32_0 : i32, i32
  }
  func.func @transform_7(%arg0: i32) -> (i32, i32) {
    %c0_i32 = arith.constant 0 : i32
    %c0_i32_0 = arith.constant 0 : i32
    %c0_i32_1 = arith.constant 0 : i32
    return %c0_i32, %c0_i32_0 : i32, i32
  }
  func.func @transform_8(%arg0: i32) -> (i32, i32) {
    %c0_i32 = arith.constant 0 : i32
    %c0_i32_0 = arith.constant 0 : i32
    %c0_i32_1 = arith.constant 0 : i32
    return %c0_i32, %c0_i32_0 : i32, i32
  }
  func.func @transform_9(%arg0: i32) -> (i32, i32) {
    %c0_i32 = arith.constant 0 : i32
    %c0_i32_0 = arith.constant 0 : i32
    %c0_i32_1 = arith.constant 0 : i32
    return %c0_i32, %c0_i32_0 : i32, i32
  }
  func.func @transform_10(%arg0: i32) -> (i32, i32) {
    %c0_i32 = arith.constant 0 : i32
    %c0_i32_0 = arith.constant 0 : i32
    %c0_i32_1 = arith.constant 0 : i32
    return %c0_i32, %c0_i32_0 : i32, i32
  }
  func.func @transform_11(%arg0: i32) -> (i32, i32) {
    %c0_i32 = arith.constant 0 : i32
    %c0_i32_0 = arith.constant 0 : i32
    %c0_i32_1 = arith.constant 0 : i32
    return %c0_i32, %c0_i32_0 : i32, i32
  }
  func.func @transform_12(%arg0: i32) -> (i32, i32) {
    %c0_i32 = arith.constant 0 : i32
    %c0_i32_0 = arith.constant 0 : i32
    %c0_i32_1 = arith.constant 0 : i32
    return %c0_i32, %c0_i32_0 : i32, i32
  }
  func.func @transform_13(%arg0: i32) -> (i32, i32) {
    %c0_i32 = arith.constant 0 : i32
    %c0_i32_0 = arith.constant 0 : i32
    %c0_i32_1 = arith.constant 0 : i32
    return %c0_i32, %c0_i32_0 : i32, i32
  }
  func.func @transform_14(%arg0: i32) -> (i32, i32) {
    %c0_i32 = arith.constant 0 : i32
    %c0_i32_0 = arith.constant 0 : i32
    %c0_i32_1 = arith.constant 0 : i32
    return %c0_i32, %c0_i32_0 : i32, i32
  }
  func.func @transform_15(%arg0: i32) -> (i32, i32) {
    %c0_i32 = arith.constant 0 : i32
    %c0_i32_0 = arith.constant 0 : i32
    %c0_i32_1 = arith.constant 0 : i32
    return %c0_i32, %c0_i32_0 : i32, i32
  }
  func.func @transform_16(%arg0: i32) -> (i32, i32) {
    %c0_i32 = arith.constant 0 : i32
    %c0_i32_0 = arith.constant 0 : i32
    %c0_i32_1 = arith.constant 0 : i32
    return %c0_i32, %c0_i32_0 : i32, i32
  }
  func.func @transform_17(%arg0: i32) -> (i32, i32) {
    %c0_i32 = arith.constant 0 : i32
    %c0_i32_0 = arith.constant 0 : i32
    %c0_i32_1 = arith.constant 0 : i32
    return %c0_i32, %c0_i32_0 : i32, i32
  }
  func.func @transform_18(%arg0: i32) -> (i32, i32) {
    %c0_i32 = arith.constant 0 : i32
    %c0_i32_0 = arith.constant 0 : i32
    %c0_i32_1 = arith.constant 0 : i32
    return %c0_i32, %c0_i32_0 : i32, i32
  }
  func.func @transform_19(%arg0: i32) -> (i32, i32) {
    %c0_i32 = arith.constant 0 : i32
    %c0_i32_0 = arith.constant 0 : i32
    %c0_i32_1 = arith.constant 0 : i32
    return %c0_i32, %c0_i32_0 : i32, i32
  }
  func.func @transform_20(%arg0: i32) -> (i32, i32) {
    %c0_i32 = arith.constant 0 : i32
    %c0_i32_0 = arith.constant 0 : i32
    %c0_i32_1 = arith.constant 0 : i32
    return %c0_i32, %c0_i32_0 : i32, i32
  }
  func.func @transform_21(%arg0: i32) -> (i32, i32) {
    %c0_i32 = arith.constant 0 : i32
    %c0_i32_0 = arith.constant 0 : i32
    %c0_i32_1 = arith.constant 0 : i32
    return %c0_i32, %c0_i32_0 : i32, i32
  }
  func.func @transform_22(%arg0: i32) -> (i32, i32) {
    %c0_i32 = arith.constant 0 : i32
    %c0_i32_0 = arith.constant 0 : i32
    %c0_i32_1 = arith.constant 0 : i32
    return %c0_i32, %c0_i32_0 : i32, i32
  }
  func.func @transform_23(%arg0: i32) -> (i32, i32) {
    %c0_i32 = arith.constant 0 : i32
    %c0_i32_0 = arith.constant 0 : i32
    %c0_i32_1 = arith.constant 0 : i32
    return %c0_i32, %c0_i32_0 : i32, i32
  }
  func.func @transform_24(%arg0: i32) -> (i32, i32) {
    %c0_i32 = arith.constant 0 : i32
    %c0_i32_0 = arith.constant 0 : i32
    %c0_i32_1 = arith.constant 0 : i32
    return %c0_i32, %c0_i32_0 : i32, i32
  }
  func.func @transform_25(%arg0: i32) -> (i32, i32) {
    %c0_i32 = arith.constant 0 : i32
    %c0_i32_0 = arith.constant 0 : i32
    return %arg0, %c0_i32 : i32, i32
  }
  func.func @transform_26(%arg0: i32) -> (i32, i32, i32) {
    %c0_i32 = arith.constant 0 : i32
    %c0_i32_0 = arith.constant 0 : i32
    %c0_i32_1 = arith.constant 0 : i32
    return %c0_i32, %arg0, %c0_i32_0 : i32, i32, i32
  }
}

module attributes {stable_mosaic.version = 11 : i64} {
  func.func @kernel(%arg0: i32, %arg1: memref<16x32xf32, #tpu.memory_space<vmem>>, %arg2: memref<16x32xf32, #tpu.memory_space<vmem>>, %arg3: memref<3x16x4xf32, #tpu.memory_space<vmem>>, %arg4: memref<3x16x4xf32, #tpu.memory_space<vmem>>, %arg5: memref<1x32xf32, #tpu.memory_space<vmem>>, %arg6: memref<1x32xf32, #tpu.memory_space<vmem>>, %arg7: memref<4x8xf32, #tpu.memory_space<vmem>>, %arg8: memref<32x128xf32, #tpu.memory_space<vmem>>, %arg9: memref<8x128xf32, #tpu.memory_space<vmem>>, %arg10: memref<1x128xf32, #tpu.memory_space<vmem>>, %arg11: memref<8x8xf32, #tpu.memory_space<vmem>>, %arg12: memref<8x8xf32, #tpu.memory_space<vmem>>, %arg13: memref<128x32xf32, #tpu.memory_space<vmem>>, %arg14: memref<8x32xf32, #tpu.memory_space<vmem>>, %arg15: memref<1x32xf32, #tpu.memory_space<vmem>>, %arg16: memref<8x4xf32, #tpu.memory_space<vmem>>, %arg17: memref<1x32xf32, #tpu.memory_space<vmem>>, %arg18: memref<1x32xf32, #tpu.memory_space<vmem>>, %arg19: memref<16x32xf32, #tpu.memory_space<vmem>>, %arg20: memref<3x16x4xf32, #tpu.memory_space<vmem>>) attributes {dimension_semantics = [#tpu.dimension_semantics<parallel>], iteration_bounds = array<i64: 1>, scalar_prefetch = 0 : i64, scratch_operands = 0 : i64, tpu.core_type = #tpu.core_type<tc>, window_params = [{transform_indices = @transform_0, window_bounds = array<i64: 16, 32>}, {transform_indices = @transform_1, window_bounds = array<i64: 16, 32>}, {transform_indices = @transform_2, window_bounds = array<i64: 3, 16, 4>}, {transform_indices = @transform_3, window_bounds = array<i64: 3, 16, 4>}, {pipeline_mode = #tpu.pipeline_mode<synchronous>, transform_indices = @transform_4, window_bounds = array<i64: 1, 32>}, {pipeline_mode = #tpu.pipeline_mode<synchronous>, transform_indices = @transform_5, window_bounds = array<i64: 1, 32>}, {pipeline_mode = #tpu.pipeline_mode<synchronous>, transform_indices = @transform_6, window_bounds = array<i64: 4, 8>}, {pipeline_mode = #tpu.pipeline_mode<synchronous>, transform_indices = @transform_7, window_bounds = array<i64: 32, 128>}, {pipeline_mode = #tpu.pipeline_mode<synchronous>, transform_indices = @transform_8, window_bounds = array<i64: 8, 128>}, {pipeline_mode = #tpu.pipeline_mode<synchronous>, transform_indices = @transform_9, window_bounds = array<i64: 1, 128>}, {pipeline_mode = #tpu.pipeline_mode<synchronous>, transform_indices = @transform_10, window_bounds = array<i64: 8, 8>}, {pipeline_mode = #tpu.pipeline_mode<synchronous>, transform_indices = @transform_11, window_bounds = array<i64: 8, 8>}, {pipeline_mode = #tpu.pipeline_mode<synchronous>, transform_indices = @transform_12, window_bounds = array<i64: 128, 32>}, {pipeline_mode = #tpu.pipeline_mode<synchronous>, transform_indices = @transform_13, window_bounds = array<i64: 8, 32>}, {pipeline_mode = #tpu.pipeline_mode<synchronous>, transform_indices = @transform_14, window_bounds = array<i64: 1, 32>}, {pipeline_mode = #tpu.pipeline_mode<synchronous>, transform_indices = @transform_15, window_bounds = array<i64: 8, 4>}, {pipeline_mode = #tpu.pipeline_mode<synchronous>, transform_indices = @transform_16, window_bounds = array<i64: 1, 32>}, {pipeline_mode = #tpu.pipeline_mode<synchronous>, transform_indices = @transform_17, window_bounds = array<i64: 1, 32>}, {transform_indices = @transform_18, window_bounds = array<i64: 16, 32>}, {transform_indices = @transform_19, window_bounds = array<i64: 3, 16, 4>}]} {
    %c0 = arith.constant 0 : index
    %c0_0 = arith.constant 0 : index
    %0 = vector.load %arg5[%c0, %c0_0] : memref<1x32xf32, #tpu.memory_space<vmem>>, vector<1x32xf32>
    %c0_1 = arith.constant 0 : index
    %c0_2 = arith.constant 0 : index
    %1 = vector.load %arg6[%c0_1, %c0_2] : memref<1x32xf32, #tpu.memory_space<vmem>>, vector<1x32xf32>
    %c0_3 = arith.constant 0 : index
    %c0_4 = arith.constant 0 : index
    %2 = vector.load %arg7[%c0_3, %c0_4] : memref<4x8xf32, #tpu.memory_space<vmem>>, vector<4x8xf32>
    %c0_5 = arith.constant 0 : index
    %c0_6 = arith.constant 0 : index
    %3 = vector.load %arg8[%c0_5, %c0_6] : memref<32x128xf32, #tpu.memory_space<vmem>>, vector<32x128xf32>
    %c0_7 = arith.constant 0 : index
    %c0_8 = arith.constant 0 : index
    %4 = vector.load %arg9[%c0_7, %c0_8] : memref<8x128xf32, #tpu.memory_space<vmem>>, vector<8x128xf32>
    %c0_9 = arith.constant 0 : index
    %c0_10 = arith.constant 0 : index
    %5 = vector.load %arg10[%c0_9, %c0_10] : memref<1x128xf32, #tpu.memory_space<vmem>>, vector<1x128xf32>
    %c0_11 = arith.constant 0 : index
    %c0_12 = arith.constant 0 : index
    %6 = vector.load %arg11[%c0_11, %c0_12] : memref<8x8xf32, #tpu.memory_space<vmem>>, vector<8x8xf32>
    %c0_13 = arith.constant 0 : index
    %c0_14 = arith.constant 0 : index
    %7 = vector.load %arg12[%c0_13, %c0_14] : memref<8x8xf32, #tpu.memory_space<vmem>>, vector<8x8xf32>
    %c0_15 = arith.constant 0 : index
    %c0_16 = arith.constant 0 : index
    %8 = vector.load %arg13[%c0_15, %c0_16] : memref<128x32xf32, #tpu.memory_space<vmem>>, vector<128x32xf32>
    %c0_17 = arith.constant 0 : index
    %c0_18 = arith.constant 0 : index
    %9 = vector.load %arg14[%c0_17, %c0_18] : memref<8x32xf32, #tpu.memory_space<vmem>>, vector<8x32xf32>
    %c0_19 = arith.constant 0 : index
    %c0_20 = arith.constant 0 : index
    %10 = vector.load %arg15[%c0_19, %c0_20] : memref<1x32xf32, #tpu.memory_space<vmem>>, vector<1x32xf32>
    %c0_21 = arith.constant 0 : index
    %c0_22 = arith.constant 0 : index
    %11 = vector.load %arg16[%c0_21, %c0_22] : memref<8x4xf32, #tpu.memory_space<vmem>>, vector<8x4xf32>
    %c0_23 = arith.constant 0 : index
    %c0_24 = arith.constant 0 : index
    %12 = vector.load %arg17[%c0_23, %c0_24] : memref<1x32xf32, #tpu.memory_space<vmem>>, vector<1x32xf32>
    %c0_25 = arith.constant 0 : index
    %c0_26 = arith.constant 0 : index
    %13 = vector.load %arg18[%c0_25, %c0_26] : memref<1x32xf32, #tpu.memory_space<vmem>>, vector<1x32xf32>
    %c0_27 = arith.constant 0 : index
    %c0_28 = arith.constant 0 : index
    %14 = vector.load %arg1[%c0_27, %c0_28] : memref<16x32xf32, #tpu.memory_space<vmem>>, vector<16x32xf32>
    %c0_29 = arith.constant 0 : index
    %c0_30 = arith.constant 0 : index
    %15 = vector.load %arg2[%c0_29, %c0_30] : memref<16x32xf32, #tpu.memory_space<vmem>>, vector<16x32xf32>
    %16 = arith.addf %14, %15 : vector<16x32xf32>
    %c0_31 = arith.constant 0 : index
    %c0_32 = arith.constant 0 : index
    %c0_33 = arith.constant 0 : index
    %17 = vector.load %arg3[%c0_31, %c0_32, %c0_33] : memref<3x16x4xf32, #tpu.memory_space<vmem>>, vector<3x16x4xf32>
    %c0_34 = arith.constant 0 : index
    %c0_35 = arith.constant 0 : index
    %c0_36 = arith.constant 0 : index
    %18 = vector.load %arg4[%c0_34, %c0_35, %c0_36] : memref<3x16x4xf32, #tpu.memory_space<vmem>>, vector<3x16x4xf32>
    %19 = arith.addf %17, %18 : vector<3x16x4xf32>
    %cst = arith.constant dense<0.000000e+00> : vector<16xf32>
    %20 = vector.multi_reduction <add>, %16, %cst [1] : vector<16x32xf32> to vector<16xf32>
    %21 = vector.shape_cast %20 : vector<16xf32> to vector<16x1xf32>
    %cst_37 = arith.constant 3.200000e+01 : f32
    %22 = vector.broadcast %cst_37 : f32 to vector<16x1xf32>
    %23 = arith.divf %21, %22 : vector<16x1xf32>
    %24 = vector.broadcast %23 : vector<16x1xf32> to vector<16x32xf32>
    %25 = arith.subf %16, %24 : vector<16x32xf32>
    %26 = arith.mulf %25, %25 : vector<16x32xf32>
    %cst_38 = arith.constant dense<0.000000e+00> : vector<16xf32>
    %27 = vector.multi_reduction <add>, %26, %cst_38 [1] : vector<16x32xf32> to vector<16xf32>
    %28 = vector.shape_cast %27 : vector<16xf32> to vector<16x1xf32>
    %cst_39 = arith.constant 3.200000e+01 : f32
    %29 = vector.broadcast %cst_39 : f32 to vector<16x1xf32>
    %30 = arith.divf %28, %29 : vector<16x1xf32>
    %31 = vector.broadcast %23 : vector<16x1xf32> to vector<16x32xf32>
    %32 = arith.subf %16, %31 : vector<16x32xf32>
    %cst_40 = arith.constant 9.99999974E-6 : f32
    %33 = vector.broadcast %cst_40 : f32 to vector<16x1xf32>
    %34 = arith.addf %30, %33 : vector<16x1xf32>
    %35 = math.rsqrt %34 : vector<16x1xf32>
    %36 = vector.broadcast %35 : vector<16x1xf32> to vector<16x32xf32>
    %37 = arith.mulf %32, %36 : vector<16x32xf32>
    %38 = vector.broadcast %0 : vector<1x32xf32> to vector<16x32xf32>
    %39 = arith.mulf %37, %38 : vector<16x32xf32>
    %40 = vector.broadcast %1 : vector<1x32xf32> to vector<16x32xf32>
    %41 = arith.addf %39, %40 : vector<16x32xf32>
    %42 = vector.extract_strided_slice %19 {offsets = [0, 0, 0], sizes = [1, 16, 4], strides = [1, 1, 1]} : vector<3x16x4xf32> to vector<1x16x4xf32>
    %43 = vector.shape_cast %42 : vector<1x16x4xf32> to vector<16x4xf32>
    %44 = vector.extract_strided_slice %19 {offsets = [0, 0, 0], sizes = [1, 16, 4], strides = [1, 1, 1]} : vector<3x16x4xf32> to vector<1x16x4xf32>
    %45 = vector.shape_cast %44 : vector<1x16x4xf32> to vector<16x4xf32>
    %46 = arith.mulf %43, %45 : vector<16x4xf32>
    %47 = vector.extract_strided_slice %19 {offsets = [1, 0, 0], sizes = [1, 16, 4], strides = [1, 1, 1]} : vector<3x16x4xf32> to vector<1x16x4xf32>
    %48 = vector.shape_cast %47 : vector<1x16x4xf32> to vector<16x4xf32>
    %49 = vector.extract_strided_slice %19 {offsets = [1, 0, 0], sizes = [1, 16, 4], strides = [1, 1, 1]} : vector<3x16x4xf32> to vector<1x16x4xf32>
    %50 = vector.shape_cast %49 : vector<1x16x4xf32> to vector<16x4xf32>
    %51 = arith.mulf %48, %50 : vector<16x4xf32>
    %52 = arith.addf %46, %51 : vector<16x4xf32>
    %53 = vector.extract_strided_slice %19 {offsets = [2, 0, 0], sizes = [1, 16, 4], strides = [1, 1, 1]} : vector<3x16x4xf32> to vector<1x16x4xf32>
    %54 = vector.shape_cast %53 : vector<1x16x4xf32> to vector<16x4xf32>
    %55 = vector.extract_strided_slice %19 {offsets = [2, 0, 0], sizes = [1, 16, 4], strides = [1, 1, 1]} : vector<3x16x4xf32> to vector<1x16x4xf32>
    %56 = vector.shape_cast %55 : vector<1x16x4xf32> to vector<16x4xf32>
    %57 = arith.mulf %54, %56 : vector<16x4xf32>
    %58 = arith.addf %52, %57 : vector<16x4xf32>
    %cst_41 = arith.constant 9.99999993E-9 : f32
    %59 = vector.broadcast %cst_41 : f32 to vector<16x4xf32>
    %60 = arith.maximumf %58, %59 : vector<16x4xf32>
    %cst_42 = arith.constant dense<0.000000e+00> : vector<16xf32>
    %61 = vector.multi_reduction <add>, %60, %cst_42 [1] : vector<16x4xf32> to vector<16xf32>
    %62 = vector.shape_cast %61 : vector<16xf32> to vector<16x1xf32>
    %cst_43 = arith.constant 4.000000e+00 : f32
    %63 = vector.broadcast %cst_43 : f32 to vector<16x1xf32>
    %64 = arith.divf %62, %63 : vector<16x1xf32>
    %65 = math.rsqrt %64 : vector<16x1xf32>
    %66 = vector.shape_cast %65 : vector<16x1xf32> to vector<1x16x1xf32>
    %67 = vector.broadcast %66 : vector<1x16x1xf32> to vector<3x16x4xf32>
    %68 = arith.mulf %19, %67 : vector<3x16x4xf32>
    %69 = vector.shape_cast %68 : vector<3x16x4xf32> to vector<48x4xf32>
    %cst_44 = arith.constant dense<0.000000e+00> : vector<48x8xf32>
    %70 = tpu.matmul %69, %2, %cst_44 {dimension_numbers = #tpu.dot_dimension_numbers<[1], [0], [0], [1], [0, 0, 1, 1], [], []>} : vector<48x4xf32>, vector<4x8xf32>, vector<48x8xf32> -> vector<48x8xf32>
    %71 = vector.shape_cast %70 : vector<48x8xf32> to vector<3x16x8xf32>
    %72 = vector.extract_strided_slice %71 {offsets = [0, 0, 0], sizes = [1, 16, 8], strides = [1, 1, 1]} : vector<3x16x8xf32> to vector<1x16x8xf32>
    %73 = vector.shape_cast %72 : vector<1x16x8xf32> to vector<16x8xf32>
    %74 = vector.extract_strided_slice %71 {offsets = [0, 0, 0], sizes = [1, 16, 8], strides = [1, 1, 1]} : vector<3x16x8xf32> to vector<1x16x8xf32>
    %75 = vector.shape_cast %74 : vector<1x16x8xf32> to vector<16x8xf32>
    %76 = arith.mulf %73, %75 : vector<16x8xf32>
    %77 = vector.extract_strided_slice %71 {offsets = [1, 0, 0], sizes = [1, 16, 8], strides = [1, 1, 1]} : vector<3x16x8xf32> to vector<1x16x8xf32>
    %78 = vector.shape_cast %77 : vector<1x16x8xf32> to vector<16x8xf32>
    %79 = vector.extract_strided_slice %71 {offsets = [1, 0, 0], sizes = [1, 16, 8], strides = [1, 1, 1]} : vector<3x16x8xf32> to vector<1x16x8xf32>
    %80 = vector.shape_cast %79 : vector<1x16x8xf32> to vector<16x8xf32>
    %81 = arith.mulf %78, %80 : vector<16x8xf32>
    %82 = arith.addf %76, %81 : vector<16x8xf32>
    %83 = vector.extract_strided_slice %71 {offsets = [2, 0, 0], sizes = [1, 16, 8], strides = [1, 1, 1]} : vector<3x16x8xf32> to vector<1x16x8xf32>
    %84 = vector.shape_cast %83 : vector<1x16x8xf32> to vector<16x8xf32>
    %85 = vector.extract_strided_slice %71 {offsets = [2, 0, 0], sizes = [1, 16, 8], strides = [1, 1, 1]} : vector<3x16x8xf32> to vector<1x16x8xf32>
    %86 = vector.shape_cast %85 : vector<1x16x8xf32> to vector<16x8xf32>
    %87 = arith.mulf %84, %86 : vector<16x8xf32>
    %88 = arith.addf %82, %87 : vector<16x8xf32>
    %cst_45 = arith.constant 9.99999993E-9 : f32
    %89 = vector.broadcast %cst_45 : f32 to vector<16x8xf32>
    %90 = arith.maximumf %88, %89 : vector<16x8xf32>
    %91 = math.sqrt %90 : vector<16x8xf32>
    %cst_46 = arith.constant dense<0.000000e+00> : vector<16x128xf32>
    %92 = tpu.matmul %41, %3, %cst_46 {dimension_numbers = #tpu.dot_dimension_numbers<[1], [0], [0], [1], [0, 0, 1, 1], [], []>} : vector<16x32xf32>, vector<32x128xf32>, vector<16x128xf32> -> vector<16x128xf32>
    %93 = vector.broadcast %5 : vector<1x128xf32> to vector<16x128xf32>
    %94 = arith.addf %93, %92 : vector<16x128xf32>
    %cst_47 = arith.constant dense<0.000000e+00> : vector<16x128xf32>
    %95 = tpu.matmul %91, %4, %cst_47 {dimension_numbers = #tpu.dot_dimension_numbers<[1], [0], [0], [1], [0, 0, 1, 1], [], []>} : vector<16x8xf32>, vector<8x128xf32>, vector<16x128xf32> -> vector<16x128xf32>
    %96 = arith.addf %94, %95 : vector<16x128xf32>
    %97 = vector.shape_cast %71 : vector<3x16x8xf32> to vector<48x8xf32>
    %cst_48 = arith.constant dense<0.000000e+00> : vector<48x8xf32>
    %98 = tpu.matmul %97, %6, %cst_48 {dimension_numbers = #tpu.dot_dimension_numbers<[1], [0], [0], [1], [0, 0, 1, 1], [], []>} : vector<48x8xf32>, vector<8x8xf32>, vector<48x8xf32> -> vector<48x8xf32>
    %99 = vector.shape_cast %98 : vector<48x8xf32> to vector<3x16x8xf32>
    %100 = vector.extract_strided_slice %99 {offsets = [0, 0, 0], sizes = [1, 16, 8], strides = [1, 1, 1]} : vector<3x16x8xf32> to vector<1x16x8xf32>
    %101 = vector.shape_cast %100 : vector<1x16x8xf32> to vector<16x8xf32>
    %102 = vector.extract_strided_slice %99 {offsets = [0, 0, 0], sizes = [1, 16, 8], strides = [1, 1, 1]} : vector<3x16x8xf32> to vector<1x16x8xf32>
    %103 = vector.shape_cast %102 : vector<1x16x8xf32> to vector<16x8xf32>
    %104 = arith.mulf %101, %103 : vector<16x8xf32>
    %105 = vector.extract_strided_slice %99 {offsets = [1, 0, 0], sizes = [1, 16, 8], strides = [1, 1, 1]} : vector<3x16x8xf32> to vector<1x16x8xf32>
    %106 = vector.shape_cast %105 : vector<1x16x8xf32> to vector<16x8xf32>
    %107 = vector.extract_strided_slice %99 {offsets = [1, 0, 0], sizes = [1, 16, 8], strides = [1, 1, 1]} : vector<3x16x8xf32> to vector<1x16x8xf32>
    %108 = vector.shape_cast %107 : vector<1x16x8xf32> to vector<16x8xf32>
    %109 = arith.mulf %106, %108 : vector<16x8xf32>
    %110 = arith.addf %104, %109 : vector<16x8xf32>
    %111 = vector.extract_strided_slice %99 {offsets = [2, 0, 0], sizes = [1, 16, 8], strides = [1, 1, 1]} : vector<3x16x8xf32> to vector<1x16x8xf32>
    %112 = vector.shape_cast %111 : vector<1x16x8xf32> to vector<16x8xf32>
    %113 = vector.extract_strided_slice %99 {offsets = [2, 0, 0], sizes = [1, 16, 8], strides = [1, 1, 1]} : vector<3x16x8xf32> to vector<1x16x8xf32>
    %114 = vector.shape_cast %113 : vector<1x16x8xf32> to vector<16x8xf32>
    %115 = arith.mulf %112, %114 : vector<16x8xf32>
    %116 = arith.addf %110, %115 : vector<16x8xf32>
    %cst_49 = arith.constant 9.99999993E-9 : f32
    %117 = vector.broadcast %cst_49 : f32 to vector<16x8xf32>
    %118 = arith.maximumf %116, %117 : vector<16x8xf32>
    %119 = math.sqrt %118 : vector<16x8xf32>
    %120 = arith.negf %119 : vector<16x8xf32>
    %121 = math.exp %120 : vector<16x8xf32>
    %cst_50 = arith.constant 1.000000e+00 : f32
    %122 = vector.broadcast %cst_50 : f32 to vector<16x8xf32>
    %123 = arith.addf %122, %121 : vector<16x8xf32>
    %124 = arith.divf %122, %123 : vector<16x8xf32>
    %125 = vector.shape_cast %124 : vector<16x8xf32> to vector<1x16x8xf32>
    %126 = vector.broadcast %125 : vector<1x16x8xf32> to vector<3x16x8xf32>
    %127 = arith.mulf %99, %126 : vector<3x16x8xf32>
    %cst_51 = arith.constant 0.000000e+00 : f32
    %128 = vector.broadcast %cst_51 : f32 to vector<16x128xf32>
    %129 = arith.maximumf %96, %128 : vector<16x128xf32>
    %130 = vector.shape_cast %127 : vector<3x16x8xf32> to vector<48x8xf32>
    %cst_52 = arith.constant dense<0.000000e+00> : vector<48x8xf32>
    %131 = tpu.matmul %130, %7, %cst_52 {dimension_numbers = #tpu.dot_dimension_numbers<[1], [0], [0], [1], [0, 0, 1, 1], [], []>} : vector<48x8xf32>, vector<8x8xf32>, vector<48x8xf32> -> vector<48x8xf32>
    %132 = vector.shape_cast %131 : vector<48x8xf32> to vector<3x16x8xf32>
    %133 = vector.extract_strided_slice %132 {offsets = [0, 0, 0], sizes = [1, 16, 8], strides = [1, 1, 1]} : vector<3x16x8xf32> to vector<1x16x8xf32>
    %134 = vector.shape_cast %133 : vector<1x16x8xf32> to vector<16x8xf32>
    %135 = vector.extract_strided_slice %132 {offsets = [0, 0, 0], sizes = [1, 16, 8], strides = [1, 1, 1]} : vector<3x16x8xf32> to vector<1x16x8xf32>
    %136 = vector.shape_cast %135 : vector<1x16x8xf32> to vector<16x8xf32>
    %137 = arith.mulf %134, %136 : vector<16x8xf32>
    %138 = vector.extract_strided_slice %132 {offsets = [1, 0, 0], sizes = [1, 16, 8], strides = [1, 1, 1]} : vector<3x16x8xf32> to vector<1x16x8xf32>
    %139 = vector.shape_cast %138 : vector<1x16x8xf32> to vector<16x8xf32>
    %140 = vector.extract_strided_slice %132 {offsets = [1, 0, 0], sizes = [1, 16, 8], strides = [1, 1, 1]} : vector<3x16x8xf32> to vector<1x16x8xf32>
    %141 = vector.shape_cast %140 : vector<1x16x8xf32> to vector<16x8xf32>
    %142 = arith.mulf %139, %141 : vector<16x8xf32>
    %143 = arith.addf %137, %142 : vector<16x8xf32>
    %144 = vector.extract_strided_slice %132 {offsets = [2, 0, 0], sizes = [1, 16, 8], strides = [1, 1, 1]} : vector<3x16x8xf32> to vector<1x16x8xf32>
    %145 = vector.shape_cast %144 : vector<1x16x8xf32> to vector<16x8xf32>
    %146 = vector.extract_strided_slice %132 {offsets = [2, 0, 0], sizes = [1, 16, 8], strides = [1, 1, 1]} : vector<3x16x8xf32> to vector<1x16x8xf32>
    %147 = vector.shape_cast %146 : vector<1x16x8xf32> to vector<16x8xf32>
    %148 = arith.mulf %145, %147 : vector<16x8xf32>
    %149 = arith.addf %143, %148 : vector<16x8xf32>
    %cst_53 = arith.constant 9.99999993E-9 : f32
    %150 = vector.broadcast %cst_53 : f32 to vector<16x8xf32>
    %151 = arith.maximumf %149, %150 : vector<16x8xf32>
    %152 = math.sqrt %151 : vector<16x8xf32>
    %cst_54 = arith.constant dense<0.000000e+00> : vector<16x32xf32>
    %153 = tpu.matmul %129, %8, %cst_54 {dimension_numbers = #tpu.dot_dimension_numbers<[1], [0], [0], [1], [0, 0, 1, 1], [], []>} : vector<16x128xf32>, vector<128x32xf32>, vector<16x32xf32> -> vector<16x32xf32>
    %154 = vector.broadcast %10 : vector<1x32xf32> to vector<16x32xf32>
    %155 = arith.addf %154, %153 : vector<16x32xf32>
    %cst_55 = arith.constant dense<0.000000e+00> : vector<16x32xf32>
    %156 = tpu.matmul %152, %9, %cst_55 {dimension_numbers = #tpu.dot_dimension_numbers<[1], [0], [0], [1], [0, 0, 1, 1], [], []>} : vector<16x8xf32>, vector<8x32xf32>, vector<16x32xf32> -> vector<16x32xf32>
    %157 = arith.addf %155, %156 : vector<16x32xf32>
    %158 = vector.shape_cast %132 : vector<3x16x8xf32> to vector<48x8xf32>
    %cst_56 = arith.constant dense<0.000000e+00> : vector<48x4xf32>
    %159 = tpu.matmul %158, %11, %cst_56 {dimension_numbers = #tpu.dot_dimension_numbers<[1], [0], [0], [1], [0, 0, 1, 1], [], []>} : vector<48x8xf32>, vector<8x4xf32>, vector<48x4xf32> -> vector<48x4xf32>
    %160 = vector.shape_cast %159 : vector<48x4xf32> to vector<3x16x4xf32>
    %161 = arith.addf %41, %157 : vector<16x32xf32>
    %162 = arith.addf %68, %160 : vector<3x16x4xf32>
    %cst_57 = arith.constant dense<0.000000e+00> : vector<16xf32>
    %163 = vector.multi_reduction <add>, %161, %cst_57 [1] : vector<16x32xf32> to vector<16xf32>
    %164 = vector.shape_cast %163 : vector<16xf32> to vector<16x1xf32>
    %cst_58 = arith.constant 3.200000e+01 : f32
    %165 = vector.broadcast %cst_58 : f32 to vector<16x1xf32>
    %166 = arith.divf %164, %165 : vector<16x1xf32>
    %167 = vector.broadcast %166 : vector<16x1xf32> to vector<16x32xf32>
    %168 = arith.subf %161, %167 : vector<16x32xf32>
    %169 = arith.mulf %168, %168 : vector<16x32xf32>
    %cst_59 = arith.constant dense<0.000000e+00> : vector<16xf32>
    %170 = vector.multi_reduction <add>, %169, %cst_59 [1] : vector<16x32xf32> to vector<16xf32>
    %171 = vector.shape_cast %170 : vector<16xf32> to vector<16x1xf32>
    %cst_60 = arith.constant 3.200000e+01 : f32
    %172 = vector.broadcast %cst_60 : f32 to vector<16x1xf32>
    %173 = arith.divf %171, %172 : vector<16x1xf32>
    %174 = vector.broadcast %166 : vector<16x1xf32> to vector<16x32xf32>
    %175 = arith.subf %161, %174 : vector<16x32xf32>
    %cst_61 = arith.constant 9.99999974E-6 : f32
    %176 = vector.broadcast %cst_61 : f32 to vector<16x1xf32>
    %177 = arith.addf %173, %176 : vector<16x1xf32>
    %178 = math.rsqrt %177 : vector<16x1xf32>
    %179 = vector.broadcast %178 : vector<16x1xf32> to vector<16x32xf32>
    %180 = arith.mulf %175, %179 : vector<16x32xf32>
    %181 = vector.broadcast %12 : vector<1x32xf32> to vector<16x32xf32>
    %182 = arith.mulf %180, %181 : vector<16x32xf32>
    %183 = vector.broadcast %13 : vector<1x32xf32> to vector<16x32xf32>
    %184 = arith.addf %182, %183 : vector<16x32xf32>
    %185 = vector.extract_strided_slice %162 {offsets = [0, 0, 0], sizes = [1, 16, 4], strides = [1, 1, 1]} : vector<3x16x4xf32> to vector<1x16x4xf32>
    %186 = vector.shape_cast %185 : vector<1x16x4xf32> to vector<16x4xf32>
    %187 = vector.extract_strided_slice %162 {offsets = [0, 0, 0], sizes = [1, 16, 4], strides = [1, 1, 1]} : vector<3x16x4xf32> to vector<1x16x4xf32>
    %188 = vector.shape_cast %187 : vector<1x16x4xf32> to vector<16x4xf32>
    %189 = arith.mulf %186, %188 : vector<16x4xf32>
    %190 = vector.extract_strided_slice %162 {offsets = [1, 0, 0], sizes = [1, 16, 4], strides = [1, 1, 1]} : vector<3x16x4xf32> to vector<1x16x4xf32>
    %191 = vector.shape_cast %190 : vector<1x16x4xf32> to vector<16x4xf32>
    %192 = vector.extract_strided_slice %162 {offsets = [1, 0, 0], sizes = [1, 16, 4], strides = [1, 1, 1]} : vector<3x16x4xf32> to vector<1x16x4xf32>
    %193 = vector.shape_cast %192 : vector<1x16x4xf32> to vector<16x4xf32>
    %194 = arith.mulf %191, %193 : vector<16x4xf32>
    %195 = arith.addf %189, %194 : vector<16x4xf32>
    %196 = vector.extract_strided_slice %162 {offsets = [2, 0, 0], sizes = [1, 16, 4], strides = [1, 1, 1]} : vector<3x16x4xf32> to vector<1x16x4xf32>
    %197 = vector.shape_cast %196 : vector<1x16x4xf32> to vector<16x4xf32>
    %198 = vector.extract_strided_slice %162 {offsets = [2, 0, 0], sizes = [1, 16, 4], strides = [1, 1, 1]} : vector<3x16x4xf32> to vector<1x16x4xf32>
    %199 = vector.shape_cast %198 : vector<1x16x4xf32> to vector<16x4xf32>
    %200 = arith.mulf %197, %199 : vector<16x4xf32>
    %201 = arith.addf %195, %200 : vector<16x4xf32>
    %cst_62 = arith.constant 9.99999993E-9 : f32
    %202 = vector.broadcast %cst_62 : f32 to vector<16x4xf32>
    %203 = arith.maximumf %201, %202 : vector<16x4xf32>
    %cst_63 = arith.constant dense<0.000000e+00> : vector<16xf32>
    %204 = vector.multi_reduction <add>, %203, %cst_63 [1] : vector<16x4xf32> to vector<16xf32>
    %205 = vector.shape_cast %204 : vector<16xf32> to vector<16x1xf32>
    %cst_64 = arith.constant 4.000000e+00 : f32
    %206 = vector.broadcast %cst_64 : f32 to vector<16x1xf32>
    %207 = arith.divf %205, %206 : vector<16x1xf32>
    %208 = math.rsqrt %207 : vector<16x1xf32>
    %209 = vector.shape_cast %208 : vector<16x1xf32> to vector<1x16x1xf32>
    %210 = vector.broadcast %209 : vector<1x16x1xf32> to vector<3x16x4xf32>
    %211 = arith.mulf %162, %210 : vector<3x16x4xf32>
    %c0_65 = arith.constant 0 : index
    %c0_66 = arith.constant 0 : index
    %212 = vector.load %arg19[%c0_65, %c0_66] : memref<16x32xf32, #tpu.memory_space<vmem>>, vector<16x32xf32>
    tpu.vector_store %arg19[%c0_65, %c0_66], %184 {strides = array<i32>} : memref<16x32xf32, #tpu.memory_space<vmem>>, vector<16x32xf32>,
    %c0_67 = arith.constant 0 : index
    %c0_68 = arith.constant 0 : index
    %c0_69 = arith.constant 0 : index
    %213 = vector.load %arg20[%c0_67, %c0_68, %c0_69] : memref<3x16x4xf32, #tpu.memory_space<vmem>>, vector<3x16x4xf32>
    tpu.vector_store %arg20[%c0_67, %c0_68, %c0_69], %211 {strides = array<i32>} : memref<3x16x4xf32, #tpu.memory_space<vmem>>, vector<3x16x4xf32>,
    return
  }
  func.func @transform_0(%arg0: i32) -> (i32, i32) {
    %c0_i32 = arith.constant 0 : i32
    %c0_i32_0 = arith.constant 0 : i32
    return %arg0, %c0_i32 : i32, i32
  }
  func.func @transform_1(%arg0: i32) -> (i32, i32) {
    %c0_i32 = arith.constant 0 : i32
    %c0_i32_0 = arith.constant 0 : i32
    return %arg0, %c0_i32 : i32, i32
  }
  func.func @transform_2(%arg0: i32) -> (i32, i32, i32) {
    %c0_i32 = arith.constant 0 : i32
    %c0_i32_0 = arith.constant 0 : i32
    %c0_i32_1 = arith.constant 0 : i32
    return %c0_i32, %arg0, %c0_i32_0 : i32, i32, i32
  }
  func.func @transform_3(%arg0: i32) -> (i32, i32, i32) {
    %c0_i32 = arith.constant 0 : i32
    %c0_i32_0 = arith.constant 0 : i32
    %c0_i32_1 = arith.constant 0 : i32
    return %c0_i32, %arg0, %c0_i32_0 : i32, i32, i32
  }
  func.func @transform_4(%arg0: i32) -> (i32, i32) {
    %c0_i32 = arith.constant 0 : i32
    %c0_i32_0 = arith.constant 0 : i32
    %c0_i32_1 = arith.constant 0 : i32
    return %c0_i32, %c0_i32_0 : i32, i32
  }
  func.func @transform_5(%arg0: i32) -> (i32, i32) {
    %c0_i32 = arith.constant 0 : i32
    %c0_i32_0 = arith.constant 0 : i32
    %c0_i32_1 = arith.constant 0 : i32
    return %c0_i32, %c0_i32_0 : i32, i32
  }
  func.func @transform_6(%arg0: i32) -> (i32, i32) {
    %c0_i32 = arith.constant 0 : i32
    %c0_i32_0 = arith.constant 0 : i32
    %c0_i32_1 = arith.constant 0 : i32
    return %c0_i32, %c0_i32_0 : i32, i32
  }
  func.func @transform_7(%arg0: i32) -> (i32, i32) {
    %c0_i32 = arith.constant 0 : i32
    %c0_i32_0 = arith.constant 0 : i32
    %c0_i32_1 = arith.constant 0 : i32
    return %c0_i32, %c0_i32_0 : i32, i32
  }
  func.func @transform_8(%arg0: i32) -> (i32, i32) {
    %c0_i32 = arith.constant 0 : i32
    %c0_i32_0 = arith.constant 0 : i32
    %c0_i32_1 = arith.constant 0 : i32
    return %c0_i32, %c0_i32_0 : i32, i32
  }
  func.func @transform_9(%arg0: i32) -> (i32, i32) {
    %c0_i32 = arith.constant 0 : i32
    %c0_i32_0 = arith.constant 0 : i32
    %c0_i32_1 = arith.constant 0 : i32
    return %c0_i32, %c0_i32_0 : i32, i32
  }
  func.func @transform_10(%arg0: i32) -> (i32, i32) {
    %c0_i32 = arith.constant 0 : i32
    %c0_i32_0 = arith.constant 0 : i32
    %c0_i32_1 = arith.constant 0 : i32
    return %c0_i32, %c0_i32_0 : i32, i32
  }
  func.func @transform_11(%arg0: i32) -> (i32, i32) {
    %c0_i32 = arith.constant 0 : i32
    %c0_i32_0 = arith.constant 0 : i32
    %c0_i32_1 = arith.constant 0 : i32
    return %c0_i32, %c0_i32_0 : i32, i32
  }
  func.func @transform_12(%arg0: i32) -> (i32, i32) {
    %c0_i32 = arith.constant 0 : i32
    %c0_i32_0 = arith.constant 0 : i32
    %c0_i32_1 = arith.constant 0 : i32
    return %c0_i32, %c0_i32_0 : i32, i32
  }
  func.func @transform_13(%arg0: i32) -> (i32, i32) {
    %c0_i32 = arith.constant 0 : i32
    %c0_i32_0 = arith.constant 0 : i32
    %c0_i32_1 = arith.constant 0 : i32
    return %c0_i32, %c0_i32_0 : i32, i32
  }
  func.func @transform_14(%arg0: i32) -> (i32, i32) {
    %c0_i32 = arith.constant 0 : i32
    %c0_i32_0 = arith.constant 0 : i32
    %c0_i32_1 = arith.constant 0 : i32
    return %c0_i32, %c0_i32_0 : i32, i32
  }
  func.func @transform_15(%arg0: i32) -> (i32, i32) {
    %c0_i32 = arith.constant 0 : i32
    %c0_i32_0 = arith.constant 0 : i32
    %c0_i32_1 = arith.constant 0 : i32
    return %c0_i32, %c0_i32_0 : i32, i32
  }
  func.func @transform_16(%arg0: i32) -> (i32, i32) {
    %c0_i32 = arith.constant 0 : i32
    %c0_i32_0 = arith.constant 0 : i32
    %c0_i32_1 = arith.constant 0 : i32
    return %c0_i32, %c0_i32_0 : i32, i32
  }
  func.func @transform_17(%arg0: i32) -> (i32, i32) {
    %c0_i32 = arith.constant 0 : i32
    %c0_i32_0 = arith.constant 0 : i32
    %c0_i32_1 = arith.constant 0 : i32
    return %c0_i32, %c0_i32_0 : i32, i32
  }
  func.func @transform_18(%arg0: i32) -> (i32, i32) {
    %c0_i32 = arith.constant 0 : i32
    %c0_i32_0 = arith.constant 0 : i32
    return %arg0, %c0_i32 : i32, i32
  }
  func.func @transform_19(%arg0: i32) -> (i32, i32, i32) {
    %c0_i32 = arith.constant 0 : i32
    %c0_i32_0 = arith.constant 0 : i32
    %c0_i32_1 = arith.constant 0 : i32
    return %c0_i32, %arg0, %c0_i32_0 : i32, i32, i32
  }
}

module attributes {stable_mosaic.version = 11 : i64} {
  func.func @kernel(%arg0: i32, %arg1: memref<16x32xf32, #tpu.memory_space<vmem>>, %arg2: memref<3x16x4xf32, #tpu.memory_space<vmem>>, %arg3: memref<1x32xf32, #tpu.memory_space<vmem>>, %arg4: memref<1x32xf32, #tpu.memory_space<vmem>>, %arg5: memref<4x4xf32, #tpu.memory_space<vmem>>, %arg6: memref<32x32xf32, #tpu.memory_space<vmem>>, %arg7: memref<4x32xf32, #tpu.memory_space<vmem>>, %arg8: memref<1x32xf32, #tpu.memory_space<vmem>>, %arg9: memref<16x32xf32, #tpu.memory_space<vmem>>) attributes {dimension_semantics = [#tpu.dimension_semantics<parallel>], iteration_bounds = array<i64: 1>, scalar_prefetch = 0 : i64, scratch_operands = 0 : i64, tpu.core_type = #tpu.core_type<tc>, window_params = [{transform_indices = @transform_0, window_bounds = array<i64: 16, 32>}, {transform_indices = @transform_1, window_bounds = array<i64: 3, 16, 4>}, {pipeline_mode = #tpu.pipeline_mode<synchronous>, transform_indices = @transform_2, window_bounds = array<i64: 1, 32>}, {pipeline_mode = #tpu.pipeline_mode<synchronous>, transform_indices = @transform_3, window_bounds = array<i64: 1, 32>}, {pipeline_mode = #tpu.pipeline_mode<synchronous>, transform_indices = @transform_4, window_bounds = array<i64: 4, 4>}, {pipeline_mode = #tpu.pipeline_mode<synchronous>, transform_indices = @transform_5, window_bounds = array<i64: 32, 32>}, {pipeline_mode = #tpu.pipeline_mode<synchronous>, transform_indices = @transform_6, window_bounds = array<i64: 4, 32>}, {pipeline_mode = #tpu.pipeline_mode<synchronous>, transform_indices = @transform_7, window_bounds = array<i64: 1, 32>}, {transform_indices = @transform_8, window_bounds = array<i64: 16, 32>}]} {
    %c0 = arith.constant 0 : index
    %c0_0 = arith.constant 0 : index
    %0 = vector.load %arg1[%c0, %c0_0] : memref<16x32xf32, #tpu.memory_space<vmem>>, vector<16x32xf32>
    %c0_1 = arith.constant 0 : index
    %c0_2 = arith.constant 0 : index
    %c0_3 = arith.constant 0 : index
    %1 = vector.load %arg2[%c0_1, %c0_2, %c0_3] : memref<3x16x4xf32, #tpu.memory_space<vmem>>, vector<3x16x4xf32>
    %c0_4 = arith.constant 0 : index
    %c0_5 = arith.constant 0 : index
    %2 = vector.load %arg3[%c0_4, %c0_5] : memref<1x32xf32, #tpu.memory_space<vmem>>, vector<1x32xf32>
    %c0_6 = arith.constant 0 : index
    %c0_7 = arith.constant 0 : index
    %3 = vector.load %arg4[%c0_6, %c0_7] : memref<1x32xf32, #tpu.memory_space<vmem>>, vector<1x32xf32>
    %c0_8 = arith.constant 0 : index
    %c0_9 = arith.constant 0 : index
    %4 = vector.load %arg5[%c0_8, %c0_9] : memref<4x4xf32, #tpu.memory_space<vmem>>, vector<4x4xf32>
    %c0_10 = arith.constant 0 : index
    %c0_11 = arith.constant 0 : index
    %5 = vector.load %arg6[%c0_10, %c0_11] : memref<32x32xf32, #tpu.memory_space<vmem>>, vector<32x32xf32>
    %c0_12 = arith.constant 0 : index
    %c0_13 = arith.constant 0 : index
    %6 = vector.load %arg7[%c0_12, %c0_13] : memref<4x32xf32, #tpu.memory_space<vmem>>, vector<4x32xf32>
    %c0_14 = arith.constant 0 : index
    %c0_15 = arith.constant 0 : index
    %7 = vector.load %arg8[%c0_14, %c0_15] : memref<1x32xf32, #tpu.memory_space<vmem>>, vector<1x32xf32>
    %cst = arith.constant dense<0.000000e+00> : vector<16xf32>
    %8 = vector.multi_reduction <add>, %0, %cst [1] : vector<16x32xf32> to vector<16xf32>
    %9 = vector.shape_cast %8 : vector<16xf32> to vector<16x1xf32>
    %cst_16 = arith.constant 3.200000e+01 : f32
    %10 = vector.broadcast %cst_16 : f32 to vector<16x1xf32>
    %11 = arith.divf %9, %10 : vector<16x1xf32>
    %12 = vector.broadcast %11 : vector<16x1xf32> to vector<16x32xf32>
    %13 = arith.subf %0, %12 : vector<16x32xf32>
    %14 = arith.mulf %13, %13 : vector<16x32xf32>
    %cst_17 = arith.constant dense<0.000000e+00> : vector<16xf32>
    %15 = vector.multi_reduction <add>, %14, %cst_17 [1] : vector<16x32xf32> to vector<16xf32>
    %16 = vector.shape_cast %15 : vector<16xf32> to vector<16x1xf32>
    %cst_18 = arith.constant 3.200000e+01 : f32
    %17 = vector.broadcast %cst_18 : f32 to vector<16x1xf32>
    %18 = arith.divf %16, %17 : vector<16x1xf32>
    %19 = vector.broadcast %11 : vector<16x1xf32> to vector<16x32xf32>
    %20 = arith.subf %0, %19 : vector<16x32xf32>
    %cst_19 = arith.constant 9.99999974E-6 : f32
    %21 = vector.broadcast %cst_19 : f32 to vector<16x1xf32>
    %22 = arith.addf %18, %21 : vector<16x1xf32>
    %23 = math.rsqrt %22 : vector<16x1xf32>
    %24 = vector.broadcast %23 : vector<16x1xf32> to vector<16x32xf32>
    %25 = arith.mulf %20, %24 : vector<16x32xf32>
    %26 = vector.broadcast %2 : vector<1x32xf32> to vector<16x32xf32>
    %27 = arith.mulf %25, %26 : vector<16x32xf32>
    %28 = vector.broadcast %3 : vector<1x32xf32> to vector<16x32xf32>
    %29 = arith.addf %27, %28 : vector<16x32xf32>
    %30 = vector.extract_strided_slice %1 {offsets = [0, 0, 0], sizes = [1, 16, 4], strides = [1, 1, 1]} : vector<3x16x4xf32> to vector<1x16x4xf32>
    %31 = vector.shape_cast %30 : vector<1x16x4xf32> to vector<16x4xf32>
    %32 = vector.extract_strided_slice %1 {offsets = [0, 0, 0], sizes = [1, 16, 4], strides = [1, 1, 1]} : vector<3x16x4xf32> to vector<1x16x4xf32>
    %33 = vector.shape_cast %32 : vector<1x16x4xf32> to vector<16x4xf32>
    %34 = arith.mulf %31, %33 : vector<16x4xf32>
    %35 = vector.extract_strided_slice %1 {offsets = [1, 0, 0], sizes = [1, 16, 4], strides = [1, 1, 1]} : vector<3x16x4xf32> to vector<1x16x4xf32>
    %36 = vector.shape_cast %35 : vector<1x16x4xf32> to vector<16x4xf32>
    %37 = vector.extract_strided_slice %1 {offsets = [1, 0, 0], sizes = [1, 16, 4], strides = [1, 1, 1]} : vector<3x16x4xf32> to vector<1x16x4xf32>
    %38 = vector.shape_cast %37 : vector<1x16x4xf32> to vector<16x4xf32>
    %39 = arith.mulf %36, %38 : vector<16x4xf32>
    %40 = arith.addf %34, %39 : vector<16x4xf32>
    %41 = vector.extract_strided_slice %1 {offsets = [2, 0, 0], sizes = [1, 16, 4], strides = [1, 1, 1]} : vector<3x16x4xf32> to vector<1x16x4xf32>
    %42 = vector.shape_cast %41 : vector<1x16x4xf32> to vector<16x4xf32>
    %43 = vector.extract_strided_slice %1 {offsets = [2, 0, 0], sizes = [1, 16, 4], strides = [1, 1, 1]} : vector<3x16x4xf32> to vector<1x16x4xf32>
    %44 = vector.shape_cast %43 : vector<1x16x4xf32> to vector<16x4xf32>
    %45 = arith.mulf %42, %44 : vector<16x4xf32>
    %46 = arith.addf %40, %45 : vector<16x4xf32>
    %cst_20 = arith.constant 9.99999993E-9 : f32
    %47 = vector.broadcast %cst_20 : f32 to vector<16x4xf32>
    %48 = arith.maximumf %46, %47 : vector<16x4xf32>
    %cst_21 = arith.constant dense<0.000000e+00> : vector<16xf32>
    %49 = vector.multi_reduction <add>, %48, %cst_21 [1] : vector<16x4xf32> to vector<16xf32>
    %50 = vector.shape_cast %49 : vector<16xf32> to vector<16x1xf32>
    %cst_22 = arith.constant 4.000000e+00 : f32
    %51 = vector.broadcast %cst_22 : f32 to vector<16x1xf32>
    %52 = arith.divf %50, %51 : vector<16x1xf32>
    %53 = math.rsqrt %52 : vector<16x1xf32>
    %54 = vector.shape_cast %53 : vector<16x1xf32> to vector<1x16x1xf32>
    %55 = vector.broadcast %54 : vector<1x16x1xf32> to vector<3x16x4xf32>
    %56 = arith.mulf %1, %55 : vector<3x16x4xf32>
    %57 = vector.shape_cast %56 : vector<3x16x4xf32> to vector<48x4xf32>
    %cst_23 = arith.constant dense<0.000000e+00> : vector<48x4xf32>
    %58 = tpu.matmul %57, %4, %cst_23 {dimension_numbers = #tpu.dot_dimension_numbers<[1], [0], [0], [1], [0, 0, 1, 1], [], []>} : vector<48x4xf32>, vector<4x4xf32>, vector<48x4xf32> -> vector<48x4xf32>
    %59 = vector.shape_cast %58 : vector<48x4xf32> to vector<3x16x4xf32>
    %60 = vector.extract_strided_slice %59 {offsets = [0, 0, 0], sizes = [1, 16, 4], strides = [1, 1, 1]} : vector<3x16x4xf32> to vector<1x16x4xf32>
    %61 = vector.shape_cast %60 : vector<1x16x4xf32> to vector<16x4xf32>
    %62 = vector.extract_strided_slice %59 {offsets = [0, 0, 0], sizes = [1, 16, 4], strides = [1, 1, 1]} : vector<3x16x4xf32> to vector<1x16x4xf32>
    %63 = vector.shape_cast %62 : vector<1x16x4xf32> to vector<16x4xf32>
    %64 = arith.mulf %61, %63 : vector<16x4xf32>
    %65 = vector.extract_strided_slice %59 {offsets = [1, 0, 0], sizes = [1, 16, 4], strides = [1, 1, 1]} : vector<3x16x4xf32> to vector<1x16x4xf32>
    %66 = vector.shape_cast %65 : vector<1x16x4xf32> to vector<16x4xf32>
    %67 = vector.extract_strided_slice %59 {offsets = [1, 0, 0], sizes = [1, 16, 4], strides = [1, 1, 1]} : vector<3x16x4xf32> to vector<1x16x4xf32>
    %68 = vector.shape_cast %67 : vector<1x16x4xf32> to vector<16x4xf32>
    %69 = arith.mulf %66, %68 : vector<16x4xf32>
    %70 = arith.addf %64, %69 : vector<16x4xf32>
    %71 = vector.extract_strided_slice %59 {offsets = [2, 0, 0], sizes = [1, 16, 4], strides = [1, 1, 1]} : vector<3x16x4xf32> to vector<1x16x4xf32>
    %72 = vector.shape_cast %71 : vector<1x16x4xf32> to vector<16x4xf32>
    %73 = vector.extract_strided_slice %59 {offsets = [2, 0, 0], sizes = [1, 16, 4], strides = [1, 1, 1]} : vector<3x16x4xf32> to vector<1x16x4xf32>
    %74 = vector.shape_cast %73 : vector<1x16x4xf32> to vector<16x4xf32>
    %75 = arith.mulf %72, %74 : vector<16x4xf32>
    %76 = arith.addf %70, %75 : vector<16x4xf32>
    %cst_24 = arith.constant 9.99999993E-9 : f32
    %77 = vector.broadcast %cst_24 : f32 to vector<16x4xf32>
    %78 = arith.maximumf %76, %77 : vector<16x4xf32>
    %79 = math.sqrt %78 : vector<16x4xf32>
    %cst_25 = arith.constant dense<0.000000e+00> : vector<16x32xf32>
    %80 = tpu.matmul %29, %5, %cst_25 {dimension_numbers = #tpu.dot_dimension_numbers<[1], [0], [0], [1], [0, 0, 1, 1], [], []>} : vector<16x32xf32>, vector<32x32xf32>, vector<16x32xf32> -> vector<16x32xf32>
    %81 = vector.broadcast %7 : vector<1x32xf32> to vector<16x32xf32>
    %82 = arith.addf %81, %80 : vector<16x32xf32>
    %cst_26 = arith.constant dense<0.000000e+00> : vector<16x32xf32>
    %83 = tpu.matmul %79, %6, %cst_26 {dimension_numbers = #tpu.dot_dimension_numbers<[1], [0], [0], [1], [0, 0, 1, 1], [], []>} : vector<16x4xf32>, vector<4x32xf32>, vector<16x32xf32> -> vector<16x32xf32>
    %84 = arith.addf %82, %83 : vector<16x32xf32>
    %cst_27 = arith.constant 0.000000e+00 : f32
    %85 = vector.broadcast %cst_27 : f32 to vector<16x32xf32>
    %86 = arith.maximumf %84, %85 : vector<16x32xf32>
    %c0_28 = arith.constant 0 : index
    %c0_29 = arith.constant 0 : index
    %87 = vector.load %arg9[%c0_28, %c0_29] : memref<16x32xf32, #tpu.memory_space<vmem>>, vector<16x32xf32>
    tpu.vector_store %arg9[%c0_28, %c0_29], %86 {strides = array<i32>} : memref<16x32xf32, #tpu.memory_space<vmem>>, vector<16x32xf32>,
    return
  }
  func.func @transform_0(%arg0: i32) -> (i32, i32) {
    %c0_i32 = arith.constant 0 : i32
    %c0_i32_0 = arith.constant 0 : i32
    return %arg0, %c0_i32 : i32, i32
  }
  func.func @transform_1(%arg0: i32) -> (i32, i32, i32) {
    %c0_i32 = arith.constant 0 : i32
    %c0_i32_0 = arith.constant 0 : i32
    %c0_i32_1 = arith.constant 0 : i32
    return %c0_i32, %arg0, %c0_i32_0 : i32, i32, i32
  }
  func.func @transform_2(%arg0: i32) -> (i32, i32) {
    %c0_i32 = arith.constant 0 : i32
    %c0_i32_0 = arith.constant 0 : i32
    %c0_i32_1 = arith.constant 0 : i32
    return %c0_i32, %c0_i32_0 : i32, i32
  }
  func.func @transform_3(%arg0: i32) -> (i32, i32) {
    %c0_i32 = arith.constant 0 : i32
    %c0_i32_0 = arith.constant 0 : i32
    %c0_i32_1 = arith.constant 0 : i32
    return %c0_i32, %c0_i32_0 : i32, i32
  }
  func.func @transform_4(%arg0: i32) -> (i32, i32) {
    %c0_i32 = arith.constant 0 : i32
    %c0_i32_0 = arith.constant 0 : i32
    %c0_i32_1 = arith.constant 0 : i32
    return %c0_i32, %c0_i32_0 : i32, i32
  }
  func.func @transform_5(%arg0: i32) -> (i32, i32) {
    %c0_i32 = arith.constant 0 : i32
    %c0_i32_0 = arith.constant 0 : i32
    %c0_i32_1 = arith.constant 0 : i32
    return %c0_i32, %c0_i32_0 : i32, i32
  }
  func.func @transform_6(%arg0: i32) -> (i32, i32) {
    %c0_i32 = arith.constant 0 : i32
    %c0_i32_0 = arith.constant 0 : i32
    %c0_i32_1 = arith.constant 0 : i32
    return %c0_i32, %c0_i32_0 : i32, i32
  }
  func.func @transform_7(%arg0: i32) -> (i32, i32) {
    %c0_i32 = arith.constant 0 : i32
    %c0_i32_0 = arith.constant 0 : i32
    %c0_i32_1 = arith.constant 0 : i32
    return %c0_i32, %c0_i32_0 : i32, i32
  }
  func.func @transform_8(%arg0: i32) -> (i32, i32) {
    %c0_i32 = arith.constant 0 : i32
    %c0_i32_0 = arith.constant 0 : i32
    return %arg0, %c0_i32 : i32, i32
  }
}

</mosaic_0001>

<llo_original>
// kernel: _lambda_.3
$region0: #{_lambda_.3}
  #allocation0 [shape = 'u32[]', space=smem, size = 0x4, offset = 0x4, fixed_abs, tag = 'smem constant byte address 0x4 - core index']
  #allocation1 [shape = 'u32[144,128]{1,0:T(1,128)}', space=vmem, size = 0x12000, scoped, tag = 'internal scratch']
  %s0 = inlined_call_operand.vmem [shape: f32[16,6], index: 0, kind: input, shape index: {}]
  %s1 = inlined_call_operand.vmem [shape: f32[3,16,3], index: 1, kind: input, shape index: {}]
  %s2 = inlined_call_operand.vmem [shape: f32[1,6], index: 2, kind: input, shape index: {}]
  %s3 = inlined_call_operand.vmem [shape: f32[1,6], index: 3, kind: input, shape index: {}]
  %s4 = inlined_call_operand.vmem [shape: f32[3,4], index: 4, kind: input, shape index: {}]
  %s5 = inlined_call_operand.vmem [shape: f32[6,32], index: 5, kind: input, shape index: {}]
  %s6 = inlined_call_operand.vmem [shape: f32[4,32], index: 6, kind: input, shape index: {}]
  %s7 = inlined_call_operand.vmem [shape: f32[1,32], index: 7, kind: input, shape index: {}]
  %s8 = inlined_call_operand.vmem [shape: f32[4,4], index: 8, kind: input, shape index: {}]
  %s9 = inlined_call_operand.vmem [shape: f32[16,32], index: 9, kind: output, shape index: {0}]
  %s10 = inlined_call_operand.vmem [shape: f32[3,16,4], index: 10, kind: output, shape index: {1}]
  %11 = xla_tuple %s9, %s10
  %s12 = sld [smem:[#allocation0]]
  $region54: #{_lambda_.3} parent=0
    _
  %s14 = ssub.s32 1, %s12
  %s15 = scalar_select 0, %s14, %s12
  // Predicated region
  $region2: #{_lambda_.3} parent=0 // pred_check
    _
  $region3: #{_lambda_.3} parent=0 // pred_check_branch
    %17 = sbr.rel (0) target = $region5
  $region4: #{_lambda_.3} parent=0 // pred_region
    _
  $region5: #{_lambda_.3} parent=0 // pred_fallthru
    _
  // Predicated region
  $region6: #{_lambda_.3} parent=0 // pred_check
    _
  $region7: #{_lambda_.3} parent=0 // pred_check_branch
    %19 = sbr.rel (0) target = $region9
  $region8: #{_lambda_.3} parent=0 // pred_region
    _
  $region9: #{_lambda_.3} parent=0 // pred_fallthru
    _
  // Predicated region
  $region10: #{_lambda_.3} parent=0 // pred_check
    _
  $region11: #{_lambda_.3} parent=0 // pred_check_branch
    %21 = sbr.rel (0) target = $region13
  $region12: #{_lambda_.3} parent=0 // pred_region
    _
  $region13: #{_lambda_.3} parent=0 // pred_fallthru
    _
  // Predicated region
  $region14: #{_lambda_.3} parent=0 // pred_check
    _
  $region15: #{_lambda_.3} parent=0 // pred_check_branch
    %23 = sbr.rel (0) target = $region17
  $region16: #{_lambda_.3} parent=0 // pred_region
    _
  $region17: #{_lambda_.3} parent=0 // pred_fallthru
    _
  // Predicated region
  $region18: #{_lambda_.3} parent=0 // pred_check
    _
  $region19: #{_lambda_.3} parent=0 // pred_check_branch
    %25 = sbr.rel (0) target = $region21
  $region20: #{_lambda_.3} parent=0 // pred_region
    _
  $region21: #{_lambda_.3} parent=0 // pred_fallthru
    _
  // Predicated region
  $region22: #{_lambda_.3} parent=0 // pred_check
    _
  $region23: #{_lambda_.3} parent=0 // pred_check_branch
    %27 = sbr.rel (0) target = $region25
  $region24: #{_lambda_.3} parent=0 // pred_region
    _
  $region25: #{_lambda_.3} parent=0 // pred_fallthru
    _
  // Predicated region
  $region26: #{_lambda_.3} parent=0 // pred_check
    _
  $region27: #{_lambda_.3} parent=0 // pred_check_branch
    %29 = sbr.rel (0) target = $region29
  $region28: #{_lambda_.3} parent=0 // pred_region
    _
  $region29: #{_lambda_.3} parent=0 // pred_fallthru
    _
  // Predicated region
  $region30: #{_lambda_.3} parent=0 // pred_check
    _
  $region31: #{_lambda_.3} parent=0 // pred_check_branch
    %31 = sbr.rel (0) target = $region33
  $region32: #{_lambda_.3} parent=0 // pred_region
    _
  $region33: #{_lambda_.3} parent=0 // pred_fallthru
    _
  // Predicated region
  $region34: #{_lambda_.3} parent=0 // pred_check
    _
  $region35: #{_lambda_.3} parent=0 // pred_check_branch
    %33 = sbr.rel (0) target = $region37
  $region36: #{_lambda_.3} parent=0 // pred_region
    _
  $region37: #{_lambda_.3} parent=0 // pred_fallthru
    _
  %v34 = vld [vmem:[%s0] sm:$0xff]
  %v35 = vld [vmem:[%s0 + $0x8] sm:$0xff]
  %v36 = vld [vmem:[%s1] sm:$0xff]
  %v37 = vld [vmem:[%s1 + $0x8] sm:$0xff]
  %v38 = vld [vmem:[%s1 + $0x10] sm:$0xff]
  %v39 = vld [vmem:[%s1 + $0x18] sm:$0xff]
  %v40 = vld [vmem:[%s1 + $0x20] sm:$0xff]
  %v41 = vld [vmem:[%s1 + $0x28] sm:$0xff]
  %v42 = vld [vmem:[%s2] sm:$0x1]
  %v43 = vld [vmem:[%s3] sm:$0x1]
  %v44 = vld [vmem:[%s4] sm:$0x7]
  %v45 = vld [vmem:[%s5] sm:$0x3f]
  %v46 = vld [vmem:[%s6] sm:$0xf]
  %v47 = vld [vmem:[%s7] sm:$0x1]
  %v48 = vld [vmem:[%s8] sm:$0xf]
  %vm49 = vcmask 48128
  %v50 = vsel %vm49, %v34, 0.0
  %51 = vadd.xlane.f32.xlu0 %v50
  %v52 = vpop.xlane.xlu0 %51
  %v53 = vsel %vm49, %v35, 0.0
  %54 = vadd.xlane.f32.xlu0 %v53
  %v55 = vpop.xlane.xlu0 %54
  %v56 = vrcp.pop 6.0
  %v57 = vmul.f32 %v52, %v56
  %v58 = vmul.f32 %v55, %v56
  %v59 = vsub.f32 %v34, %v57
  %v60 = vsub.f32 %v35, %v58
  %v61 = vmul.f32 %v59, %v59
  %v62 = vmul.f32 %v60, %v60
  %v63 = vsel %vm49, %v61, 0.0
  %64 = vadd.xlane.f32.xlu0 %v63
  %v65 = vpop.xlane.xlu0 %64
  %v66 = vsel %vm49, %v62, 0.0
  %67 = vadd.xlane.f32.xlu0 %v66
  %v68 = vpop.xlane.xlu0 %67
  %v69 = vmul.f32 %v65, %v56
  %v70 = vmul.f32 %v68, %v56
  %v71 = vadd.f32 %v69, 1e-05
  %v72 = vadd.f32 %v70, 1e-05
  %v73 = vrsqrt.pop %v71
  %v74 = vrsqrt.pop %v72
  %v75 = vmul.f32 %v59, %v73
  %v76 = vmul.f32 %v60, %v74
  %v78 = vlaneseq
  %v79 = vshrl.u32 %v78, 7
  %v80 = vsub.s32 0, %v79
  %v81 = vrot.slane %v42, %v80
  %v83 = vmul.f32 %v75, %v81
  %v84 = vmul.f32 %v76, %v81
  %v86 = vlaneseq
  %v87 = vshrl.u32 %v86, 7
  %v88 = vsub.s32 0, %v87
  %v89 = vrot.slane %v43, %v88
  %v91 = vadd.f32 %v83, %v89
  %v92 = vadd.f32 %v84, %v89
  %v93 = vmul.f32 %v36, %v36
  %v94 = vmul.f32 %v37, %v37
  %v95 = vmul.f32 %v38, %v38
  %v96 = vmul.f32 %v39, %v39
  %v97 = vadd.f32 %v93, %v95
  %v98 = vadd.f32 %v94, %v96
  %v99 = vmul.f32 %v40, %v40
  %v100 = vmul.f32 %v41, %v41
  %v101 = vadd.f32 %v97, %v99
  %v102 = vadd.f32 %v98, %v100
  %v103 = vmax.f32 %v101, 1e-08
  %v104 = vmax.f32 %v102, 1e-08
  %vm105 = vcmask 23552
  %v106 = vsel %vm105, %v103, 0.0
  %107 = vadd.xlane.f32.xlu0 %v106
  %v108 = vpop.xlane.xlu0 %107
  %v109 = vsel %vm105, %v104, 0.0
  %110 = vadd.xlane.f32.xlu0 %v109
  %v111 = vpop.xlane.xlu0 %110
  %v112 = vrcp.pop 3.0
  %v113 = vmul.f32 %v108, %v112
  %v114 = vmul.f32 %v111, %v112
  %v115 = vrsqrt.pop %v113
  %v116 = vrsqrt.pop %v114
  %v117 = vmul.f32 %v36, %v115
  %v118 = vmul.f32 %v37, %v116
  %v119 = vmul.f32 %v38, %v115
  %v120 = vmul.f32 %v39, %v116
  %v121 = vmul.f32 %v40, %v115
  %v122 = vmul.f32 %v41, %v116
  %v124 = vsel %vm105, %v117, 0
  %v127 = vsel %vm105, %v118, 0
  %v130 = vsel %vm105, %v119, 0
  %v133 = vsel %vm105, %v120, 0
  %v136 = vsel %vm105, %v121, 0
  %v139 = vsel %vm105, %v122, 0
  %vm141 = vcmask 1042432
  %v143 = vsel %vm141, %v44, 0
  %145 = vmatprep.subr.mxu0 0.0
  %146 = vmatpush1.msra.mxu0 %v143
  %147 = vmatprep.subr.mxu0 0.0
  %148 = vmatpush1.msra.mxu0 0.0
  %149 = vmatprep.subr.mxu0 0.0
  %150 = vmatpush1.msra.mxu0 0.0
  %151 = vmatprep.subr.mxu0 0.0
  %152 = vmatpush1.msra.mxu0 0.0
  %153 = vmatprep.subr.mxu0 0.0
  %154 = vmatpush1.msra.mxu0 0.0
  %155 = vmatprep.subr.mxu0 0.0
  %156 = vmatpush1.msra.mxu0 0.0
  %157 = vmatprep.subr.mxu0 0.0
  %158 = vmatpush1.msra.mxu0 0.0
  %159 = vmatprep.subr.mxu0 0.0
  %160 = vmatpush1.msra.mxu0 0.0
  %161 = vmatprep.subr.mxu0 0.0
  %162 = vmatpush1.msra.mxu0 0.0
  %163 = vmatprep.subr.mxu0 0.0
  %164 = vmatpush1.msra.mxu0 0.0
  %165 = vmatprep.subr.mxu0 0.0
  %166 = vmatpush1.msra.mxu0 0.0
  %167 = vmatprep.subr.mxu0 0.0
  %168 = vmatpush1.msra.mxu0 0.0
  %169 = vmatprep.subr.mxu0 0.0
  %170 = vmatpush1.msra.mxu0 0.0
  %171 = vmatprep.subr.mxu0 0.0
  %172 = vmatpush1.msra.mxu0 0.0
  %173 = vmatprep.subr.mxu0 0.0
  %174 = vmatpush1.msra.mxu0 0.0
  %175 = vmatprep.subr.mxu0 0.0
  %176 = vmatpush1.msra.mxu0 0.0
  %177 = vmatprep.subr.mxu0 0.0
  %178 = vmatpush1.msra.mxu0 0.0
  %179 = vmatprep.subr.mxu0 0.0
  %180 = vmatpush1.msra.mxu0 0.0
  %181 = vmatprep.subr.mxu0 0.0
  %182 = vmatpush1.msra.mxu0 0.0
  %183 = vmatprep.subr.mxu0 0.0
  %184 = vmatpush1.msra.mxu0 0.0
  %185 = vmatprep.subr.mxu0 0.0
  %186 = vmatpush1.msra.mxu0 0.0
  %187 = vmatprep.subr.mxu0 0.0
  %188 = vmatpush1.msra.mxu0 0.0
  %189 = vmatprep.subr.mxu0 0.0
  %190 = vmatpush1.msra.mxu0 0.0
  %191 = vmatprep.subr.mxu0 0.0
  %192 = vmatpush1.msra.mxu0 0.0
  %193 = vmatprep.subr.mxu0 0.0
  %194 = vmatpush1.msra.mxu0 0.0
  %195 = vmatprep.subr.mxu0 0.0
  %196 = vmatpush1.msra.mxu0 0.0
  %197 = vmatprep.subr.mxu0 0.0
  %198 = vmatpush1.msra.mxu0 0.0
  %199 = vmatprep.subr.mxu0 0.0
  %200 = vmatpush1.msra.mxu0 0.0
  %201 = vmatprep.subr.mxu0 0.0
  %202 = vmatpush1.msra.mxu0 0.0
  %203 = vmatprep.subr.mxu0 0.0
  %204 = vmatpush1.msra.mxu0 0.0
  %205 = vmatprep.subr.mxu0 0.0
  %206 = vmatpush1.msra.mxu0 0.0
  %207 = vmatprep.subr.mxu0 0.0
  %208 = vmatpush1.msra.mxu0 0.0
  %209 = vmatprep.mubr.f32.mxu0 0.0
  %210 = vmatmul.mubr.f32.gmra.mrb[0].mxu0 %v124
  %v211 = vpop.f32.mrb[0].mxu0
  %v212 = vadd.f32 0.0, %v211
  %v213 = vpop.f32.mrb[0].mxu0
  %214 = vmatprep.mubr.f32.mxu0 0.0
  %215 = vmatmul.mubr.f32.gmra.mrb[0].mxu0 %v127
  %v216 = vpop.f32.mrb[0].mxu0
  %v217 = vadd.f32 0.0, %v216
  %v218 = vpop.f32.mrb[0].mxu0
  %219 = vmatprep.mubr.f32.mxu0 0.0
  %220 = vmatmul.mubr.f32.gmra.mrb[0].mxu0 %v130
  %v221 = vpop.f32.mrb[0].mxu0
  %v222 = vadd.f32 0.0, %v221
  %v223 = vpop.f32.mrb[0].mxu0
  %224 = vmatprep.mubr.f32.mxu0 0.0
  %225 = vmatmul.mubr.f32.gmra.mrb[0].mxu0 %v133
  %v226 = vpop.f32.mrb[0].mxu0
  %v227 = vadd.f32 0.0, %v226
  %v228 = vpop.f32.mrb[0].mxu0
  %229 = vmatprep.mubr.f32.mxu0 0.0
  %230 = vmatmul.mubr.f32.gmra.mrb[0].mxu0 %v136
  %v231 = vpop.f32.mrb[0].mxu0
  %v232 = vadd.f32 0.0, %v231
  %v233 = vpop.f32.mrb[0].mxu0
  %234 = vmatprep.mubr.f32.mxu0 0.0
  %235 = vmatmul.mubr.f32.gmra.mrb[0].mxu0 %v139
  %v236 = vpop.f32.mrb[0].mxu0
  %v237 = vadd.f32 0.0, %v236
  %v238 = vpop.f32.mrb[0].mxu0
  %239 = vdwg.mxu0
  %v240 = vmul.f32 %v212, %v212
  %v241 = vmul.f32 %v217, %v217
  %v242 = vmul.f32 %v222, %v222
  %v243 = vmul.f32 %v227, %v227
  %v244 = vadd.f32 %v240, %v242
  %v245 = vadd.f32 %v241, %v243
  %v246 = vmul.f32 %v232, %v232
  %v247 = vmul.f32 %v237, %v237
  %v248 = vadd.f32 %v244, %v246
  %v249 = vadd.f32 %v245, %v247
  %v250 = vmax.f32 %v248, 1e-08
  %v251 = vmax.f32 %v249, 1e-08
  %v252 = vrsqrt.pop %v250
  %v253 = vmul.f32 %v250, %v252
  %vm254 = vcmp.eq.f32.partialorder %v250, inf
  %v255 = vsel %vm254, %v250, %v253
  %vm256 = vcmp.eq.f32.partialorder %v250, 0.0
  %v257 = vand.u32 %v250, 2147483648
  %v258 = vsel %vm256, %v257, %v255
  %v259 = vrsqrt.pop %v251
  %v260 = vmul.f32 %v251, %v259
  %vm261 = vcmp.eq.f32.partialorder %v251, inf
  %v262 = vsel %vm261, %v251, %v260
  %vm263 = vcmp.eq.f32.partialorder %v251, 0.0
  %v264 = vand.u32 %v251, 2147483648
  %v265 = vsel %vm263, %v264, %v262
  %v267 = vsel %vm49, %v91, 0
  %v270 = vsel %vm49, %v92, 0
  %vm272 = vcmask 1045504
  %v274 = vsel %vm272, %v45, 0
  %276 = vmatprep.subr.mxu0 0.0
  %277 = vmatpush1.msra.mxu0 %v274
  %278 = vmatprep.subr.mxu0 0.0
  %279 = vmatpush1.msra.mxu0 0.0
  %280 = vmatprep.subr.mxu0 0.0
  %281 = vmatpush1.msra.mxu0 0.0
  %282 = vmatprep.subr.mxu0 0.0
  %283 = vmatpush1.msra.mxu0 0.0
  %284 = vmatprep.subr.mxu0 0.0
  %285 = vmatpush1.msra.mxu0 0.0
  %286 = vmatprep.subr.mxu0 0.0
  %287 = vmatpush1.msra.mxu0 0.0
  %288 = vmatprep.subr.mxu0 0.0
  %289 = vmatpush1.msra.mxu0 0.0
  %290 = vmatprep.subr.mxu0 0.0
  %291 = vmatpush1.msra.mxu0 0.0
  %292 = vmatprep.subr.mxu0 0.0
  %293 = vmatpush1.msra.mxu0 0.0
  %294 = vmatprep.subr.mxu0 0.0
  %295 = vmatpush1.msra.mxu0 0.0
  %296 = vmatprep.subr.mxu0 0.0
  %297 = vmatpush1.msra.mxu0 0.0
  %298 = vmatprep.subr.mxu0 0.0
  %299 = vmatpush1.msra.mxu0 0.0
  %300 = vmatprep.subr.mxu0 0.0
  %301 = vmatpush1.msra.mxu0 0.0
  %302 = vmatprep.subr.mxu0 0.0
  %303 = vmatpush1.msra.mxu0 0.0
  %304 = vmatprep.subr.mxu0 0.0
  %305 = vmatpush1.msra.mxu0 0.0
  %306 = vmatprep.subr.mxu0 0.0
  %307 = vmatpush1.msra.mxu0 0.0
  %308 = vmatprep.subr.mxu0 0.0
  %309 = vmatpush1.msra.mxu0 0.0
  %310 = vmatprep.subr.mxu0 0.0
  %311 = vmatpush1.msra.mxu0 0.0
  %312 = vmatprep.subr.mxu0 0.0
  %313 = vmatpush1.msra.mxu0 0.0
  %314 = vmatprep.subr.mxu0 0.0
  %315 = vmatpush1.msra.mxu0 0.0
  %316 = vmatprep.subr.mxu0 0.0
  %317 = vmatpush1.msra.mxu0 0.0
  %318 = vmatprep.subr.mxu0 0.0
  %319 = vmatpush1.msra.mxu0 0.0
  %320 = vmatprep.subr.mxu0 0.0
  %321 = vmatpush1.msra.mxu0 0.0
  %322 = vmatprep.subr.mxu0 0.0
  %323 = vmatpush1.msra.mxu0 0.0
  %324 = vmatprep.subr.mxu0 0.0
  %325 = vmatpush1.msra.mxu0 0.0
  %326 = vmatprep.subr.mxu0 0.0
  %327 = vmatpush1.msra.mxu0 0.0
  %328 = vmatprep.subr.mxu0 0.0
  %329 = vmatpush1.msra.mxu0 0.0
  %330 = vmatprep.subr.mxu0 0.0
  %331 = vmatpush1.msra.mxu0 0.0
  %332 = vmatprep.subr.mxu0 0.0
  %333 = vmatpush1.msra.mxu0 0.0
  %334 = vmatprep.subr.mxu0 0.0
  %335 = vmatpush1.msra.mxu0 0.0
  %336 = vmatprep.subr.mxu0 0.0
  %337 = vmatpush1.msra.mxu0 0.0
  %338 = vmatprep.subr.mxu0 0.0
  %339 = vmatpush1.msra.mxu0 0.0
  %340 = vmatprep.mubr.f32.mxu0 0.0
  %341 = vmatmul.mubr.f32.gmra.mrb[0].mxu0 %v267
  %v342 = vpop.f32.mrb[0].mxu0
  %v343 = vadd.f32 0.0, %v342
  %v344 = vpop.f32.mrb[0].mxu0
  %345 = vmatprep.mubr.f32.mxu0 0.0
  %346 = vmatmul.mubr.f32.gmra.mrb[0].mxu0 %v270
  %v347 = vpop.f32.mrb[0].mxu0
  %v348 = vadd.f32 0.0, %v347
  %v349 = vpop.f32.mrb[0].mxu0
  %350 = vdwg.mxu0
  %v352 = vlaneseq
  %v353 = vshrl.u32 %v352, 7
  %v354 = vsub.s32 0, %v353
  %v355 = vrot.slane %v47, %v354
  %v357 = vadd.f32 %v355, %v343
  %v358 = vadd.f32 %v355, %v348
  %vm359 = vcmask 31744
  %v361 = vsel %vm359, %v258, 0
  %v364 = vsel %vm359, %v265, 0
  %vm366 = vcmask 1043456
  %v368 = vsel %vm366, %v46, 0
  %370 = vmatprep.subr.mxu0 0.0
  %371 = vmatpush1.msra.mxu0 %v368
  %372 = vmatprep.subr.mxu0 0.0
  %373 = vmatpush1.msra.mxu0 0.0
  %374 = vmatprep.subr.mxu0 0.0
  %375 = vmatpush1.msra.mxu0 0.0
  %376 = vmatprep.subr.mxu0 0.0
  %377 = vmatpush1.msra.mxu0 0.0
  %378 = vmatprep.subr.mxu0 0.0
  %379 = vmatpush1.msra.mxu0 0.0
  %380 = vmatprep.subr.mxu0 0.0
  %381 = vmatpush1.msra.mxu0 0.0
  %382 = vmatprep.subr.mxu0 0.0
  %383 = vmatpush1.msra.mxu0 0.0
  %384 = vmatprep.subr.mxu0 0.0
  %385 = vmatpush1.msra.mxu0 0.0
  %386 = vmatprep.subr.mxu0 0.0
  %387 = vmatpush1.msra.mxu0 0.0
  %388 = vmatprep.subr.mxu0 0.0
  %389 = vmatpush1.msra.mxu0 0.0
  %390 = vmatprep.subr.mxu0 0.0
  %391 = vmatpush1.msra.mxu0 0.0
  %392 = vmatprep.subr.mxu0 0.0
  %393 = vmatpush1.msra.mxu0 0.0
  %394 = vmatprep.subr.mxu0 0.0
  %395 = vmatpush1.msra.mxu0 0.0
  %396 = vmatprep.subr.mxu0 0.0
  %397 = vmatpush1.msra.mxu0 0.0
  %398 = vmatprep.subr.mxu0 0.0
  %399 = vmatpush1.msra.mxu0 0.0
  %400 = vmatprep.subr.mxu0 0.0
  %401 = vmatpush1.msra.mxu0 0.0
  %402 = vmatprep.subr.mxu0 0.0
  %403 = vmatpush1.msra.mxu0 0.0
  %404 = vmatprep.subr.mxu0 0.0
  %405 = vmatpush1.msra.mxu0 0.0
  %406 = vmatprep.subr.mxu0 0.0
  %407 = vmatpush1.msra.mxu0 0.0
  %408 = vmatprep.subr.mxu0 0.0
  %409 = vmatpush1.msra.mxu0 0.0
  %410 = vmatprep.subr.mxu0 0.0
  %411 = vmatpush1.msra.mxu0 0.0
  %412 = vmatprep.subr.mxu0 0.0
  %413 = vmatpush1.msra.mxu0 0.0
  %414 = vmatprep.subr.mxu0 0.0
  %415 = vmatpush1.msra.mxu0 0.0
  %416 = vmatprep.subr.mxu0 0.0
  %417 = vmatpush1.msra.mxu0 0.0
  %418 = vmatprep.subr.mxu0 0.0
  %419 = vmatpush1.msra.mxu0 0.0
  %420 = vmatprep.subr.mxu0 0.0
  %421 = vmatpush1.msra.mxu0 0.0
  %422 = vmatprep.subr.mxu0 0.0
  %423 = vmatpush1.msra.mxu0 0.0
  %424 = vmatprep.subr.mxu0 0.0
  %425 = vmatpush1.msra.mxu0 0.0
  %426 = vmatprep.subr.mxu0 0.0
  %427 = vmatpush1.msra.mxu0 0.0
  %428 = vmatprep.subr.mxu0 0.0
  %429 = vmatpush1.msra.mxu0 0.0
  %430 = vmatprep.subr.mxu0 0.0
  %431 = vmatpush1.msra.mxu0 0.0
  %432 = vmatprep.subr.mxu0 0.0
  %433 = vmatpush1.msra.mxu0 0.0
  %434 = vmatprep.mubr.f32.mxu0 0.0
  %435 = vmatmul.mubr.f32.gmra.mrb[0].mxu0 %v361
  %v436 = vpop.f32.mrb[0].mxu0
  %v437 = vadd.f32 0.0, %v436
  %v438 = vpop.f32.mrb[0].mxu0
  %439 = vmatprep.mubr.f32.mxu0 0.0
  %440 = vmatmul.mubr.f32.gmra.mrb[0].mxu0 %v364
  %v441 = vpop.f32.mrb[0].mxu0
  %v442 = vadd.f32 0.0, %v441
  %v443 = vpop.f32.mrb[0].mxu0
  %444 = vdwg.mxu0
  %v445 = vadd.f32 %v357, %v437
  %v446 = vadd.f32 %v358, %v442
  %v448 = vsel %vm359, %v212, 0
  %v451 = vsel %vm359, %v217, 0
  %v454 = vsel %vm359, %v222, 0
  %v457 = vsel %vm359, %v227, 0
  %v460 = vsel %vm359, %v232, 0
  %v463 = vsel %vm359, %v237, 0
  %v466 = vsel %vm366, %v48, 0
  %468 = vmatprep.subr.mxu0 0.0
  %469 = vmatpush1.msra.mxu0 %v466
  %470 = vmatprep.subr.mxu0 0.0
  %471 = vmatpush1.msra.mxu0 0.0
  %472 = vmatprep.subr.mxu0 0.0
  %473 = vmatpush1.msra.mxu0 0.0
  %474 = vmatprep.subr.mxu0 0.0
  %475 = vmatpush1.msra.mxu0 0.0
  %476 = vmatprep.subr.mxu0 0.0
  %477 = vmatpush1.msra.mxu0 0.0
  %478 = vmatprep.subr.mxu0 0.0
  %479 = vmatpush1.msra.mxu0 0.0
  %480 = vmatprep.subr.mxu0 0.0
  %481 = vmatpush1.msra.mxu0 0.0
  %482 = vmatprep.subr.mxu0 0.0
  %483 = vmatpush1.msra.mxu0 0.0
  %484 = vmatprep.subr.mxu0 0.0
  %485 = vmatpush1.msra.mxu0 0.0
  %486 = vmatprep.subr.mxu0 0.0
  %487 = vmatpush1.msra.mxu0 0.0
  %488 = vmatprep.subr.mxu0 0.0
  %489 = vmatpush1.msra.mxu0 0.0
  %490 = vmatprep.subr.mxu0 0.0
  %491 = vmatpush1.msra.mxu0 0.0
  %492 = vmatprep.subr.mxu0 0.0
  %493 = vmatpush1.msra.mxu0 0.0
  %494 = vmatprep.subr.mxu0 0.0
  %495 = vmatpush1.msra.mxu0 0.0
  %496 = vmatprep.subr.mxu0 0.0
  %497 = vmatpush1.msra.mxu0 0.0
  %498 = vmatprep.subr.mxu0 0.0
  %499 = vmatpush1.msra.mxu0 0.0
  %500 = vmatprep.subr.mxu0 0.0
  %501 = vmatpush1.msra.mxu0 0.0
  %502 = vmatprep.subr.mxu0 0.0
  %503 = vmatpush1.msra.mxu0 0.0
  %504 = vmatprep.subr.mxu0 0.0
  %505 = vmatpush1.msra.mxu0 0.0
  %506 = vmatprep.subr.mxu0 0.0
  %507 = vmatpush1.msra.mxu0 0.0
  %508 = vmatprep.subr.mxu0 0.0
  %509 = vmatpush1.msra.mxu0 0.0
  %510 = vmatprep.subr.mxu0 0.0
  %511 = vmatpush1.msra.mxu0 0.0
  %512 = vmatprep.subr.mxu0 0.0
  %513 = vmatpush1.msra.mxu0 0.0
  %514 = vmatprep.subr.mxu0 0.0
  %515 = vmatpush1.msra.mxu0 0.0
  %516 = vmatprep.subr.mxu0 0.0
  %517 = vmatpush1.msra.mxu0 0.0
  %518 = vmatprep.subr.mxu0 0.0
  %519 = vmatpush1.msra.mxu0 0.0
  %520 = vmatprep.subr.mxu0 0.0
  %521 = vmatpush1.msra.mxu0 0.0
  %522 = vmatprep.subr.mxu0 0.0
  %523 = vmatpush1.msra.mxu0 0.0
  %524 = vmatprep.subr.mxu0 0.0
  %525 = vmatpush1.msra.mxu0 0.0
  %526 = vmatprep.subr.mxu0 0.0
  %527 = vmatpush1.msra.mxu0 0.0
  %528 = vmatprep.subr.mxu0 0.0
  %529 = vmatpush1.msra.mxu0 0.0
  %530 = vmatprep.subr.mxu0 0.0
  %531 = vmatpush1.msra.mxu0 0.0
  %532 = vmatprep.mubr.f32.mxu0 0.0
  %533 = vmatmul.mubr.f32.gmra.mrb[0].mxu0 %v448
  %v534 = vpop.f32.mrb[0].mxu0
  %v535 = vadd.f32 0.0, %v534
  %v536 = vpop.f32.mrb[0].mxu0
  %537 = vmatprep.mubr.f32.mxu0 0.0
  %538 = vmatmul.mubr.f32.gmra.mrb[0].mxu0 %v451
  %v539 = vpop.f32.mrb[0].mxu0
  %v540 = vadd.f32 0.0, %v539
  %v541 = vpop.f32.mrb[0].mxu0
  %542 = vmatprep.mubr.f32.mxu0 0.0
  %543 = vmatmul.mubr.f32.gmra.mrb[0].mxu0 %v454
  %v544 = vpop.f32.mrb[0].mxu0
  %v545 = vadd.f32 0.0, %v544
  %v546 = vpop.f32.mrb[0].mxu0
  %547 = vmatprep.mubr.f32.mxu0 0.0
  %548 = vmatmul.mubr.f32.gmra.mrb[0].mxu0 %v457
  %v549 = vpop.f32.mrb[0].mxu0
  %v550 = vadd.f32 0.0, %v549
  %v551 = vpop.f32.mrb[0].mxu0
  %552 = vmatprep.mubr.f32.mxu0 0.0
  %553 = vmatmul.mubr.f32.gmra.mrb[0].mxu0 %v460
  %v554 = vpop.f32.mrb[0].mxu0
  %v555 = vadd.f32 0.0, %v554
  %v556 = vpop.f32.mrb[0].mxu0
  %557 = vmatprep.mubr.f32.mxu0 0.0
  %558 = vmatmul.mubr.f32.gmra.mrb[0].mxu0 %v463
  %v559 = vpop.f32.mrb[0].mxu0
  %v560 = vadd.f32 0.0, %v559
  %v561 = vpop.f32.mrb[0].mxu0
  %562 = vdwg.mxu0
  %vm563 = vcmask 261120
  %564 = vst.msk [vmem:[%s9] sm:$0xff] %vm563, %v445
  %565 = vst.msk [vmem:[%s9 + $0x8] sm:$0xff] %vm563, %v446
  %566 = vst.msk [vmem:[%s10] sm:$0xff] %vm359, %v535
  %567 = vst.msk [vmem:[%s10 + $0x8] sm:$0xff] %vm359, %v540
  %568 = vst.msk [vmem:[%s10 + $0x10] sm:$0xff] %vm359, %v545
  %569 = vst.msk [vmem:[%s10 + $0x18] sm:$0xff] %vm359, %v550
  %570 = vst.msk [vmem:[%s10 + $0x20] sm:$0xff] %vm359, %v555
  %571 = vst.msk [vmem:[%s10 + $0x28] sm:$0xff] %vm359, %v560
  // Predicated region
  $region38: #{_lambda_.3} parent=0 // pred_check
    _
  $region39: #{_lambda_.3} parent=0 // pred_check_branch
    %573 = sbr.rel (0) target = $region41
  $region40: #{_lambda_.3} parent=0 // pred_region
    _
  $region41: #{_lambda_.3} parent=0 // pred_fallthru
    _
  // Predicated region
  $region42: #{_lambda_.3} parent=0 // pred_check
    _
  $region43: #{_lambda_.3} parent=0 // pred_check_branch
    %575 = sbr.rel (0) target = $region45
  $region44: #{_lambda_.3} parent=0 // pred_region
    _
  $region45: #{_lambda_.3} parent=0 // pred_fallthru
    _
  // Predicated region
  $region46: #{_lambda_.3} parent=0 // pred_check
    _
  $region47: #{_lambda_.3} parent=0 // pred_check_branch
    %577 = sbr.rel (0) target = $region49
  $region48: #{_lambda_.3} parent=0 // pred_region
    _
  $region49: #{_lambda_.3} parent=0 // pred_fallthru
    _
  // Predicated region
  $region50: #{_lambda_.3} parent=0 // pred_check
    _
  $region51: #{_lambda_.3} parent=0 // pred_check_branch
    %579 = sbr.rel (0) target = $region53
  $region52: #{_lambda_.3} parent=0 // pred_region
    _
  $region53: #{_lambda_.3} parent=0 // pred_fallthru
    _

// kernel: _lambda_.4
$region0: #{_lambda_.4}
  #allocation0 [shape = 'u32[]', space=smem, size = 0x4, offset = 0x4, fixed_abs, tag = 'smem constant byte address 0x4 - core index']
  #allocation1 [shape = 'u32[144,128]{1,0:T(1,128)}', space=vmem, size = 0x12000, scoped, tag = 'internal scratch']
  %s0 = inlined_call_operand.vmem [shape: f32[24,8], index: 0, kind: input, shape index: {}]
  %s1 = inlined_call_operand.vmem [shape: f32[3,24,1], index: 1, kind: input, shape index: {}]
  %s2 = inlined_call_operand.vmem [shape: f32[1,8], index: 2, kind: input, shape index: {}]
  %s3 = inlined_call_operand.vmem [shape: f32[1,8], index: 3, kind: input, shape index: {}]
  %s4 = inlined_call_operand.vmem [shape: f32[1,2], index: 4, kind: input, shape index: {}]
  %s5 = inlined_call_operand.vmem [shape: f32[8,16], index: 5, kind: input, shape index: {}]
  %s6 = inlined_call_operand.vmem [shape: f32[2,16], index: 6, kind: input, shape index: {}]
  %s7 = inlined_call_operand.vmem [shape: f32[1,16], index: 7, kind: input, shape index: {}]
  %s8 = inlined_call_operand.vmem [shape: f32[2,2], index: 8, kind: input, shape index: {}]
  %s9 = inlined_call_operand.vmem [shape: f32[24,16], index: 9, kind: output, shape index: {0}]
  %s10 = inlined_call_operand.vmem [shape: f32[3,24,2], index: 10, kind: output, shape index: {1}]
  %11 = xla_tuple %s9, %s10
  %s12 = sld [smem:[#allocation0]]
  $region54: #{_lambda_.4} parent=0
    _
  %s14 = ssub.s32 1, %s12
  %s15 = scalar_select 0, %s14, %s12
  // Predicated region
  $region2: #{_lambda_.4} parent=0 // pred_check
    _
  $region3: #{_lambda_.4} parent=0 // pred_check_branch
    %17 = sbr.rel (0) target = $region5
  $region4: #{_lambda_.4} parent=0 // pred_region
    _
  $region5: #{_lambda_.4} parent=0 // pred_fallthru
    _
  // Predicated region
  $region6: #{_lambda_.4} parent=0 // pred_check
    _
  $region7: #{_lambda_.4} parent=0 // pred_check_branch
    %19 = sbr.rel (0) target = $region9
  $region8: #{_lambda_.4} parent=0 // pred_region
    _
  $region9: #{_lambda_.4} parent=0 // pred_fallthru
    _
  // Predicated region
  $region10: #{_lambda_.4} parent=0 // pred_check
    _
  $region11: #{_lambda_.4} parent=0 // pred_check_branch
    %21 = sbr.rel (0) target = $region13
  $region12: #{_lambda_.4} parent=0 // pred_region
    _
  $region13: #{_lambda_.4} parent=0 // pred_fallthru
    _
  // Predicated region
  $region14: #{_lambda_.4} parent=0 // pred_check
    _
  $region15: #{_lambda_.4} parent=0 // pred_check_branch
    %23 = sbr.rel (0) target = $region17
  $region16: #{_lambda_.4} parent=0 // pred_region
    _
  $region17: #{_lambda_.4} parent=0 // pred_fallthru
    _
  // Predicated region
  $region18: #{_lambda_.4} parent=0 // pred_check
    _
  $region19: #{_lambda_.4} parent=0 // pred_check_branch
    %25 = sbr.rel (0) target = $region21
  $region20: #{_lambda_.4} parent=0 // pred_region
    _
  $region21: #{_lambda_.4} parent=0 // pred_fallthru
    _
  // Predicated region
  $region22: #{_lambda_.4} parent=0 // pred_check
    _
  $region23: #{_lambda_.4} parent=0 // pred_check_branch
    %27 = sbr.rel (0) target = $region25
  $region24: #{_lambda_.4} parent=0 // pred_region
    _
  $region25: #{_lambda_.4} parent=0 // pred_fallthru
    _
  // Predicated region
  $region26: #{_lambda_.4} parent=0 // pred_check
    _
  $region27: #{_lambda_.4} parent=0 // pred_check_branch
    %29 = sbr.rel (0) target = $region29
  $region28: #{_lambda_.4} parent=0 // pred_region
    _
  $region29: #{_lambda_.4} parent=0 // pred_fallthru
    _
  // Predicated region
  $region30: #{_lambda_.4} parent=0 // pred_check
    _
  $region31: #{_lambda_.4} parent=0 // pred_check_branch
    %31 = sbr.rel (0) target = $region33
  $region32: #{_lambda_.4} parent=0 // pred_region
    _
  $region33: #{_lambda_.4} parent=0 // pred_fallthru
    _
  // Predicated region
  $region34: #{_lambda_.4} parent=0 // pred_check
    _
  $region35: #{_lambda_.4} parent=0 // pred_check_branch
    %33 = sbr.rel (0) target = $region37
  $region36: #{_lambda_.4} parent=0 // pred_region
    _
  $region37: #{_lambda_.4} parent=0 // pred_fallthru
    _
  %v34 = vld [vmem:[%s0] sm:$0xff]
  %v35 = vld [vmem:[%s0 + $0x8] sm:$0xff]
  %v36 = vld [vmem:[%s0 + $0x10] sm:$0xff]
  %v37 = vld [vmem:[%s1] sm:$0xff]
  %v38 = vld [vmem:[%s1 + $0x8] sm:$0xff]
  %v39 = vld [vmem:[%s1 + $0x10] sm:$0xff]
  %v40 = vld [vmem:[%s1 + $0x18] sm:$0xff]
  %v41 = vld [vmem:[%s1 + $0x20] sm:$0xff]
  %v42 = vld [vmem:[%s1 + $0x28] sm:$0xff]
  %v43 = vld [vmem:[%s1 + $0x30] sm:$0xff]
  %v44 = vld [vmem:[%s1 + $0x38] sm:$0xff]
  %v45 = vld [vmem:[%s1 + $0x40] sm:$0xff]
  %v46 = vld [vmem:[%s2] sm:$0x1]
  %v47 = vld [vmem:[%s3] sm:$0x1]
  %v48 = vld [vmem:[%s4] sm:$0x1]
  %v49 = vld [vmem:[%s5] sm:$0xff]
  %v50 = vld [vmem:[%s6] sm:$0x3]
  %v51 = vld [vmem:[%s7] sm:$0x1]
  %v52 = vld [vmem:[%s8] sm:$0x3]
  %vm53 = vcmask 64512
  %v54 = vsel %vm53, %v34, 0.0
  %55 = vadd.xlane.f32.xlu0 %v54
  %v56 = vpop.xlane.xlu0 %55
  %v57 = vsel %vm53, %v35, 0.0
  %58 = vadd.xlane.f32.xlu0 %v57
  %v59 = vpop.xlane.xlu0 %58
  %v60 = vsel %vm53, %v36, 0.0
  %61 = vadd.xlane.f32.xlu0 %v60
  %v62 = vpop.xlane.xlu0 %61
  %v63 = vrcp.pop 8.0
  %v64 = vmul.f32 %v56, %v63
  %v65 = vmul.f32 %v59, %v63
  %v66 = vmul.f32 %v62, %v63
  %v67 = vsub.f32 %v34, %v64
  %v68 = vsub.f32 %v35, %v65
  %v69 = vsub.f32 %v36, %v66
  %v70 = vmul.f32 %v67, %v67
  %v71 = vmul.f32 %v68, %v68
  %v72 = vmul.f32 %v69, %v69
  %v73 = vsel %vm53, %v70, 0.0
  %74 = vadd.xlane.f32.xlu0 %v73
  %v75 = vpop.xlane.xlu0 %74
  %v76 = vsel %vm53, %v71, 0.0
  %77 = vadd.xlane.f32.xlu0 %v76
  %v78 = vpop.xlane.xlu0 %77
  %v79 = vsel %vm53, %v72, 0.0
  %80 = vadd.xlane.f32.xlu0 %v79
  %v81 = vpop.xlane.xlu0 %80
  %v82 = vmul.f32 %v75, %v63
  %v83 = vmul.f32 %v78, %v63
  %v84 = vmul.f32 %v81, %v63
  %v85 = vadd.f32 %v82, 1e-05
  %v86 = vadd.f32 %v83, 1e-05
  %v87 = vadd.f32 %v84, 1e-05
  %v88 = vrsqrt.pop %v85
  %v89 = vrsqrt.pop %v86
  %v90 = vrsqrt.pop %v87
  %v91 = vmul.f32 %v67, %v88
  %v92 = vmul.f32 %v68, %v89
  %v93 = vmul.f32 %v69, %v90
  %v95 = vlaneseq
  %v96 = vshrl.u32 %v95, 7
  %v97 = vsub.s32 0, %v96
  %v98 = vrot.slane %v46, %v97
  %v100 = vmul.f32 %v91, %v98
  %v101 = vmul.f32 %v92, %v98
  %v102 = vmul.f32 %v93, %v98
  %v104 = vlaneseq
  %v105 = vshrl.u32 %v104, 7
  %v106 = vsub.s32 0, %v105
  %v107 = vrot.slane %v47, %v106
  %v109 = vadd.f32 %v100, %v107
  %v110 = vadd.f32 %v101, %v107
  %v111 = vadd.f32 %v102, %v107
  %v112 = vmul.f32 %v37, %v37
  %v113 = vmul.f32 %v38, %v38
  %v114 = vmul.f32 %v39, %v39
  %v115 = vmul.f32 %v40, %v40
  %v116 = vmul.f32 %v41, %v41
  %v117 = vmul.f32 %v42, %v42
  %v118 = vadd.f32 %v112, %v115
  %v119 = vadd.f32 %v113, %v116
  %v120 = vadd.f32 %v114, %v117
  %v121 = vmul.f32 %v43, %v43
  %v122 = vmul.f32 %v44, %v44
  %v123 = vmul.f32 %v45, %v45
  %v124 = vadd.f32 %v118, %v121
  %v125 = vadd.f32 %v119, %v122
  %v126 = vadd.f32 %v120, %v123
  %v127 = vmax.f32 %v124, 1e-08
  %v128 = vmax.f32 %v125, 1e-08
  %v129 = vmax.f32 %v126, 1e-08
  %v130 = vadd.f32 %v127, 0.0
  %v131 = vadd.f32 %v128, 0.0
  %v132 = vadd.f32 %v129, 0.0
  %v133 = vrsqrt.pop %v130
  %v134 = vrsqrt.pop %v131
  %v135 = vrsqrt.pop %v132
  %v136 = vmul.f32 %v37, %v133
  %v137 = vmul.f32 %v38, %v134
  %v138 = vmul.f32 %v39, %v135
  %v139 = vmul.f32 %v40, %v133
  %v140 = vmul.f32 %v41, %v134
  %v141 = vmul.f32 %v42, %v135
  %v142 = vmul.f32 %v43, %v133
  %v143 = vmul.f32 %v44, %v134
  %v144 = vmul.f32 %v45, %v135
  %vm145 = vcmask 7168
  %v147 = vsel %vm145, %v136, 0
  %v150 = vsel %vm145, %v137, 0
  %v153 = vsel %vm145, %v138, 0
  %v156 = vsel %vm145, %v139, 0
  %v159 = vsel %vm145, %v140, 0
  %v162 = vsel %vm145, %v141, 0
  %v165 = vsel %vm145, %v142, 0
  %v168 = vsel %vm145, %v143, 0
  %v171 = vsel %vm145, %v144, 0
  %vm173 = vcmask 1040384
  %v175 = vsel %vm173, %v48, 0
  %177 = vmatprep.subr.mxu0 0.0
  %178 = vmatpush1.msra.mxu0 %v175
  %179 = vmatprep.subr.mxu0 0.0
  %180 = vmatpush1.msra.mxu0 0.0
  %181 = vmatprep.subr.mxu0 0.0
  %182 = vmatpush1.msra.mxu0 0.0
  %183 = vmatprep.subr.mxu0 0.0
  %184 = vmatpush1.msra.mxu0 0.0
  %185 = vmatprep.subr.mxu0 0.0
  %186 = vmatpush1.msra.mxu0 0.0
  %187 = vmatprep.subr.mxu0 0.0
  %188 = vmatpush1.msra.mxu0 0.0
  %189 = vmatprep.subr.mxu0 0.0
  %190 = vmatpush1.msra.mxu0 0.0
  %191 = vmatprep.subr.mxu0 0.0
  %192 = vmatpush1.msra.mxu0 0.0
  %193 = vmatprep.subr.mxu0 0.0
  %194 = vmatpush1.msra.mxu0 0.0
  %195 = vmatprep.subr.mxu0 0.0
  %196 = vmatpush1.msra.mxu0 0.0
  %197 = vmatprep.subr.mxu0 0.0
  %198 = vmatpush1.msra.mxu0 0.0
  %199 = vmatprep.subr.mxu0 0.0
  %200 = vmatpush1.msra.mxu0 0.0
  %201 = vmatprep.subr.mxu0 0.0
  %202 = vmatpush1.msra.mxu0 0.0
  %203 = vmatprep.subr.mxu0 0.0
  %204 = vmatpush1.msra.mxu0 0.0
  %205 = vmatprep.subr.mxu0 0.0
  %206 = vmatpush1.msra.mxu0 0.0
  %207 = vmatprep.subr.mxu0 0.0
  %208 = vmatpush1.msra.mxu0 0.0
  %209 = vmatprep.subr.mxu0 0.0
  %210 = vmatpush1.msra.mxu0 0.0
  %211 = vmatprep.subr.mxu0 0.0
  %212 = vmatpush1.msra.mxu0 0.0
  %213 = vmatprep.subr.mxu0 0.0
  %214 = vmatpush1.msra.mxu0 0.0
  %215 = vmatprep.subr.mxu0 0.0
  %216 = vmatpush1.msra.mxu0 0.0
  %217 = vmatprep.subr.mxu0 0.0
  %218 = vmatpush1.msra.mxu0 0.0
  %219 = vmatprep.subr.mxu0 0.0
  %220 = vmatpush1.msra.mxu0 0.0
  %221 = vmatprep.subr.mxu0 0.0
  %222 = vmatpush1.msra.mxu0 0.0
  %223 = vmatprep.subr.mxu0 0.0
  %224 = vmatpush1.msra.mxu0 0.0
  %225 = vmatprep.subr.mxu0 0.0
  %226 = vmatpush1.msra.mxu0 0.0
  %227 = vmatprep.subr.mxu0 0.0
  %228 = vmatpush1.msra.mxu0 0.0
  %229 = vmatprep.subr.mxu0 0.0
  %230 = vmatpush1.msra.mxu0 0.0
  %231 = vmatprep.subr.mxu0 0.0
  %232 = vmatpush1.msra.mxu0 0.0
  %233 = vmatprep.subr.mxu0 0.0
  %234 = vmatpush1.msra.mxu0 0.0
  %235 = vmatprep.subr.mxu0 0.0
  %236 = vmatpush1.msra.mxu0 0.0
  %237 = vmatprep.subr.mxu0 0.0
  %238 = vmatpush1.msra.mxu0 0.0
  %239 = vmatprep.subr.mxu0 0.0
  %240 = vmatpush1.msra.mxu0 0.0
  %241 = vmatprep.mubr.f32.mxu0 0.0
  %242 = vmatmul.mubr.f32.gmra.mrb[0].mxu0 %v147
  %v243 = vpop.f32.mrb[0].mxu0
  %v244 = vadd.f32 0.0, %v243
  %v245 = vpop.f32.mrb[0].mxu0
  %246 = vmatprep.mubr.f32.mxu0 0.0
  %247 = vmatmul.mubr.f32.gmra.mrb[0].mxu0 %v150
  %v248 = vpop.f32.mrb[0].mxu0
  %v249 = vadd.f32 0.0, %v248
  %v250 = vpop.f32.mrb[0].mxu0
  %251 = vmatprep.mubr.f32.mxu0 0.0
  %252 = vmatmul.mubr.f32.gmra.mrb[0].mxu0 %v153
  %v253 = vpop.f32.mrb[0].mxu0
  %v254 = vadd.f32 0.0, %v253
  %v255 = vpop.f32.mrb[0].mxu0
  %256 = vmatprep.mubr.f32.mxu0 0.0
  %257 = vmatmul.mubr.f32.gmra.mrb[0].mxu0 %v156
  %v258 = vpop.f32.mrb[0].mxu0
  %v259 = vadd.f32 0.0, %v258
  %v260 = vpop.f32.mrb[0].mxu0
  %261 = vmatprep.mubr.f32.mxu0 0.0
  %262 = vmatmul.mubr.f32.gmra.mrb[0].mxu0 %v159
  %v263 = vpop.f32.mrb[0].mxu0
  %v264 = vadd.f32 0.0, %v263
  %v265 = vpop.f32.mrb[0].mxu0
  %266 = vmatprep.mubr.f32.mxu0 0.0
  %267 = vmatmul.mubr.f32.gmra.mrb[0].mxu0 %v162
  %v268 = vpop.f32.mrb[0].mxu0
  %v269 = vadd.f32 0.0, %v268
  %v270 = vpop.f32.mrb[0].mxu0
  %271 = vmatprep.mubr.f32.mxu0 0.0
  %272 = vmatmul.mubr.f32.gmra.mrb[0].mxu0 %v165
  %v273 = vpop.f32.mrb[0].mxu0
  %v274 = vadd.f32 0.0, %v273
  %v275 = vpop.f32.mrb[0].mxu0
  %276 = vmatprep.mubr.f32.mxu0 0.0
  %277 = vmatmul.mubr.f32.gmra.mrb[0].mxu0 %v168
  %v278 = vpop.f32.mrb[0].mxu0
  %v279 = vadd.f32 0.0, %v278
  %v280 = vpop.f32.mrb[0].mxu0
  %281 = vmatprep.mubr.f32.mxu0 0.0
  %282 = vmatmul.mubr.f32.gmra.mrb[0].mxu0 %v171
  %v283 = vpop.f32.mrb[0].mxu0
  %v284 = vadd.f32 0.0, %v283
  %v285 = vpop.f32.mrb[0].mxu0
  %286 = vdwg.mxu0
  %v287 = vmul.f32 %v244, %v244
  %v288 = vmul.f32 %v249, %v249
  %v289 = vmul.f32 %v254, %v254
  %v290 = vmul.f32 %v259, %v259
  %v291 = vmul.f32 %v264, %v264
  %v292 = vmul.f32 %v269, %v269
  %v293 = vadd.f32 %v287, %v290
  %v294 = vadd.f32 %v288, %v291
  %v295 = vadd.f32 %v289, %v292
  %v296 = vmul.f32 %v274, %v274
  %v297 = vmul.f32 %v279, %v279
  %v298 = vmul.f32 %v284, %v284
  %v299 = vadd.f32 %v293, %v296
  %v300 = vadd.f32 %v294, %v297
  %v301 = vadd.f32 %v295, %v298
  %v302 = vmax.f32 %v299, 1e-08
  %v303 = vmax.f32 %v300, 1e-08
  %v304 = vmax.f32 %v301, 1e-08
  %v305 = vrsqrt.pop %v302
  %v306 = vmul.f32 %v302, %v305
  %vm307 = vcmp.eq.f32.partialorder %v302, inf
  %v308 = vsel %vm307, %v302, %v306
  %vm309 = vcmp.eq.f32.partialorder %v302, 0.0
  %v310 = vand.u32 %v302, 2147483648
  %v311 = vsel %vm309, %v310, %v308
  %v312 = vrsqrt.pop %v303
  %v313 = vmul.f32 %v303, %v312
  %vm314 = vcmp.eq.f32.partialorder %v303, inf
  %v315 = vsel %vm314, %v303, %v313
  %vm316 = vcmp.eq.f32.partialorder %v303, 0.0
  %v317 = vand.u32 %v303, 2147483648
  %v318 = vsel %vm316, %v317, %v315
  %v319 = vrsqrt.pop %v304
  %v320 = vmul.f32 %v304, %v319
  %vm321 = vcmp.eq.f32.partialorder %v304, inf
  %v322 = vsel %vm321, %v304, %v320
  %vm323 = vcmp.eq.f32.partialorder %v304, 0.0
  %v324 = vand.u32 %v304, 2147483648
  %v325 = vsel %vm323, %v324, %v322
  %v327 = vsel %vm53, %v109, 0
  %v330 = vsel %vm53, %v110, 0
  %v333 = vsel %vm53, %v111, 0
  %335 = vmatprep.subr.mxu0 0.0
  %336 = vmatpush1.msra.mxu0 %v49
  %337 = vmatprep.subr.mxu0 0.0
  %338 = vmatpush1.msra.mxu0 0.0
  %339 = vmatprep.subr.mxu0 0.0
  %340 = vmatpush1.msra.mxu0 0.0
  %341 = vmatprep.subr.mxu0 0.0
  %342 = vmatpush1.msra.mxu0 0.0
  %343 = vmatprep.subr.mxu0 0.0
  %344 = vmatpush1.msra.mxu0 0.0
  %345 = vmatprep.subr.mxu0 0.0
  %346 = vmatpush1.msra.mxu0 0.0
  %347 = vmatprep.subr.mxu0 0.0
  %348 = vmatpush1.msra.mxu0 0.0
  %349 = vmatprep.subr.mxu0 0.0
  %350 = vmatpush1.msra.mxu0 0.0
  %351 = vmatprep.subr.mxu0 0.0
  %352 = vmatpush1.msra.mxu0 0.0
  %353 = vmatprep.subr.mxu0 0.0
  %354 = vmatpush1.msra.mxu0 0.0
  %355 = vmatprep.subr.mxu0 0.0
  %356 = vmatpush1.msra.mxu0 0.0
  %357 = vmatprep.subr.mxu0 0.0
  %358 = vmatpush1.msra.mxu0 0.0
  %359 = vmatprep.subr.mxu0 0.0
  %360 = vmatpush1.msra.mxu0 0.0
  %361 = vmatprep.subr.mxu0 0.0
  %362 = vmatpush1.msra.mxu0 0.0
  %363 = vmatprep.subr.mxu0 0.0
  %364 = vmatpush1.msra.mxu0 0.0
  %365 = vmatprep.subr.mxu0 0.0
  %366 = vmatpush1.msra.mxu0 0.0
  %367 = vmatprep.subr.mxu0 0.0
  %368 = vmatpush1.msra.mxu0 0.0
  %369 = vmatprep.subr.mxu0 0.0
  %370 = vmatpush1.msra.mxu0 0.0
  %371 = vmatprep.subr.mxu0 0.0
  %372 = vmatpush1.msra.mxu0 0.0
  %373 = vmatprep.subr.mxu0 0.0
  %374 = vmatpush1.msra.mxu0 0.0
  %375 = vmatprep.subr.mxu0 0.0
  %376 = vmatpush1.msra.mxu0 0.0
  %377 = vmatprep.subr.mxu0 0.0
  %378 = vmatpush1.msra.mxu0 0.0
  %379 = vmatprep.subr.mxu0 0.0
  %380 = vmatpush1.msra.mxu0 0.0
  %381 = vmatprep.subr.mxu0 0.0
  %382 = vmatpush1.msra.mxu0 0.0
  %383 = vmatprep.subr.mxu0 0.0
  %384 = vmatpush1.msra.mxu0 0.0
  %385 = vmatprep.subr.mxu0 0.0
  %386 = vmatpush1.msra.mxu0 0.0
  %387 = vmatprep.subr.mxu0 0.0
  %388 = vmatpush1.msra.mxu0 0.0
  %389 = vmatprep.subr.mxu0 0.0
  %390 = vmatpush1.msra.mxu0 0.0
  %391 = vmatprep.subr.mxu0 0.0
  %392 = vmatpush1.msra.mxu0 0.0
  %393 = vmatprep.subr.mxu0 0.0
  %394 = vmatpush1.msra.mxu0 0.0
  %395 = vmatprep.subr.mxu0 0.0
  %396 = vmatpush1.msra.mxu0 0.0
  %397 = vmatprep.subr.mxu0 0.0
  %398 = vmatpush1.msra.mxu0 0.0
  %399 = vmatprep.mubr.f32.mxu0 0.0
  %400 = vmatmul.mubr.f32.gmra.mrb[0].mxu0 %v327
  %v401 = vpop.f32.mrb[0].mxu0
  %v402 = vadd.f32 0.0, %v401
  %v403 = vpop.f32.mrb[0].mxu0
  %404 = vmatprep.mubr.f32.mxu0 0.0
  %405 = vmatmul.mubr.f32.gmra.mrb[0].mxu0 %v330
  %v406 = vpop.f32.mrb[0].mxu0
  %v407 = vadd.f32 0.0, %v406
  %v408 = vpop.f32.mrb[0].mxu0
  %409 = vmatprep.mubr.f32.mxu0 0.0
  %410 = vmatmul.mubr.f32.gmra.mrb[0].mxu0 %v333
  %v411 = vpop.f32.mrb[0].mxu0
  %v412 = vadd.f32 0.0, %v411
  %v413 = vpop.f32.mrb[0].mxu0
  %414 = vdwg.mxu0
  %v416 = vlaneseq
  %v417 = vshrl.u32 %v416, 7
  %v418 = vsub.s32 0, %v417
  %v419 = vrot.slane %v51, %v418
  %v421 = vadd.f32 %v419, %v402
  %v422 = vadd.f32 %v419, %v407
  %v423 = vadd.f32 %v419, %v412
  %vm424 = vcmask 15360
  %v426 = vsel %vm424, %v311, 0
  %v429 = vsel %vm424, %v318, 0
  %v432 = vsel %vm424, %v325, 0
  %vm434 = vcmask 1041408
  %v436 = vsel %vm434, %v50, 0
  %438 = vmatprep.subr.mxu0 0.0
  %439 = vmatpush1.msra.mxu0 %v436
  %440 = vmatprep.subr.mxu0 0.0
  %441 = vmatpush1.msra.mxu0 0.0
  %442 = vmatprep.subr.mxu0 0.0
  %443 = vmatpush1.msra.mxu0 0.0
  %444 = vmatprep.subr.mxu0 0.0
  %445 = vmatpush1.msra.mxu0 0.0
  %446 = vmatprep.subr.mxu0 0.0
  %447 = vmatpush1.msra.mxu0 0.0
  %448 = vmatprep.subr.mxu0 0.0
  %449 = vmatpush1.msra.mxu0 0.0
  %450 = vmatprep.subr.mxu0 0.0
  %451 = vmatpush1.msra.mxu0 0.0
  %452 = vmatprep.subr.mxu0 0.0
  %453 = vmatpush1.msra.mxu0 0.0
  %454 = vmatprep.subr.mxu0 0.0
  %455 = vmatpush1.msra.mxu0 0.0
  %456 = vmatprep.subr.mxu0 0.0
  %457 = vmatpush1.msra.mxu0 0.0
  %458 = vmatprep.subr.mxu0 0.0
  %459 = vmatpush1.msra.mxu0 0.0
  %460 = vmatprep.subr.mxu0 0.0
  %461 = vmatpush1.msra.mxu0 0.0
  %462 = vmatprep.subr.mxu0 0.0
  %463 = vmatpush1.msra.mxu0 0.0
  %464 = vmatprep.subr.mxu0 0.0
  %465 = vmatpush1.msra.mxu0 0.0
  %466 = vmatprep.subr.mxu0 0.0
  %467 = vmatpush1.msra.mxu0 0.0
  %468 = vmatprep.subr.mxu0 0.0
  %469 = vmatpush1.msra.mxu0 0.0
  %470 = vmatprep.subr.mxu0 0.0
  %471 = vmatpush1.msra.mxu0 0.0
  %472 = vmatprep.subr.mxu0 0.0
  %473 = vmatpush1.msra.mxu0 0.0
  %474 = vmatprep.subr.mxu0 0.0
  %475 = vmatpush1.msra.mxu0 0.0
  %476 = vmatprep.subr.mxu0 0.0
  %477 = vmatpush1.msra.mxu0 0.0
  %478 = vmatprep.subr.mxu0 0.0
  %479 = vmatpush1.msra.mxu0 0.0
  %480 = vmatprep.subr.mxu0 0.0
  %481 = vmatpush1.msra.mxu0 0.0
  %482 = vmatprep.subr.mxu0 0.0
  %483 = vmatpush1.msra.mxu0 0.0
  %484 = vmatprep.subr.mxu0 0.0
  %485 = vmatpush1.msra.mxu0 0.0
  %486 = vmatprep.subr.mxu0 0.0
  %487 = vmatpush1.msra.mxu0 0.0
  %488 = vmatprep.subr.mxu0 0.0
  %489 = vmatpush1.msra.mxu0 0.0
  %490 = vmatprep.subr.mxu0 0.0
  %491 = vmatpush1.msra.mxu0 0.0
  %492 = vmatprep.subr.mxu0 0.0
  %493 = vmatpush1.msra.mxu0 0.0
  %494 = vmatprep.subr.mxu0 0.0
  %495 = vmatpush1.msra.mxu0 0.0
  %496 = vmatprep.subr.mxu0 0.0
  %497 = vmatpush1.msra.mxu0 0.0
  %498 = vmatprep.subr.mxu0 0.0
  %499 = vmatpush1.msra.mxu0 0.0
  %500 = vmatprep.subr.mxu0 0.0
  %501 = vmatpush1.msra.mxu0 0.0
  %502 = vmatprep.mubr.f32.mxu0 0.0
  %503 = vmatmul.mubr.f32.gmra.mrb[0].mxu0 %v426
  %v504 = vpop.f32.mrb[0].mxu0
  %v505 = vadd.f32 0.0, %v504
  %v506 = vpop.f32.mrb[0].mxu0
  %507 = vmatprep.mubr.f32.mxu0 0.0
  %508 = vmatmul.mubr.f32.gmra.mrb[0].mxu0 %v429
  %v509 = vpop.f32.mrb[0].mxu0
  %v510 = vadd.f32 0.0, %v509
  %v511 = vpop.f32.mrb[0].mxu0
  %512 = vmatprep.mubr.f32.mxu0 0.0
  %513 = vmatmul.mubr.f32.gmra.mrb[0].mxu0 %v432
  %v514 = vpop.f32.mrb[0].mxu0
  %v515 = vadd.f32 0.0, %v514
  %v516 = vpop.f32.mrb[0].mxu0
  %517 = vdwg.mxu0
  %v518 = vadd.f32 %v421, %v505
  %v519 = vadd.f32 %v422, %v510
  %v520 = vadd.f32 %v423, %v515
  %v522 = vsel %vm424, %v244, 0
  %v525 = vsel %vm424, %v249, 0
  %v528 = vsel %vm424, %v254, 0
  %v531 = vsel %vm424, %v259, 0
  %v534 = vsel %vm424, %v264, 0
  %v537 = vsel %vm424, %v269, 0
  %v540 = vsel %vm424, %v274, 0
  %v543 = vsel %vm424, %v279, 0
  %v546 = vsel %vm424, %v284, 0
  %v549 = vsel %vm434, %v52, 0
  %551 = vmatprep.subr.mxu0 0.0
  %552 = vmatpush1.msra.mxu0 %v549
  %553 = vmatprep.subr.mxu0 0.0
  %554 = vmatpush1.msra.mxu0 0.0
  %555 = vmatprep.subr.mxu0 0.0
  %556 = vmatpush1.msra.mxu0 0.0
  %557 = vmatprep.subr.mxu0 0.0
  %558 = vmatpush1.msra.mxu0 0.0
  %559 = vmatprep.subr.mxu0 0.0
  %560 = vmatpush1.msra.mxu0 0.0
  %561 = vmatprep.subr.mxu0 0.0
  %562 = vmatpush1.msra.mxu0 0.0
  %563 = vmatprep.subr.mxu0 0.0
  %564 = vmatpush1.msra.mxu0 0.0
  %565 = vmatprep.subr.mxu0 0.0
  %566 = vmatpush1.msra.mxu0 0.0
  %567 = vmatprep.subr.mxu0 0.0
  %568 = vmatpush1.msra.mxu0 0.0
  %569 = vmatprep.subr.mxu0 0.0
  %570 = vmatpush1.msra.mxu0 0.0
  %571 = vmatprep.subr.mxu0 0.0
  %572 = vmatpush1.msra.mxu0 0.0
  %573 = vmatprep.subr.mxu0 0.0
  %574 = vmatpush1.msra.mxu0 0.0
  %575 = vmatprep.subr.mxu0 0.0
  %576 = vmatpush1.msra.mxu0 0.0
  %577 = vmatprep.subr.mxu0 0.0
  %578 = vmatpush1.msra.mxu0 0.0
  %579 = vmatprep.subr.mxu0 0.0
  %580 = vmatpush1.msra.mxu0 0.0
  %581 = vmatprep.subr.mxu0 0.0
  %582 = vmatpush1.msra.mxu0 0.0
  %583 = vmatprep.subr.mxu0 0.0
  %584 = vmatpush1.msra.mxu0 0.0
  %585 = vmatprep.subr.mxu0 0.0
  %586 = vmatpush1.msra.mxu0 0.0
  %587 = vmatprep.subr.mxu0 0.0
  %588 = vmatpush1.msra.mxu0 0.0
  %589 = vmatprep.subr.mxu0 0.0
  %590 = vmatpush1.msra.mxu0 0.0
  %591 = vmatprep.subr.mxu0 0.0
  %592 = vmatpush1.msra.mxu0 0.0
  %593 = vmatprep.subr.mxu0 0.0
  %594 = vmatpush1.msra.mxu0 0.0
  %595 = vmatprep.subr.mxu0 0.0
  %596 = vmatpush1.msra.mxu0 0.0
  %597 = vmatprep.subr.mxu0 0.0
  %598 = vmatpush1.msra.mxu0 0.0
  %599 = vmatprep.subr.mxu0 0.0
  %600 = vmatpush1.msra.mxu0 0.0
  %601 = vmatprep.subr.mxu0 0.0
  %602 = vmatpush1.msra.mxu0 0.0
  %603 = vmatprep.subr.mxu0 0.0
  %604 = vmatpush1.msra.mxu0 0.0
  %605 = vmatprep.subr.mxu0 0.0
  %606 = vmatpush1.msra.mxu0 0.0
  %607 = vmatprep.subr.mxu0 0.0
  %608 = vmatpush1.msra.mxu0 0.0
  %609 = vmatprep.subr.mxu0 0.0
  %610 = vmatpush1.msra.mxu0 0.0
  %611 = vmatprep.subr.mxu0 0.0
  %612 = vmatpush1.msra.mxu0 0.0
  %613 = vmatprep.subr.mxu0 0.0
  %614 = vmatpush1.msra.mxu0 0.0
  %615 = vmatprep.mubr.f32.mxu0 0.0
  %616 = vmatmul.mubr.f32.gmra.mrb[0].mxu0 %v522
  %v617 = vpop.f32.mrb[0].mxu0
  %v618 = vadd.f32 0.0, %v617
  %v619 = vpop.f32.mrb[0].mxu0
  %620 = vmatprep.mubr.f32.mxu0 0.0
  %621 = vmatmul.mubr.f32.gmra.mrb[0].mxu0 %v525
  %v622 = vpop.f32.mrb[0].mxu0
  %v623 = vadd.f32 0.0, %v622
  %v624 = vpop.f32.mrb[0].mxu0
  %625 = vmatprep.mubr.f32.mxu0 0.0
  %626 = vmatmul.mubr.f32.gmra.mrb[0].mxu0 %v528
  %v627 = vpop.f32.mrb[0].mxu0
  %v628 = vadd.f32 0.0, %v627
  %v629 = vpop.f32.mrb[0].mxu0
  %630 = vmatprep.mubr.f32.mxu0 0.0
  %631 = vmatmul.mubr.f32.gmra.mrb[0].mxu0 %v531
  %v632 = vpop.f32.mrb[0].mxu0
  %v633 = vadd.f32 0.0, %v632
  %v634 = vpop.f32.mrb[0].mxu0
  %635 = vmatprep.mubr.f32.mxu0 0.0
  %636 = vmatmul.mubr.f32.gmra.mrb[0].mxu0 %v534
  %v637 = vpop.f32.mrb[0].mxu0
  %v638 = vadd.f32 0.0, %v637
  %v639 = vpop.f32.mrb[0].mxu0
  %640 = vmatprep.mubr.f32.mxu0 0.0
  %641 = vmatmul.mubr.f32.gmra.mrb[0].mxu0 %v537
  %v642 = vpop.f32.mrb[0].mxu0
  %v643 = vadd.f32 0.0, %v642
  %v644 = vpop.f32.mrb[0].mxu0
  %645 = vmatprep.mubr.f32.mxu0 0.0
  %646 = vmatmul.mubr.f32.gmra.mrb[0].mxu0 %v540
  %v647 = vpop.f32.mrb[0].mxu0
  %v648 = vadd.f32 0.0, %v647
  %v649 = vpop.f32.mrb[0].mxu0
  %650 = vmatprep.mubr.f32.mxu0 0.0
  %651 = vmatmul.mubr.f32.gmra.mrb[0].mxu0 %v543
  %v652 = vpop.f32.mrb[0].mxu0
  %v653 = vadd.f32 0.0, %v652
  %v654 = vpop.f32.mrb[0].mxu0
  %655 = vmatprep.mubr.f32.mxu0 0.0
  %656 = vmatmul.mubr.f32.gmra.mrb[0].mxu0 %v546
  %v657 = vpop.f32.mrb[0].mxu0
  %v658 = vadd.f32 0.0, %v657
  %v659 = vpop.f32.mrb[0].mxu0
  %660 = vdwg.mxu0
  %vm661 = vcmask 130048
  %662 = vst.msk [vmem:[%s9] sm:$0xff] %vm661, %v518
  %663 = vst.msk [vmem:[%s9 + $0x8] sm:$0xff] %vm661, %v519
  %664 = vst.msk [vmem:[%s9 + $0x10] sm:$0xff] %vm661, %v520
  %665 = vst.msk [vmem:[%s10] sm:$0xff] %vm424, %v618
  %666 = vst.msk [vmem:[%s10 + $0x8] sm:$0xff] %vm424, %v623
  %667 = vst.msk [vmem:[%s10 + $0x10] sm:$0xff] %vm424, %v628
  %668 = vst.msk [vmem:[%s10 + $0x18] sm:$0xff] %vm424, %v633
  %669 = vst.msk [vmem:[%s10 + $0x20] sm:$0xff] %vm424, %v638
  %670 = vst.msk [vmem:[%s10 + $0x28] sm:$0xff] %vm424, %v643
  %671 = vst.msk [vmem:[%s10 + $0x30] sm:$0xff] %vm424, %v648
  %672 = vst.msk [vmem:[%s10 + $0x38] sm:$0xff] %vm424, %v653
  %673 = vst.msk [vmem:[%s10 + $0x40] sm:$0xff] %vm424, %v658
  // Predicated region
  $region38: #{_lambda_.4} parent=0 // pred_check
    _
  $region39: #{_lambda_.4} parent=0 // pred_check_branch
    %675 = sbr.rel (0) target = $region41
  $region40: #{_lambda_.4} parent=0 // pred_region
    _
  $region41: #{_lambda_.4} parent=0 // pred_fallthru
    _
  // Predicated region
  $region42: #{_lambda_.4} parent=0 // pred_check
    _
  $region43: #{_lambda_.4} parent=0 // pred_check_branch
    %677 = sbr.rel (0) target = $region45
  $region44: #{_lambda_.4} parent=0 // pred_region
    _
  $region45: #{_lambda_.4} parent=0 // pred_fallthru
    _
  // Predicated region
  $region46: #{_lambda_.4} parent=0 // pred_check
    _
  $region47: #{_lambda_.4} parent=0 // pred_check_branch
    %679 = sbr.rel (0) target = $region49
  $region48: #{_lambda_.4} parent=0 // pred_region
    _
  $region49: #{_lambda_.4} parent=0 // pred_fallthru
    _
  // Predicated region
  $region50: #{_lambda_.4} parent=0 // pred_check
    _
  $region51: #{_lambda_.4} parent=0 // pred_check_branch
    %681 = sbr.rel (0) target = $region53
  $region52: #{_lambda_.4} parent=0 // pred_region
    _
  $region53: #{_lambda_.4} parent=0 // pred_fallthru
    _

// kernel: closed_call.11
$region0: #{closed_call.11}
  #allocation0 [shape = 'u32[]', space=smem, size = 0x4, offset = 0x4, fixed_abs, tag = 'smem constant byte address 0x4 - core index']
  #allocation1 [shape = 'u32[144,128]{1,0:T(1,128)}', space=vmem, size = 0x12000, scoped, tag = 'internal scratch']
  %s0 = inlined_call_operand.vmem [shape: f32[24,32], index: 0, kind: input, shape index: {}]
  %s1 = inlined_call_operand.vmem [shape: f32[24,16], index: 1, kind: input, shape index: {}]
  %s2 = inlined_call_operand.vmem [shape: f32[24,32], index: 2, kind: input, shape index: {}]
  %s3 = inlined_call_operand.vmem [shape: f32[3,24,4], index: 3, kind: input, shape index: {}]
  %s4 = inlined_call_operand.vmem [shape: f32[3,24,2], index: 4, kind: input, shape index: {}]
  %s5 = inlined_call_operand.vmem [shape: f32[3,24,4], index: 5, kind: input, shape index: {}]
  %s6 = inlined_call_operand.vmem [shape: f32[4,10], index: 6, kind: input, shape index: {}]
  %s7 = inlined_call_operand.vmem [shape: f32[2,10], index: 7, kind: input, shape index: {}]
  %s8 = inlined_call_operand.vmem [shape: f32[4,10], index: 8, kind: input, shape index: {}]
  %s9 = inlined_call_operand.vmem [shape: f32[32,32], index: 9, kind: input, shape index: {}]
  %s10 = inlined_call_operand.vmem [shape: f32[16,32], index: 10, kind: input, shape index: {}]
  %s11 = inlined_call_operand.vmem [shape: f32[32,32], index: 11, kind: input, shape index: {}]
  %s12 = inlined_call_operand.vmem [shape: f32[10,32], index: 12, kind: input, shape index: {}]
  %s13 = inlined_call_operand.vmem [shape: f32[1,32], index: 13, kind: input, shape index: {}]
  %s14 = inlined_call_operand.vmem [shape: f32[10,4], index: 14, kind: input, shape index: {}]
  %s15 = inlined_call_operand.vmem [shape: f32[4,4], index: 15, kind: input, shape index: {}]
  %s16 = inlined_call_operand.vmem [shape: f32[32,32], index: 16, kind: input, shape index: {}]
  %s17 = inlined_call_operand.vmem [shape: f32[4,32], index: 17, kind: input, shape index: {}]
  %s18 = inlined_call_operand.vmem [shape: f32[1,32], index: 18, kind: input, shape index: {}]
  %s19 = inlined_call_operand.vmem [shape: f32[4,4], index: 19, kind: input, shape index: {}]
  %s20 = inlined_call_operand.vmem [shape: f32[4,4], index: 20, kind: input, shape index: {}]
  %s21 = inlined_call_operand.vmem [shape: f32[32,32], index: 21, kind: input, shape index: {}]
  %s22 = inlined_call_operand.vmem [shape: f32[4,32], index: 22, kind: input, shape index: {}]
  %s23 = inlined_call_operand.vmem [shape: f32[1,32], index: 23, kind: input, shape index: {}]
  %s24 = inlined_call_operand.vmem [shape: f32[4,4], index: 24, kind: input, shape index: {}]
  %s25 = inlined_call_operand.vmem [shape: f32[24,32], index: 25, kind: output, shape index: {0}]
  %s26 = inlined_call_operand.vmem [shape: f32[3,24,4], index: 26, kind: output, shape index: {1}]
  %27 = xla_tuple %s25, %s26
  %s28 = sld [smem:[#allocation0]]
  $region118: #{closed_call.11} parent=0
    _
  %s30 = ssub.s32 1, %s28
  %s31 = scalar_select 0, %s30, %s28
  // Predicated region
  $region2: #{closed_call.11} parent=0 // pred_check
    _
  $region3: #{closed_call.11} parent=0 // pred_check_branch
    %33 = sbr.rel (0) target = $region5
  $region4: #{closed_call.11} parent=0 // pred_region
    _
  $region5: #{closed_call.11} parent=0 // pred_fallthru
    _
  // Predicated region
  $region6: #{closed_call.11} parent=0 // pred_check
    _
  $region7: #{closed_call.11} parent=0 // pred_check_branch
    %35 = sbr.rel (0) target = $region9
  $region8: #{closed_call.11} parent=0 // pred_region
    _
  $region9: #{closed_call.11} parent=0 // pred_fallthru
    _
  // Predicated region
  $region10: #{closed_call.11} parent=0 // pred_check
    _
  $region11: #{closed_call.11} parent=0 // pred_check_branch
    %37 = sbr.rel (0) target = $region13
  $region12: #{closed_call.11} parent=0 // pred_region
    _
  $region13: #{closed_call.11} parent=0 // pred_fallthru
    _
  // Predicated region
  $region14: #{closed_call.11} parent=0 // pred_check
    _
  $region15: #{closed_call.11} parent=0 // pred_check_branch
    %39 = sbr.rel (0) target = $region17
  $region16: #{closed_call.11} parent=0 // pred_region
    _
  $region17: #{closed_call.11} parent=0 // pred_fallthru
    _
  // Predicated region
  $region18: #{closed_call.11} parent=0 // pred_check
    _
  $region19: #{closed_call.11} parent=0 // pred_check_branch
    %41 = sbr.rel (0) target = $region21
  $region20: #{closed_call.11} parent=0 // pred_region
    _
  $region21: #{closed_call.11} parent=0 // pred_fallthru
    _
  // Predicated region
  $region22: #{closed_call.11} parent=0 // pred_check
    _
  $region23: #{closed_call.11} parent=0 // pred_check_branch
    %43 = sbr.rel (0) target = $region25
  $region24: #{closed_call.11} parent=0 // pred_region
    _
  $region25: #{closed_call.11} parent=0 // pred_fallthru
    _
  // Predicated region
  $region26: #{closed_call.11} parent=0 // pred_check
    _
  $region27: #{closed_call.11} parent=0 // pred_check_branch
    %45 = sbr.rel (0) target = $region29
  $region28: #{closed_call.11} parent=0 // pred_region
    _
  $region29: #{closed_call.11} parent=0 // pred_fallthru
    _
  // Predicated region
  $region30: #{closed_call.11} parent=0 // pred_check
    _
  $region31: #{closed_call.11} parent=0 // pred_check_branch
    %47 = sbr.rel (0) target = $region33
  $region32: #{closed_call.11} parent=0 // pred_region
    _
  $region33: #{closed_call.11} parent=0 // pred_fallthru
    _
  // Predicated region
  $region34: #{closed_call.11} parent=0 // pred_check
    _
  $region35: #{closed_call.11} parent=0 // pred_check_branch
    %49 = sbr.rel (0) target = $region37
  $region36: #{closed_call.11} parent=0 // pred_region
    _
  $region37: #{closed_call.11} parent=0 // pred_fallthru
    _
  // Predicated region
  $region38: #{closed_call.11} parent=0 // pred_check
    _
  $region39: #{closed_call.11} parent=0 // pred_check_branch
    %51 = sbr.rel (0) target = $region41
  $region40: #{closed_call.11} parent=0 // pred_region
    _
  $region41: #{closed_call.11} parent=0 // pred_fallthru
    _
  // Predicated region
  $region42: #{closed_call.11} parent=0 // pred_check
    _
  $region43: #{closed_call.11} parent=0 // pred_check_branch
    %53 = sbr.rel (0) target = $region45
  $region44: #{closed_call.11} parent=0 // pred_region
    _
  $region45: #{closed_call.11} parent=0 // pred_fallthru
    _
  // Predicated region
  $region46: #{closed_call.11} parent=0 // pred_check
    _
  $region47: #{closed_call.11} parent=0 // pred_check_branch
    %55 = sbr.rel (0) target = $region49
  $region48: #{closed_call.11} parent=0 // pred_region
    _
  $region49: #{closed_call.11} parent=0 // pred_fallthru
    _
  // Predicated region
  $region50: #{closed_call.11} parent=0 // pred_check
    _
  $region51: #{closed_call.11} parent=0 // pred_check_branch
    %57 = sbr.rel (0) target = $region53
  $region52: #{closed_call.11} parent=0 // pred_region
    _
  $region53: #{closed_call.11} parent=0 // pred_fallthru
    _
  // Predicated region
  $region54: #{closed_call.11} parent=0 // pred_check
    _
  $region55: #{closed_call.11} parent=0 // pred_check_branch
    %59 = sbr.rel (0) target = $region57
  $region56: #{closed_call.11} parent=0 // pred_region
    _
  $region57: #{closed_call.11} parent=0 // pred_fallthru
    _
  // Predicated region
  $region58: #{closed_call.11} parent=0 // pred_check
    _
  $region59: #{closed_call.11} parent=0 // pred_check_branch
    %61 = sbr.rel (0) target = $region61
  $region60: #{closed_call.11} parent=0 // pred_region
    _
  $region61: #{closed_call.11} parent=0 // pred_fallthru
    _
  // Predicated region
  $region62: #{closed_call.11} parent=0 // pred_check
    _
  $region63: #{closed_call.11} parent=0 // pred_check_branch
    %63 = sbr.rel (0) target = $region65
  $region64: #{closed_call.11} parent=0 // pred_region
    _
  $region65: #{closed_call.11} parent=0 // pred_fallthru
    _
  // Predicated region
  $region66: #{closed_call.11} parent=0 // pred_check
    _
  $region67: #{closed_call.11} parent=0 // pred_check_branch
    %65 = sbr.rel (0) target = $region69
  $region68: #{closed_call.11} parent=0 // pred_region
    _
  $region69: #{closed_call.11} parent=0 // pred_fallthru
    _
  // Predicated region
  $region70: #{closed_call.11} parent=0 // pred_check
    _
  $region71: #{closed_call.11} parent=0 // pred_check_branch
    %67 = sbr.rel (0) target = $region73
  $region72: #{closed_call.11} parent=0 // pred_region
    _
  $region73: #{closed_call.11} parent=0 // pred_fallthru
    _
  // Predicated region
  $region74: #{closed_call.11} parent=0 // pred_check
    _
  $region75: #{closed_call.11} parent=0 // pred_check_branch
    %69 = sbr.rel (0) target = $region77
  $region76: #{closed_call.11} parent=0 // pred_region
    _
  $region77: #{closed_call.11} parent=0 // pred_fallthru
    _
  // Predicated region
  $region78: #{closed_call.11} parent=0 // pred_check
    _
  $region79: #{closed_call.11} parent=0 // pred_check_branch
    %71 = sbr.rel (0) target = $region81
  $region80: #{closed_call.11} parent=0 // pred_region
    _
  $region81: #{closed_call.11} parent=0 // pred_fallthru
    _
  // Predicated region
  $region82: #{closed_call.11} parent=0 // pred_check
    _
  $region83: #{closed_call.11} parent=0 // pred_check_branch
    %73 = sbr.rel (0) target = $region85
  $region84: #{closed_call.11} parent=0 // pred_region
    _
  $region85: #{closed_call.11} parent=0 // pred_fallthru
    _
  // Predicated region
  $region86: #{closed_call.11} parent=0 // pred_check
    _
  $region87: #{closed_call.11} parent=0 // pred_check_branch
    %75 = sbr.rel (0) target = $region89
  $region88: #{closed_call.11} parent=0 // pred_region
    _
  $region89: #{closed_call.11} parent=0 // pred_fallthru
    _
  // Predicated region
  $region90: #{closed_call.11} parent=0 // pred_check
    _
  $region91: #{closed_call.11} parent=0 // pred_check_branch
    %77 = sbr.rel (0) target = $region93
  $region92: #{closed_call.11} parent=0 // pred_region
    _
  $region93: #{closed_call.11} parent=0 // pred_fallthru
    _
  // Predicated region
  $region94: #{closed_call.11} parent=0 // pred_check
    _
  $region95: #{closed_call.11} parent=0 // pred_check_branch
    %79 = sbr.rel (0) target = $region97
  $region96: #{closed_call.11} parent=0 // pred_region
    _
  $region97: #{closed_call.11} parent=0 // pred_fallthru
    _
  // Predicated region
  $region98: #{closed_call.11} parent=0 // pred_check
    _
  $region99: #{closed_call.11} parent=0 // pred_check_branch
    %81 = sbr.rel (0) target = $region101
  $region100: #{closed_call.11} parent=0 // pred_region
    _
  $region101: #{closed_call.11} parent=0 // pred_fallthru
    _
  %v82 = vld [vmem:[%s0] sm:$0xff]
  %v83 = vld [vmem:[%s0 + $0x8] sm:$0xff]
  %v84 = vld [vmem:[%s0 + $0x10] sm:$0xff]
  %v85 = vld [vmem:[%s1] sm:$0xff]
  %v86 = vld [vmem:[%s1 + $0x8] sm:$0xff]
  %v87 = vld [vmem:[%s1 + $0x10] sm:$0xff]
  %v88 = vld [vmem:[%s2] sm:$0xff]
  %v89 = vld [vmem:[%s2 + $0x8] sm:$0xff]
  %v90 = vld [vmem:[%s2 + $0x10] sm:$0xff]
  %v91 = vld [vmem:[%s3] sm:$0xff]
  %v92 = vld [vmem:[%s3 + $0x8] sm:$0xff]
  %v93 = vld [vmem:[%s3 + $0x10] sm:$0xff]
  %v94 = vld [vmem:[%s3 + $0x18] sm:$0xff]
  %v95 = vld [vmem:[%s3 + $0x20] sm:$0xff]
  %v96 = vld [vmem:[%s3 + $0x28] sm:$0xff]
  %v97 = vld [vmem:[%s3 + $0x30] sm:$0xff]
  %v98 = vld [vmem:[%s3 + $0x38] sm:$0xff]
  %v99 = vld [vmem:[%s3 + $0x40] sm:$0xff]
  %v100 = vld [vmem:[%s4] sm:$0xff]
  %v101 = vld [vmem:[%s4 + $0x8] sm:$0xff]
  %v102 = vld [vmem:[%s4 + $0x10] sm:$0xff]
  %v103 = vld [vmem:[%s4 + $0x18] sm:$0xff]
  %v104 = vld [vmem:[%s4 + $0x20] sm:$0xff]
  %v105 = vld [vmem:[%s4 + $0x28] sm:$0xff]
  %v106 = vld [vmem:[%s4 + $0x30] sm:$0xff]
  %v107 = vld [vmem:[%s4 + $0x38] sm:$0xff]
  %v108 = vld [vmem:[%s4 + $0x40] sm:$0xff]
  %v109 = vld [vmem:[%s5] sm:$0xff]
  %v110 = vld [vmem:[%s5 + $0x8] sm:$0xff]
  %v111 = vld [vmem:[%s5 + $0x10] sm:$0xff]
  %v112 = vld [vmem:[%s5 + $0x18] sm:$0xff]
  %v113 = vld [vmem:[%s5 + $0x20] sm:$0xff]
  %v114 = vld [vmem:[%s5 + $0x28] sm:$0xff]
  %v115 = vld [vmem:[%s5 + $0x30] sm:$0xff]
  %v116 = vld [vmem:[%s5 + $0x38] sm:$0xff]
  %v117 = vld [vmem:[%s5 + $0x40] sm:$0xff]
  %v118 = vld [vmem:[%s6] sm:$0xf]
  %v119 = vld [vmem:[%s7] sm:$0x3]
  %v120 = vld [vmem:[%s8] sm:$0xf]
  %v121 = vld [vmem:[%s9] sm:$0xff]
  %v122 = vld [vmem:[%s9 + $0x8] sm:$0xff]
  %v123 = vld [vmem:[%s9 + $0x10] sm:$0xff]
  %v124 = vld [vmem:[%s9 + $0x18] sm:$0xff]
  %v125 = vld [vmem:[%s10] sm:$0xff]
  %v126 = vld [vmem:[%s10 + $0x8] sm:$0xff]
  %v127 = vld [vmem:[%s11] sm:$0xff]
  %v128 = vld [vmem:[%s11 + $0x8] sm:$0xff]
  %v129 = vld [vmem:[%s11 + $0x10] sm:$0xff]
  %v130 = vld [vmem:[%s11 + $0x18] sm:$0xff]
  %v131 = vld [vmem:[%s12] sm:$0xff]
  %v132 = vld [vmem:[%s12 + $0x8] sm:$0x3]
  %v133 = vld [vmem:[%s13] sm:$0x1]
  %v134 = vld [vmem:[%s14] sm:$0xff]
  %v135 = vld [vmem:[%s14 + $0x8] sm:$0x3]
  %v136 = vld [vmem:[%s15] sm:$0xf]
  %v137 = vld [vmem:[%s16] sm:$0xff]
  %v138 = vld [vmem:[%s16 + $0x8] sm:$0xff]
  %v139 = vld [vmem:[%s16 + $0x10] sm:$0xff]
  %v140 = vld [vmem:[%s16 + $0x18] sm:$0xff]
  %v141 = vld [vmem:[%s17] sm:$0xf]
  %v142 = vld [vmem:[%s18] sm:$0x1]
  %v143 = vld [vmem:[%s19] sm:$0xf]
  %v144 = vld [vmem:[%s20] sm:$0xf]
  %v145 = vld [vmem:[%s21] sm:$0xff]
  %v146 = vld [vmem:[%s21 + $0x8] sm:$0xff]
  %v147 = vld [vmem:[%s21 + $0x10] sm:$0xff]
  %v148 = vld [vmem:[%s21 + $0x18] sm:$0xff]
  %v149 = vld [vmem:[%s22] sm:$0xf]
  %v150 = vld [vmem:[%s23] sm:$0x1]
  %v151 = vld [vmem:[%s24] sm:$0xf]
  %vm152 = vcmask 31744
  %v154 = vsel %vm152, %v91, 0
  %v157 = vsel %vm152, %v92, 0
  %v160 = vsel %vm152, %v93, 0
  %v163 = vsel %vm152, %v94, 0
  %v166 = vsel %vm152, %v95, 0
  %v169 = vsel %vm152, %v96, 0
  %v172 = vsel %vm152, %v97, 0
  %v175 = vsel %vm152, %v98, 0
  %v178 = vsel %vm152, %v99, 0
  %vm180 = vcmask 1043456
  %v182 = vsel %vm180, %v118, 0
  %184 = vmatprep.subr.mxu0 0.0
  %185 = vmatpush1.msra.mxu0 %v182
  %186 = vmatprep.subr.mxu0 0.0
  %187 = vmatpush1.msra.mxu0 0.0
  %188 = vmatprep.subr.mxu0 0.0
  %189 = vmatpush1.msra.mxu0 0.0
  %190 = vmatprep.subr.mxu0 0.0
  %191 = vmatpush1.msra.mxu0 0.0
  %192 = vmatprep.subr.mxu0 0.0
  %193 = vmatpush1.msra.mxu0 0.0
  %194 = vmatprep.subr.mxu0 0.0
  %195 = vmatpush1.msra.mxu0 0.0
  %196 = vmatprep.subr.mxu0 0.0
  %197 = vmatpush1.msra.mxu0 0.0
  %198 = vmatprep.subr.mxu0 0.0
  %199 = vmatpush1.msra.mxu0 0.0
  %200 = vmatprep.subr.mxu0 0.0
  %201 = vmatpush1.msra.mxu0 0.0
  %202 = vmatprep.subr.mxu0 0.0
  %203 = vmatpush1.msra.mxu0 0.0
  %204 = vmatprep.subr.mxu0 0.0
  %205 = vmatpush1.msra.mxu0 0.0
  %206 = vmatprep.subr.mxu0 0.0
  %207 = vmatpush1.msra.mxu0 0.0
  %208 = vmatprep.subr.mxu0 0.0
  %209 = vmatpush1.msra.mxu0 0.0
  %210 = vmatprep.subr.mxu0 0.0
  %211 = vmatpush1.msra.mxu0 0.0
  %212 = vmatprep.subr.mxu0 0.0
  %213 = vmatpush1.msra.mxu0 0.0
  %214 = vmatprep.subr.mxu0 0.0
  %215 = vmatpush1.msra.mxu0 0.0
  %216 = vmatprep.subr.mxu0 0.0
  %217 = vmatpush1.msra.mxu0 0.0
  %218 = vmatprep.subr.mxu0 0.0
  %219 = vmatpush1.msra.mxu0 0.0
  %220 = vmatprep.subr.mxu0 0.0
  %221 = vmatpush1.msra.mxu0 0.0
  %222 = vmatprep.subr.mxu0 0.0
  %223 = vmatpush1.msra.mxu0 0.0
  %224 = vmatprep.subr.mxu0 0.0
  %225 = vmatpush1.msra.mxu0 0.0
  %226 = vmatprep.subr.mxu0 0.0
  %227 = vmatpush1.msra.mxu0 0.0
  %228 = vmatprep.subr.mxu0 0.0
  %229 = vmatpush1.msra.mxu0 0.0
  %230 = vmatprep.subr.mxu0 0.0
  %231 = vmatpush1.msra.mxu0 0.0
  %232 = vmatprep.subr.mxu0 0.0
  %233 = vmatpush1.msra.mxu0 0.0
  %234 = vmatprep.subr.mxu0 0.0
  %235 = vmatpush1.msra.mxu0 0.0
  %236 = vmatprep.subr.mxu0 0.0
  %237 = vmatpush1.msra.mxu0 0.0
  %238 = vmatprep.subr.mxu0 0.0
  %239 = vmatpush1.msra.mxu0 0.0
  %240 = vmatprep.subr.mxu0 0.0
  %241 = vmatpush1.msra.mxu0 0.0
  %242 = vmatprep.subr.mxu0 0.0
  %243 = vmatpush1.msra.mxu0 0.0
  %244 = vmatprep.subr.mxu0 0.0
  %245 = vmatpush1.msra.mxu0 0.0
  %246 = vmatprep.subr.mxu0 0.0
  %247 = vmatpush1.msra.mxu0 0.0
  %248 = vmatprep.mubr.f32.mxu0 0.0
  %249 = vmatmul.mubr.f32.gmra.mrb[0].mxu0 %v154
  %v250 = vpop.f32.mrb[0].mxu0
  %v251 = vadd.f32 0.0, %v250
  %v252 = vpop.f32.mrb[0].mxu0
  %253 = vmatprep.mubr.f32.mxu0 0.0
  %254 = vmatmul.mubr.f32.gmra.mrb[0].mxu0 %v157
  %v255 = vpop.f32.mrb[0].mxu0
  %v256 = vadd.f32 0.0, %v255
  %v257 = vpop.f32.mrb[0].mxu0
  %258 = vmatprep.mubr.f32.mxu0 0.0
  %259 = vmatmul.mubr.f32.gmra.mrb[0].mxu0 %v160
  %v260 = vpop.f32.mrb[0].mxu0
  %v261 = vadd.f32 0.0, %v260
  %v262 = vpop.f32.mrb[0].mxu0
  %263 = vmatprep.mubr.f32.mxu0 0.0
  %264 = vmatmul.mubr.f32.gmra.mrb[0].mxu0 %v163
  %v265 = vpop.f32.mrb[0].mxu0
  %v266 = vadd.f32 0.0, %v265
  %v267 = vpop.f32.mrb[0].mxu0
  %268 = vmatprep.mubr.f32.mxu0 0.0
  %269 = vmatmul.mubr.f32.gmra.mrb[0].mxu0 %v166
  %v270 = vpop.f32.mrb[0].mxu0
  %v271 = vadd.f32 0.0, %v270
  %v272 = vpop.f32.mrb[0].mxu0
  %273 = vmatprep.mubr.f32.mxu0 0.0
  %274 = vmatmul.mubr.f32.gmra.mrb[0].mxu0 %v169
  %v275 = vpop.f32.mrb[0].mxu0
  %v276 = vadd.f32 0.0, %v275
  %v277 = vpop.f32.mrb[0].mxu0
  %278 = vmatprep.mubr.f32.mxu0 0.0
  %279 = vmatmul.mubr.f32.gmra.mrb[0].mxu0 %v172
  %v280 = vpop.f32.mrb[0].mxu0
  %v281 = vadd.f32 0.0, %v280
  %v282 = vpop.f32.mrb[0].mxu0
  %283 = vmatprep.mubr.f32.mxu0 0.0
  %284 = vmatmul.mubr.f32.gmra.mrb[0].mxu0 %v175
  %v285 = vpop.f32.mrb[0].mxu0
  %v286 = vadd.f32 0.0, %v285
  %v287 = vpop.f32.mrb[0].mxu0
  %288 = vmatprep.mubr.f32.mxu0 0.0
  %289 = vmatmul.mubr.f32.gmra.mrb[0].mxu0 %v178
  %v290 = vpop.f32.mrb[0].mxu0
  %v291 = vadd.f32 0.0, %v290
  %v292 = vpop.f32.mrb[0].mxu0
  %293 = vdwg.mxu0
  %vm294 = vcmask 15360
  %v296 = vsel %vm294, %v100, 0
  %v299 = vsel %vm294, %v101, 0
  %v302 = vsel %vm294, %v102, 0
  %v305 = vsel %vm294, %v103, 0
  %v308 = vsel %vm294, %v104, 0
  %v311 = vsel %vm294, %v105, 0
  %v314 = vsel %vm294, %v106, 0
  %v317 = vsel %vm294, %v107, 0
  %v320 = vsel %vm294, %v108, 0
  %vm322 = vcmask 1041408
  %v324 = vsel %vm322, %v119, 0
  %326 = vmatprep.subr.mxu0 0.0
  %327 = vmatpush1.msra.mxu0 %v324
  %328 = vmatprep.subr.mxu0 0.0
  %329 = vmatpush1.msra.mxu0 0.0
  %330 = vmatprep.subr.mxu0 0.0
  %331 = vmatpush1.msra.mxu0 0.0
  %332 = vmatprep.subr.mxu0 0.0
  %333 = vmatpush1.msra.mxu0 0.0
  %334 = vmatprep.subr.mxu0 0.0
  %335 = vmatpush1.msra.mxu0 0.0
  %336 = vmatprep.subr.mxu0 0.0
  %337 = vmatpush1.msra.mxu0 0.0
  %338 = vmatprep.subr.mxu0 0.0
  %339 = vmatpush1.msra.mxu0 0.0
  %340 = vmatprep.subr.mxu0 0.0
  %341 = vmatpush1.msra.mxu0 0.0
  %342 = vmatprep.subr.mxu0 0.0
  %343 = vmatpush1.msra.mxu0 0.0
  %344 = vmatprep.subr.mxu0 0.0
  %345 = vmatpush1.msra.mxu0 0.0
  %346 = vmatprep.subr.mxu0 0.0
  %347 = vmatpush1.msra.mxu0 0.0
  %348 = vmatprep.subr.mxu0 0.0
  %349 = vmatpush1.msra.mxu0 0.0
  %350 = vmatprep.subr.mxu0 0.0
  %351 = vmatpush1.msra.mxu0 0.0
  %352 = vmatprep.subr.mxu0 0.0
  %353 = vmatpush1.msra.mxu0 0.0
  %354 = vmatprep.subr.mxu0 0.0
  %355 = vmatpush1.msra.mxu0 0.0
  %356 = vmatprep.subr.mxu0 0.0
  %357 = vmatpush1.msra.mxu0 0.0
  %358 = vmatprep.subr.mxu0 0.0
  %359 = vmatpush1.msra.mxu0 0.0
  %360 = vmatprep.subr.mxu0 0.0
  %361 = vmatpush1.msra.mxu0 0.0
  %362 = vmatprep.subr.mxu0 0.0
  %363 = vmatpush1.msra.mxu0 0.0
  %364 = vmatprep.subr.mxu0 0.0
  %365 = vmatpush1.msra.mxu0 0.0
  %366 = vmatprep.subr.mxu0 0.0
  %367 = vmatpush1.msra.mxu0 0.0
  %368 = vmatprep.subr.mxu0 0.0
  %369 = vmatpush1.msra.mxu0 0.0
  %370 = vmatprep.subr.mxu0 0.0
  %371 = vmatpush1.msra.mxu0 0.0
  %372 = vmatprep.subr.mxu0 0.0
  %373 = vmatpush1.msra.mxu0 0.0
  %374 = vmatprep.subr.mxu0 0.0
  %375 = vmatpush1.msra.mxu0 0.0
  %376 = vmatprep.subr.mxu0 0.0
  %377 = vmatpush1.msra.mxu0 0.0
  %378 = vmatprep.subr.mxu0 0.0
  %379 = vmatpush1.msra.mxu0 0.0
  %380 = vmatprep.subr.mxu0 0.0
  %381 = vmatpush1.msra.mxu0 0.0
  %382 = vmatprep.subr.mxu0 0.0
  %383 = vmatpush1.msra.mxu0 0.0
  %384 = vmatprep.subr.mxu0 0.0
  %385 = vmatpush1.msra.mxu0 0.0
  %386 = vmatprep.subr.mxu0 0.0
  %387 = vmatpush1.msra.mxu0 0.0
  %388 = vmatprep.subr.mxu0 0.0
  %389 = vmatpush1.msra.mxu0 0.0
  %390 = vmatprep.mubr.f32.mxu0 0.0
  %391 = vmatmul.mubr.f32.gmra.mrb[0].mxu0 %v296
  %v392 = vpop.f32.mrb[0].mxu0
  %v393 = vadd.f32 0.0, %v392
  %v394 = vpop.f32.mrb[0].mxu0
  %395 = vmatprep.mubr.f32.mxu0 0.0
  %396 = vmatmul.mubr.f32.gmra.mrb[0].mxu0 %v299
  %v397 = vpop.f32.mrb[0].mxu0
  %v398 = vadd.f32 0.0, %v397
  %v399 = vpop.f32.mrb[0].mxu0
  %400 = vmatprep.mubr.f32.mxu0 0.0
  %401 = vmatmul.mubr.f32.gmra.mrb[0].mxu0 %v302
  %v402 = vpop.f32.mrb[0].mxu0
  %v403 = vadd.f32 0.0, %v402
  %v404 = vpop.f32.mrb[0].mxu0
  %405 = vmatprep.mubr.f32.mxu0 0.0
  %406 = vmatmul.mubr.f32.gmra.mrb[0].mxu0 %v305
  %v407 = vpop.f32.mrb[0].mxu0
  %v408 = vadd.f32 0.0, %v407
  %v409 = vpop.f32.mrb[0].mxu0
  %410 = vmatprep.mubr.f32.mxu0 0.0
  %411 = vmatmul.mubr.f32.gmra.mrb[0].mxu0 %v308
  %v412 = vpop.f32.mrb[0].mxu0
  %v413 = vadd.f32 0.0, %v412
  %v414 = vpop.f32.mrb[0].mxu0
  %415 = vmatprep.mubr.f32.mxu0 0.0
  %416 = vmatmul.mubr.f32.gmra.mrb[0].mxu0 %v311
  %v417 = vpop.f32.mrb[0].mxu0
  %v418 = vadd.f32 0.0, %v417
  %v419 = vpop.f32.mrb[0].mxu0
  %420 = vmatprep.mubr.f32.mxu0 0.0
  %421 = vmatmul.mubr.f32.gmra.mrb[0].mxu0 %v314
  %v422 = vpop.f32.mrb[0].mxu0
  %v423 = vadd.f32 0.0, %v422
  %v424 = vpop.f32.mrb[0].mxu0
  %425 = vmatprep.mubr.f32.mxu0 0.0
  %426 = vmatmul.mubr.f32.gmra.mrb[0].mxu0 %v317
  %v427 = vpop.f32.mrb[0].mxu0
  %v428 = vadd.f32 0.0, %v427
  %v429 = vpop.f32.mrb[0].mxu0
  %430 = vmatprep.mubr.f32.mxu0 0.0
  %431 = vmatmul.mubr.f32.gmra.mrb[0].mxu0 %v320
  %v432 = vpop.f32.mrb[0].mxu0
  %v433 = vadd.f32 0.0, %v432
  %v434 = vpop.f32.mrb[0].mxu0
  %435 = vdwg.mxu0
  %v436 = vadd.f32 %v251, %v393
  %v437 = vadd.f32 %v256, %v398
  %v438 = vadd.f32 %v261, %v403
  %v439 = vadd.f32 %v266, %v408
  %v440 = vadd.f32 %v271, %v413
  %v441 = vadd.f32 %v276, %v418
  %v442 = vadd.f32 %v281, %v423
  %v443 = vadd.f32 %v286, %v428
  %v444 = vadd.f32 %v291, %v433
  %v446 = vsel %vm152, %v109, 0
  %v449 = vsel %vm152, %v110, 0
  %v452 = vsel %vm152, %v111, 0
  %v455 = vsel %vm152, %v112, 0
  %v458 = vsel %vm152, %v113, 0
  %v461 = vsel %vm152, %v114, 0
  %v464 = vsel %vm152, %v115, 0
  %v467 = vsel %vm152, %v116, 0
  %v470 = vsel %vm152, %v117, 0
  %v473 = vsel %vm180, %v120, 0
  %475 = vmatprep.subr.mxu0 0.0
  %476 = vmatpush1.msra.mxu0 %v473
  %477 = vmatprep.subr.mxu0 0.0
  %478 = vmatpush1.msra.mxu0 0.0
  %479 = vmatprep.subr.mxu0 0.0
  %480 = vmatpush1.msra.mxu0 0.0
  %481 = vmatprep.subr.mxu0 0.0
  %482 = vmatpush1.msra.mxu0 0.0
  %483 = vmatprep.subr.mxu0 0.0
  %484 = vmatpush1.msra.mxu0 0.0
  %485 = vmatprep.subr.mxu0 0.0
  %486 = vmatpush1.msra.mxu0 0.0
  %487 = vmatprep.subr.mxu0 0.0
  %488 = vmatpush1.msra.mxu0 0.0
  %489 = vmatprep.subr.mxu0 0.0
  %490 = vmatpush1.msra.mxu0 0.0
  %491 = vmatprep.subr.mxu0 0.0
  %492 = vmatpush1.msra.mxu0 0.0
  %493 = vmatprep.subr.mxu0 0.0
  %494 = vmatpush1.msra.mxu0 0.0
  %495 = vmatprep.subr.mxu0 0.0
  %496 = vmatpush1.msra.mxu0 0.0
  %497 = vmatprep.subr.mxu0 0.0
  %498 = vmatpush1.msra.mxu0 0.0
  %499 = vmatprep.subr.mxu0 0.0
  %500 = vmatpush1.msra.mxu0 0.0
  %501 = vmatprep.subr.mxu0 0.0
  %502 = vmatpush1.msra.mxu0 0.0
  %503 = vmatprep.subr.mxu0 0.0
  %504 = vmatpush1.msra.mxu0 0.0
  %505 = vmatprep.subr.mxu0 0.0
  %506 = vmatpush1.msra.mxu0 0.0
  %507 = vmatprep.subr.mxu0 0.0
  %508 = vmatpush1.msra.mxu0 0.0
  %509 = vmatprep.subr.mxu0 0.0
  %510 = vmatpush1.msra.mxu0 0.0
  %511 = vmatprep.subr.mxu0 0.0
  %512 = vmatpush1.msra.mxu0 0.0
  %513 = vmatprep.subr.mxu0 0.0
  %514 = vmatpush1.msra.mxu0 0.0
  %515 = vmatprep.subr.mxu0 0.0
  %516 = vmatpush1.msra.mxu0 0.0
  %517 = vmatprep.subr.mxu0 0.0
  %518 = vmatpush1.msra.mxu0 0.0
  %519 = vmatprep.subr.mxu0 0.0
  %520 = vmatpush1.msra.mxu0 0.0
  %521 = vmatprep.subr.mxu0 0.0
  %522 = vmatpush1.msra.mxu0 0.0
  %523 = vmatprep.subr.mxu0 0.0
  %524 = vmatpush1.msra.mxu0 0.0
  %525 = vmatprep.subr.mxu0 0.0
  %526 = vmatpush1.msra.mxu0 0.0
  %527 = vmatprep.subr.mxu0 0.0
  %528 = vmatpush1.msra.mxu0 0.0
  %529 = vmatprep.subr.mxu0 0.0
  %530 = vmatpush1.msra.mxu0 0.0
  %531 = vmatprep.subr.mxu0 0.0
  %532 = vmatpush1.msra.mxu0 0.0
  %533 = vmatprep.subr.mxu0 0.0
  %534 = vmatpush1.msra.mxu0 0.0
  %535 = vmatprep.subr.mxu0 0.0
  %536 = vmatpush1.msra.mxu0 0.0
  %537 = vmatprep.subr.mxu0 0.0
  %538 = vmatpush1.msra.mxu0 0.0
  %539 = vmatprep.mubr.f32.mxu0 0.0
  %540 = vmatmul.mubr.f32.gmra.mrb[0].mxu0 %v446
  %v541 = vpop.f32.mrb[0].mxu0
  %v542 = vadd.f32 0.0, %v541
  %v543 = vpop.f32.mrb[0].mxu0
  %544 = vmatprep.mubr.f32.mxu0 0.0
  %545 = vmatmul.mubr.f32.gmra.mrb[0].mxu0 %v449
  %v546 = vpop.f32.mrb[0].mxu0
  %v547 = vadd.f32 0.0, %v546
  %v548 = vpop.f32.mrb[0].mxu0
  %549 = vmatprep.mubr.f32.mxu0 0.0
  %550 = vmatmul.mubr.f32.gmra.mrb[0].mxu0 %v452
  %v551 = vpop.f32.mrb[0].mxu0
  %v552 = vadd.f32 0.0, %v551
  %v553 = vpop.f32.mrb[0].mxu0
  %554 = vmatprep.mubr.f32.mxu0 0.0
  %555 = vmatmul.mubr.f32.gmra.mrb[0].mxu0 %v455
  %v556 = vpop.f32.mrb[0].mxu0
  %v557 = vadd.f32 0.0, %v556
  %v558 = vpop.f32.mrb[0].mxu0
  %559 = vmatprep.mubr.f32.mxu0 0.0
  %560 = vmatmul.mubr.f32.gmra.mrb[0].mxu0 %v458
  %v561 = vpop.f32.mrb[0].mxu0
  %v562 = vadd.f32 0.0, %v561
  %v563 = vpop.f32.mrb[0].mxu0
  %564 = vmatprep.mubr.f32.mxu0 0.0
  %565 = vmatmul.mubr.f32.gmra.mrb[0].mxu0 %v461
  %v566 = vpop.f32.mrb[0].mxu0
  %v567 = vadd.f32 0.0, %v566
  %v568 = vpop.f32.mrb[0].mxu0
  %569 = vmatprep.mubr.f32.mxu0 0.0
  %570 = vmatmul.mubr.f32.gmra.mrb[0].mxu0 %v464
  %v571 = vpop.f32.mrb[0].mxu0
  %v572 = vadd.f32 0.0, %v571
  %v573 = vpop.f32.mrb[0].mxu0
  %574 = vmatprep.mubr.f32.mxu0 0.0
  %575 = vmatmul.mubr.f32.gmra.mrb[0].mxu0 %v467
  %v576 = vpop.f32.mrb[0].mxu0
  %v577 = vadd.f32 0.0, %v576
  %v578 = vpop.f32.mrb[0].mxu0
  %579 = vmatprep.mubr.f32.mxu0 0.0
  %580 = vmatmul.mubr.f32.gmra.mrb[0].mxu0 %v470
  %v581 = vpop.f32.mrb[0].mxu0
  %v582 = vadd.f32 0.0, %v581
  %v583 = vpop.f32.mrb[0].mxu0
  %584 = vdwg.mxu0
  %v585 = vadd.f32 %v436, %v542
  %v586 = vadd.f32 %v437, %v547
  %v587 = vadd.f32 %v438, %v552
  %v588 = vadd.f32 %v439, %v557
  %v589 = vadd.f32 %v440, %v562
  %v590 = vadd.f32 %v441, %v567
  %v591 = vadd.f32 %v442, %v572
  %v592 = vadd.f32 %v443, %v577
  %v593 = vadd.f32 %v444, %v582
  %v594 = vmul.f32 %v585, %v585
  %v595 = vmul.f32 %v586, %v586
  %v596 = vmul.f32 %v587, %v587
  %v597 = vmul.f32 %v588, %v588
  %v598 = vmul.f32 %v589, %v589
  %v599 = vmul.f32 %v590, %v590
  %v600 = vadd.f32 %v594, %v597
  %v601 = vadd.f32 %v595, %v598
  %v602 = vadd.f32 %v596, %v599
  %v603 = vmul.f32 %v591, %v591
  %v604 = vmul.f32 %v592, %v592
  %v605 = vmul.f32 %v593, %v593
  %v606 = vadd.f32 %v600, %v603
  %v607 = vadd.f32 %v601, %v604
  %v608 = vadd.f32 %v602, %v605
  %v609 = vmax.f32 %v606, 1e-08
  %v610 = vmax.f32 %v607, 1e-08
  %v611 = vmax.f32 %v608, 1e-08
  %v612 = vrsqrt.pop %v609
  %v613 = vmul.f32 %v609, %v612
  %vm614 = vcmp.eq.f32.partialorder %v609, inf
  %v615 = vsel %vm614, %v609, %v613
  %vm616 = vcmp.eq.f32.partialorder %v609, 0.0
  %v617 = vand.u32 %v609, 2147483648
  %v618 = vsel %vm616, %v617, %v615
  %v619 = vrsqrt.pop %v610
  %v620 = vmul.f32 %v610, %v619
  %vm621 = vcmp.eq.f32.partialorder %v610, inf
  %v622 = vsel %vm621, %v610, %v620
  %vm623 = vcmp.eq.f32.partialorder %v610, 0.0
  %v624 = vand.u32 %v610, 2147483648
  %v625 = vsel %vm623, %v624, %v622
  %v626 = vrsqrt.pop %v611
  %v627 = vmul.f32 %v611, %v626
  %vm628 = vcmp.eq.f32.partialorder %v611, inf
  %v629 = vsel %vm628, %v611, %v627
  %vm630 = vcmp.eq.f32.partialorder %v611, 0.0
  %v631 = vand.u32 %v611, 2147483648
  %v632 = vsel %vm630, %v631, %v629
  %vm633 = vcmask 261120
  %v635 = vsel %vm633, %v82, 0
  %v638 = vsel %vm633, %v83, 0
  %v641 = vsel %vm633, %v84, 0
  %643 = vmatprep.subr.mxu0 0.0
  %644 = vmatpush1.msra.mxu0 %v121
  %645 = vmatprep.subr.mxu0 0.0
  %646 = vmatpush1.msra.mxu0 %v122
  %647 = vmatprep.subr.mxu0 0.0
  %648 = vmatpush1.msra.mxu0 %v123
  %649 = vmatprep.subr.mxu0 0.0
  %650 = vmatpush1.msra.mxu0 %v124
  %651 = vmatprep.subr.mxu0 0.0
  %652 = vmatpush1.msra.mxu0 0.0
  %653 = vmatprep.subr.mxu0 0.0
  %654 = vmatpush1.msra.mxu0 0.0
  %655 = vmatprep.subr.mxu0 0.0
  %656 = vmatpush1.msra.mxu0 0.0
  %657 = vmatprep.subr.mxu0 0.0
  %658 = vmatpush1.msra.mxu0 0.0
  %659 = vmatprep.subr.mxu0 0.0
  %660 = vmatpush1.msra.mxu0 0.0
  %661 = vmatprep.subr.mxu0 0.0
  %662 = vmatpush1.msra.mxu0 0.0
  %663 = vmatprep.subr.mxu0 0.0
  %664 = vmatpush1.msra.mxu0 0.0
  %665 = vmatprep.subr.mxu0 0.0
  %666 = vmatpush1.msra.mxu0 0.0
  %667 = vmatprep.subr.mxu0 0.0
  %668 = vmatpush1.msra.mxu0 0.0
  %669 = vmatprep.subr.mxu0 0.0
  %670 = vmatpush1.msra.mxu0 0.0
  %671 = vmatprep.subr.mxu0 0.0
  %672 = vmatpush1.msra.mxu0 0.0
  %673 = vmatprep.subr.mxu0 0.0
  %674 = vmatpush1.msra.mxu0 0.0
  %675 = vmatprep.subr.mxu0 0.0
  %676 = vmatpush1.msra.mxu0 0.0
  %677 = vmatprep.subr.mxu0 0.0
  %678 = vmatpush1.msra.mxu0 0.0
  %679 = vmatprep.subr.mxu0 0.0
  %680 = vmatpush1.msra.mxu0 0.0
  %681 = vmatprep.subr.mxu0 0.0
  %682 = vmatpush1.msra.mxu0 0.0
  %683 = vmatprep.subr.mxu0 0.0
  %684 = vmatpush1.msra.mxu0 0.0
  %685 = vmatprep.subr.mxu0 0.0
  %686 = vmatpush1.msra.mxu0 0.0
  %687 = vmatprep.subr.mxu0 0.0
  %688 = vmatpush1.msra.mxu0 0.0
  %689 = vmatprep.subr.mxu0 0.0
  %690 = vmatpush1.msra.mxu0 0.0
  %691 = vmatprep.subr.mxu0 0.0
  %692 = vmatpush1.msra.mxu0 0.0
  %693 = vmatprep.subr.mxu0 0.0
  %694 = vmatpush1.msra.mxu0 0.0
  %695 = vmatprep.subr.mxu0 0.0
  %696 = vmatpush1.msra.mxu0 0.0
  %697 = vmatprep.subr.mxu0 0.0
  %698 = vmatpush1.msra.mxu0 0.0
  %699 = vmatprep.subr.mxu0 0.0
  %700 = vmatpush1.msra.mxu0 0.0
  %701 = vmatprep.subr.mxu0 0.0
  %702 = vmatpush1.msra.mxu0 0.0
  %703 = vmatprep.subr.mxu0 0.0
  %704 = vmatpush1.msra.mxu0 0.0
  %705 = vmatprep.subr.mxu0 0.0
  %706 = vmatpush1.msra.mxu0 0.0
  %707 = vmatprep.mubr.f32.mxu0 0.0
  %708 = vmatmul.mubr.f32.gmra.mrb[0].mxu0 %v635
  %v709 = vpop.f32.mrb[0].mxu0
  %v710 = vadd.f32 0.0, %v709
  %v711 = vpop.f32.mrb[0].mxu0
  %712 = vmatprep.mubr.f32.mxu0 0.0
  %713 = vmatmul.mubr.f32.gmra.mrb[0].mxu0 %v638
  %v714 = vpop.f32.mrb[0].mxu0
  %v715 = vadd.f32 0.0, %v714
  %v716 = vpop.f32.mrb[0].mxu0
  %717 = vmatprep.mubr.f32.mxu0 0.0
  %718 = vmatmul.mubr.f32.gmra.mrb[0].mxu0 %v641
  %v719 = vpop.f32.mrb[0].mxu0
  %v720 = vadd.f32 0.0, %v719
  %v721 = vpop.f32.mrb[0].mxu0
  %722 = vdwg.mxu0
  %v724 = vlaneseq
  %v725 = vshrl.u32 %v724, 7
  %v726 = vsub.s32 0, %v725
  %v727 = vrot.slane %v133, %v726
  %v729 = vadd.f32 %v727, %v710
  %v730 = vadd.f32 %v727, %v715
  %v731 = vadd.f32 %v727, %v720
  %vm732 = vcmask 130048
  %v734 = vsel %vm732, %v85, 0
  %v737 = vsel %vm732, %v86, 0
  %v740 = vsel %vm732, %v87, 0
  %742 = vmatprep.subr.mxu0 0.0
  %743 = vmatpush1.msra.mxu0 %v125
  %744 = vmatprep.subr.mxu0 0.0
  %745 = vmatpush1.msra.mxu0 %v126
  %746 = vmatprep.subr.mxu0 0.0
  %747 = vmatpush1.msra.mxu0 0.0
  %748 = vmatprep.subr.mxu0 0.0
  %749 = vmatpush1.msra.mxu0 0.0
  %750 = vmatprep.subr.mxu0 0.0
  %751 = vmatpush1.msra.mxu0 0.0
  %752 = vmatprep.subr.mxu0 0.0
  %753 = vmatpush1.msra.mxu0 0.0
  %754 = vmatprep.subr.mxu0 0.0
  %755 = vmatpush1.msra.mxu0 0.0
  %756 = vmatprep.subr.mxu0 0.0
  %757 = vmatpush1.msra.mxu0 0.0
  %758 = vmatprep.subr.mxu0 0.0
  %759 = vmatpush1.msra.mxu0 0.0
  %760 = vmatprep.subr.mxu0 0.0
  %761 = vmatpush1.msra.mxu0 0.0
  %762 = vmatprep.subr.mxu0 0.0
  %763 = vmatpush1.msra.mxu0 0.0
  %764 = vmatprep.subr.mxu0 0.0
  %765 = vmatpush1.msra.mxu0 0.0
  %766 = vmatprep.subr.mxu0 0.0
  %767 = vmatpush1.msra.mxu0 0.0
  %768 = vmatprep.subr.mxu0 0.0
  %769 = vmatpush1.msra.mxu0 0.0
  %770 = vmatprep.subr.mxu0 0.0
  %771 = vmatpush1.msra.mxu0 0.0
  %772 = vmatprep.subr.mxu0 0.0
  %773 = vmatpush1.msra.mxu0 0.0
  %774 = vmatprep.subr.mxu0 0.0
  %775 = vmatpush1.msra.mxu0 0.0
  %776 = vmatprep.subr.mxu0 0.0
  %777 = vmatpush1.msra.mxu0 0.0
  %778 = vmatprep.subr.mxu0 0.0
  %779 = vmatpush1.msra.mxu0 0.0
  %780 = vmatprep.subr.mxu0 0.0
  %781 = vmatpush1.msra.mxu0 0.0
  %782 = vmatprep.subr.mxu0 0.0
  %783 = vmatpush1.msra.mxu0 0.0
  %784 = vmatprep.subr.mxu0 0.0
  %785 = vmatpush1.msra.mxu0 0.0
  %786 = vmatprep.subr.mxu0 0.0
  %787 = vmatpush1.msra.mxu0 0.0
  %788 = vmatprep.subr.mxu0 0.0
  %789 = vmatpush1.msra.mxu0 0.0
  %790 = vmatprep.subr.mxu0 0.0
  %791 = vmatpush1.msra.mxu0 0.0
  %792 = vmatprep.subr.mxu0 0.0
  %793 = vmatpush1.msra.mxu0 0.0
  %794 = vmatprep.subr.mxu0 0.0
  %795 = vmatpush1.msra.mxu0 0.0
  %796 = vmatprep.subr.mxu0 0.0
  %797 = vmatpush1.msra.mxu0 0.0
  %798 = vmatprep.subr.mxu0 0.0
  %799 = vmatpush1.msra.mxu0 0.0
  %800 = vmatprep.subr.mxu0 0.0
  %801 = vmatpush1.msra.mxu0 0.0
  %802 = vmatprep.subr.mxu0 0.0
  %803 = vmatpush1.msra.mxu0 0.0
  %804 = vmatprep.subr.mxu0 0.0
  %805 = vmatpush1.msra.mxu0 0.0
  %806 = vmatprep.mubr.f32.mxu0 0.0
  %807 = vmatmul.mubr.f32.gmra.mrb[0].mxu0 %v734
  %v808 = vpop.f32.mrb[0].mxu0
  %v809 = vadd.f32 0.0, %v808
  %v810 = vpop.f32.mrb[0].mxu0
  %811 = vmatprep.mubr.f32.mxu0 0.0
  %812 = vmatmul.mubr.f32.gmra.mrb[0].mxu0 %v737
  %v813 = vpop.f32.mrb[0].mxu0
  %v814 = vadd.f32 0.0, %v813
  %v815 = vpop.f32.mrb[0].mxu0
  %816 = vmatprep.mubr.f32.mxu0 0.0
  %817 = vmatmul.mubr.f32.gmra.mrb[0].mxu0 %v740
  %v818 = vpop.f32.mrb[0].mxu0
  %v819 = vadd.f32 0.0, %v818
  %v820 = vpop.f32.mrb[0].mxu0
  %821 = vdwg.mxu0
  %v822 = vadd.f32 %v729, %v809
  %v823 = vadd.f32 %v730, %v814
  %v824 = vadd.f32 %v731, %v819
  %v826 = vsel %vm633, %v88, 0
  %v829 = vsel %vm633, %v89, 0
  %v832 = vsel %vm633, %v90, 0
  %834 = vmatprep.subr.mxu0 0.0
  %835 = vmatpush1.msra.mxu0 %v127
  %836 = vmatprep.subr.mxu0 0.0
  %837 = vmatpush1.msra.mxu0 %v128
  %838 = vmatprep.subr.mxu0 0.0
  %839 = vmatpush1.msra.mxu0 %v129
  %840 = vmatprep.subr.mxu0 0.0
  %841 = vmatpush1.msra.mxu0 %v130
  %842 = vmatprep.subr.mxu0 0.0
  %843 = vmatpush1.msra.mxu0 0.0
  %844 = vmatprep.subr.mxu0 0.0
  %845 = vmatpush1.msra.mxu0 0.0
  %846 = vmatprep.subr.mxu0 0.0
  %847 = vmatpush1.msra.mxu0 0.0
  %848 = vmatprep.subr.mxu0 0.0
  %849 = vmatpush1.msra.mxu0 0.0
  %850 = vmatprep.subr.mxu0 0.0
  %851 = vmatpush1.msra.mxu0 0.0
  %852 = vmatprep.subr.mxu0 0.0
  %853 = vmatpush1.msra.mxu0 0.0
  %854 = vmatprep.subr.mxu0 0.0
  %855 = vmatpush1.msra.mxu0 0.0
  %856 = vmatprep.subr.mxu0 0.0
  %857 = vmatpush1.msra.mxu0 0.0
  %858 = vmatprep.subr.mxu0 0.0
  %859 = vmatpush1.msra.mxu0 0.0
  %860 = vmatprep.subr.mxu0 0.0
  %861 = vmatpush1.msra.mxu0 0.0
  %862 = vmatprep.subr.mxu0 0.0
  %863 = vmatpush1.msra.mxu0 0.0
  %864 = vmatprep.subr.mxu0 0.0
  %865 = vmatpush1.msra.mxu0 0.0
  %866 = vmatprep.subr.mxu0 0.0
  %867 = vmatpush1.msra.mxu0 0.0
  %868 = vmatprep.subr.mxu0 0.0
  %869 = vmatpush1.msra.mxu0 0.0
  %870 = vmatprep.subr.mxu0 0.0
  %871 = vmatpush1.msra.mxu0 0.0
  %872 = vmatprep.subr.mxu0 0.0
  %873 = vmatpush1.msra.mxu0 0.0
  %874 = vmatprep.subr.mxu0 0.0
  %875 = vmatpush1.msra.mxu0 0.0
  %876 = vmatprep.subr.mxu0 0.0
  %877 = vmatpush1.msra.mxu0 0.0
  %878 = vmatprep.subr.mxu0 0.0
  %879 = vmatpush1.msra.mxu0 0.0
  %880 = vmatprep.subr.mxu0 0.0
  %881 = vmatpush1.msra.mxu0 0.0
  %882 = vmatprep.subr.mxu0 0.0
  %883 = vmatpush1.msra.mxu0 0.0
  %884 = vmatprep.subr.mxu0 0.0
  %885 = vmatpush1.msra.mxu0 0.0
  %886 = vmatprep.subr.mxu0 0.0
  %887 = vmatpush1.msra.mxu0 0.0
  %888 = vmatprep.subr.mxu0 0.0
  %889 = vmatpush1.msra.mxu0 0.0
  %890 = vmatprep.subr.mxu0 0.0
  %891 = vmatpush1.msra.mxu0 0.0
  %892 = vmatprep.subr.mxu0 0.0
  %893 = vmatpush1.msra.mxu0 0.0
  %894 = vmatprep.subr.mxu0 0.0
  %895 = vmatpush1.msra.mxu0 0.0
  %896 = vmatprep.subr.mxu0 0.0
  %897 = vmatpush1.msra.mxu0 0.0
  %898 = vmatprep.mubr.f32.mxu0 0.0
  %899 = vmatmul.mubr.f32.gmra.mrb[0].mxu0 %v826
  %v900 = vpop.f32.mrb[0].mxu0
  %v901 = vadd.f32 0.0, %v900
  %v902 = vpop.f32.mrb[0].mxu0
  %903 = vmatprep.mubr.f32.mxu0 0.0
  %904 = vmatmul.mubr.f32.gmra.mrb[0].mxu0 %v829
  %v905 = vpop.f32.mrb[0].mxu0
  %v906 = vadd.f32 0.0, %v905
  %v907 = vpop.f32.mrb[0].mxu0
  %908 = vmatprep.mubr.f32.mxu0 0.0
  %909 = vmatmul.mubr.f32.gmra.mrb[0].mxu0 %v832
  %v910 = vpop.f32.mrb[0].mxu0
  %v911 = vadd.f32 0.0, %v910
  %v912 = vpop.f32.mrb[0].mxu0
  %913 = vdwg.mxu0
  %v914 = vadd.f32 %v822, %v901
  %v915 = vadd.f32 %v823, %v906
  %v916 = vadd.f32 %v824, %v911
  %vm917 = vcmask 80896
  %v919 = vsel %vm917, %v618, 0
  %v922 = vsel %vm917, %v625, 0
  %v925 = vsel %vm917, %v632, 0
  %v928 = vsel %vm322, %v132, 0
  %930 = vmatprep.subr.mxu0 0.0
  %931 = vmatpush1.msra.mxu0 %v131
  %932 = vmatprep.subr.mxu0 0.0
  %933 = vmatpush1.msra.mxu0 %v928
  %934 = vmatprep.subr.mxu0 0.0
  %935 = vmatpush1.msra.mxu0 0.0
  %936 = vmatprep.subr.mxu0 0.0
  %937 = vmatpush1.msra.mxu0 0.0
  %938 = vmatprep.subr.mxu0 0.0
  %939 = vmatpush1.msra.mxu0 0.0
  %940 = vmatprep.subr.mxu0 0.0
  %941 = vmatpush1.msra.mxu0 0.0
  %942 = vmatprep.subr.mxu0 0.0
  %943 = vmatpush1.msra.mxu0 0.0
  %944 = vmatprep.subr.mxu0 0.0
  %945 = vmatpush1.msra.mxu0 0.0
  %946 = vmatprep.subr.mxu0 0.0
  %947 = vmatpush1.msra.mxu0 0.0
  %948 = vmatprep.subr.mxu0 0.0
  %949 = vmatpush1.msra.mxu0 0.0
  %950 = vmatprep.subr.mxu0 0.0
  %951 = vmatpush1.msra.mxu0 0.0
  %952 = vmatprep.subr.mxu0 0.0
  %953 = vmatpush1.msra.mxu0 0.0
  %954 = vmatprep.subr.mxu0 0.0
  %955 = vmatpush1.msra.mxu0 0.0
  %956 = vmatprep.subr.mxu0 0.0
  %957 = vmatpush1.msra.mxu0 0.0
  %958 = vmatprep.subr.mxu0 0.0
  %959 = vmatpush1.msra.mxu0 0.0
  %960 = vmatprep.subr.mxu0 0.0
  %961 = vmatpush1.msra.mxu0 0.0
  %962 = vmatprep.subr.mxu0 0.0
  %963 = vmatpush1.msra.mxu0 0.0
  %964 = vmatprep.subr.mxu0 0.0
  %965 = vmatpush1.msra.mxu0 0.0
  %966 = vmatprep.subr.mxu0 0.0
  %967 = vmatpush1.msra.mxu0 0.0
  %968 = vmatprep.subr.mxu0 0.0
  %969 = vmatpush1.msra.mxu0 0.0
  %970 = vmatprep.subr.mxu0 0.0
  %971 = vmatpush1.msra.mxu0 0.0
  %972 = vmatprep.subr.mxu0 0.0
  %973 = vmatpush1.msra.mxu0 0.0
  %974 = vmatprep.subr.mxu0 0.0
  %975 = vmatpush1.msra.mxu0 0.0
  %976 = vmatprep.subr.mxu0 0.0
  %977 = vmatpush1.msra.mxu0 0.0
  %978 = vmatprep.subr.mxu0 0.0
  %979 = vmatpush1.msra.mxu0 0.0
  %980 = vmatprep.subr.mxu0 0.0
  %981 = vmatpush1.msra.mxu0 0.0
  %982 = vmatprep.subr.mxu0 0.0
  %983 = vmatpush1.msra.mxu0 0.0
  %984 = vmatprep.subr.mxu0 0.0
  %985 = vmatpush1.msra.mxu0 0.0
  %986 = vmatprep.subr.mxu0 0.0
  %987 = vmatpush1.msra.mxu0 0.0
  %988 = vmatprep.subr.mxu0 0.0
  %989 = vmatpush1.msra.mxu0 0.0
  %990 = vmatprep.subr.mxu0 0.0
  %991 = vmatpush1.msra.mxu0 0.0
  %992 = vmatprep.subr.mxu0 0.0
  %993 = vmatpush1.msra.mxu0 0.0
  %994 = vmatprep.mubr.f32.mxu0 0.0
  %995 = vmatmul.mubr.f32.gmra.mrb[0].mxu0 %v919
  %v996 = vpop.f32.mrb[0].mxu0
  %v997 = vadd.f32 0.0, %v996
  %v998 = vpop.f32.mrb[0].mxu0
  %999 = vmatprep.mubr.f32.mxu0 0.0
  %1000 = vmatmul.mubr.f32.gmra.mrb[0].mxu0 %v922
  %v1001 = vpop.f32.mrb[0].mxu0
  %v1002 = vadd.f32 0.0, %v1001
  %v1003 = vpop.f32.mrb[0].mxu0
  %1004 = vmatprep.mubr.f32.mxu0 0.0
  %1005 = vmatmul.mubr.f32.gmra.mrb[0].mxu0 %v925
  %v1006 = vpop.f32.mrb[0].mxu0
  %v1007 = vadd.f32 0.0, %v1006
  %v1008 = vpop.f32.mrb[0].mxu0
  %1009 = vdwg.mxu0
  %v1010 = vadd.f32 %v914, %v997
  %v1011 = vadd.f32 %v915, %v1002
  %v1012 = vadd.f32 %v916, %v1007
  %v1014 = vsel %vm917, %v585, 0
  %v1017 = vsel %vm917, %v586, 0
  %v1020 = vsel %vm917, %v587, 0
  %v1023 = vsel %vm917, %v588, 0
  %v1026 = vsel %vm917, %v589, 0
  %v1029 = vsel %vm917, %v590, 0
  %v1032 = vsel %vm917, %v591, 0
  %v1035 = vsel %vm917, %v592, 0
  %v1038 = vsel %vm917, %v593, 0
  %v1041 = vsel %vm322, %v135, 0
  %1043 = vmatprep.subr.mxu0 0.0
  %1044 = vmatpush1.msra.mxu0 %v134
  %1045 = vmatprep.subr.mxu0 0.0
  %1046 = vmatpush1.msra.mxu0 %v1041
  %1047 = vmatprep.subr.mxu0 0.0
  %1048 = vmatpush1.msra.mxu0 0.0
  %1049 = vmatprep.subr.mxu0 0.0
  %1050 = vmatpush1.msra.mxu0 0.0
  %1051 = vmatprep.subr.mxu0 0.0
  %1052 = vmatpush1.msra.mxu0 0.0
  %1053 = vmatprep.subr.mxu0 0.0
  %1054 = vmatpush1.msra.mxu0 0.0
  %1055 = vmatprep.subr.mxu0 0.0
  %1056 = vmatpush1.msra.mxu0 0.0
  %1057 = vmatprep.subr.mxu0 0.0
  %1058 = vmatpush1.msra.mxu0 0.0
  %1059 = vmatprep.subr.mxu0 0.0
  %1060 = vmatpush1.msra.mxu0 0.0
  %1061 = vmatprep.subr.mxu0 0.0
  %1062 = vmatpush1.msra.mxu0 0.0
  %1063 = vmatprep.subr.mxu0 0.0
  %1064 = vmatpush1.msra.mxu0 0.0
  %1065 = vmatprep.subr.mxu0 0.0
  %1066 = vmatpush1.msra.mxu0 0.0
  %1067 = vmatprep.subr.mxu0 0.0
  %1068 = vmatpush1.msra.mxu0 0.0
  %1069 = vmatprep.subr.mxu0 0.0
  %1070 = vmatpush1.msra.mxu0 0.0
  %1071 = vmatprep.subr.mxu0 0.0
  %1072 = vmatpush1.msra.mxu0 0.0
  %1073 = vmatprep.subr.mxu0 0.0
  %1074 = vmatpush1.msra.mxu0 0.0
  %1075 = vmatprep.subr.mxu0 0.0
  %1076 = vmatpush1.msra.mxu0 0.0
  %1077 = vmatprep.subr.mxu0 0.0
  %1078 = vmatpush1.msra.mxu0 0.0
  %1079 = vmatprep.subr.mxu0 0.0
  %1080 = vmatpush1.msra.mxu0 0.0
  %1081 = vmatprep.subr.mxu0 0.0
  %1082 = vmatpush1.msra.mxu0 0.0
  %1083 = vmatprep.subr.mxu0 0.0
  %1084 = vmatpush1.msra.mxu0 0.0
  %1085 = vmatprep.subr.mxu0 0.0
  %1086 = vmatpush1.msra.mxu0 0.0
  %1087 = vmatprep.subr.mxu0 0.0
  %1088 = vmatpush1.msra.mxu0 0.0
  %1089 = vmatprep.subr.mxu0 0.0
  %1090 = vmatpush1.msra.mxu0 0.0
  %1091 = vmatprep.subr.mxu0 0.0
  %1092 = vmatpush1.msra.mxu0 0.0
  %1093 = vmatprep.subr.mxu0 0.0
  %1094 = vmatpush1.msra.mxu0 0.0
  %1095 = vmatprep.subr.mxu0 0.0
  %1096 = vmatpush1.msra.mxu0 0.0
  %1097 = vmatprep.subr.mxu0 0.0
  %1098 = vmatpush1.msra.mxu0 0.0
  %1099 = vmatprep.subr.mxu0 0.0
  %1100 = vmatpush1.msra.mxu0 0.0
  %1101 = vmatprep.subr.mxu0 0.0
  %1102 = vmatpush1.msra.mxu0 0.0
  %1103 = vmatprep.subr.mxu0 0.0
  %1104 = vmatpush1.msra.mxu0 0.0
  %1105 = vmatprep.subr.mxu0 0.0
  %1106 = vmatpush1.msra.mxu0 0.0
  %1107 = vmatprep.mubr.f32.mxu0 0.0
  %1108 = vmatmul.mubr.f32.gmra.mrb[0].mxu0 %v1014
  %v1109 = vpop.f32.mrb[0].mxu0
  %v1110 = vadd.f32 0.0, %v1109
  %v1111 = vpop.f32.mrb[0].mxu0
  %1112 = vmatprep.mubr.f32.mxu0 0.0
  %1113 = vmatmul.mubr.f32.gmra.mrb[0].mxu0 %v1017
  %v1114 = vpop.f32.mrb[0].mxu0
  %v1115 = vadd.f32 0.0, %v1114
  %v1116 = vpop.f32.mrb[0].mxu0
  %1117 = vmatprep.mubr.f32.mxu0 0.0
  %1118 = vmatmul.mubr.f32.gmra.mrb[0].mxu0 %v1020
  %v1119 = vpop.f32.mrb[0].mxu0
  %v1120 = vadd.f32 0.0, %v1119
  %v1121 = vpop.f32.mrb[0].mxu0
  %1122 = vmatprep.mubr.f32.mxu0 0.0
  %1123 = vmatmul.mubr.f32.gmra.mrb[0].mxu0 %v1023
  %v1124 = vpop.f32.mrb[0].mxu0
  %v1125 = vadd.f32 0.0, %v1124
  %v1126 = vpop.f32.mrb[0].mxu0
  %1127 = vmatprep.mubr.f32.mxu0 0.0
  %1128 = vmatmul.mubr.f32.gmra.mrb[0].mxu0 %v1026
  %v1129 = vpop.f32.mrb[0].mxu0
  %v1130 = vadd.f32 0.0, %v1129
  %v1131 = vpop.f32.mrb[0].mxu0
  %1132 = vmatprep.mubr.f32.mxu0 0.0
  %1133 = vmatmul.mubr.f32.gmra.mrb[0].mxu0 %v1029
  %v1134 = vpop.f32.mrb[0].mxu0
  %v1135 = vadd.f32 0.0, %v1134
  %v1136 = vpop.f32.mrb[0].mxu0
  %1137 = vmatprep.mubr.f32.mxu0 0.0
  %1138 = vmatmul.mubr.f32.gmra.mrb[0].mxu0 %v1032
  %v1139 = vpop.f32.mrb[0].mxu0
  %v1140 = vadd.f32 0.0, %v1139
  %v1141 = vpop.f32.mrb[0].mxu0
  %1142 = vmatprep.mubr.f32.mxu0 0.0
  %1143 = vmatmul.mubr.f32.gmra.mrb[0].mxu0 %v1035
  %v1144 = vpop.f32.mrb[0].mxu0
  %v1145 = vadd.f32 0.0, %v1144
  %v1146 = vpop.f32.mrb[0].mxu0
  %1147 = vmatprep.mubr.f32.mxu0 0.0
  %1148 = vmatmul.mubr.f32.gmra.mrb[0].mxu0 %v1038
  %v1149 = vpop.f32.mrb[0].mxu0
  %v1150 = vadd.f32 0.0, %v1149
  %v1151 = vpop.f32.mrb[0].mxu0
  %1152 = vdwg.mxu0
  %v1153 = vmul.f32 %v1110, %v1110
  %v1154 = vmul.f32 %v1115, %v1115
  %v1155 = vmul.f32 %v1120, %v1120
  %v1156 = vmul.f32 %v1125, %v1125
  %v1157 = vmul.f32 %v1130, %v1130
  %v1158 = vmul.f32 %v1135, %v1135
  %v1159 = vadd.f32 %v1153, %v1156
  %v1160 = vadd.f32 %v1154, %v1157
  %v1161 = vadd.f32 %v1155, %v1158
  %v1162 = vmul.f32 %v1140, %v1140
  %v1163 = vmul.f32 %v1145, %v1145
  %v1164 = vmul.f32 %v1150, %v1150
  %v1165 = vadd.f32 %v1159, %v1162
  %v1166 = vadd.f32 %v1160, %v1163
  %v1167 = vadd.f32 %v1161, %v1164
  %v1168 = vmax.f32 %v1165, 1e-08
  %v1169 = vmax.f32 %v1166, 1e-08
  %v1170 = vmax.f32 %v1167, 1e-08
  %v1171 = vrsqrt.pop %v1168
  %v1172 = vmul.f32 %v1168, %v1171
  %vm1173 = vcmp.eq.f32.partialorder %v1168, inf
  %v1174 = vsel %vm1173, %v1168, %v1172
  %vm1175 = vcmp.eq.f32.partialorder %v1168, 0.0
  %v1176 = vand.u32 %v1168, 2147483648
  %v1177 = vsel %vm1175, %v1176, %v1174
  %v1178 = vrsqrt.pop %v1169
  %v1179 = vmul.f32 %v1169, %v1178
  %vm1180 = vcmp.eq.f32.partialorder %v1169, inf
  %v1181 = vsel %vm1180, %v1169, %v1179
  %vm1182 = vcmp.eq.f32.partialorder %v1169, 0.0
  %v1183 = vand.u32 %v1169, 2147483648
  %v1184 = vsel %vm1182, %v1183, %v1181
  %v1185 = vrsqrt.pop %v1170
  %v1186 = vmul.f32 %v1170, %v1185
  %vm1187 = vcmp.eq.f32.partialorder %v1170, inf
  %v1188 = vsel %vm1187, %v1170, %v1186
  %vm1189 = vcmp.eq.f32.partialorder %v1170, 0.0
  %v1190 = vand.u32 %v1170, 2147483648
  %v1191 = vsel %vm1189, %v1190, %v1188
  %v1192 = vxor.u32 %v1177, 2147483648
  %v1193 = vxor.u32 %v1184, 2147483648
  %v1194 = vxor.u32 %v1191, 2147483648
  %v1195 = vmul.f32 %v1192, 1.442695
  %v1196 = vpow.pop %v1195
  %v1197 = vmul.f32 %v1193, 1.442695
  %v1198 = vpow.pop %v1197
  %v1199 = vmul.f32 %v1194, 1.442695
  %v1200 = vpow.pop %v1199
  %v1201 = vadd.f32 %v1196, 1.0
  %v1202 = vadd.f32 %v1198, 1.0
  %v1203 = vadd.f32 %v1200, 1.0
  %v1204 = vrcp.pop %v1201
  %v1205 = vmul.f32 1.0, %v1204
  %v1206 = vrcp.pop %v1202
  %v1207 = vmul.f32 1.0, %v1206
  %v1208 = vrcp.pop %v1203
  %v1209 = vmul.f32 1.0, %v1208
  %v1210 = vmul.f32 %v1110, %v1205
  %v1211 = vmul.f32 %v1115, %v1207
  %v1212 = vmul.f32 %v1120, %v1209
  %v1213 = vmul.f32 %v1125, %v1205
  %v1214 = vmul.f32 %v1130, %v1207
  %v1215 = vmul.f32 %v1135, %v1209
  %v1216 = vmul.f32 %v1140, %v1205
  %v1217 = vmul.f32 %v1145, %v1207
  %v1218 = vmul.f32 %v1150, %v1209
  %v1219 = vmax.f32 %v1010, 0.0
  %v1220 = vmax.f32 %v1011, 0.0
  %v1221 = vmax.f32 %v1012, 0.0
  %v1223 = vsel %vm152, %v1210, 0
  %v1226 = vsel %vm152, %v1211, 0
  %v1229 = vsel %vm152, %v1212, 0
  %v1232 = vsel %vm152, %v1213, 0
  %v1235 = vsel %vm152, %v1214, 0
  %v1238 = vsel %vm152, %v1215, 0
  %v1241 = vsel %vm152, %v1216, 0
  %v1244 = vsel %vm152, %v1217, 0
  %v1247 = vsel %vm152, %v1218, 0
  %v1250 = vsel %vm180, %v136, 0
  %1252 = vmatprep.subr.mxu0 0.0
  %1253 = vmatpush1.msra.mxu0 %v1250
  %1254 = vmatprep.subr.mxu0 0.0
  %1255 = vmatpush1.msra.mxu0 0.0
  %1256 = vmatprep.subr.mxu0 0.0
  %1257 = vmatpush1.msra.mxu0 0.0
  %1258 = vmatprep.subr.mxu0 0.0
  %1259 = vmatpush1.msra.mxu0 0.0
  %1260 = vmatprep.subr.mxu0 0.0
  %1261 = vmatpush1.msra.mxu0 0.0
  %1262 = vmatprep.subr.mxu0 0.0
  %1263 = vmatpush1.msra.mxu0 0.0
  %1264 = vmatprep.subr.mxu0 0.0
  %1265 = vmatpush1.msra.mxu0 0.0
  %1266 = vmatprep.subr.mxu0 0.0
  %1267 = vmatpush1.msra.mxu0 0.0
  %1268 = vmatprep.subr.mxu0 0.0
  %1269 = vmatpush1.msra.mxu0 0.0
  %1270 = vmatprep.subr.mxu0 0.0
  %1271 = vmatpush1.msra.mxu0 0.0
  %1272 = vmatprep.subr.mxu0 0.0
  %1273 = vmatpush1.msra.mxu0 0.0
  %1274 = vmatprep.subr.mxu0 0.0
  %1275 = vmatpush1.msra.mxu0 0.0
  %1276 = vmatprep.subr.mxu0 0.0
  %1277 = vmatpush1.msra.mxu0 0.0
  %1278 = vmatprep.subr.mxu0 0.0
  %1279 = vmatpush1.msra.mxu0 0.0
  %1280 = vmatprep.subr.mxu0 0.0
  %1281 = vmatpush1.msra.mxu0 0.0
  %1282 = vmatprep.subr.mxu0 0.0
  %1283 = vmatpush1.msra.mxu0 0.0
  %1284 = vmatprep.subr.mxu0 0.0
  %1285 = vmatpush1.msra.mxu0 0.0
  %1286 = vmatprep.subr.mxu0 0.0
  %1287 = vmatpush1.msra.mxu0 0.0
  %1288 = vmatprep.subr.mxu0 0.0
  %1289 = vmatpush1.msra.mxu0 0.0
  %1290 = vmatprep.subr.mxu0 0.0
  %1291 = vmatpush1.msra.mxu0 0.0
  %1292 = vmatprep.subr.mxu0 0.0
  %1293 = vmatpush1.msra.mxu0 0.0
  %1294 = vmatprep.subr.mxu0 0.0
  %1295 = vmatpush1.msra.mxu0 0.0
  %1296 = vmatprep.subr.mxu0 0.0
  %1297 = vmatpush1.msra.mxu0 0.0
  %1298 = vmatprep.subr.mxu0 0.0
  %1299 = vmatpush1.msra.mxu0 0.0
  %1300 = vmatprep.subr.mxu0 0.0
  %1301 = vmatpush1.msra.mxu0 0.0
  %1302 = vmatprep.subr.mxu0 0.0
  %1303 = vmatpush1.msra.mxu0 0.0
  %1304 = vmatprep.subr.mxu0 0.0
  %1305 = vmatpush1.msra.mxu0 0.0
  %1306 = vmatprep.subr.mxu0 0.0
  %1307 = vmatpush1.msra.mxu0 0.0
  %1308 = vmatprep.subr.mxu0 0.0
  %1309 = vmatpush1.msra.mxu0 0.0
  %1310 = vmatprep.subr.mxu0 0.0
  %1311 = vmatpush1.msra.mxu0 0.0
  %1312 = vmatprep.subr.mxu0 0.0
  %1313 = vmatpush1.msra.mxu0 0.0
  %1314 = vmatprep.subr.mxu0 0.0
  %1315 = vmatpush1.msra.mxu0 0.0
  %1316 = vmatprep.mubr.f32.mxu0 0.0
  %1317 = vmatmul.mubr.f32.gmra.mrb[0].mxu0 %v1223
  %v1318 = vpop.f32.mrb[0].mxu0
  %v1319 = vadd.f32 0.0, %v1318
  %v1320 = vpop.f32.mrb[0].mxu0
  %1321 = vmatprep.mubr.f32.mxu0 0.0
  %1322 = vmatmul.mubr.f32.gmra.mrb[0].mxu0 %v1226
  %v1323 = vpop.f32.mrb[0].mxu0
  %v1324 = vadd.f32 0.0, %v1323
  %v1325 = vpop.f32.mrb[0].mxu0
  %1326 = vmatprep.mubr.f32.mxu0 0.0
  %1327 = vmatmul.mubr.f32.gmra.mrb[0].mxu0 %v1229
  %v1328 = vpop.f32.mrb[0].mxu0
  %v1329 = vadd.f32 0.0, %v1328
  %v1330 = vpop.f32.mrb[0].mxu0
  %1331 = vmatprep.mubr.f32.mxu0 0.0
  %1332 = vmatmul.mubr.f32.gmra.mrb[0].mxu0 %v1232
  %v1333 = vpop.f32.mrb[0].mxu0
  %v1334 = vadd.f32 0.0, %v1333
  %v1335 = vpop.f32.mrb[0].mxu0
  %1336 = vmatprep.mubr.f32.mxu0 0.0
  %1337 = vmatmul.mubr.f32.gmra.mrb[0].mxu0 %v1235
  %v1338 = vpop.f32.mrb[0].mxu0
  %v1339 = vadd.f32 0.0, %v1338
  %v1340 = vpop.f32.mrb[0].mxu0
  %1341 = vmatprep.mubr.f32.mxu0 0.0
  %1342 = vmatmul.mubr.f32.gmra.mrb[0].mxu0 %v1238
  %v1343 = vpop.f32.mrb[0].mxu0
  %v1344 = vadd.f32 0.0, %v1343
  %v1345 = vpop.f32.mrb[0].mxu0
  %1346 = vmatprep.mubr.f32.mxu0 0.0
  %1347 = vmatmul.mubr.f32.gmra.mrb[0].mxu0 %v1241
  %v1348 = vpop.f32.mrb[0].mxu0
  %v1349 = vadd.f32 0.0, %v1348
  %v1350 = vpop.f32.mrb[0].mxu0
  %1351 = vmatprep.mubr.f32.mxu0 0.0
  %1352 = vmatmul.mubr.f32.gmra.mrb[0].mxu0 %v1244
  %v1353 = vpop.f32.mrb[0].mxu0
  %v1354 = vadd.f32 0.0, %v1353
  %v1355 = vpop.f32.mrb[0].mxu0
  %1356 = vmatprep.mubr.f32.mxu0 0.0
  %1357 = vmatmul.mubr.f32.gmra.mrb[0].mxu0 %v1247
  %v1358 = vpop.f32.mrb[0].mxu0
  %v1359 = vadd.f32 0.0, %v1358
  %v1360 = vpop.f32.mrb[0].mxu0
  %1361 = vdwg.mxu0
  %v1362 = vmul.f32 %v1319, %v1319
  %v1363 = vmul.f32 %v1324, %v1324
  %v1364 = vmul.f32 %v1329, %v1329
  %v1365 = vmul.f32 %v1334, %v1334
  %v1366 = vmul.f32 %v1339, %v1339
  %v1367 = vmul.f32 %v1344, %v1344
  %v1368 = vadd.f32 %v1362, %v1365
  %v1369 = vadd.f32 %v1363, %v1366
  %v1370 = vadd.f32 %v1364, %v1367
  %v1371 = vmul.f32 %v1349, %v1349
  %v1372 = vmul.f32 %v1354, %v1354
  %v1373 = vmul.f32 %v1359, %v1359
  %v1374 = vadd.f32 %v1368, %v1371
  %v1375 = vadd.f32 %v1369, %v1372
  %v1376 = vadd.f32 %v1370, %v1373
  %v1377 = vmax.f32 %v1374, 1e-08
  %v1378 = vmax.f32 %v1375, 1e-08
  %v1379 = vmax.f32 %v1376, 1e-08
  %v1380 = vrsqrt.pop %v1377
  %v1381 = vmul.f32 %v1377, %v1380
  %vm1382 = vcmp.eq.f32.partialorder %v1377, inf
  %v1383 = vsel %vm1382, %v1377, %v1381
  %vm1384 = vcmp.eq.f32.partialorder %v1377, 0.0
  %v1385 = vand.u32 %v1377, 2147483648
  %v1386 = vsel %vm1384, %v1385, %v1383
  %v1387 = vrsqrt.pop %v1378
  %v1388 = vmul.f32 %v1378, %v1387
  %vm1389 = vcmp.eq.f32.partialorder %v1378, inf
  %v1390 = vsel %vm1389, %v1378, %v1388
  %vm1391 = vcmp.eq.f32.partialorder %v1378, 0.0
  %v1392 = vand.u32 %v1378, 2147483648
  %v1393 = vsel %vm1391, %v1392, %v1390
  %v1394 = vrsqrt.pop %v1379
  %v1395 = vmul.f32 %v1379, %v1394
  %vm1396 = vcmp.eq.f32.partialorder %v1379, inf
  %v1397 = vsel %vm1396, %v1379, %v1395
  %vm1398 = vcmp.eq.f32.partialorder %v1379, 0.0
  %v1399 = vand.u32 %v1379, 2147483648
  %v1400 = vsel %vm1398, %v1399, %v1397
  %v1402 = vsel %vm633, %v1219, 0
  %v1405 = vsel %vm633, %v1220, 0
  %v1408 = vsel %vm633, %v1221, 0
  %1410 = vmatprep.subr.mxu0 0.0
  %1411 = vmatpush1.msra.mxu0 %v137
  %1412 = vmatprep.subr.mxu0 0.0
  %1413 = vmatpush1.msra.mxu0 %v138
  %1414 = vmatprep.subr.mxu0 0.0
  %1415 = vmatpush1.msra.mxu0 %v139
  %1416 = vmatprep.subr.mxu0 0.0
  %1417 = vmatpush1.msra.mxu0 %v140
  %1418 = vmatprep.subr.mxu0 0.0
  %1419 = vmatpush1.msra.mxu0 0.0
  %1420 = vmatprep.subr.mxu0 0.0
  %1421 = vmatpush1.msra.mxu0 0.0
  %1422 = vmatprep.subr.mxu0 0.0
  %1423 = vmatpush1.msra.mxu0 0.0
  %1424 = vmatprep.subr.mxu0 0.0
  %1425 = vmatpush1.msra.mxu0 0.0
  %1426 = vmatprep.subr.mxu0 0.0
  %1427 = vmatpush1.msra.mxu0 0.0
  %1428 = vmatprep.subr.mxu0 0.0
  %1429 = vmatpush1.msra.mxu0 0.0
  %1430 = vmatprep.subr.mxu0 0.0
  %1431 = vmatpush1.msra.mxu0 0.0
  %1432 = vmatprep.subr.mxu0 0.0
  %1433 = vmatpush1.msra.mxu0 0.0
  %1434 = vmatprep.subr.mxu0 0.0
  %1435 = vmatpush1.msra.mxu0 0.0
  %1436 = vmatprep.subr.mxu0 0.0
  %1437 = vmatpush1.msra.mxu0 0.0
  %1438 = vmatprep.subr.mxu0 0.0
  %1439 = vmatpush1.msra.mxu0 0.0
  %1440 = vmatprep.subr.mxu0 0.0
  %1441 = vmatpush1.msra.mxu0 0.0
  %1442 = vmatprep.subr.mxu0 0.0
  %1443 = vmatpush1.msra.mxu0 0.0
  %1444 = vmatprep.subr.mxu0 0.0
  %1445 = vmatpush1.msra.mxu0 0.0
  %1446 = vmatprep.subr.mxu0 0.0
  %1447 = vmatpush1.msra.mxu0 0.0
  %1448 = vmatprep.subr.mxu0 0.0
  %1449 = vmatpush1.msra.mxu0 0.0
  %1450 = vmatprep.subr.mxu0 0.0
  %1451 = vmatpush1.msra.mxu0 0.0
  %1452 = vmatprep.subr.mxu0 0.0
  %1453 = vmatpush1.msra.mxu0 0.0
  %1454 = vmatprep.subr.mxu0 0.0
  %1455 = vmatpush1.msra.mxu0 0.0
  %1456 = vmatprep.subr.mxu0 0.0
  %1457 = vmatpush1.msra.mxu0 0.0
  %1458 = vmatprep.subr.mxu0 0.0
  %1459 = vmatpush1.msra.mxu0 0.0
  %1460 = vmatprep.subr.mxu0 0.0
  %1461 = vmatpush1.msra.mxu0 0.0
  %1462 = vmatprep.subr.mxu0 0.0
  %1463 = vmatpush1.msra.mxu0 0.0
  %1464 = vmatprep.subr.mxu0 0.0
  %1465 = vmatpush1.msra.mxu0 0.0
  %1466 = vmatprep.subr.mxu0 0.0
  %1467 = vmatpush1.msra.mxu0 0.0
  %1468 = vmatprep.subr.mxu0 0.0
  %1469 = vmatpush1.msra.mxu0 0.0
  %1470 = vmatprep.subr.mxu0 0.0
  %1471 = vmatpush1.msra.mxu0 0.0
  %1472 = vmatprep.subr.mxu0 0.0
  %1473 = vmatpush1.msra.mxu0 0.0
  %1474 = vmatprep.mubr.f32.mxu0 0.0
  %1475 = vmatmul.mubr.f32.gmra.mrb[0].mxu0 %v1402
  %v1476 = vpop.f32.mrb[0].mxu0
  %v1477 = vadd.f32 0.0, %v1476
  %v1478 = vpop.f32.mrb[0].mxu0
  %1479 = vmatprep.mubr.f32.mxu0 0.0
  %1480 = vmatmul.mubr.f32.gmra.mrb[0].mxu0 %v1405
  %v1481 = vpop.f32.mrb[0].mxu0
  %v1482 = vadd.f32 0.0, %v1481
  %v1483 = vpop.f32.mrb[0].mxu0
  %1484 = vmatprep.mubr.f32.mxu0 0.0
  %1485 = vmatmul.mubr.f32.gmra.mrb[0].mxu0 %v1408
  %v1486 = vpop.f32.mrb[0].mxu0
  %v1487 = vadd.f32 0.0, %v1486
  %v1488 = vpop.f32.mrb[0].mxu0
  %1489 = vdwg.mxu0
  %v1491 = vlaneseq
  %v1492 = vshrl.u32 %v1491, 7
  %v1493 = vsub.s32 0, %v1492
  %v1494 = vrot.slane %v142, %v1493
  %v1496 = vadd.f32 %v1494, %v1477
  %v1497 = vadd.f32 %v1494, %v1482
  %v1498 = vadd.f32 %v1494, %v1487
  %v1500 = vsel %vm152, %v1386, 0
  %v1503 = vsel %vm152, %v1393, 0
  %v1506 = vsel %vm152, %v1400, 0
  %v1509 = vsel %vm180, %v141, 0
  %1511 = vmatprep.subr.mxu0 0.0
  %1512 = vmatpush1.msra.mxu0 %v1509
  %1513 = vmatprep.subr.mxu0 0.0
  %1514 = vmatpush1.msra.mxu0 0.0
  %1515 = vmatprep.subr.mxu0 0.0
  %1516 = vmatpush1.msra.mxu0 0.0
  %1517 = vmatprep.subr.mxu0 0.0
  %1518 = vmatpush1.msra.mxu0 0.0
  %1519 = vmatprep.subr.mxu0 0.0
  %1520 = vmatpush1.msra.mxu0 0.0
  %1521 = vmatprep.subr.mxu0 0.0
  %1522 = vmatpush1.msra.mxu0 0.0
  %1523 = vmatprep.subr.mxu0 0.0
  %1524 = vmatpush1.msra.mxu0 0.0
  %1525 = vmatprep.subr.mxu0 0.0
  %1526 = vmatpush1.msra.mxu0 0.0
  %1527 = vmatprep.subr.mxu0 0.0
  %1528 = vmatpush1.msra.mxu0 0.0
  %1529 = vmatprep.subr.mxu0 0.0
  %1530 = vmatpush1.msra.mxu0 0.0
  %1531 = vmatprep.subr.mxu0 0.0
  %1532 = vmatpush1.msra.mxu0 0.0
  %1533 = vmatprep.subr.mxu0 0.0
  %1534 = vmatpush1.msra.mxu0 0.0
  %1535 = vmatprep.subr.mxu0 0.0
  %1536 = vmatpush1.msra.mxu0 0.0
  %1537 = vmatprep.subr.mxu0 0.0
  %1538 = vmatpush1.msra.mxu0 0.0
  %1539 = vmatprep.subr.mxu0 0.0
  %1540 = vmatpush1.msra.mxu0 0.0
  %1541 = vmatprep.subr.mxu0 0.0
  %1542 = vmatpush1.msra.mxu0 0.0
  %1543 = vmatprep.subr.mxu0 0.0
  %1544 = vmatpush1.msra.mxu0 0.0
  %1545 = vmatprep.subr.mxu0 0.0
  %1546 = vmatpush1.msra.mxu0 0.0
  %1547 = vmatprep.subr.mxu0 0.0
  %1548 = vmatpush1.msra.mxu0 0.0
  %1549 = vmatprep.subr.mxu0 0.0
  %1550 = vmatpush1.msra.mxu0 0.0
  %1551 = vmatprep.subr.mxu0 0.0
  %1552 = vmatpush1.msra.mxu0 0.0
  %1553 = vmatprep.subr.mxu0 0.0
  %1554 = vmatpush1.msra.mxu0 0.0
  %1555 = vmatprep.subr.mxu0 0.0
  %1556 = vmatpush1.msra.mxu0 0.0
  %1557 = vmatprep.subr.mxu0 0.0
  %1558 = vmatpush1.msra.mxu0 0.0
  %1559 = vmatprep.subr.mxu0 0.0
  %1560 = vmatpush1.msra.mxu0 0.0
  %1561 = vmatprep.subr.mxu0 0.0
  %1562 = vmatpush1.msra.mxu0 0.0
  %1563 = vmatprep.subr.mxu0 0.0
  %1564 = vmatpush1.msra.mxu0 0.0
  %1565 = vmatprep.subr.mxu0 0.0
  %1566 = vmatpush1.msra.mxu0 0.0
  %1567 = vmatprep.subr.mxu0 0.0
  %1568 = vmatpush1.msra.mxu0 0.0
  %1569 = vmatprep.subr.mxu0 0.0
  %1570 = vmatpush1.msra.mxu0 0.0
  %1571 = vmatprep.subr.mxu0 0.0
  %1572 = vmatpush1.msra.mxu0 0.0
  %1573 = vmatprep.subr.mxu0 0.0
  %1574 = vmatpush1.msra.mxu0 0.0
  %1575 = vmatprep.mubr.f32.mxu0 0.0
  %1576 = vmatmul.mubr.f32.gmra.mrb[0].mxu0 %v1500
  %v1577 = vpop.f32.mrb[0].mxu0
  %v1578 = vadd.f32 0.0, %v1577
  %v1579 = vpop.f32.mrb[0].mxu0
  %1580 = vmatprep.mubr.f32.mxu0 0.0
  %1581 = vmatmul.mubr.f32.gmra.mrb[0].mxu0 %v1503
  %v1582 = vpop.f32.mrb[0].mxu0
  %v1583 = vadd.f32 0.0, %v1582
  %v1584 = vpop.f32.mrb[0].mxu0
  %1585 = vmatprep.mubr.f32.mxu0 0.0
  %1586 = vmatmul.mubr.f32.gmra.mrb[0].mxu0 %v1506
  %v1587 = vpop.f32.mrb[0].mxu0
  %v1588 = vadd.f32 0.0, %v1587
  %v1589 = vpop.f32.mrb[0].mxu0
  %1590 = vdwg.mxu0
  %v1591 = vadd.f32 %v1496, %v1578
  %v1592 = vadd.f32 %v1497, %v1583
  %v1593 = vadd.f32 %v1498, %v1588
  %v1595 = vsel %vm152, %v1319, 0
  %v1598 = vsel %vm152, %v1324, 0
  %v1601 = vsel %vm152, %v1329, 0
  %v1604 = vsel %vm152, %v1334, 0
  %v1607 = vsel %vm152, %v1339, 0
  %v1610 = vsel %vm152, %v1344, 0
  %v1613 = vsel %vm152, %v1349, 0
  %v1616 = vsel %vm152, %v1354, 0
  %v1619 = vsel %vm152, %v1359, 0
  %v1622 = vsel %vm180, %v143, 0
  %1624 = vmatprep.subr.mxu0 0.0
  %1625 = vmatpush1.msra.mxu0 %v1622
  %1626 = vmatprep.subr.mxu0 0.0
  %1627 = vmatpush1.msra.mxu0 0.0
  %1628 = vmatprep.subr.mxu0 0.0
  %1629 = vmatpush1.msra.mxu0 0.0
  %1630 = vmatprep.subr.mxu0 0.0
  %1631 = vmatpush1.msra.mxu0 0.0
  %1632 = vmatprep.subr.mxu0 0.0
  %1633 = vmatpush1.msra.mxu0 0.0
  %1634 = vmatprep.subr.mxu0 0.0
  %1635 = vmatpush1.msra.mxu0 0.0
  %1636 = vmatprep.subr.mxu0 0.0
  %1637 = vmatpush1.msra.mxu0 0.0
  %1638 = vmatprep.subr.mxu0 0.0
  %1639 = vmatpush1.msra.mxu0 0.0
  %1640 = vmatprep.subr.mxu0 0.0
  %1641 = vmatpush1.msra.mxu0 0.0
  %1642 = vmatprep.subr.mxu0 0.0
  %1643 = vmatpush1.msra.mxu0 0.0
  %1644 = vmatprep.subr.mxu0 0.0
  %1645 = vmatpush1.msra.mxu0 0.0
  %1646 = vmatprep.subr.mxu0 0.0
  %1647 = vmatpush1.msra.mxu0 0.0
  %1648 = vmatprep.subr.mxu0 0.0
  %1649 = vmatpush1.msra.mxu0 0.0
  %1650 = vmatprep.subr.mxu0 0.0
  %1651 = vmatpush1.msra.mxu0 0.0
  %1652 = vmatprep.subr.mxu0 0.0
  %1653 = vmatpush1.msra.mxu0 0.0
  %1654 = vmatprep.subr.mxu0 0.0
  %1655 = vmatpush1.msra.mxu0 0.0
  %1656 = vmatprep.subr.mxu0 0.0
  %1657 = vmatpush1.msra.mxu0 0.0
  %1658 = vmatprep.subr.mxu0 0.0
  %1659 = vmatpush1.msra.mxu0 0.0
  %1660 = vmatprep.subr.mxu0 0.0
  %1661 = vmatpush1.msra.mxu0 0.0
  %1662 = vmatprep.subr.mxu0 0.0
  %1663 = vmatpush1.msra.mxu0 0.0
  %1664 = vmatprep.subr.mxu0 0.0
  %1665 = vmatpush1.msra.mxu0 0.0
  %1666 = vmatprep.subr.mxu0 0.0
  %1667 = vmatpush1.msra.mxu0 0.0
  %1668 = vmatprep.subr.mxu0 0.0
  %1669 = vmatpush1.msra.mxu0 0.0
  %1670 = vmatprep.subr.mxu0 0.0
  %1671 = vmatpush1.msra.mxu0 0.0
  %1672 = vmatprep.subr.mxu0 0.0
  %1673 = vmatpush1.msra.mxu0 0.0
  %1674 = vmatprep.subr.mxu0 0.0
  %1675 = vmatpush1.msra.mxu0 0.0
  %1676 = vmatprep.subr.mxu0 0.0
  %1677 = vmatpush1.msra.mxu0 0.0
  %1678 = vmatprep.subr.mxu0 0.0
  %1679 = vmatpush1.msra.mxu0 0.0
  %1680 = vmatprep.subr.mxu0 0.0
  %1681 = vmatpush1.msra.mxu0 0.0
  %1682 = vmatprep.subr.mxu0 0.0
  %1683 = vmatpush1.msra.mxu0 0.0
  %1684 = vmatprep.subr.mxu0 0.0
  %1685 = vmatpush1.msra.mxu0 0.0
  %1686 = vmatprep.subr.mxu0 0.0
  %1687 = vmatpush1.msra.mxu0 0.0
  %1688 = vmatprep.mubr.f32.mxu0 0.0
  %1689 = vmatmul.mubr.f32.gmra.mrb[0].mxu0 %v1595
  %v1690 = vpop.f32.mrb[0].mxu0
  %v1691 = vadd.f32 0.0, %v1690
  %v1692 = vpop.f32.mrb[0].mxu0
  %1693 = vmatprep.mubr.f32.mxu0 0.0
  %1694 = vmatmul.mubr.f32.gmra.mrb[0].mxu0 %v1598
  %v1695 = vpop.f32.mrb[0].mxu0
  %v1696 = vadd.f32 0.0, %v1695
  %v1697 = vpop.f32.mrb[0].mxu0
  %1698 = vmatprep.mubr.f32.mxu0 0.0
  %1699 = vmatmul.mubr.f32.gmra.mrb[0].mxu0 %v1601
  %v1700 = vpop.f32.mrb[0].mxu0
  %v1701 = vadd.f32 0.0, %v1700
  %v1702 = vpop.f32.mrb[0].mxu0
  %1703 = vmatprep.mubr.f32.mxu0 0.0
  %1704 = vmatmul.mubr.f32.gmra.mrb[0].mxu0 %v1604
  %v1705 = vpop.f32.mrb[0].mxu0
  %v1706 = vadd.f32 0.0, %v1705
  %v1707 = vpop.f32.mrb[0].mxu0
  %1708 = vmatprep.mubr.f32.mxu0 0.0
  %1709 = vmatmul.mubr.f32.gmra.mrb[0].mxu0 %v1607
  %v1710 = vpop.f32.mrb[0].mxu0
  %v1711 = vadd.f32 0.0, %v1710
  %v1712 = vpop.f32.mrb[0].mxu0
  %1713 = vmatprep.mubr.f32.mxu0 0.0
  %1714 = vmatmul.mubr.f32.gmra.mrb[0].mxu0 %v1610
  %v1715 = vpop.f32.mrb[0].mxu0
  %v1716 = vadd.f32 0.0, %v1715
  %v1717 = vpop.f32.mrb[0].mxu0
  %1718 = vmatprep.mubr.f32.mxu0 0.0
  %1719 = vmatmul.mubr.f32.gmra.mrb[0].mxu0 %v1613
  %v1720 = vpop.f32.mrb[0].mxu0
  %v1721 = vadd.f32 0.0, %v1720
  %v1722 = vpop.f32.mrb[0].mxu0
  %1723 = vmatprep.mubr.f32.mxu0 0.0
  %1724 = vmatmul.mubr.f32.gmra.mrb[0].mxu0 %v1616
  %v1725 = vpop.f32.mrb[0].mxu0
  %v1726 = vadd.f32 0.0, %v1725
  %v1727 = vpop.f32.mrb[0].mxu0
  %1728 = vmatprep.mubr.f32.mxu0 0.0
  %1729 = vmatmul.mubr.f32.gmra.mrb[0].mxu0 %v1619
  %v1730 = vpop.f32.mrb[0].mxu0
  %v1731 = vadd.f32 0.0, %v1730
  %v1732 = vpop.f32.mrb[0].mxu0
  %1733 = vdwg.mxu0
  %v1734 = vmul.f32 %v1691, %v1691
  %v1735 = vmul.f32 %v1696, %v1696
  %v1736 = vmul.f32 %v1701, %v1701
  %v1737 = vmul.f32 %v1706, %v1706
  %v1738 = vmul.f32 %v1711, %v1711
  %v1739 = vmul.f32 %v1716, %v1716
  %v1740 = vadd.f32 %v1734, %v1737
  %v1741 = vadd.f32 %v1735, %v1738
  %v1742 = vadd.f32 %v1736, %v1739
  %v1743 = vmul.f32 %v1721, %v1721
  %v1744 = vmul.f32 %v1726, %v1726
  %v1745 = vmul.f32 %v1731, %v1731
  %v1746 = vadd.f32 %v1740, %v1743
  %v1747 = vadd.f32 %v1741, %v1744
  %v1748 = vadd.f32 %v1742, %v1745
  %v1749 = vmax.f32 %v1746, 1e-08
  %v1750 = vmax.f32 %v1747, 1e-08
  %v1751 = vmax.f32 %v1748, 1e-08
  %v1752 = vrsqrt.pop %v1749
  %v1753 = vmul.f32 %v1749, %v1752
  %vm1754 = vcmp.eq.f32.partialorder %v1749, inf
  %v1755 = vsel %vm1754, %v1749, %v1753
  %vm1756 = vcmp.eq.f32.partialorder %v1749, 0.0
  %v1757 = vand.u32 %v1749, 2147483648
  %v1758 = vsel %vm1756, %v1757, %v1755
  %v1759 = vrsqrt.pop %v1750
  %v1760 = vmul.f32 %v1750, %v1759
  %vm1761 = vcmp.eq.f32.partialorder %v1750, inf
  %v1762 = vsel %vm1761, %v1750, %v1760
  %vm1763 = vcmp.eq.f32.partialorder %v1750, 0.0
  %v1764 = vand.u32 %v1750, 2147483648
  %v1765 = vsel %vm1763, %v1764, %v1762
  %v1766 = vrsqrt.pop %v1751
  %v1767 = vmul.f32 %v1751, %v1766
  %vm1768 = vcmp.eq.f32.partialorder %v1751, inf
  %v1769 = vsel %vm1768, %v1751, %v1767
  %vm1770 = vcmp.eq.f32.partialorder %v1751, 0.0
  %v1771 = vand.u32 %v1751, 2147483648
  %v1772 = vsel %vm1770, %v1771, %v1769
  %v1773 = vxor.u32 %v1758, 2147483648
  %v1774 = vxor.u32 %v1765, 2147483648
  %v1775 = vxor.u32 %v1772, 2147483648
  %v1776 = vmul.f32 %v1773, 1.442695
  %v1777 = vpow.pop %v1776
  %v1778 = vmul.f32 %v1774, 1.442695
  %v1779 = vpow.pop %v1778
  %v1780 = vmul.f32 %v1775, 1.442695
  %v1781 = vpow.pop %v1780
  %v1782 = vadd.f32 %v1777, 1.0
  %v1783 = vadd.f32 %v1779, 1.0
  %v1784 = vadd.f32 %v1781, 1.0
  %v1785 = vrcp.pop %v1782
  %v1786 = vmul.f32 1.0, %v1785
  %v1787 = vrcp.pop %v1783
  %v1788 = vmul.f32 1.0, %v1787
  %v1789 = vrcp.pop %v1784
  %v1790 = vmul.f32 1.0, %v1789
  %v1791 = vmul.f32 %v1691, %v1786
  %v1792 = vmul.f32 %v1696, %v1788
  %v1793 = vmul.f32 %v1701, %v1790
  %v1794 = vmul.f32 %v1706, %v1786
  %v1795 = vmul.f32 %v1711, %v1788
  %v1796 = vmul.f32 %v1716, %v1790
  %v1797 = vmul.f32 %v1721, %v1786
  %v1798 = vmul.f32 %v1726, %v1788
  %v1799 = vmul.f32 %v1731, %v1790
  %v1800 = vmax.f32 %v1591, 0.0
  %v1801 = vmax.f32 %v1592, 0.0
  %v1802 = vmax.f32 %v1593, 0.0
  %v1804 = vsel %vm152, %v1791, 0
  %v1807 = vsel %vm152, %v1792, 0
  %v1810 = vsel %vm152, %v1793, 0
  %v1813 = vsel %vm152, %v1794, 0
  %v1816 = vsel %vm152, %v1795, 0
  %v1819 = vsel %vm152, %v1796, 0
  %v1822 = vsel %vm152, %v1797, 0
  %v1825 = vsel %vm152, %v1798, 0
  %v1828 = vsel %vm152, %v1799, 0
  %v1831 = vsel %vm180, %v144, 0
  %1833 = vmatprep.subr.mxu0 0.0
  %1834 = vmatpush1.msra.mxu0 %v1831
  %1835 = vmatprep.subr.mxu0 0.0
  %1836 = vmatpush1.msra.mxu0 0.0
  %1837 = vmatprep.subr.mxu0 0.0
  %1838 = vmatpush1.msra.mxu0 0.0
  %1839 = vmatprep.subr.mxu0 0.0
  %1840 = vmatpush1.msra.mxu0 0.0
  %1841 = vmatprep.subr.mxu0 0.0
  %1842 = vmatpush1.msra.mxu0 0.0
  %1843 = vmatprep.subr.mxu0 0.0
  %1844 = vmatpush1.msra.mxu0 0.0
  %1845 = vmatprep.subr.mxu0 0.0
  %1846 = vmatpush1.msra.mxu0 0.0
  %1847 = vmatprep.subr.mxu0 0.0
  %1848 = vmatpush1.msra.mxu0 0.0
  %1849 = vmatprep.subr.mxu0 0.0
  %1850 = vmatpush1.msra.mxu0 0.0
  %1851 = vmatprep.subr.mxu0 0.0
  %1852 = vmatpush1.msra.mxu0 0.0
  %1853 = vmatprep.subr.mxu0 0.0
  %1854 = vmatpush1.msra.mxu0 0.0
  %1855 = vmatprep.subr.mxu0 0.0
  %1856 = vmatpush1.msra.mxu0 0.0
  %1857 = vmatprep.subr.mxu0 0.0
  %1858 = vmatpush1.msra.mxu0 0.0
  %1859 = vmatprep.subr.mxu0 0.0
  %1860 = vmatpush1.msra.mxu0 0.0
  %1861 = vmatprep.subr.mxu0 0.0
  %1862 = vmatpush1.msra.mxu0 0.0
  %1863 = vmatprep.subr.mxu0 0.0
  %1864 = vmatpush1.msra.mxu0 0.0
  %1865 = vmatprep.subr.mxu0 0.0
  %1866 = vmatpush1.msra.mxu0 0.0
  %1867 = vmatprep.subr.mxu0 0.0
  %1868 = vmatpush1.msra.mxu0 0.0
  %1869 = vmatprep.subr.mxu0 0.0
  %1870 = vmatpush1.msra.mxu0 0.0
  %1871 = vmatprep.subr.mxu0 0.0
  %1872 = vmatpush1.msra.mxu0 0.0
  %1873 = vmatprep.subr.mxu0 0.0
  %1874 = vmatpush1.msra.mxu0 0.0
  %1875 = vmatprep.subr.mxu0 0.0
  %1876 = vmatpush1.msra.mxu0 0.0
  %1877 = vmatprep.subr.mxu0 0.0
  %1878 = vmatpush1.msra.mxu0 0.0
  %1879 = vmatprep.subr.mxu0 0.0
  %1880 = vmatpush1.msra.mxu0 0.0
  %1881 = vmatprep.subr.mxu0 0.0
  %1882 = vmatpush1.msra.mxu0 0.0
  %1883 = vmatprep.subr.mxu0 0.0
  %1884 = vmatpush1.msra.mxu0 0.0
  %1885 = vmatprep.subr.mxu0 0.0
  %1886 = vmatpush1.msra.mxu0 0.0
  %1887 = vmatprep.subr.mxu0 0.0
  %1888 = vmatpush1.msra.mxu0 0.0
  %1889 = vmatprep.subr.mxu0 0.0
  %1890 = vmatpush1.msra.mxu0 0.0
  %1891 = vmatprep.subr.mxu0 0.0
  %1892 = vmatpush1.msra.mxu0 0.0
  %1893 = vmatprep.subr.mxu0 0.0
  %1894 = vmatpush1.msra.mxu0 0.0
  %1895 = vmatprep.subr.mxu0 0.0
  %1896 = vmatpush1.msra.mxu0 0.0
  %1897 = vmatprep.mubr.f32.mxu0 0.0
  %1898 = vmatmul.mubr.f32.gmra.mrb[0].mxu0 %v1804
  %v1899 = vpop.f32.mrb[0].mxu0
  %v1900 = vadd.f32 0.0, %v1899
  %v1901 = vpop.f32.mrb[0].mxu0
  %1902 = vmatprep.mubr.f32.mxu0 0.0
  %1903 = vmatmul.mubr.f32.gmra.mrb[0].mxu0 %v1807
  %v1904 = vpop.f32.mrb[0].mxu0
  %v1905 = vadd.f32 0.0, %v1904
  %v1906 = vpop.f32.mrb[0].mxu0
  %1907 = vmatprep.mubr.f32.mxu0 0.0
  %1908 = vmatmul.mubr.f32.gmra.mrb[0].mxu0 %v1810
  %v1909 = vpop.f32.mrb[0].mxu0
  %v1910 = vadd.f32 0.0, %v1909
  %v1911 = vpop.f32.mrb[0].mxu0
  %1912 = vmatprep.mubr.f32.mxu0 0.0
  %1913 = vmatmul.mubr.f32.gmra.mrb[0].mxu0 %v1813
  %v1914 = vpop.f32.mrb[0].mxu0
  %v1915 = vadd.f32 0.0, %v1914
  %v1916 = vpop.f32.mrb[0].mxu0
  %1917 = vmatprep.mubr.f32.mxu0 0.0
  %1918 = vmatmul.mubr.f32.gmra.mrb[0].mxu0 %v1816
  %v1919 = vpop.f32.mrb[0].mxu0
  %v1920 = vadd.f32 0.0, %v1919
  %v1921 = vpop.f32.mrb[0].mxu0
  %1922 = vmatprep.mubr.f32.mxu0 0.0
  %1923 = vmatmul.mubr.f32.gmra.mrb[0].mxu0 %v1819
  %v1924 = vpop.f32.mrb[0].mxu0
  %v1925 = vadd.f32 0.0, %v1924
  %v1926 = vpop.f32.mrb[0].mxu0
  %1927 = vmatprep.mubr.f32.mxu0 0.0
  %1928 = vmatmul.mubr.f32.gmra.mrb[0].mxu0 %v1822
  %v1929 = vpop.f32.mrb[0].mxu0
  %v1930 = vadd.f32 0.0, %v1929
  %v1931 = vpop.f32.mrb[0].mxu0
  %1932 = vmatprep.mubr.f32.mxu0 0.0
  %1933 = vmatmul.mubr.f32.gmra.mrb[0].mxu0 %v1825
  %v1934 = vpop.f32.mrb[0].mxu0
  %v1935 = vadd.f32 0.0, %v1934
  %v1936 = vpop.f32.mrb[0].mxu0
  %1937 = vmatprep.mubr.f32.mxu0 0.0
  %1938 = vmatmul.mubr.f32.gmra.mrb[0].mxu0 %v1828
  %v1939 = vpop.f32.mrb[0].mxu0
  %v1940 = vadd.f32 0.0, %v1939
  %v1941 = vpop.f32.mrb[0].mxu0
  %1942 = vdwg.mxu0
  %v1943 = vmul.f32 %v1900, %v1900
  %v1944 = vmul.f32 %v1905, %v1905
  %v1945 = vmul.f32 %v1910, %v1910
  %v1946 = vmul.f32 %v1915, %v1915
  %v1947 = vmul.f32 %v1920, %v1920
  %v1948 = vmul.f32 %v1925, %v1925
  %v1949 = vadd.f32 %v1943, %v1946
  %v1950 = vadd.f32 %v1944, %v1947
  %v1951 = vadd.f32 %v1945, %v1948
  %v1952 = vmul.f32 %v1930, %v1930
  %v1953 = vmul.f32 %v1935, %v1935
  %v1954 = vmul.f32 %v1940, %v1940
  %v1955 = vadd.f32 %v1949, %v1952
  %v1956 = vadd.f32 %v1950, %v1953
  %v1957 = vadd.f32 %v1951, %v1954
  %v1958 = vmax.f32 %v1955, 1e-08
  %v1959 = vmax.f32 %v1956, 1e-08
  %v1960 = vmax.f32 %v1957, 1e-08
  %v1961 = vrsqrt.pop %v1958
  %v1962 = vmul.f32 %v1958, %v1961
  %vm1963 = vcmp.eq.f32.partialorder %v1958, inf
  %v1964 = vsel %vm1963, %v1958, %v1962
  %vm1965 = vcmp.eq.f32.partialorder %v1958, 0.0
  %v1966 = vand.u32 %v1958, 2147483648
  %v1967 = vsel %vm1965, %v1966, %v1964
  %v1968 = vrsqrt.pop %v1959
  %v1969 = vmul.f32 %v1959, %v1968
  %vm1970 = vcmp.eq.f32.partialorder %v1959, inf
  %v1971 = vsel %vm1970, %v1959, %v1969
  %vm1972 = vcmp.eq.f32.partialorder %v1959, 0.0
  %v1973 = vand.u32 %v1959, 2147483648
  %v1974 = vsel %vm1972, %v1973, %v1971
  %v1975 = vrsqrt.pop %v1960
  %v1976 = vmul.f32 %v1960, %v1975
  %vm1977 = vcmp.eq.f32.partialorder %v1960, inf
  %v1978 = vsel %vm1977, %v1960, %v1976
  %vm1979 = vcmp.eq.f32.partialorder %v1960, 0.0
  %v1980 = vand.u32 %v1960, 2147483648
  %v1981 = vsel %vm1979, %v1980, %v1978
  %v1983 = vsel %vm633, %v1800, 0
  %v1986 = vsel %vm633, %v1801, 0
  %v1989 = vsel %vm633, %v1802, 0
  %1991 = vmatprep.subr.mxu0 0.0
  %1992 = vmatpush1.msra.mxu0 %v145
  %1993 = vmatprep.subr.mxu0 0.0
  %1994 = vmatpush1.msra.mxu0 %v146
  %1995 = vmatprep.subr.mxu0 0.0
  %1996 = vmatpush1.msra.mxu0 %v147
  %1997 = vmatprep.subr.mxu0 0.0
  %1998 = vmatpush1.msra.mxu0 %v148
  %1999 = vmatprep.subr.mxu0 0.0
  %2000 = vmatpush1.msra.mxu0 0.0
  %2001 = vmatprep.subr.mxu0 0.0
  %2002 = vmatpush1.msra.mxu0 0.0
  %2003 = vmatprep.subr.mxu0 0.0
  %2004 = vmatpush1.msra.mxu0 0.0
  %2005 = vmatprep.subr.mxu0 0.0
  %2006 = vmatpush1.msra.mxu0 0.0
  %2007 = vmatprep.subr.mxu0 0.0
  %2008 = vmatpush1.msra.mxu0 0.0
  %2009 = vmatprep.subr.mxu0 0.0
  %2010 = vmatpush1.msra.mxu0 0.0
  %2011 = vmatprep.subr.mxu0 0.0
  %2012 = vmatpush1.msra.mxu0 0.0
  %2013 = vmatprep.subr.mxu0 0.0
  %2014 = vmatpush1.msra.mxu0 0.0
  %2015 = vmatprep.subr.mxu0 0.0
  %2016 = vmatpush1.msra.mxu0 0.0
  %2017 = vmatprep.subr.mxu0 0.0
  %2018 = vmatpush1.msra.mxu0 0.0
  %2019 = vmatprep.subr.mxu0 0.0
  %2020 = vmatpush1.msra.mxu0 0.0
  %2021 = vmatprep.subr.mxu0 0.0
  %2022 = vmatpush1.msra.mxu0 0.0
  %2023 = vmatprep.subr.mxu0 0.0
  %2024 = vmatpush1.msra.mxu0 0.0
  %2025 = vmatprep.subr.mxu0 0.0
  %2026 = vmatpush1.msra.mxu0 0.0
  %2027 = vmatprep.subr.mxu0 0.0
  %2028 = vmatpush1.msra.mxu0 0.0
  %2029 = vmatprep.subr.mxu0 0.0
  %2030 = vmatpush1.msra.mxu0 0.0
  %2031 = vmatprep.subr.mxu0 0.0
  %2032 = vmatpush1.msra.mxu0 0.0
  %2033 = vmatprep.subr.mxu0 0.0
  %2034 = vmatpush1.msra.mxu0 0.0
  %2035 = vmatprep.subr.mxu0 0.0
  %2036 = vmatpush1.msra.mxu0 0.0
  %2037 = vmatprep.subr.mxu0 0.0
  %2038 = vmatpush1.msra.mxu0 0.0
  %2039 = vmatprep.subr.mxu0 0.0
  %2040 = vmatpush1.msra.mxu0 0.0
  %2041 = vmatprep.subr.mxu0 0.0
  %2042 = vmatpush1.msra.mxu0 0.0
  %2043 = vmatprep.subr.mxu0 0.0
  %2044 = vmatpush1.msra.mxu0 0.0
  %2045 = vmatprep.subr.mxu0 0.0
  %2046 = vmatpush1.msra.mxu0 0.0
  %2047 = vmatprep.subr.mxu0 0.0
  %2048 = vmatpush1.msra.mxu0 0.0
  %2049 = vmatprep.subr.mxu0 0.0
  %2050 = vmatpush1.msra.mxu0 0.0
  %2051 = vmatprep.subr.mxu0 0.0
  %2052 = vmatpush1.msra.mxu0 0.0
  %2053 = vmatprep.subr.mxu0 0.0
  %2054 = vmatpush1.msra.mxu0 0.0
  %2055 = vmatprep.mubr.f32.mxu0 0.0
  %2056 = vmatmul.mubr.f32.gmra.mrb[0].mxu0 %v1983
  %v2057 = vpop.f32.mrb[0].mxu0
  %v2058 = vadd.f32 0.0, %v2057
  %v2059 = vpop.f32.mrb[0].mxu0
  %2060 = vmatprep.mubr.f32.mxu0 0.0
  %2061 = vmatmul.mubr.f32.gmra.mrb[0].mxu0 %v1986
  %v2062 = vpop.f32.mrb[0].mxu0
  %v2063 = vadd.f32 0.0, %v2062
  %v2064 = vpop.f32.mrb[0].mxu0
  %2065 = vmatprep.mubr.f32.mxu0 0.0
  %2066 = vmatmul.mubr.f32.gmra.mrb[0].mxu0 %v1989
  %v2067 = vpop.f32.mrb[0].mxu0
  %v2068 = vadd.f32 0.0, %v2067
  %v2069 = vpop.f32.mrb[0].mxu0
  %2070 = vdwg.mxu0
  %v2072 = vlaneseq
  %v2073 = vshrl.u32 %v2072, 7
  %v2074 = vsub.s32 0, %v2073
  %v2075 = vrot.slane %v150, %v2074
  %v2077 = vadd.f32 %v2075, %v2058
  %v2078 = vadd.f32 %v2075, %v2063
  %v2079 = vadd.f32 %v2075, %v2068
  %v2081 = vsel %vm152, %v1967, 0
  %v2084 = vsel %vm152, %v1974, 0
  %v2087 = vsel %vm152, %v1981, 0
  %v2090 = vsel %vm180, %v149, 0
  %2092 = vmatprep.subr.mxu0 0.0
  %2093 = vmatpush1.msra.mxu0 %v2090
  %2094 = vmatprep.subr.mxu0 0.0
  %2095 = vmatpush1.msra.mxu0 0.0
  %2096 = vmatprep.subr.mxu0 0.0
  %2097 = vmatpush1.msra.mxu0 0.0
  %2098 = vmatprep.subr.mxu0 0.0
  %2099 = vmatpush1.msra.mxu0 0.0
  %2100 = vmatprep.subr.mxu0 0.0
  %2101 = vmatpush1.msra.mxu0 0.0
  %2102 = vmatprep.subr.mxu0 0.0
  %2103 = vmatpush1.msra.mxu0 0.0
  %2104 = vmatprep.subr.mxu0 0.0
  %2105 = vmatpush1.msra.mxu0 0.0
  %2106 = vmatprep.subr.mxu0 0.0
  %2107 = vmatpush1.msra.mxu0 0.0
  %2108 = vmatprep.subr.mxu0 0.0
  %2109 = vmatpush1.msra.mxu0 0.0
  %2110 = vmatprep.subr.mxu0 0.0
  %2111 = vmatpush1.msra.mxu0 0.0
  %2112 = vmatprep.subr.mxu0 0.0
  %2113 = vmatpush1.msra.mxu0 0.0
  %2114 = vmatprep.subr.mxu0 0.0
  %2115 = vmatpush1.msra.mxu0 0.0
  %2116 = vmatprep.subr.mxu0 0.0
  %2117 = vmatpush1.msra.mxu0 0.0
  %2118 = vmatprep.subr.mxu0 0.0
  %2119 = vmatpush1.msra.mxu0 0.0
  %2120 = vmatprep.subr.mxu0 0.0
  %2121 = vmatpush1.msra.mxu0 0.0
  %2122 = vmatprep.subr.mxu0 0.0
  %2123 = vmatpush1.msra.mxu0 0.0
  %2124 = vmatprep.subr.mxu0 0.0
  %2125 = vmatpush1.msra.mxu0 0.0
  %2126 = vmatprep.subr.mxu0 0.0
  %2127 = vmatpush1.msra.mxu0 0.0
  %2128 = vmatprep.subr.mxu0 0.0
  %2129 = vmatpush1.msra.mxu0 0.0
  %2130 = vmatprep.subr.mxu0 0.0
  %2131 = vmatpush1.msra.mxu0 0.0
  %2132 = vmatprep.subr.mxu0 0.0
  %2133 = vmatpush1.msra.mxu0 0.0
  %2134 = vmatprep.subr.mxu0 0.0
  %2135 = vmatpush1.msra.mxu0 0.0
  %2136 = vmatprep.subr.mxu0 0.0
  %2137 = vmatpush1.msra.mxu0 0.0
  %2138 = vmatprep.subr.mxu0 0.0
  %2139 = vmatpush1.msra.mxu0 0.0
  %2140 = vmatprep.subr.mxu0 0.0
  %2141 = vmatpush1.msra.mxu0 0.0
  %2142 = vmatprep.subr.mxu0 0.0
  %2143 = vmatpush1.msra.mxu0 0.0
  %2144 = vmatprep.subr.mxu0 0.0
  %2145 = vmatpush1.msra.mxu0 0.0
  %2146 = vmatprep.subr.mxu0 0.0
  %2147 = vmatpush1.msra.mxu0 0.0
  %2148 = vmatprep.subr.mxu0 0.0
  %2149 = vmatpush1.msra.mxu0 0.0
  %2150 = vmatprep.subr.mxu0 0.0
  %2151 = vmatpush1.msra.mxu0 0.0
  %2152 = vmatprep.subr.mxu0 0.0
  %2153 = vmatpush1.msra.mxu0 0.0
  %2154 = vmatprep.subr.mxu0 0.0
  %2155 = vmatpush1.msra.mxu0 0.0
  %2156 = vmatprep.mubr.f32.mxu0 0.0
  %2157 = vmatmul.mubr.f32.gmra.mrb[0].mxu0 %v2081
  %v2158 = vpop.f32.mrb[0].mxu0
  %v2159 = vadd.f32 0.0, %v2158
  %v2160 = vpop.f32.mrb[0].mxu0
  %2161 = vmatprep.mubr.f32.mxu0 0.0
  %2162 = vmatmul.mubr.f32.gmra.mrb[0].mxu0 %v2084
  %v2163 = vpop.f32.mrb[0].mxu0
  %v2164 = vadd.f32 0.0, %v2163
  %v2165 = vpop.f32.mrb[0].mxu0
  %2166 = vmatprep.mubr.f32.mxu0 0.0
  %2167 = vmatmul.mubr.f32.gmra.mrb[0].mxu0 %v2087
  %v2168 = vpop.f32.mrb[0].mxu0
  %v2169 = vadd.f32 0.0, %v2168
  %v2170 = vpop.f32.mrb[0].mxu0
  %2171 = vdwg.mxu0
  %v2172 = vadd.f32 %v2077, %v2159
  %v2173 = vadd.f32 %v2078, %v2164
  %v2174 = vadd.f32 %v2079, %v2169
  %v2176 = vsel %vm152, %v1900, 0
  %v2179 = vsel %vm152, %v1905, 0
  %v2182 = vsel %vm152, %v1910, 0
  %v2185 = vsel %vm152, %v1915, 0
  %v2188 = vsel %vm152, %v1920, 0
  %v2191 = vsel %vm152, %v1925, 0
  %v2194 = vsel %vm152, %v1930, 0
  %v2197 = vsel %vm152, %v1935, 0
  %v2200 = vsel %vm152, %v1940, 0
  %v2203 = vsel %vm180, %v151, 0
  %2205 = vmatprep.subr.mxu0 0.0
  %2206 = vmatpush1.msra.mxu0 %v2203
  %2207 = vmatprep.subr.mxu0 0.0
  %2208 = vmatpush1.msra.mxu0 0.0
  %2209 = vmatprep.subr.mxu0 0.0
  %2210 = vmatpush1.msra.mxu0 0.0
  %2211 = vmatprep.subr.mxu0 0.0
  %2212 = vmatpush1.msra.mxu0 0.0
  %2213 = vmatprep.subr.mxu0 0.0
  %2214 = vmatpush1.msra.mxu0 0.0
  %2215 = vmatprep.subr.mxu0 0.0
  %2216 = vmatpush1.msra.mxu0 0.0
  %2217 = vmatprep.subr.mxu0 0.0
  %2218 = vmatpush1.msra.mxu0 0.0
  %2219 = vmatprep.subr.mxu0 0.0
  %2220 = vmatpush1.msra.mxu0 0.0
  %2221 = vmatprep.subr.mxu0 0.0
  %2222 = vmatpush1.msra.mxu0 0.0
  %2223 = vmatprep.subr.mxu0 0.0
  %2224 = vmatpush1.msra.mxu0 0.0
  %2225 = vmatprep.subr.mxu0 0.0
  %2226 = vmatpush1.msra.mxu0 0.0
  %2227 = vmatprep.subr.mxu0 0.0
  %2228 = vmatpush1.msra.mxu0 0.0
  %2229 = vmatprep.subr.mxu0 0.0
  %2230 = vmatpush1.msra.mxu0 0.0
  %2231 = vmatprep.subr.mxu0 0.0
  %2232 = vmatpush1.msra.mxu0 0.0
  %2233 = vmatprep.subr.mxu0 0.0
  %2234 = vmatpush1.msra.mxu0 0.0
  %2235 = vmatprep.subr.mxu0 0.0
  %2236 = vmatpush1.msra.mxu0 0.0
  %2237 = vmatprep.subr.mxu0 0.0
  %2238 = vmatpush1.msra.mxu0 0.0
  %2239 = vmatprep.subr.mxu0 0.0
  %2240 = vmatpush1.msra.mxu0 0.0
  %2241 = vmatprep.subr.mxu0 0.0
  %2242 = vmatpush1.msra.mxu0 0.0
  %2243 = vmatprep.subr.mxu0 0.0
  %2244 = vmatpush1.msra.mxu0 0.0
  %2245 = vmatprep.subr.mxu0 0.0
  %2246 = vmatpush1.msra.mxu0 0.0
  %2247 = vmatprep.subr.mxu0 0.0
  %2248 = vmatpush1.msra.mxu0 0.0
  %2249 = vmatprep.subr.mxu0 0.0
  %2250 = vmatpush1.msra.mxu0 0.0
  %2251 = vmatprep.subr.mxu0 0.0
  %2252 = vmatpush1.msra.mxu0 0.0
  %2253 = vmatprep.subr.mxu0 0.0
  %2254 = vmatpush1.msra.mxu0 0.0
  %2255 = vmatprep.subr.mxu0 0.0
  %2256 = vmatpush1.msra.mxu0 0.0
  %2257 = vmatprep.subr.mxu0 0.0
  %2258 = vmatpush1.msra.mxu0 0.0
  %2259 = vmatprep.subr.mxu0 0.0
  %2260 = vmatpush1.msra.mxu0 0.0
  %2261 = vmatprep.subr.mxu0 0.0
  %2262 = vmatpush1.msra.mxu0 0.0
  %2263 = vmatprep.subr.mxu0 0.0
  %2264 = vmatpush1.msra.mxu0 0.0
  %2265 = vmatprep.subr.mxu0 0.0
  %2266 = vmatpush1.msra.mxu0 0.0
  %2267 = vmatprep.subr.mxu0 0.0
  %2268 = vmatpush1.msra.mxu0 0.0
  %2269 = vmatprep.mubr.f32.mxu0 0.0
  %2270 = vmatmul.mubr.f32.gmra.mrb[0].mxu0 %v2176
  %v2271 = vpop.f32.mrb[0].mxu0
  %v2272 = vadd.f32 0.0, %v2271
  %v2273 = vpop.f32.mrb[0].mxu0
  %2274 = vmatprep.mubr.f32.mxu0 0.0
  %2275 = vmatmul.mubr.f32.gmra.mrb[0].mxu0 %v2179
  %v2276 = vpop.f32.mrb[0].mxu0
  %v2277 = vadd.f32 0.0, %v2276
  %v2278 = vpop.f32.mrb[0].mxu0
  %2279 = vmatprep.mubr.f32.mxu0 0.0
  %2280 = vmatmul.mubr.f32.gmra.mrb[0].mxu0 %v2182
  %v2281 = vpop.f32.mrb[0].mxu0
  %v2282 = vadd.f32 0.0, %v2281
  %v2283 = vpop.f32.mrb[0].mxu0
  %2284 = vmatprep.mubr.f32.mxu0 0.0
  %2285 = vmatmul.mubr.f32.gmra.mrb[0].mxu0 %v2185
  %v2286 = vpop.f32.mrb[0].mxu0
  %v2287 = vadd.f32 0.0, %v2286
  %v2288 = vpop.f32.mrb[0].mxu0
  %2289 = vmatprep.mubr.f32.mxu0 0.0
  %2290 = vmatmul.mubr.f32.gmra.mrb[0].mxu0 %v2188
  %v2291 = vpop.f32.mrb[0].mxu0
  %v2292 = vadd.f32 0.0, %v2291
  %v2293 = vpop.f32.mrb[0].mxu0
  %2294 = vmatprep.mubr.f32.mxu0 0.0
  %2295 = vmatmul.mubr.f32.gmra.mrb[0].mxu0 %v2191
  %v2296 = vpop.f32.mrb[0].mxu0
  %v2297 = vadd.f32 0.0, %v2296
  %v2298 = vpop.f32.mrb[0].mxu0
  %2299 = vmatprep.mubr.f32.mxu0 0.0
  %2300 = vmatmul.mubr.f32.gmra.mrb[0].mxu0 %v2194
  %v2301 = vpop.f32.mrb[0].mxu0
  %v2302 = vadd.f32 0.0, %v2301
  %v2303 = vpop.f32.mrb[0].mxu0
  %2304 = vmatprep.mubr.f32.mxu0 0.0
  %2305 = vmatmul.mubr.f32.gmra.mrb[0].mxu0 %v2197
  %v2306 = vpop.f32.mrb[0].mxu0
  %v2307 = vadd.f32 0.0, %v2306
  %v2308 = vpop.f32.mrb[0].mxu0
  %2309 = vmatprep.mubr.f32.mxu0 0.0
  %2310 = vmatmul.mubr.f32.gmra.mrb[0].mxu0 %v2200
  %v2311 = vpop.f32.mrb[0].mxu0
  %v2312 = vadd.f32 0.0, %v2311
  %v2313 = vpop.f32.mrb[0].mxu0
  %2314 = vdwg.mxu0
  %2315 = vst.msk [vmem:[%s25] sm:$0xff] %vm633, %v2172
  %2316 = vst.msk [vmem:[%s25 + $0x8] sm:$0xff] %vm633, %v2173
  %2317 = vst.msk [vmem:[%s25 + $0x10] sm:$0xff] %vm633, %v2174
  %2318 = vst.msk [vmem:[%s26] sm:$0xff] %vm152, %v2272
  %2319 = vst.msk [vmem:[%s26 + $0x8] sm:$0xff] %vm152, %v2277
  %2320 = vst.msk [vmem:[%s26 + $0x10] sm:$0xff] %vm152, %v2282
  %2321 = vst.msk [vmem:[%s26 + $0x18] sm:$0xff] %vm152, %v2287
  %2322 = vst.msk [vmem:[%s26 + $0x20] sm:$0xff] %vm152, %v2292
  %2323 = vst.msk [vmem:[%s26 + $0x28] sm:$0xff] %vm152, %v2297
  %2324 = vst.msk [vmem:[%s26 + $0x30] sm:$0xff] %vm152, %v2302
  %2325 = vst.msk [vmem:[%s26 + $0x38] sm:$0xff] %vm152, %v2307
  %2326 = vst.msk [vmem:[%s26 + $0x40] sm:$0xff] %vm152, %v2312
  // Predicated region
  $region102: #{closed_call.11} parent=0 // pred_check
    _
  $region103: #{closed_call.11} parent=0 // pred_check_branch
    %2328 = sbr.rel (0) target = $region105
  $region104: #{closed_call.11} parent=0 // pred_region
    _
  $region105: #{closed_call.11} parent=0 // pred_fallthru
    _
  // Predicated region
  $region106: #{closed_call.11} parent=0 // pred_check
    _
  $region107: #{closed_call.11} parent=0 // pred_check_branch
    %2330 = sbr.rel (0) target = $region109
  $region108: #{closed_call.11} parent=0 // pred_region
    _
  $region109: #{closed_call.11} parent=0 // pred_fallthru
    _
  // Predicated region
  $region110: #{closed_call.11} parent=0 // pred_check
    _
  $region111: #{closed_call.11} parent=0 // pred_check_branch
    %2332 = sbr.rel (0) target = $region113
  $region112: #{closed_call.11} parent=0 // pred_region
    _
  $region113: #{closed_call.11} parent=0 // pred_fallthru
    _
  // Predicated region
  $region114: #{closed_call.11} parent=0 // pred_check
    _
  $region115: #{closed_call.11} parent=0 // pred_check_branch
    %2334 = sbr.rel (0) target = $region117
  $region116: #{closed_call.11} parent=0 // pred_region
    _
  $region117: #{closed_call.11} parent=0 // pred_fallthru
    _

// kernel: _lambda_.5
$region0: #{_lambda_.5}
  #allocation0 [shape = 'u32[]', space=smem, size = 0x4, offset = 0x4, fixed_abs, tag = 'smem constant byte address 0x4 - core index']
  #allocation1 [shape = 'u32[144,128]{1,0:T(1,128)}', space=vmem, size = 0x12000, scoped, tag = 'internal scratch']
  %s0 = inlined_call_operand.vmem [shape: f32[16,32], index: 0, kind: input, shape index: {}]
  %s1 = inlined_call_operand.vmem [shape: f32[3,16,4], index: 1, kind: input, shape index: {}]
  %s2 = inlined_call_operand.vmem [shape: f32[1,32], index: 2, kind: input, shape index: {}]
  %s3 = inlined_call_operand.vmem [shape: f32[1,32], index: 3, kind: input, shape index: {}]
  %s4 = inlined_call_operand.vmem [shape: f32[4,4], index: 4, kind: input, shape index: {}]
  %s5 = inlined_call_operand.vmem [shape: f32[32,32], index: 5, kind: input, shape index: {}]
  %s6 = inlined_call_operand.vmem [shape: f32[4,32], index: 6, kind: input, shape index: {}]
  %s7 = inlined_call_operand.vmem [shape: f32[1,32], index: 7, kind: input, shape index: {}]
  %s8 = inlined_call_operand.hbm [shape: f32[16,32], index: 8, kind: output, shape index: {}]
  %s9 = sld [smem:[#allocation0]]
  $region42: #{_lambda_.5} parent=0
    _
  %s11 = ssub.s32 1, %s9
  %s12 = scalar_select 0, %s11, %s9
  $region1: #{_lambda_.5} parent=0
    #allocation2 [shape = 'u8[8192]{0}', space=vmem, size = 0x2000, scoped, tag = 'output window, operand 0, single buffered']
    #allocation3 [shape = 's32[1]{0}', space=sflag, size = 0x4, scoped, tag = 'scoped memory for _lambda_.5']
    %13 = vsyncpa [#allocation3], 0
    // Predicated region
    $region2: #{_lambda_.5} parent=1 // pred_check
      _
    $region3: #{_lambda_.5} parent=1 // pred_check_branch
      %15 = sbr.rel (0) target = $region5
    $region4: #{_lambda_.5} parent=1 // pred_region
      _
    $region5: #{_lambda_.5} parent=1 // pred_fallthru
      _
    // Predicated region
    $region6: #{_lambda_.5} parent=1 // pred_check
      _
    $region7: #{_lambda_.5} parent=1 // pred_check_branch
      %17 = sbr.rel (0) target = $region9
    $region8: #{_lambda_.5} parent=1 // pred_region
      _
    $region9: #{_lambda_.5} parent=1 // pred_fallthru
      _
    // Predicated region
    $region10: #{_lambda_.5} parent=1 // pred_check
      _
    $region11: #{_lambda_.5} parent=1 // pred_check_branch
      %19 = sbr.rel (0) target = $region13
    $region12: #{_lambda_.5} parent=1 // pred_region
      _
    $region13: #{_lambda_.5} parent=1 // pred_fallthru
      _
    // Predicated region
    $region14: #{_lambda_.5} parent=1 // pred_check
      _
    $region15: #{_lambda_.5} parent=1 // pred_check_branch
      %21 = sbr.rel (0) target = $region17
    $region16: #{_lambda_.5} parent=1 // pred_region
      _
    $region17: #{_lambda_.5} parent=1 // pred_fallthru
      _
    // Predicated region
    $region18: #{_lambda_.5} parent=1 // pred_check
      _
    $region19: #{_lambda_.5} parent=1 // pred_check_branch
      %23 = sbr.rel (0) target = $region21
    $region20: #{_lambda_.5} parent=1 // pred_region
      _
    $region21: #{_lambda_.5} parent=1 // pred_fallthru
      _
    // Predicated region
    $region22: #{_lambda_.5} parent=1 // pred_check
      _
    $region23: #{_lambda_.5} parent=1 // pred_check_branch
      %25 = sbr.rel (0) target = $region25
    $region24: #{_lambda_.5} parent=1 // pred_region
      _
    $region25: #{_lambda_.5} parent=1 // pred_fallthru
      _
    // Predicated region
    $region26: #{_lambda_.5} parent=1 // pred_check
      _
    $region27: #{_lambda_.5} parent=1 // pred_check_branch
      %27 = sbr.rel (0) target = $region29
    $region28: #{_lambda_.5} parent=1 // pred_region
      _
    $region29: #{_lambda_.5} parent=1 // pred_fallthru
      _
    // Predicated region
    $region30: #{_lambda_.5} parent=1 // pred_check
      _
    $region31: #{_lambda_.5} parent=1 // pred_check_branch
      %29 = sbr.rel (0) target = $region33
    $region32: #{_lambda_.5} parent=1 // pred_region
      _
    $region33: #{_lambda_.5} parent=1 // pred_fallthru
      _
    %v30 = vld [vmem:[%s0] sm:$0xff]
    %v31 = vld [vmem:[%s0 + $0x8] sm:$0xff]
    %v32 = vld [vmem:[%s1] sm:$0xff]
    %v33 = vld [vmem:[%s1 + $0x8] sm:$0xff]
    %v34 = vld [vmem:[%s1 + $0x10] sm:$0xff]
    %v35 = vld [vmem:[%s1 + $0x18] sm:$0xff]
    %v36 = vld [vmem:[%s1 + $0x20] sm:$0xff]
    %v37 = vld [vmem:[%s1 + $0x28] sm:$0xff]
    %v38 = vld [vmem:[%s2] sm:$0x1]
    %v39 = vld [vmem:[%s3] sm:$0x1]
    %v40 = vld [vmem:[%s4] sm:$0xf]
    %v41 = vld [vmem:[%s5] sm:$0xff]
    %v42 = vld [vmem:[%s5 + $0x8] sm:$0xff]
    %v43 = vld [vmem:[%s5 + $0x10] sm:$0xff]
    %v44 = vld [vmem:[%s5 + $0x18] sm:$0xff]
    %v45 = vld [vmem:[%s6] sm:$0xf]
    %v46 = vld [vmem:[%s7] sm:$0x1]
    %vm47 = vcmask 261120
    %v48 = vsel %vm47, %v30, 0.0
    %49 = vadd.xlane.f32.xlu0 %v48
    %v50 = vpop.xlane.xlu0 %49
    %v51 = vsel %vm47, %v31, 0.0
    %52 = vadd.xlane.f32.xlu0 %v51
    %v53 = vpop.xlane.xlu0 %52
    %v54 = vrcp.pop 32.0
    %v55 = vmul.f32 %v50, %v54
    %v56 = vmul.f32 %v53, %v54
    %v57 = vsub.f32 %v30, %v55
    %v58 = vsub.f32 %v31, %v56
    %v59 = vmul.f32 %v57, %v57
    %v60 = vmul.f32 %v58, %v58
    %v61 = vsel %vm47, %v59, 0.0
    %62 = vadd.xlane.f32.xlu0 %v61
    %v63 = vpop.xlane.xlu0 %62
    %v64 = vsel %vm47, %v60, 0.0
    %65 = vadd.xlane.f32.xlu0 %v64
    %v66 = vpop.xlane.xlu0 %65
    %v67 = vmul.f32 %v63, %v54
    %v68 = vmul.f32 %v66, %v54
    %v69 = vadd.f32 %v67, 1e-05
    %v70 = vadd.f32 %v68, 1e-05
    %v71 = vrsqrt.pop %v69
    %v72 = vrsqrt.pop %v70
    %v73 = vmul.f32 %v57, %v71
    %v74 = vmul.f32 %v58, %v72
    %v76 = vlaneseq
    %v77 = vshrl.u32 %v76, 7
    %v78 = vsub.s32 0, %v77
    %v79 = vrot.slane %v38, %v78
    %v81 = vmul.f32 %v73, %v79
    %v82 = vmul.f32 %v74, %v79
    %v84 = vlaneseq
    %v85 = vshrl.u32 %v84, 7
    %v86 = vsub.s32 0, %v85
    %v87 = vrot.slane %v39, %v86
    %v89 = vadd.f32 %v81, %v87
    %v90 = vadd.f32 %v82, %v87
    %v91 = vmul.f32 %v32, %v32
    %v92 = vmul.f32 %v33, %v33
    %v93 = vmul.f32 %v34, %v34
    %v94 = vmul.f32 %v35, %v35
    %v95 = vadd.f32 %v91, %v93
    %v96 = vadd.f32 %v92, %v94
    %v97 = vmul.f32 %v36, %v36
    %v98 = vmul.f32 %v37, %v37
    %v99 = vadd.f32 %v95, %v97
    %v100 = vadd.f32 %v96, %v98
    %v101 = vmax.f32 %v99, 1e-08
    %v102 = vmax.f32 %v100, 1e-08
    %vm103 = vcmask 31744
    %v104 = vsel %vm103, %v101, 0.0
    %105 = vadd.xlane.f32.xlu0 %v104
    %v106 = vpop.xlane.xlu0 %105
    %v107 = vsel %vm103, %v102, 0.0
    %108 = vadd.xlane.f32.xlu0 %v107
    %v109 = vpop.xlane.xlu0 %108
    %v110 = vrcp.pop 4.0
    %v111 = vmul.f32 %v106, %v110
    %v112 = vmul.f32 %v109, %v110
    %v113 = vrsqrt.pop %v111
    %v114 = vrsqrt.pop %v112
    %v115 = vmul.f32 %v32, %v113
    %v116 = vmul.f32 %v33, %v114
    %v117 = vmul.f32 %v34, %v113
    %v118 = vmul.f32 %v35, %v114
    %v119 = vmul.f32 %v36, %v113
    %v120 = vmul.f32 %v37, %v114
    %v122 = vsel %vm103, %v115, 0
    %v125 = vsel %vm103, %v116, 0
    %v128 = vsel %vm103, %v117, 0
    %v131 = vsel %vm103, %v118, 0
    %v134 = vsel %vm103, %v119, 0
    %v137 = vsel %vm103, %v120, 0
    %vm139 = vcmask 1043456
    %v141 = vsel %vm139, %v40, 0
    %143 = vmatprep.subr.mxu0 0.0
    %144 = vmatpush1.msra.mxu0 %v141
    %145 = vmatprep.subr.mxu0 0.0
    %146 = vmatpush1.msra.mxu0 0.0
    %147 = vmatprep.subr.mxu0 0.0
    %148 = vmatpush1.msra.mxu0 0.0
    %149 = vmatprep.subr.mxu0 0.0
    %150 = vmatpush1.msra.mxu0 0.0
    %151 = vmatprep.subr.mxu0 0.0
    %152 = vmatpush1.msra.mxu0 0.0
    %153 = vmatprep.subr.mxu0 0.0
    %154 = vmatpush1.msra.mxu0 0.0
    %155 = vmatprep.subr.mxu0 0.0
    %156 = vmatpush1.msra.mxu0 0.0
    %157 = vmatprep.subr.mxu0 0.0
    %158 = vmatpush1.msra.mxu0 0.0
    %159 = vmatprep.subr.mxu0 0.0
    %160 = vmatpush1.msra.mxu0 0.0
    %161 = vmatprep.subr.mxu0 0.0
    %162 = vmatpush1.msra.mxu0 0.0
    %163 = vmatprep.subr.mxu0 0.0
    %164 = vmatpush1.msra.mxu0 0.0
    %165 = vmatprep.subr.mxu0 0.0
    %166 = vmatpush1.msra.mxu0 0.0
    %167 = vmatprep.subr.mxu0 0.0
    %168 = vmatpush1.msra.mxu0 0.0
    %169 = vmatprep.subr.mxu0 0.0
    %170 = vmatpush1.msra.mxu0 0.0
    %171 = vmatprep.subr.mxu0 0.0
    %172 = vmatpush1.msra.mxu0 0.0
    %173 = vmatprep.subr.mxu0 0.0
    %174 = vmatpush1.msra.mxu0 0.0
    %175 = vmatprep.subr.mxu0 0.0
    %176 = vmatpush1.msra.mxu0 0.0
    %177 = vmatprep.subr.mxu0 0.0
    %178 = vmatpush1.msra.mxu0 0.0
    %179 = vmatprep.subr.mxu0 0.0
    %180 = vmatpush1.msra.mxu0 0.0
    %181 = vmatprep.subr.mxu0 0.0
    %182 = vmatpush1.msra.mxu0 0.0
    %183 = vmatprep.subr.mxu0 0.0
    %184 = vmatpush1.msra.mxu0 0.0
    %185 = vmatprep.subr.mxu0 0.0
    %186 = vmatpush1.msra.mxu0 0.0
    %187 = vmatprep.subr.mxu0 0.0
    %188 = vmatpush1.msra.mxu0 0.0
    %189 = vmatprep.subr.mxu0 0.0
    %190 = vmatpush1.msra.mxu0 0.0
    %191 = vmatprep.subr.mxu0 0.0
    %192 = vmatpush1.msra.mxu0 0.0
    %193 = vmatprep.subr.mxu0 0.0
    %194 = vmatpush1.msra.mxu0 0.0
    %195 = vmatprep.subr.mxu0 0.0
    %196 = vmatpush1.msra.mxu0 0.0
    %197 = vmatprep.subr.mxu0 0.0
    %198 = vmatpush1.msra.mxu0 0.0
    %199 = vmatprep.subr.mxu0 0.0
    %200 = vmatpush1.msra.mxu0 0.0
    %201 = vmatprep.subr.mxu0 0.0
    %202 = vmatpush1.msra.mxu0 0.0
    %203 = vmatprep.subr.mxu0 0.0
    %204 = vmatpush1.msra.mxu0 0.0
    %205 = vmatprep.subr.mxu0 0.0
    %206 = vmatpush1.msra.mxu0 0.0
    %207 = vmatprep.mubr.f32.mxu0 0.0
    %208 = vmatmul.mubr.f32.gmra.mrb[0].mxu0 %v122
    %v209 = vpop.f32.mrb[0].mxu0
    %v210 = vadd.f32 0.0, %v209
    %v211 = vpop.f32.mrb[0].mxu0
    %212 = vmatprep.mubr.f32.mxu0 0.0
    %213 = vmatmul.mubr.f32.gmra.mrb[0].mxu0 %v125
    %v214 = vpop.f32.mrb[0].mxu0
    %v215 = vadd.f32 0.0, %v214
    %v216 = vpop.f32.mrb[0].mxu0
    %217 = vmatprep.mubr.f32.mxu0 0.0
    %218 = vmatmul.mubr.f32.gmra.mrb[0].mxu0 %v128
    %v219 = vpop.f32.mrb[0].mxu0
    %v220 = vadd.f32 0.0, %v219
    %v221 = vpop.f32.mrb[0].mxu0
    %222 = vmatprep.mubr.f32.mxu0 0.0
    %223 = vmatmul.mubr.f32.gmra.mrb[0].mxu0 %v131
    %v224 = vpop.f32.mrb[0].mxu0
    %v225 = vadd.f32 0.0, %v224
    %v226 = vpop.f32.mrb[0].mxu0
    %227 = vmatprep.mubr.f32.mxu0 0.0
    %228 = vmatmul.mubr.f32.gmra.mrb[0].mxu0 %v134
    %v229 = vpop.f32.mrb[0].mxu0
    %v230 = vadd.f32 0.0, %v229
    %v231 = vpop.f32.mrb[0].mxu0
    %232 = vmatprep.mubr.f32.mxu0 0.0
    %233 = vmatmul.mubr.f32.gmra.mrb[0].mxu0 %v137
    %v234 = vpop.f32.mrb[0].mxu0
    %v235 = vadd.f32 0.0, %v234
    %v236 = vpop.f32.mrb[0].mxu0
    %237 = vdwg.mxu0
    %v238 = vmul.f32 %v210, %v210
    %v239 = vmul.f32 %v215, %v215
    %v240 = vmul.f32 %v220, %v220
    %v241 = vmul.f32 %v225, %v225
    %v242 = vadd.f32 %v238, %v240
    %v243 = vadd.f32 %v239, %v241
    %v244 = vmul.f32 %v230, %v230
    %v245 = vmul.f32 %v235, %v235
    %v246 = vadd.f32 %v242, %v244
    %v247 = vadd.f32 %v243, %v245
    %v248 = vmax.f32 %v246, 1e-08
    %v249 = vmax.f32 %v247, 1e-08
    %v250 = vrsqrt.pop %v248
    %v251 = vmul.f32 %v248, %v250
    %vm252 = vcmp.eq.f32.partialorder %v248, inf
    %v253 = vsel %vm252, %v248, %v251
    %vm254 = vcmp.eq.f32.partialorder %v248, 0.0
    %v255 = vand.u32 %v248, 2147483648
    %v256 = vsel %vm254, %v255, %v253
    %v257 = vrsqrt.pop %v249
    %v258 = vmul.f32 %v249, %v257
    %vm259 = vcmp.eq.f32.partialorder %v249, inf
    %v260 = vsel %vm259, %v249, %v258
    %vm261 = vcmp.eq.f32.partialorder %v249, 0.0
    %v262 = vand.u32 %v249, 2147483648
    %v263 = vsel %vm261, %v262, %v260
    %v265 = vsel %vm47, %v89, 0
    %v268 = vsel %vm47, %v90, 0
    %270 = vmatprep.subr.mxu0 0.0
    %271 = vmatpush1.msra.mxu0 %v41
    %272 = vmatprep.subr.mxu0 0.0
    %273 = vmatpush1.msra.mxu0 %v42
    %274 = vmatprep.subr.mxu0 0.0
    %275 = vmatpush1.msra.mxu0 %v43
    %276 = vmatprep.subr.mxu0 0.0
    %277 = vmatpush1.msra.mxu0 %v44
    %278 = vmatprep.subr.mxu0 0.0
    %279 = vmatpush1.msra.mxu0 0.0
    %280 = vmatprep.subr.mxu0 0.0
    %281 = vmatpush1.msra.mxu0 0.0
    %282 = vmatprep.subr.mxu0 0.0
    %283 = vmatpush1.msra.mxu0 0.0
    %284 = vmatprep.subr.mxu0 0.0
    %285 = vmatpush1.msra.mxu0 0.0
    %286 = vmatprep.subr.mxu0 0.0
    %287 = vmatpush1.msra.mxu0 0.0
    %288 = vmatprep.subr.mxu0 0.0
    %289 = vmatpush1.msra.mxu0 0.0
    %290 = vmatprep.subr.mxu0 0.0
    %291 = vmatpush1.msra.mxu0 0.0
    %292 = vmatprep.subr.mxu0 0.0
    %293 = vmatpush1.msra.mxu0 0.0
    %294 = vmatprep.subr.mxu0 0.0
    %295 = vmatpush1.msra.mxu0 0.0
    %296 = vmatprep.subr.mxu0 0.0
    %297 = vmatpush1.msra.mxu0 0.0
    %298 = vmatprep.subr.mxu0 0.0
    %299 = vmatpush1.msra.mxu0 0.0
    %300 = vmatprep.subr.mxu0 0.0
    %301 = vmatpush1.msra.mxu0 0.0
    %302 = vmatprep.subr.mxu0 0.0
    %303 = vmatpush1.msra.mxu0 0.0
    %304 = vmatprep.subr.mxu0 0.0
    %305 = vmatpush1.msra.mxu0 0.0
    %306 = vmatprep.subr.mxu0 0.0
    %307 = vmatpush1.msra.mxu0 0.0
    %308 = vmatprep.subr.mxu0 0.0
    %309 = vmatpush1.msra.mxu0 0.0
    %310 = vmatprep.subr.mxu0 0.0
    %311 = vmatpush1.msra.mxu0 0.0
    %312 = vmatprep.subr.mxu0 0.0
    %313 = vmatpush1.msra.mxu0 0.0
    %314 = vmatprep.subr.mxu0 0.0
    %315 = vmatpush1.msra.mxu0 0.0
    %316 = vmatprep.subr.mxu0 0.0
    %317 = vmatpush1.msra.mxu0 0.0
    %318 = vmatprep.subr.mxu0 0.0
    %319 = vmatpush1.msra.mxu0 0.0
    %320 = vmatprep.subr.mxu0 0.0
    %321 = vmatpush1.msra.mxu0 0.0
    %322 = vmatprep.subr.mxu0 0.0
    %323 = vmatpush1.msra.mxu0 0.0
    %324 = vmatprep.subr.mxu0 0.0
    %325 = vmatpush1.msra.mxu0 0.0
    %326 = vmatprep.subr.mxu0 0.0
    %327 = vmatpush1.msra.mxu0 0.0
    %328 = vmatprep.subr.mxu0 0.0
    %329 = vmatpush1.msra.mxu0 0.0
    %330 = vmatprep.subr.mxu0 0.0
    %331 = vmatpush1.msra.mxu0 0.0
    %332 = vmatprep.subr.mxu0 0.0
    %333 = vmatpush1.msra.mxu0 0.0
    %334 = vmatprep.mubr.f32.mxu0 0.0
    %335 = vmatmul.mubr.f32.gmra.mrb[0].mxu0 %v265
    %v336 = vpop.f32.mrb[0].mxu0
    %v337 = vadd.f32 0.0, %v336
    %v338 = vpop.f32.mrb[0].mxu0
    %339 = vmatprep.mubr.f32.mxu0 0.0
    %340 = vmatmul.mubr.f32.gmra.mrb[0].mxu0 %v268
    %v341 = vpop.f32.mrb[0].mxu0
    %v342 = vadd.f32 0.0, %v341
    %v343 = vpop.f32.mrb[0].mxu0
    %344 = vdwg.mxu0
    %v346 = vlaneseq
    %v347 = vshrl.u32 %v346, 7
    %v348 = vsub.s32 0, %v347
    %v349 = vrot.slane %v46, %v348
    %v351 = vadd.f32 %v349, %v337
    %v352 = vadd.f32 %v349, %v342
    %v354 = vsel %vm103, %v256, 0
    %v357 = vsel %vm103, %v263, 0
    %v360 = vsel %vm139, %v45, 0
    %362 = vmatprep.subr.mxu0 0.0
    %363 = vmatpush1.msra.mxu0 %v360
    %364 = vmatprep.subr.mxu0 0.0
    %365 = vmatpush1.msra.mxu0 0.0
    %366 = vmatprep.subr.mxu0 0.0
    %367 = vmatpush1.msra.mxu0 0.0
    %368 = vmatprep.subr.mxu0 0.0
    %369 = vmatpush1.msra.mxu0 0.0
    %370 = vmatprep.subr.mxu0 0.0
    %371 = vmatpush1.msra.mxu0 0.0
    %372 = vmatprep.subr.mxu0 0.0
    %373 = vmatpush1.msra.mxu0 0.0
    %374 = vmatprep.subr.mxu0 0.0
    %375 = vmatpush1.msra.mxu0 0.0
    %376 = vmatprep.subr.mxu0 0.0
    %377 = vmatpush1.msra.mxu0 0.0
    %378 = vmatprep.subr.mxu0 0.0
    %379 = vmatpush1.msra.mxu0 0.0
    %380 = vmatprep.subr.mxu0 0.0
    %381 = vmatpush1.msra.mxu0 0.0
    %382 = vmatprep.subr.mxu0 0.0
    %383 = vmatpush1.msra.mxu0 0.0
    %384 = vmatprep.subr.mxu0 0.0
    %385 = vmatpush1.msra.mxu0 0.0
    %386 = vmatprep.subr.mxu0 0.0
    %387 = vmatpush1.msra.mxu0 0.0
    %388 = vmatprep.subr.mxu0 0.0
    %389 = vmatpush1.msra.mxu0 0.0
    %390 = vmatprep.subr.mxu0 0.0
    %391 = vmatpush1.msra.mxu0 0.0
    %392 = vmatprep.subr.mxu0 0.0
    %393 = vmatpush1.msra.mxu0 0.0
    %394 = vmatprep.subr.mxu0 0.0
    %395 = vmatpush1.msra.mxu0 0.0
    %396 = vmatprep.subr.mxu0 0.0
    %397 = vmatpush1.msra.mxu0 0.0
    %398 = vmatprep.subr.mxu0 0.0
    %399 = vmatpush1.msra.mxu0 0.0
    %400 = vmatprep.subr.mxu0 0.0
    %401 = vmatpush1.msra.mxu0 0.0
    %402 = vmatprep.subr.mxu0 0.0
    %403 = vmatpush1.msra.mxu0 0.0
    %404 = vmatprep.subr.mxu0 0.0
    %405 = vmatpush1.msra.mxu0 0.0
    %406 = vmatprep.subr.mxu0 0.0
    %407 = vmatpush1.msra.mxu0 0.0
    %408 = vmatprep.subr.mxu0 0.0
    %409 = vmatpush1.msra.mxu0 0.0
    %410 = vmatprep.subr.mxu0 0.0
    %411 = vmatpush1.msra.mxu0 0.0
    %412 = vmatprep.subr.mxu0 0.0
    %413 = vmatpush1.msra.mxu0 0.0
    %414 = vmatprep.subr.mxu0 0.0
    %415 = vmatpush1.msra.mxu0 0.0
    %416 = vmatprep.subr.mxu0 0.0
    %417 = vmatpush1.msra.mxu0 0.0
    %418 = vmatprep.subr.mxu0 0.0
    %419 = vmatpush1.msra.mxu0 0.0
    %420 = vmatprep.subr.mxu0 0.0
    %421 = vmatpush1.msra.mxu0 0.0
    %422 = vmatprep.subr.mxu0 0.0
    %423 = vmatpush1.msra.mxu0 0.0
    %424 = vmatprep.subr.mxu0 0.0
    %425 = vmatpush1.msra.mxu0 0.0
    %426 = vmatprep.mubr.f32.mxu0 0.0
    %427 = vmatmul.mubr.f32.gmra.mrb[0].mxu0 %v354
    %v428 = vpop.f32.mrb[0].mxu0
    %v429 = vadd.f32 0.0, %v428
    %v430 = vpop.f32.mrb[0].mxu0
    %431 = vmatprep.mubr.f32.mxu0 0.0
    %432 = vmatmul.mubr.f32.gmra.mrb[0].mxu0 %v357
    %v433 = vpop.f32.mrb[0].mxu0
    %v434 = vadd.f32 0.0, %v433
    %v435 = vpop.f32.mrb[0].mxu0
    %436 = vdwg.mxu0
    %v437 = vadd.f32 %v351, %v429
    %v438 = vadd.f32 %v352, %v434
    %v439 = vmax.f32 %v437, 0.0
    %v440 = vmax.f32 %v438, 0.0
    %441 = vst.msk [vmem:[#allocation2] sm:$0xff] %vm47, %v439
    %442 = vst.msk [vmem:[#allocation2 + $0x8] sm:$0xff] %vm47, %v440
    // Predicated region
    $region34: #{_lambda_.5} parent=1 // pred_check
      _
    $region35: #{_lambda_.5} parent=1 // pred_check_branch
      %444 = sbr.rel (0) target = $region37
    $region36: #{_lambda_.5} parent=1 // pred_region
      %s446 = ssub.s32 256, 256
      %447 = vsyncadd [#allocation3], %s446
      %s448 = sshll.u32 [#allocation2], 4
      %s449 = int_to_ptr.vmem [resolvable:$true] %s448
      %454 = dma.vmem_to_hbm [thread:$0]  %s449, 256, %s8, [#allocation3], 128, 128, 8
    $region37: #{_lambda_.5} parent=1 // pred_fallthru
      _
    // Predicated region
    $region38: #{_lambda_.5} parent=1 // pred_check
      _
    $region39: #{_lambda_.5} parent=1 // pred_check_branch
      %456 = sbr.rel (0) target = $region41
    $region40: #{_lambda_.5} parent=1 // pred_region
      %457 = dma.done [#allocation3], 256
    $region41: #{_lambda_.5} parent=1 // pred_fallthru
      _
    %458 = vsyncpa [#allocation3], 1

// kernel: closed_call.12
$region0: #{closed_call.12}
  #allocation0 [shape = 'u32[]', space=smem, size = 0x4, offset = 0x4, fixed_abs, tag = 'smem constant byte address 0x4 - core index']
  #allocation1 [shape = 'u32[144,128]{1,0:T(1,128)}', space=vmem, size = 0x12000, scoped, tag = 'internal scratch']
  %s0 = inlined_call_operand.vmem [shape: f32[16,32], index: 0, kind: input, shape index: {}]
  %s1 = inlined_call_operand.vmem [shape: f32[16,32], index: 1, kind: input, shape index: {}]
  %s2 = inlined_call_operand.vmem [shape: f32[3,16,4], index: 2, kind: input, shape index: {}]
  %s3 = inlined_call_operand.vmem [shape: f32[3,16,4], index: 3, kind: input, shape index: {}]
  %s4 = inlined_call_operand.vmem [shape: f32[1,32], index: 4, kind: input, shape index: {}, may-alias: {4,16}]
  %s5 = inlined_call_operand.vmem [shape: f32[1,32], index: 5, kind: input, shape index: {}, may-alias: {5,17}]
  %s6 = inlined_call_operand.vmem [shape: f32[4,8], index: 6, kind: input, shape index: {}]
  %s7 = inlined_call_operand.vmem [shape: f32[32,128], index: 7, kind: input, shape index: {}]
  %s8 = inlined_call_operand.vmem [shape: f32[8,128], index: 8, kind: input, shape index: {}]
  %s9 = inlined_call_operand.vmem [shape: f32[1,128], index: 9, kind: input, shape index: {}]
  %s10 = inlined_call_operand.vmem [shape: f32[8,8], index: 10, kind: input, shape index: {}]
  %s11 = inlined_call_operand.vmem [shape: f32[8,8], index: 11, kind: input, shape index: {}]
  %s12 = inlined_call_operand.vmem [shape: f32[128,32], index: 12, kind: input, shape index: {}]
  %s13 = inlined_call_operand.vmem [shape: f32[8,32], index: 13, kind: input, shape index: {}]
  %s14 = inlined_call_operand.vmem [shape: f32[1,32], index: 14, kind: input, shape index: {}]
  %s15 = inlined_call_operand.vmem [shape: f32[8,4], index: 15, kind: input, shape index: {}]
  %s16 = inlined_call_operand.vmem [shape: f32[1,32], index: 16, kind: input, shape index: {}, may-alias: {4,16}]
  %s17 = inlined_call_operand.vmem [shape: f32[1,32], index: 17, kind: input, shape index: {}, may-alias: {5,17}]
  %s18 = inlined_call_operand.vmem [shape: f32[16,32], index: 18, kind: output, shape index: {0}]
  %s19 = inlined_call_operand.vmem [shape: f32[3,16,4], index: 19, kind: output, shape index: {1}]
  %20 = xla_tuple %s18, %s19
  %s21 = sld [smem:[#allocation0]]
  $region90: #{closed_call.12} parent=0
    _
  %s23 = ssub.s32 1, %s21
  %s24 = scalar_select 0, %s23, %s21
  // Predicated region
  $region2: #{closed_call.12} parent=0 // pred_check
    _
  $region3: #{closed_call.12} parent=0 // pred_check_branch
    %26 = sbr.rel (0) target = $region5
  $region4: #{closed_call.12} parent=0 // pred_region
    _
  $region5: #{closed_call.12} parent=0 // pred_fallthru
    _
  // Predicated region
  $region6: #{closed_call.12} parent=0 // pred_check
    _
  $region7: #{closed_call.12} parent=0 // pred_check_branch
    %28 = sbr.rel (0) target = $region9
  $region8: #{closed_call.12} parent=0 // pred_region
    _
  $region9: #{closed_call.12} parent=0 // pred_fallthru
    _
  // Predicated region
  $region10: #{closed_call.12} parent=0 // pred_check
    _
  $region11: #{closed_call.12} parent=0 // pred_check_branch
    %30 = sbr.rel (0) target = $region13
  $region12: #{closed_call.12} parent=0 // pred_region
    _
  $region13: #{closed_call.12} parent=0 // pred_fallthru
    _
  // Predicated region
  $region14: #{closed_call.12} parent=0 // pred_check
    _
  $region15: #{closed_call.12} parent=0 // pred_check_branch
    %32 = sbr.rel (0) target = $region17
  $region16: #{closed_call.12} parent=0 // pred_region
    _
  $region17: #{closed_call.12} parent=0 // pred_fallthru
    _
  // Predicated region
  $region18: #{closed_call.12} parent=0 // pred_check
    _
  $region19: #{closed_call.12} parent=0 // pred_check_branch
    %34 = sbr.rel (0) target = $region21
  $region20: #{closed_call.12} parent=0 // pred_region
    _
  $region21: #{closed_call.12} parent=0 // pred_fallthru
    _
  // Predicated region
  $region22: #{closed_call.12} parent=0 // pred_check
    _
  $region23: #{closed_call.12} parent=0 // pred_check_branch
    %36 = sbr.rel (0) target = $region25
  $region24: #{closed_call.12} parent=0 // pred_region
    _
  $region25: #{closed_call.12} parent=0 // pred_fallthru
    _
  // Predicated region
  $region26: #{closed_call.12} parent=0 // pred_check
    _
  $region27: #{closed_call.12} parent=0 // pred_check_branch
    %38 = sbr.rel (0) target = $region29
  $region28: #{closed_call.12} parent=0 // pred_region
    _
  $region29: #{closed_call.12} parent=0 // pred_fallthru
    _
  // Predicated region
  $region30: #{closed_call.12} parent=0 // pred_check
    _
  $region31: #{closed_call.12} parent=0 // pred_check_branch
    %40 = sbr.rel (0) target = $region33
  $region32: #{closed_call.12} parent=0 // pred_region
    _
  $region33: #{closed_call.12} parent=0 // pred_fallthru
    _
  // Predicated region
  $region34: #{closed_call.12} parent=0 // pred_check
    _
  $region35: #{closed_call.12} parent=0 // pred_check_branch
    %42 = sbr.rel (0) target = $region37
  $region36: #{closed_call.12} parent=0 // pred_region
    _
  $region37: #{closed_call.12} parent=0 // pred_fallthru
    _
  // Predicated region
  $region38: #{closed_call.12} parent=0 // pred_check
    _
  $region39: #{closed_call.12} parent=0 // pred_check_branch
    %44 = sbr.rel (0) target = $region41
  $region40: #{closed_call.12} parent=0 // pred_region
    _
  $region41: #{closed_call.12} parent=0 // pred_fallthru
    _
  // Predicated region
  $region42: #{closed_call.12} parent=0 // pred_check
    _
  $region43: #{closed_call.12} parent=0 // pred_check_branch
    %46 = sbr.rel (0) target = $region45
  $region44: #{closed_call.12} parent=0 // pred_region
    _
  $region45: #{closed_call.12} parent=0 // pred_fallthru
    _
  // Predicated region
  $region46: #{closed_call.12} parent=0 // pred_check
    _
  $region47: #{closed_call.12} parent=0 // pred_check_branch
    %48 = sbr.rel (0) target = $region49
  $region48: #{closed_call.12} parent=0 // pred_region
    _
  $region49: #{closed_call.12} parent=0 // pred_fallthru
    _
  // Predicated region
  $region50: #{closed_call.12} parent=0 // pred_check
    _
  $region51: #{closed_call.12} parent=0 // pred_check_branch
    %50 = sbr.rel (0) target = $region53
  $region52: #{closed_call.12} parent=0 // pred_region
    _
  $region53: #{closed_call.12} parent=0 // pred_fallthru
    _
  // Predicated region
  $region54: #{closed_call.12} parent=0 // pred_check
    _
  $region55: #{closed_call.12} parent=0 // pred_check_branch
    %52 = sbr.rel (0) target = $region57
  $region56: #{closed_call.12} parent=0 // pred_region
    _
  $region57: #{closed_call.12} parent=0 // pred_fallthru
    _
  // Predicated region
  $region58: #{closed_call.12} parent=0 // pred_check
    _
  $region59: #{closed_call.12} parent=0 // pred_check_branch
    %54 = sbr.rel (0) target = $region61
  $region60: #{closed_call.12} parent=0 // pred_region
    _
  $region61: #{closed_call.12} parent=0 // pred_fallthru
    _
  // Predicated region
  $region62: #{closed_call.12} parent=0 // pred_check
    _
  $region63: #{closed_call.12} parent=0 // pred_check_branch
    %56 = sbr.rel (0) target = $region65
  $region64: #{closed_call.12} parent=0 // pred_region
    _
  $region65: #{closed_call.12} parent=0 // pred_fallthru
    _
  // Predicated region
  $region66: #{closed_call.12} parent=0 // pred_check
    _
  $region67: #{closed_call.12} parent=0 // pred_check_branch
    %58 = sbr.rel (0) target = $region69
  $region68: #{closed_call.12} parent=0 // pred_region
    _
  $region69: #{closed_call.12} parent=0 // pred_fallthru
    _
  // Predicated region
  $region70: #{closed_call.12} parent=0 // pred_check
    _
  $region71: #{closed_call.12} parent=0 // pred_check_branch
    %60 = sbr.rel (0) target = $region73
  $region72: #{closed_call.12} parent=0 // pred_region
    _
  $region73: #{closed_call.12} parent=0 // pred_fallthru
    _
  %v61 = vld [vmem:[%s4] sm:$0x1]
  %v62 = vld [vmem:[%s5] sm:$0x1]
  %v63 = vld [vmem:[%s6] sm:$0xf]
  %v64 = vld [vmem:[%s7] sm:$0xff]
  %v65 = vld [vmem:[%s7 + $0x8] sm:$0xff]
  %v66 = vld [vmem:[%s7 + $0x10] sm:$0xff]
  %v67 = vld [vmem:[%s7 + $0x18] sm:$0xff]
  %v68 = vld [vmem:[%s8] sm:$0xff]
  %v69 = vld [vmem:[%s9] sm:$0x1]
  %v70 = vld [vmem:[%s10] sm:$0xff]
  %v71 = vld [vmem:[%s11] sm:$0xff]
  %v72 = vld [vmem:[%s12] sm:$0xff]
  %v73 = vld [vmem:[%s12 + $0x8] sm:$0xff]
  %v74 = vld [vmem:[%s12 + $0x10] sm:$0xff]
  %v75 = vld [vmem:[%s12 + $0x18] sm:$0xff]
  %v76 = vld [vmem:[%s12 + $0x20] sm:$0xff]
  %v77 = vld [vmem:[%s12 + $0x28] sm:$0xff]
  %v78 = vld [vmem:[%s12 + $0x30] sm:$0xff]
  %v79 = vld [vmem:[%s12 + $0x38] sm:$0xff]
  %v80 = vld [vmem:[%s12 + $0x40] sm:$0xff]
  %v81 = vld [vmem:[%s12 + $0x48] sm:$0xff]
  %v82 = vld [vmem:[%s12 + $0x50] sm:$0xff]
  %v83 = vld [vmem:[%s12 + $0x58] sm:$0xff]
  %v84 = vld [vmem:[%s12 + $0x60] sm:$0xff]
  %v85 = vld [vmem:[%s12 + $0x68] sm:$0xff]
  %v86 = vld [vmem:[%s12 + $0x70] sm:$0xff]
  %v87 = vld [vmem:[%s12 + $0x78] sm:$0xff]
  %v88 = vld [vmem:[%s13] sm:$0xff]
  %v89 = vld [vmem:[%s14] sm:$0x1]
  %v90 = vld [vmem:[%s15] sm:$0xff]
  %v91 = vld [vmem:[%s16] sm:$0x1]
  %v92 = vld [vmem:[%s17] sm:$0x1]
  %v93 = vld [vmem:[%s0] sm:$0xff]
  %v94 = vld [vmem:[%s0 + $0x8] sm:$0xff]
  %v95 = vld [vmem:[%s1] sm:$0xff]
  %v96 = vld [vmem:[%s1 + $0x8] sm:$0xff]
  %v97 = vadd.f32 %v93, %v95
  %v98 = vadd.f32 %v94, %v96
  %v99 = vld [vmem:[%s2] sm:$0xff]
  %v100 = vld [vmem:[%s2 + $0x8] sm:$0xff]
  %v101 = vld [vmem:[%s2 + $0x10] sm:$0xff]
  %v102 = vld [vmem:[%s2 + $0x18] sm:$0xff]
  %v103 = vld [vmem:[%s2 + $0x20] sm:$0xff]
  %v104 = vld [vmem:[%s2 + $0x28] sm:$0xff]
  %v105 = vld [vmem:[%s3] sm:$0xff]
  %v106 = vld [vmem:[%s3 + $0x8] sm:$0xff]
  %v107 = vld [vmem:[%s3 + $0x10] sm:$0xff]
  %v108 = vld [vmem:[%s3 + $0x18] sm:$0xff]
  %v109 = vld [vmem:[%s3 + $0x20] sm:$0xff]
  %v110 = vld [vmem:[%s3 + $0x28] sm:$0xff]
  %v111 = vadd.f32 %v99, %v105
  %v112 = vadd.f32 %v100, %v106
  %v113 = vadd.f32 %v101, %v107
  %v114 = vadd.f32 %v102, %v108
  %v115 = vadd.f32 %v103, %v109
  %v116 = vadd.f32 %v104, %v110
  %vm117 = vcmask 261120
  %v118 = vsel %vm117, %v97, 0.0
  %119 = vadd.xlane.f32.xlu0 %v118
  %v120 = vpop.xlane.xlu0 %119
  %v121 = vsel %vm117, %v98, 0.0
  %122 = vadd.xlane.f32.xlu0 %v121
  %v123 = vpop.xlane.xlu0 %122
  %v124 = vrcp.pop 32.0
  %v125 = vmul.f32 %v120, %v124
  %v126 = vmul.f32 %v123, %v124
  %v127 = vsub.f32 %v97, %v125
  %v128 = vsub.f32 %v98, %v126
  %v129 = vmul.f32 %v127, %v127
  %v130 = vmul.f32 %v128, %v128
  %v131 = vsel %vm117, %v129, 0.0
  %132 = vadd.xlane.f32.xlu0 %v131
  %v133 = vpop.xlane.xlu0 %132
  %v134 = vsel %vm117, %v130, 0.0
  %135 = vadd.xlane.f32.xlu0 %v134
  %v136 = vpop.xlane.xlu0 %135
  %v137 = vmul.f32 %v133, %v124
  %v138 = vmul.f32 %v136, %v124
  %v139 = vadd.f32 %v137, 1e-05
  %v140 = vadd.f32 %v138, 1e-05
  %v141 = vrsqrt.pop %v139
  %v142 = vrsqrt.pop %v140
  %v143 = vmul.f32 %v127, %v141
  %v144 = vmul.f32 %v128, %v142
  %v146 = vlaneseq
  %v147 = vshrl.u32 %v146, 7
  %v148 = vsub.s32 0, %v147
  %v149 = vrot.slane %v61, %v148
  %v151 = vmul.f32 %v143, %v149
  %v152 = vmul.f32 %v144, %v149
  %v154 = vlaneseq
  %v155 = vshrl.u32 %v154, 7
  %v156 = vsub.s32 0, %v155
  %v157 = vrot.slane %v62, %v156
  %v159 = vadd.f32 %v151, %v157
  %v160 = vadd.f32 %v152, %v157
  %v161 = vmul.f32 %v111, %v111
  %v162 = vmul.f32 %v112, %v112
  %v163 = vmul.f32 %v113, %v113
  %v164 = vmul.f32 %v114, %v114
  %v165 = vadd.f32 %v161, %v163
  %v166 = vadd.f32 %v162, %v164
  %v167 = vmul.f32 %v115, %v115
  %v168 = vmul.f32 %v116, %v116
  %v169 = vadd.f32 %v165, %v167
  %v170 = vadd.f32 %v166, %v168
  %v171 = vmax.f32 %v169, 1e-08
  %v172 = vmax.f32 %v170, 1e-08
  %vm173 = vcmask 31744
  %v174 = vsel %vm173, %v171, 0.0
  %175 = vadd.xlane.f32.xlu0 %v174
  %v176 = vpop.xlane.xlu0 %175
  %v177 = vsel %vm173, %v172, 0.0
  %178 = vadd.xlane.f32.xlu0 %v177
  %v179 = vpop.xlane.xlu0 %178
  %v180 = vrcp.pop 4.0
  %v181 = vmul.f32 %v176, %v180
  %v182 = vmul.f32 %v179, %v180
  %v183 = vrsqrt.pop %v181
  %v184 = vrsqrt.pop %v182
  %v185 = vmul.f32 %v111, %v183
  %v186 = vmul.f32 %v112, %v184
  %v187 = vmul.f32 %v113, %v183
  %v188 = vmul.f32 %v114, %v184
  %v189 = vmul.f32 %v115, %v183
  %v190 = vmul.f32 %v116, %v184
  %v192 = vsel %vm173, %v185, 0
  %v195 = vsel %vm173, %v186, 0
  %v198 = vsel %vm173, %v187, 0
  %v201 = vsel %vm173, %v188, 0
  %v204 = vsel %vm173, %v189, 0
  %v207 = vsel %vm173, %v190, 0
  %vm209 = vcmask 1043456
  %v211 = vsel %vm209, %v63, 0
  %213 = vmatprep.subr.mxu0 0.0
  %214 = vmatpush1.msra.mxu0 %v211
  %215 = vmatprep.subr.mxu0 0.0
  %216 = vmatpush1.msra.mxu0 0.0
  %217 = vmatprep.subr.mxu0 0.0
  %218 = vmatpush1.msra.mxu0 0.0
  %219 = vmatprep.subr.mxu0 0.0
  %220 = vmatpush1.msra.mxu0 0.0
  %221 = vmatprep.subr.mxu0 0.0
  %222 = vmatpush1.msra.mxu0 0.0
  %223 = vmatprep.subr.mxu0 0.0
  %224 = vmatpush1.msra.mxu0 0.0
  %225 = vmatprep.subr.mxu0 0.0
  %226 = vmatpush1.msra.mxu0 0.0
  %227 = vmatprep.subr.mxu0 0.0
  %228 = vmatpush1.msra.mxu0 0.0
  %229 = vmatprep.subr.mxu0 0.0
  %230 = vmatpush1.msra.mxu0 0.0
  %231 = vmatprep.subr.mxu0 0.0
  %232 = vmatpush1.msra.mxu0 0.0
  %233 = vmatprep.subr.mxu0 0.0
  %234 = vmatpush1.msra.mxu0 0.0
  %235 = vmatprep.subr.mxu0 0.0
  %236 = vmatpush1.msra.mxu0 0.0
  %237 = vmatprep.subr.mxu0 0.0
  %238 = vmatpush1.msra.mxu0 0.0
  %239 = vmatprep.subr.mxu0 0.0
  %240 = vmatpush1.msra.mxu0 0.0
  %241 = vmatprep.subr.mxu0 0.0
  %242 = vmatpush1.msra.mxu0 0.0
  %243 = vmatprep.subr.mxu0 0.0
  %244 = vmatpush1.msra.mxu0 0.0
  %245 = vmatprep.subr.mxu0 0.0
  %246 = vmatpush1.msra.mxu0 0.0
  %247 = vmatprep.subr.mxu0 0.0
  %248 = vmatpush1.msra.mxu0 0.0
  %249 = vmatprep.subr.mxu0 0.0
  %250 = vmatpush1.msra.mxu0 0.0
  %251 = vmatprep.subr.mxu0 0.0
  %252 = vmatpush1.msra.mxu0 0.0
  %253 = vmatprep.subr.mxu0 0.0
  %254 = vmatpush1.msra.mxu0 0.0
  %255 = vmatprep.subr.mxu0 0.0
  %256 = vmatpush1.msra.mxu0 0.0
  %257 = vmatprep.subr.mxu0 0.0
  %258 = vmatpush1.msra.mxu0 0.0
  %259 = vmatprep.subr.mxu0 0.0
  %260 = vmatpush1.msra.mxu0 0.0
  %261 = vmatprep.subr.mxu0 0.0
  %262 = vmatpush1.msra.mxu0 0.0
  %263 = vmatprep.subr.mxu0 0.0
  %264 = vmatpush1.msra.mxu0 0.0
  %265 = vmatprep.subr.mxu0 0.0
  %266 = vmatpush1.msra.mxu0 0.0
  %267 = vmatprep.subr.mxu0 0.0
  %268 = vmatpush1.msra.mxu0 0.0
  %269 = vmatprep.subr.mxu0 0.0
  %270 = vmatpush1.msra.mxu0 0.0
  %271 = vmatprep.subr.mxu0 0.0
  %272 = vmatpush1.msra.mxu0 0.0
  %273 = vmatprep.subr.mxu0 0.0
  %274 = vmatpush1.msra.mxu0 0.0
  %275 = vmatprep.subr.mxu0 0.0
  %276 = vmatpush1.msra.mxu0 0.0
  %277 = vmatprep.mubr.f32.mxu0 0.0
  %278 = vmatmul.mubr.f32.gmra.mrb[0].mxu0 %v192
  %v279 = vpop.f32.mrb[0].mxu0
  %v280 = vadd.f32 0.0, %v279
  %v281 = vpop.f32.mrb[0].mxu0
  %282 = vmatprep.mubr.f32.mxu0 0.0
  %283 = vmatmul.mubr.f32.gmra.mrb[0].mxu0 %v195
  %v284 = vpop.f32.mrb[0].mxu0
  %v285 = vadd.f32 0.0, %v284
  %v286 = vpop.f32.mrb[0].mxu0
  %287 = vmatprep.mubr.f32.mxu0 0.0
  %288 = vmatmul.mubr.f32.gmra.mrb[0].mxu0 %v198
  %v289 = vpop.f32.mrb[0].mxu0
  %v290 = vadd.f32 0.0, %v289
  %v291 = vpop.f32.mrb[0].mxu0
  %292 = vmatprep.mubr.f32.mxu0 0.0
  %293 = vmatmul.mubr.f32.gmra.mrb[0].mxu0 %v201
  %v294 = vpop.f32.mrb[0].mxu0
  %v295 = vadd.f32 0.0, %v294
  %v296 = vpop.f32.mrb[0].mxu0
  %297 = vmatprep.mubr.f32.mxu0 0.0
  %298 = vmatmul.mubr.f32.gmra.mrb[0].mxu0 %v204
  %v299 = vpop.f32.mrb[0].mxu0
  %v300 = vadd.f32 0.0, %v299
  %v301 = vpop.f32.mrb[0].mxu0
  %302 = vmatprep.mubr.f32.mxu0 0.0
  %303 = vmatmul.mubr.f32.gmra.mrb[0].mxu0 %v207
  %v304 = vpop.f32.mrb[0].mxu0
  %v305 = vadd.f32 0.0, %v304
  %v306 = vpop.f32.mrb[0].mxu0
  %307 = vdwg.mxu0
  %v308 = vmul.f32 %v280, %v280
  %v309 = vmul.f32 %v285, %v285
  %v310 = vmul.f32 %v290, %v290
  %v311 = vmul.f32 %v295, %v295
  %v312 = vadd.f32 %v308, %v310
  %v313 = vadd.f32 %v309, %v311
  %v314 = vmul.f32 %v300, %v300
  %v315 = vmul.f32 %v305, %v305
  %v316 = vadd.f32 %v312, %v314
  %v317 = vadd.f32 %v313, %v315
  %v318 = vmax.f32 %v316, 1e-08
  %v319 = vmax.f32 %v317, 1e-08
  %v320 = vrsqrt.pop %v318
  %v321 = vmul.f32 %v318, %v320
  %vm322 = vcmp.eq.f32.partialorder %v318, inf
  %v323 = vsel %vm322, %v318, %v321
  %vm324 = vcmp.eq.f32.partialorder %v318, 0.0
  %v325 = vand.u32 %v318, 2147483648
  %v326 = vsel %vm324, %v325, %v323
  %v327 = vrsqrt.pop %v319
  %v328 = vmul.f32 %v319, %v327
  %vm329 = vcmp.eq.f32.partialorder %v319, inf
  %v330 = vsel %vm329, %v319, %v328
  %vm331 = vcmp.eq.f32.partialorder %v319, 0.0
  %v332 = vand.u32 %v319, 2147483648
  %v333 = vsel %vm331, %v332, %v330
  %v335 = vsel %vm117, %v159, 0
  %v338 = vsel %vm117, %v160, 0
  %340 = vmatprep.subr.mxu0 0.0
  %341 = vmatpush1.msra.mxu0 %v64
  %342 = vmatprep.subr.mxu0 0.0
  %343 = vmatpush1.msra.mxu0 %v65
  %344 = vmatprep.subr.mxu0 0.0
  %345 = vmatpush1.msra.mxu0 %v66
  %346 = vmatprep.subr.mxu0 0.0
  %347 = vmatpush1.msra.mxu0 %v67
  %348 = vmatprep.subr.mxu0 0.0
  %349 = vmatpush1.msra.mxu0 0.0
  %350 = vmatprep.subr.mxu0 0.0
  %351 = vmatpush1.msra.mxu0 0.0
  %352 = vmatprep.subr.mxu0 0.0
  %353 = vmatpush1.msra.mxu0 0.0
  %354 = vmatprep.subr.mxu0 0.0
  %355 = vmatpush1.msra.mxu0 0.0
  %356 = vmatprep.subr.mxu0 0.0
  %357 = vmatpush1.msra.mxu0 0.0
  %358 = vmatprep.subr.mxu0 0.0
  %359 = vmatpush1.msra.mxu0 0.0
  %360 = vmatprep.subr.mxu0 0.0
  %361 = vmatpush1.msra.mxu0 0.0
  %362 = vmatprep.subr.mxu0 0.0
  %363 = vmatpush1.msra.mxu0 0.0
  %364 = vmatprep.subr.mxu0 0.0
  %365 = vmatpush1.msra.mxu0 0.0
  %366 = vmatprep.subr.mxu0 0.0
  %367 = vmatpush1.msra.mxu0 0.0
  %368 = vmatprep.subr.mxu0 0.0
  %369 = vmatpush1.msra.mxu0 0.0
  %370 = vmatprep.subr.mxu0 0.0
  %371 = vmatpush1.msra.mxu0 0.0
  %372 = vmatprep.subr.mxu0 0.0
  %373 = vmatpush1.msra.mxu0 0.0
  %374 = vmatprep.subr.mxu0 0.0
  %375 = vmatpush1.msra.mxu0 0.0
  %376 = vmatprep.subr.mxu0 0.0
  %377 = vmatpush1.msra.mxu0 0.0
  %378 = vmatprep.subr.mxu0 0.0
  %379 = vmatpush1.msra.mxu0 0.0
  %380 = vmatprep.subr.mxu0 0.0
  %381 = vmatpush1.msra.mxu0 0.0
  %382 = vmatprep.subr.mxu0 0.0
  %383 = vmatpush1.msra.mxu0 0.0
  %384 = vmatprep.subr.mxu0 0.0
  %385 = vmatpush1.msra.mxu0 0.0
  %386 = vmatprep.subr.mxu0 0.0
  %387 = vmatpush1.msra.mxu0 0.0
  %388 = vmatprep.subr.mxu0 0.0
  %389 = vmatpush1.msra.mxu0 0.0
  %390 = vmatprep.subr.mxu0 0.0
  %391 = vmatpush1.msra.mxu0 0.0
  %392 = vmatprep.subr.mxu0 0.0
  %393 = vmatpush1.msra.mxu0 0.0
  %394 = vmatprep.subr.mxu0 0.0
  %395 = vmatpush1.msra.mxu0 0.0
  %396 = vmatprep.subr.mxu0 0.0
  %397 = vmatpush1.msra.mxu0 0.0
  %398 = vmatprep.subr.mxu0 0.0
  %399 = vmatpush1.msra.mxu0 0.0
  %400 = vmatprep.subr.mxu0 0.0
  %401 = vmatpush1.msra.mxu0 0.0
  %402 = vmatprep.subr.mxu0 0.0
  %403 = vmatpush1.msra.mxu0 0.0
  %404 = vmatprep.mubr.f32.mxu0 0.0
  %405 = vmatmul.mubr.f32.gmra.mrb[0].mxu0 %v335
  %v406 = vpop.f32.mrb[0].mxu0
  %v407 = vadd.f32 0.0, %v406
  %v408 = vpop.f32.mrb[0].mxu0
  %409 = vmatprep.mubr.f32.mxu0 0.0
  %410 = vmatmul.mubr.f32.gmra.mrb[0].mxu0 %v338
  %v411 = vpop.f32.mrb[0].mxu0
  %v412 = vadd.f32 0.0, %v411
  %v413 = vpop.f32.mrb[0].mxu0
  %414 = vdwg.mxu0
  %v416 = vlaneseq
  %v417 = vshrl.u32 %v416, 7
  %v418 = vsub.s32 0, %v417
  %v419 = vrot.slane %v69, %v418
  %v421 = vadd.f32 %v419, %v407
  %v422 = vadd.f32 %v419, %v412
  %vm423 = vcmask 64512
  %v425 = vsel %vm423, %v326, 0
  %v428 = vsel %vm423, %v333, 0
  %430 = vmatprep.subr.mxu0 0.0
  %431 = vmatpush1.msra.mxu0 %v68
  %432 = vmatprep.subr.mxu0 0.0
  %433 = vmatpush1.msra.mxu0 0.0
  %434 = vmatprep.subr.mxu0 0.0
  %435 = vmatpush1.msra.mxu0 0.0
  %436 = vmatprep.subr.mxu0 0.0
  %437 = vmatpush1.msra.mxu0 0.0
  %438 = vmatprep.subr.mxu0 0.0
  %439 = vmatpush1.msra.mxu0 0.0
  %440 = vmatprep.subr.mxu0 0.0
  %441 = vmatpush1.msra.mxu0 0.0
  %442 = vmatprep.subr.mxu0 0.0
  %443 = vmatpush1.msra.mxu0 0.0
  %444 = vmatprep.subr.mxu0 0.0
  %445 = vmatpush1.msra.mxu0 0.0
  %446 = vmatprep.subr.mxu0 0.0
  %447 = vmatpush1.msra.mxu0 0.0
  %448 = vmatprep.subr.mxu0 0.0
  %449 = vmatpush1.msra.mxu0 0.0
  %450 = vmatprep.subr.mxu0 0.0
  %451 = vmatpush1.msra.mxu0 0.0
  %452 = vmatprep.subr.mxu0 0.0
  %453 = vmatpush1.msra.mxu0 0.0
  %454 = vmatprep.subr.mxu0 0.0
  %455 = vmatpush1.msra.mxu0 0.0
  %456 = vmatprep.subr.mxu0 0.0
  %457 = vmatpush1.msra.mxu0 0.0
  %458 = vmatprep.subr.mxu0 0.0
  %459 = vmatpush1.msra.mxu0 0.0
  %460 = vmatprep.subr.mxu0 0.0
  %461 = vmatpush1.msra.mxu0 0.0
  %462 = vmatprep.subr.mxu0 0.0
  %463 = vmatpush1.msra.mxu0 0.0
  %464 = vmatprep.subr.mxu0 0.0
  %465 = vmatpush1.msra.mxu0 0.0
  %466 = vmatprep.subr.mxu0 0.0
  %467 = vmatpush1.msra.mxu0 0.0
  %468 = vmatprep.subr.mxu0 0.0
  %469 = vmatpush1.msra.mxu0 0.0
  %470 = vmatprep.subr.mxu0 0.0
  %471 = vmatpush1.msra.mxu0 0.0
  %472 = vmatprep.subr.mxu0 0.0
  %473 = vmatpush1.msra.mxu0 0.0
  %474 = vmatprep.subr.mxu0 0.0
  %475 = vmatpush1.msra.mxu0 0.0
  %476 = vmatprep.subr.mxu0 0.0
  %477 = vmatpush1.msra.mxu0 0.0
  %478 = vmatprep.subr.mxu0 0.0
  %479 = vmatpush1.msra.mxu0 0.0
  %480 = vmatprep.subr.mxu0 0.0
  %481 = vmatpush1.msra.mxu0 0.0
  %482 = vmatprep.subr.mxu0 0.0
  %483 = vmatpush1.msra.mxu0 0.0
  %484 = vmatprep.subr.mxu0 0.0
  %485 = vmatpush1.msra.mxu0 0.0
  %486 = vmatprep.subr.mxu0 0.0
  %487 = vmatpush1.msra.mxu0 0.0
  %488 = vmatprep.subr.mxu0 0.0
  %489 = vmatpush1.msra.mxu0 0.0
  %490 = vmatprep.subr.mxu0 0.0
  %491 = vmatpush1.msra.mxu0 0.0
  %492 = vmatprep.subr.mxu0 0.0
  %493 = vmatpush1.msra.mxu0 0.0
  %494 = vmatprep.mubr.f32.mxu0 0.0
  %495 = vmatmul.mubr.f32.gmra.mrb[0].mxu0 %v425
  %v496 = vpop.f32.mrb[0].mxu0
  %v497 = vadd.f32 0.0, %v496
  %v498 = vpop.f32.mrb[0].mxu0
  %499 = vmatprep.mubr.f32.mxu0 0.0
  %500 = vmatmul.mubr.f32.gmra.mrb[0].mxu0 %v428
  %v501 = vpop.f32.mrb[0].mxu0
  %v502 = vadd.f32 0.0, %v501
  %v503 = vpop.f32.mrb[0].mxu0
  %504 = vdwg.mxu0
  %v505 = vadd.f32 %v421, %v497
  %v506 = vadd.f32 %v422, %v502
  %v508 = vsel %vm423, %v280, 0
  %v511 = vsel %vm423, %v285, 0
  %v514 = vsel %vm423, %v290, 0
  %v517 = vsel %vm423, %v295, 0
  %v520 = vsel %vm423, %v300, 0
  %v523 = vsel %vm423, %v305, 0
  %525 = vmatprep.subr.mxu0 0.0
  %526 = vmatpush1.msra.mxu0 %v70
  %527 = vmatprep.subr.mxu0 0.0
  %528 = vmatpush1.msra.mxu0 0.0
  %529 = vmatprep.subr.mxu0 0.0
  %530 = vmatpush1.msra.mxu0 0.0
  %531 = vmatprep.subr.mxu0 0.0
  %532 = vmatpush1.msra.mxu0 0.0
  %533 = vmatprep.subr.mxu0 0.0
  %534 = vmatpush1.msra.mxu0 0.0
  %535 = vmatprep.subr.mxu0 0.0
  %536 = vmatpush1.msra.mxu0 0.0
  %537 = vmatprep.subr.mxu0 0.0
  %538 = vmatpush1.msra.mxu0 0.0
  %539 = vmatprep.subr.mxu0 0.0
  %540 = vmatpush1.msra.mxu0 0.0
  %541 = vmatprep.subr.mxu0 0.0
  %542 = vmatpush1.msra.mxu0 0.0
  %543 = vmatprep.subr.mxu0 0.0
  %544 = vmatpush1.msra.mxu0 0.0
  %545 = vmatprep.subr.mxu0 0.0
  %546 = vmatpush1.msra.mxu0 0.0
  %547 = vmatprep.subr.mxu0 0.0
  %548 = vmatpush1.msra.mxu0 0.0
  %549 = vmatprep.subr.mxu0 0.0
  %550 = vmatpush1.msra.mxu0 0.0
  %551 = vmatprep.subr.mxu0 0.0
  %552 = vmatpush1.msra.mxu0 0.0
  %553 = vmatprep.subr.mxu0 0.0
  %554 = vmatpush1.msra.mxu0 0.0
  %555 = vmatprep.subr.mxu0 0.0
  %556 = vmatpush1.msra.mxu0 0.0
  %557 = vmatprep.subr.mxu0 0.0
  %558 = vmatpush1.msra.mxu0 0.0
  %559 = vmatprep.subr.mxu0 0.0
  %560 = vmatpush1.msra.mxu0 0.0
  %561 = vmatprep.subr.mxu0 0.0
  %562 = vmatpush1.msra.mxu0 0.0
  %563 = vmatprep.subr.mxu0 0.0
  %564 = vmatpush1.msra.mxu0 0.0
  %565 = vmatprep.subr.mxu0 0.0
  %566 = vmatpush1.msra.mxu0 0.0
  %567 = vmatprep.subr.mxu0 0.0
  %568 = vmatpush1.msra.mxu0 0.0
  %569 = vmatprep.subr.mxu0 0.0
  %570 = vmatpush1.msra.mxu0 0.0
  %571 = vmatprep.subr.mxu0 0.0
  %572 = vmatpush1.msra.mxu0 0.0
  %573 = vmatprep.subr.mxu0 0.0
  %574 = vmatpush1.msra.mxu0 0.0
  %575 = vmatprep.subr.mxu0 0.0
  %576 = vmatpush1.msra.mxu0 0.0
  %577 = vmatprep.subr.mxu0 0.0
  %578 = vmatpush1.msra.mxu0 0.0
  %579 = vmatprep.subr.mxu0 0.0
  %580 = vmatpush1.msra.mxu0 0.0
  %581 = vmatprep.subr.mxu0 0.0
  %582 = vmatpush1.msra.mxu0 0.0
  %583 = vmatprep.subr.mxu0 0.0
  %584 = vmatpush1.msra.mxu0 0.0
  %585 = vmatprep.subr.mxu0 0.0
  %586 = vmatpush1.msra.mxu0 0.0
  %587 = vmatprep.subr.mxu0 0.0
  %588 = vmatpush1.msra.mxu0 0.0
  %589 = vmatprep.mubr.f32.mxu0 0.0
  %590 = vmatmul.mubr.f32.gmra.mrb[0].mxu0 %v508
  %v591 = vpop.f32.mrb[0].mxu0
  %v592 = vadd.f32 0.0, %v591
  %v593 = vpop.f32.mrb[0].mxu0
  %594 = vmatprep.mubr.f32.mxu0 0.0
  %595 = vmatmul.mubr.f32.gmra.mrb[0].mxu0 %v511
  %v596 = vpop.f32.mrb[0].mxu0
  %v597 = vadd.f32 0.0, %v596
  %v598 = vpop.f32.mrb[0].mxu0
  %599 = vmatprep.mubr.f32.mxu0 0.0
  %600 = vmatmul.mubr.f32.gmra.mrb[0].mxu0 %v514
  %v601 = vpop.f32.mrb[0].mxu0
  %v602 = vadd.f32 0.0, %v601
  %v603 = vpop.f32.mrb[0].mxu0
  %604 = vmatprep.mubr.f32.mxu0 0.0
  %605 = vmatmul.mubr.f32.gmra.mrb[0].mxu0 %v517
  %v606 = vpop.f32.mrb[0].mxu0
  %v607 = vadd.f32 0.0, %v606
  %v608 = vpop.f32.mrb[0].mxu0
  %609 = vmatprep.mubr.f32.mxu0 0.0
  %610 = vmatmul.mubr.f32.gmra.mrb[0].mxu0 %v520
  %v611 = vpop.f32.mrb[0].mxu0
  %v612 = vadd.f32 0.0, %v611
  %v613 = vpop.f32.mrb[0].mxu0
  %614 = vmatprep.mubr.f32.mxu0 0.0
  %615 = vmatmul.mubr.f32.gmra.mrb[0].mxu0 %v523
  %v616 = vpop.f32.mrb[0].mxu0
  %v617 = vadd.f32 0.0, %v616
  %v618 = vpop.f32.mrb[0].mxu0
  %619 = vdwg.mxu0
  %v620 = vmul.f32 %v592, %v592
  %v621 = vmul.f32 %v597, %v597
  %v622 = vmul.f32 %v602, %v602
  %v623 = vmul.f32 %v607, %v607
  %v624 = vadd.f32 %v620, %v622
  %v625 = vadd.f32 %v621, %v623
  %v626 = vmul.f32 %v612, %v612
  %v627 = vmul.f32 %v617, %v617
  %v628 = vadd.f32 %v624, %v626
  %v629 = vadd.f32 %v625, %v627
  %v630 = vmax.f32 %v628, 1e-08
  %v631 = vmax.f32 %v629, 1e-08
  %v632 = vrsqrt.pop %v630
  %v633 = vmul.f32 %v630, %v632
  %vm634 = vcmp.eq.f32.partialorder %v630, inf
  %v635 = vsel %vm634, %v630, %v633
  %vm636 = vcmp.eq.f32.partialorder %v630, 0.0
  %v637 = vand.u32 %v630, 2147483648
  %v638 = vsel %vm636, %v637, %v635
  %v639 = vrsqrt.pop %v631
  %v640 = vmul.f32 %v631, %v639
  %vm641 = vcmp.eq.f32.partialorder %v631, inf
  %v642 = vsel %vm641, %v631, %v640
  %vm643 = vcmp.eq.f32.partialorder %v631, 0.0
  %v644 = vand.u32 %v631, 2147483648
  %v645 = vsel %vm643, %v644, %v642
  %v646 = vxor.u32 %v638, 2147483648
  %v647 = vxor.u32 %v645, 2147483648
  %v648 = vmul.f32 %v646, 1.442695
  %v649 = vpow.pop %v648
  %v650 = vmul.f32 %v647, 1.442695
  %v651 = vpow.pop %v650
  %v652 = vadd.f32 %v649, 1.0
  %v653 = vadd.f32 %v651, 1.0
  %v654 = vrcp.pop %v652
  %v655 = vmul.f32 1.0, %v654
  %v656 = vrcp.pop %v653
  %v657 = vmul.f32 1.0, %v656
  %v658 = vmul.f32 %v592, %v655
  %v659 = vmul.f32 %v597, %v657
  %v660 = vmul.f32 %v602, %v655
  %v661 = vmul.f32 %v607, %v657
  %v662 = vmul.f32 %v612, %v655
  %v663 = vmul.f32 %v617, %v657
  %v664 = vmax.f32 %v505, 0.0
  %v665 = vmax.f32 %v506, 0.0
  %v667 = vsel %vm423, %v658, 0
  %v670 = vsel %vm423, %v659, 0
  %v673 = vsel %vm423, %v660, 0
  %v676 = vsel %vm423, %v661, 0
  %v679 = vsel %vm423, %v662, 0
  %v682 = vsel %vm423, %v663, 0
  %684 = vmatprep.subr.mxu0 0.0
  %685 = vmatpush1.msra.mxu0 %v71
  %686 = vmatprep.subr.mxu0 0.0
  %687 = vmatpush1.msra.mxu0 0.0
  %688 = vmatprep.subr.mxu0 0.0
  %689 = vmatpush1.msra.mxu0 0.0
  %690 = vmatprep.subr.mxu0 0.0
  %691 = vmatpush1.msra.mxu0 0.0
  %692 = vmatprep.subr.mxu0 0.0
  %693 = vmatpush1.msra.mxu0 0.0
  %694 = vmatprep.subr.mxu0 0.0
  %695 = vmatpush1.msra.mxu0 0.0
  %696 = vmatprep.subr.mxu0 0.0
  %697 = vmatpush1.msra.mxu0 0.0
  %698 = vmatprep.subr.mxu0 0.0
  %699 = vmatpush1.msra.mxu0 0.0
  %700 = vmatprep.subr.mxu0 0.0
  %701 = vmatpush1.msra.mxu0 0.0
  %702 = vmatprep.subr.mxu0 0.0
  %703 = vmatpush1.msra.mxu0 0.0
  %704 = vmatprep.subr.mxu0 0.0
  %705 = vmatpush1.msra.mxu0 0.0
  %706 = vmatprep.subr.mxu0 0.0
  %707 = vmatpush1.msra.mxu0 0.0
  %708 = vmatprep.subr.mxu0 0.0
  %709 = vmatpush1.msra.mxu0 0.0
  %710 = vmatprep.subr.mxu0 0.0
  %711 = vmatpush1.msra.mxu0 0.0
  %712 = vmatprep.subr.mxu0 0.0
  %713 = vmatpush1.msra.mxu0 0.0
  %714 = vmatprep.subr.mxu0 0.0
  %715 = vmatpush1.msra.mxu0 0.0
  %716 = vmatprep.subr.mxu0 0.0
  %717 = vmatpush1.msra.mxu0 0.0
  %718 = vmatprep.subr.mxu0 0.0
  %719 = vmatpush1.msra.mxu0 0.0
  %720 = vmatprep.subr.mxu0 0.0
  %721 = vmatpush1.msra.mxu0 0.0
  %722 = vmatprep.subr.mxu0 0.0
  %723 = vmatpush1.msra.mxu0 0.0
  %724 = vmatprep.subr.mxu0 0.0
  %725 = vmatpush1.msra.mxu0 0.0
  %726 = vmatprep.subr.mxu0 0.0
  %727 = vmatpush1.msra.mxu0 0.0
  %728 = vmatprep.subr.mxu0 0.0
  %729 = vmatpush1.msra.mxu0 0.0
  %730 = vmatprep.subr.mxu0 0.0
  %731 = vmatpush1.msra.mxu0 0.0
  %732 = vmatprep.subr.mxu0 0.0
  %733 = vmatpush1.msra.mxu0 0.0
  %734 = vmatprep.subr.mxu0 0.0
  %735 = vmatpush1.msra.mxu0 0.0
  %736 = vmatprep.subr.mxu0 0.0
  %737 = vmatpush1.msra.mxu0 0.0
  %738 = vmatprep.subr.mxu0 0.0
  %739 = vmatpush1.msra.mxu0 0.0
  %740 = vmatprep.subr.mxu0 0.0
  %741 = vmatpush1.msra.mxu0 0.0
  %742 = vmatprep.subr.mxu0 0.0
  %743 = vmatpush1.msra.mxu0 0.0
  %744 = vmatprep.subr.mxu0 0.0
  %745 = vmatpush1.msra.mxu0 0.0
  %746 = vmatprep.subr.mxu0 0.0
  %747 = vmatpush1.msra.mxu0 0.0
  %748 = vmatprep.mubr.f32.mxu0 0.0
  %749 = vmatmul.mubr.f32.gmra.mrb[0].mxu0 %v667
  %v750 = vpop.f32.mrb[0].mxu0
  %v751 = vadd.f32 0.0, %v750
  %v752 = vpop.f32.mrb[0].mxu0
  %753 = vmatprep.mubr.f32.mxu0 0.0
  %754 = vmatmul.mubr.f32.gmra.mrb[0].mxu0 %v670
  %v755 = vpop.f32.mrb[0].mxu0
  %v756 = vadd.f32 0.0, %v755
  %v757 = vpop.f32.mrb[0].mxu0
  %758 = vmatprep.mubr.f32.mxu0 0.0
  %759 = vmatmul.mubr.f32.gmra.mrb[0].mxu0 %v673
  %v760 = vpop.f32.mrb[0].mxu0
  %v761 = vadd.f32 0.0, %v760
  %v762 = vpop.f32.mrb[0].mxu0
  %763 = vmatprep.mubr.f32.mxu0 0.0
  %764 = vmatmul.mubr.f32.gmra.mrb[0].mxu0 %v676
  %v765 = vpop.f32.mrb[0].mxu0
  %v766 = vadd.f32 0.0, %v765
  %v767 = vpop.f32.mrb[0].mxu0
  %768 = vmatprep.mubr.f32.mxu0 0.0
  %769 = vmatmul.mubr.f32.gmra.mrb[0].mxu0 %v679
  %v770 = vpop.f32.mrb[0].mxu0
  %v771 = vadd.f32 0.0, %v770
  %v772 = vpop.f32.mrb[0].mxu0
  %773 = vmatprep.mubr.f32.mxu0 0.0
  %774 = vmatmul.mubr.f32.gmra.mrb[0].mxu0 %v682
  %v775 = vpop.f32.mrb[0].mxu0
  %v776 = vadd.f32 0.0, %v775
  %v777 = vpop.f32.mrb[0].mxu0
  %778 = vdwg.mxu0
  %v779 = vmul.f32 %v751, %v751
  %v780 = vmul.f32 %v756, %v756
  %v781 = vmul.f32 %v761, %v761
  %v782 = vmul.f32 %v766, %v766
  %v783 = vadd.f32 %v779, %v781
  %v784 = vadd.f32 %v780, %v782
  %v785 = vmul.f32 %v771, %v771
  %v786 = vmul.f32 %v776, %v776
  %v787 = vadd.f32 %v783, %v785
  %v788 = vadd.f32 %v784, %v786
  %v789 = vmax.f32 %v787, 1e-08
  %v790 = vmax.f32 %v788, 1e-08
  %v791 = vrsqrt.pop %v789
  %v792 = vmul.f32 %v789, %v791
  %vm793 = vcmp.eq.f32.partialorder %v789, inf
  %v794 = vsel %vm793, %v789, %v792
  %vm795 = vcmp.eq.f32.partialorder %v789, 0.0
  %v796 = vand.u32 %v789, 2147483648
  %v797 = vsel %vm795, %v796, %v794
  %v798 = vrsqrt.pop %v790
  %v799 = vmul.f32 %v790, %v798
  %vm800 = vcmp.eq.f32.partialorder %v790, inf
  %v801 = vsel %vm800, %v790, %v799
  %vm802 = vcmp.eq.f32.partialorder %v790, 0.0
  %v803 = vand.u32 %v790, 2147483648
  %v804 = vsel %vm802, %v803, %v801
  %805 = vmatprep.subr.mxu0 0.0
  %806 = vmatpush1.msra.mxu0 %v72
  %807 = vmatprep.subr.mxu0 0.0
  %808 = vmatpush1.msra.mxu0 %v73
  %809 = vmatprep.subr.mxu0 0.0
  %810 = vmatpush1.msra.mxu0 %v74
  %811 = vmatprep.subr.mxu0 0.0
  %812 = vmatpush1.msra.mxu0 %v75
  %813 = vmatprep.subr.mxu0 0.0
  %814 = vmatpush1.msra.mxu0 %v76
  %815 = vmatprep.subr.mxu0 0.0
  %816 = vmatpush1.msra.mxu0 %v77
  %817 = vmatprep.subr.mxu0 0.0
  %818 = vmatpush1.msra.mxu0 %v78
  %819 = vmatprep.subr.mxu0 0.0
  %820 = vmatpush1.msra.mxu0 %v79
  %821 = vmatprep.subr.mxu0 0.0
  %822 = vmatpush1.msra.mxu0 %v80
  %823 = vmatprep.subr.mxu0 0.0
  %824 = vmatpush1.msra.mxu0 %v81
  %825 = vmatprep.subr.mxu0 0.0
  %826 = vmatpush1.msra.mxu0 %v82
  %827 = vmatprep.subr.mxu0 0.0
  %828 = vmatpush1.msra.mxu0 %v83
  %829 = vmatprep.subr.mxu0 0.0
  %830 = vmatpush1.msra.mxu0 %v84
  %831 = vmatprep.subr.mxu0 0.0
  %832 = vmatpush1.msra.mxu0 %v85
  %833 = vmatprep.subr.mxu0 0.0
  %834 = vmatpush1.msra.mxu0 %v86
  %835 = vmatprep.subr.mxu0 0.0
  %836 = vmatpush1.msra.mxu0 %v87
  %837 = vmatprep.subr.mxu0 0.0
  %838 = vmatpush1.msra.mxu0 0.0
  %839 = vmatprep.subr.mxu0 0.0
  %840 = vmatpush1.msra.mxu0 0.0
  %841 = vmatprep.subr.mxu0 0.0
  %842 = vmatpush1.msra.mxu0 0.0
  %843 = vmatprep.subr.mxu0 0.0
  %844 = vmatpush1.msra.mxu0 0.0
  %845 = vmatprep.subr.mxu0 0.0
  %846 = vmatpush1.msra.mxu0 0.0
  %847 = vmatprep.subr.mxu0 0.0
  %848 = vmatpush1.msra.mxu0 0.0
  %849 = vmatprep.subr.mxu0 0.0
  %850 = vmatpush1.msra.mxu0 0.0
  %851 = vmatprep.subr.mxu0 0.0
  %852 = vmatpush1.msra.mxu0 0.0
  %853 = vmatprep.subr.mxu0 0.0
  %854 = vmatpush1.msra.mxu0 0.0
  %855 = vmatprep.subr.mxu0 0.0
  %856 = vmatpush1.msra.mxu0 0.0
  %857 = vmatprep.subr.mxu0 0.0
  %858 = vmatpush1.msra.mxu0 0.0
  %859 = vmatprep.subr.mxu0 0.0
  %860 = vmatpush1.msra.mxu0 0.0
  %861 = vmatprep.subr.mxu0 0.0
  %862 = vmatpush1.msra.mxu0 0.0
  %863 = vmatprep.subr.mxu0 0.0
  %864 = vmatpush1.msra.mxu0 0.0
  %865 = vmatprep.subr.mxu0 0.0
  %866 = vmatpush1.msra.mxu0 0.0
  %867 = vmatprep.subr.mxu0 0.0
  %868 = vmatpush1.msra.mxu0 0.0
  %869 = vmatprep.mubr.f32.mxu0 0.0
  %870 = vmatmul.mubr.f32.gmra.mrb[0].mxu0 %v664
  %v871 = vpop.f32.mrb[0].mxu0
  %v872 = vadd.f32 0.0, %v871
  %v873 = vpop.f32.mrb[0].mxu0
  %874 = vmatprep.mubr.f32.mxu0 0.0
  %875 = vmatmul.mubr.f32.gmra.mrb[0].mxu0 %v665
  %v876 = vpop.f32.mrb[0].mxu0
  %v877 = vadd.f32 0.0, %v876
  %v878 = vpop.f32.mrb[0].mxu0
  %879 = vdwg.mxu0
  %v881 = vlaneseq
  %v882 = vshrl.u32 %v881, 7
  %v883 = vsub.s32 0, %v882
  %v884 = vrot.slane %v89, %v883
  %v886 = vadd.f32 %v884, %v872
  %v887 = vadd.f32 %v884, %v877
  %v889 = vsel %vm423, %v797, 0
  %v892 = vsel %vm423, %v804, 0
  %894 = vmatprep.subr.mxu0 0.0
  %895 = vmatpush1.msra.mxu0 %v88
  %896 = vmatprep.subr.mxu0 0.0
  %897 = vmatpush1.msra.mxu0 0.0
  %898 = vmatprep.subr.mxu0 0.0
  %899 = vmatpush1.msra.mxu0 0.0
  %900 = vmatprep.subr.mxu0 0.0
  %901 = vmatpush1.msra.mxu0 0.0
  %902 = vmatprep.subr.mxu0 0.0
  %903 = vmatpush1.msra.mxu0 0.0
  %904 = vmatprep.subr.mxu0 0.0
  %905 = vmatpush1.msra.mxu0 0.0
  %906 = vmatprep.subr.mxu0 0.0
  %907 = vmatpush1.msra.mxu0 0.0
  %908 = vmatprep.subr.mxu0 0.0
  %909 = vmatpush1.msra.mxu0 0.0
  %910 = vmatprep.subr.mxu0 0.0
  %911 = vmatpush1.msra.mxu0 0.0
  %912 = vmatprep.subr.mxu0 0.0
  %913 = vmatpush1.msra.mxu0 0.0
  %914 = vmatprep.subr.mxu0 0.0
  %915 = vmatpush1.msra.mxu0 0.0
  %916 = vmatprep.subr.mxu0 0.0
  %917 = vmatpush1.msra.mxu0 0.0
  %918 = vmatprep.subr.mxu0 0.0
  %919 = vmatpush1.msra.mxu0 0.0
  %920 = vmatprep.subr.mxu0 0.0
  %921 = vmatpush1.msra.mxu0 0.0
  %922 = vmatprep.subr.mxu0 0.0
  %923 = vmatpush1.msra.mxu0 0.0
  %924 = vmatprep.subr.mxu0 0.0
  %925 = vmatpush1.msra.mxu0 0.0
  %926 = vmatprep.subr.mxu0 0.0
  %927 = vmatpush1.msra.mxu0 0.0
  %928 = vmatprep.subr.mxu0 0.0
  %929 = vmatpush1.msra.mxu0 0.0
  %930 = vmatprep.subr.mxu0 0.0
  %931 = vmatpush1.msra.mxu0 0.0
  %932 = vmatprep.subr.mxu0 0.0
  %933 = vmatpush1.msra.mxu0 0.0
  %934 = vmatprep.subr.mxu0 0.0
  %935 = vmatpush1.msra.mxu0 0.0
  %936 = vmatprep.subr.mxu0 0.0
  %937 = vmatpush1.msra.mxu0 0.0
  %938 = vmatprep.subr.mxu0 0.0
  %939 = vmatpush1.msra.mxu0 0.0
  %940 = vmatprep.subr.mxu0 0.0
  %941 = vmatpush1.msra.mxu0 0.0
  %942 = vmatprep.subr.mxu0 0.0
  %943 = vmatpush1.msra.mxu0 0.0
  %944 = vmatprep.subr.mxu0 0.0
  %945 = vmatpush1.msra.mxu0 0.0
  %946 = vmatprep.subr.mxu0 0.0
  %947 = vmatpush1.msra.mxu0 0.0
  %948 = vmatprep.subr.mxu0 0.0
  %949 = vmatpush1.msra.mxu0 0.0
  %950 = vmatprep.subr.mxu0 0.0
  %951 = vmatpush1.msra.mxu0 0.0
  %952 = vmatprep.subr.mxu0 0.0
  %953 = vmatpush1.msra.mxu0 0.0
  %954 = vmatprep.subr.mxu0 0.0
  %955 = vmatpush1.msra.mxu0 0.0
  %956 = vmatprep.subr.mxu0 0.0
  %957 = vmatpush1.msra.mxu0 0.0
  %958 = vmatprep.mubr.f32.mxu0 0.0
  %959 = vmatmul.mubr.f32.gmra.mrb[0].mxu0 %v889
  %v960 = vpop.f32.mrb[0].mxu0
  %v961 = vadd.f32 0.0, %v960
  %v962 = vpop.f32.mrb[0].mxu0
  %963 = vmatprep.mubr.f32.mxu0 0.0
  %964 = vmatmul.mubr.f32.gmra.mrb[0].mxu0 %v892
  %v965 = vpop.f32.mrb[0].mxu0
  %v966 = vadd.f32 0.0, %v965
  %v967 = vpop.f32.mrb[0].mxu0
  %968 = vdwg.mxu0
  %v969 = vadd.f32 %v886, %v961
  %v970 = vadd.f32 %v887, %v966
  %v972 = vsel %vm423, %v751, 0
  %v975 = vsel %vm423, %v756, 0
  %v978 = vsel %vm423, %v761, 0
  %v981 = vsel %vm423, %v766, 0
  %v984 = vsel %vm423, %v771, 0
  %v987 = vsel %vm423, %v776, 0
  %989 = vmatprep.subr.mxu0 0.0
  %990 = vmatpush1.msra.mxu0 %v90
  %991 = vmatprep.subr.mxu0 0.0
  %992 = vmatpush1.msra.mxu0 0.0
  %993 = vmatprep.subr.mxu0 0.0
  %994 = vmatpush1.msra.mxu0 0.0
  %995 = vmatprep.subr.mxu0 0.0
  %996 = vmatpush1.msra.mxu0 0.0
  %997 = vmatprep.subr.mxu0 0.0
  %998 = vmatpush1.msra.mxu0 0.0
  %999 = vmatprep.subr.mxu0 0.0
  %1000 = vmatpush1.msra.mxu0 0.0
  %1001 = vmatprep.subr.mxu0 0.0
  %1002 = vmatpush1.msra.mxu0 0.0
  %1003 = vmatprep.subr.mxu0 0.0
  %1004 = vmatpush1.msra.mxu0 0.0
  %1005 = vmatprep.subr.mxu0 0.0
  %1006 = vmatpush1.msra.mxu0 0.0
  %1007 = vmatprep.subr.mxu0 0.0
  %1008 = vmatpush1.msra.mxu0 0.0
  %1009 = vmatprep.subr.mxu0 0.0
  %1010 = vmatpush1.msra.mxu0 0.0
  %1011 = vmatprep.subr.mxu0 0.0
  %1012 = vmatpush1.msra.mxu0 0.0
  %1013 = vmatprep.subr.mxu0 0.0
  %1014 = vmatpush1.msra.mxu0 0.0
  %1015 = vmatprep.subr.mxu0 0.0
  %1016 = vmatpush1.msra.mxu0 0.0
  %1017 = vmatprep.subr.mxu0 0.0
  %1018 = vmatpush1.msra.mxu0 0.0
  %1019 = vmatprep.subr.mxu0 0.0
  %1020 = vmatpush1.msra.mxu0 0.0
  %1021 = vmatprep.subr.mxu0 0.0
  %1022 = vmatpush1.msra.mxu0 0.0
  %1023 = vmatprep.subr.mxu0 0.0
  %1024 = vmatpush1.msra.mxu0 0.0
  %1025 = vmatprep.subr.mxu0 0.0
  %1026 = vmatpush1.msra.mxu0 0.0
  %1027 = vmatprep.subr.mxu0 0.0
  %1028 = vmatpush1.msra.mxu0 0.0
  %1029 = vmatprep.subr.mxu0 0.0
  %1030 = vmatpush1.msra.mxu0 0.0
  %1031 = vmatprep.subr.mxu0 0.0
  %1032 = vmatpush1.msra.mxu0 0.0
  %1033 = vmatprep.subr.mxu0 0.0
  %1034 = vmatpush1.msra.mxu0 0.0
  %1035 = vmatprep.subr.mxu0 0.0
  %1036 = vmatpush1.msra.mxu0 0.0
  %1037 = vmatprep.subr.mxu0 0.0
  %1038 = vmatpush1.msra.mxu0 0.0
  %1039 = vmatprep.subr.mxu0 0.0
  %1040 = vmatpush1.msra.mxu0 0.0
  %1041 = vmatprep.subr.mxu0 0.0
  %1042 = vmatpush1.msra.mxu0 0.0
  %1043 = vmatprep.subr.mxu0 0.0
  %1044 = vmatpush1.msra.mxu0 0.0
  %1045 = vmatprep.subr.mxu0 0.0
  %1046 = vmatpush1.msra.mxu0 0.0
  %1047 = vmatprep.subr.mxu0 0.0
  %1048 = vmatpush1.msra.mxu0 0.0
  %1049 = vmatprep.subr.mxu0 0.0
  %1050 = vmatpush1.msra.mxu0 0.0
  %1051 = vmatprep.subr.mxu0 0.0
  %1052 = vmatpush1.msra.mxu0 0.0
  %1053 = vmatprep.mubr.f32.mxu0 0.0
  %1054 = vmatmul.mubr.f32.gmra.mrb[0].mxu0 %v972
  %v1055 = vpop.f32.mrb[0].mxu0
  %v1056 = vadd.f32 0.0, %v1055
  %v1057 = vpop.f32.mrb[0].mxu0
  %1058 = vmatprep.mubr.f32.mxu0 0.0
  %1059 = vmatmul.mubr.f32.gmra.mrb[0].mxu0 %v975
  %v1060 = vpop.f32.mrb[0].mxu0
  %v1061 = vadd.f32 0.0, %v1060
  %v1062 = vpop.f32.mrb[0].mxu0
  %1063 = vmatprep.mubr.f32.mxu0 0.0
  %1064 = vmatmul.mubr.f32.gmra.mrb[0].mxu0 %v978
  %v1065 = vpop.f32.mrb[0].mxu0
  %v1066 = vadd.f32 0.0, %v1065
  %v1067 = vpop.f32.mrb[0].mxu0
  %1068 = vmatprep.mubr.f32.mxu0 0.0
  %1069 = vmatmul.mubr.f32.gmra.mrb[0].mxu0 %v981
  %v1070 = vpop.f32.mrb[0].mxu0
  %v1071 = vadd.f32 0.0, %v1070
  %v1072 = vpop.f32.mrb[0].mxu0
  %1073 = vmatprep.mubr.f32.mxu0 0.0
  %1074 = vmatmul.mubr.f32.gmra.mrb[0].mxu0 %v984
  %v1075 = vpop.f32.mrb[0].mxu0
  %v1076 = vadd.f32 0.0, %v1075
  %v1077 = vpop.f32.mrb[0].mxu0
  %1078 = vmatprep.mubr.f32.mxu0 0.0
  %1079 = vmatmul.mubr.f32.gmra.mrb[0].mxu0 %v987
  %v1080 = vpop.f32.mrb[0].mxu0
  %v1081 = vadd.f32 0.0, %v1080
  %v1082 = vpop.f32.mrb[0].mxu0
  %1083 = vdwg.mxu0
  %v1084 = vadd.f32 %v159, %v969
  %v1085 = vadd.f32 %v160, %v970
  %v1086 = vadd.f32 %v185, %v1056
  %v1087 = vadd.f32 %v186, %v1061
  %v1088 = vadd.f32 %v187, %v1066
  %v1089 = vadd.f32 %v188, %v1071
  %v1090 = vadd.f32 %v189, %v1076
  %v1091 = vadd.f32 %v190, %v1081
  %v1092 = vsel %vm117, %v1084, 0.0
  %1093 = vadd.xlane.f32.xlu0 %v1092
  %v1094 = vpop.xlane.xlu0 %1093
  %v1095 = vsel %vm117, %v1085, 0.0
  %1096 = vadd.xlane.f32.xlu0 %v1095
  %v1097 = vpop.xlane.xlu0 %1096
  %v1098 = vmul.f32 %v1094, %v124
  %v1099 = vmul.f32 %v1097, %v124
  %v1100 = vsub.f32 %v1084, %v1098
  %v1101 = vsub.f32 %v1085, %v1099
  %v1102 = vmul.f32 %v1100, %v1100
  %v1103 = vmul.f32 %v1101, %v1101
  %v1104 = vsel %vm117, %v1102, 0.0
  %1105 = vadd.xlane.f32.xlu0 %v1104
  %v1106 = vpop.xlane.xlu0 %1105
  %v1107 = vsel %vm117, %v1103, 0.0
  %1108 = vadd.xlane.f32.xlu0 %v1107
  %v1109 = vpop.xlane.xlu0 %1108
  %v1110 = vmul.f32 %v1106, %v124
  %v1111 = vmul.f32 %v1109, %v124
  %v1112 = vadd.f32 %v1110, 1e-05
  %v1113 = vadd.f32 %v1111, 1e-05
  %v1114 = vrsqrt.pop %v1112
  %v1115 = vrsqrt.pop %v1113
  %v1116 = vmul.f32 %v1100, %v1114
  %v1117 = vmul.f32 %v1101, %v1115
  %v1119 = vlaneseq
  %v1120 = vshrl.u32 %v1119, 7
  %v1121 = vsub.s32 0, %v1120
  %v1122 = vrot.slane %v91, %v1121
  %v1124 = vmul.f32 %v1116, %v1122
  %v1125 = vmul.f32 %v1117, %v1122
  %v1127 = vlaneseq
  %v1128 = vshrl.u32 %v1127, 7
  %v1129 = vsub.s32 0, %v1128
  %v1130 = vrot.slane %v92, %v1129
  %v1132 = vadd.f32 %v1124, %v1130
  %v1133 = vadd.f32 %v1125, %v1130
  %v1134 = vmul.f32 %v1086, %v1086
  %v1135 = vmul.f32 %v1087, %v1087
  %v1136 = vmul.f32 %v1088, %v1088
  %v1137 = vmul.f32 %v1089, %v1089
  %v1138 = vadd.f32 %v1134, %v1136
  %v1139 = vadd.f32 %v1135, %v1137
  %v1140 = vmul.f32 %v1090, %v1090
  %v1141 = vmul.f32 %v1091, %v1091
  %v1142 = vadd.f32 %v1138, %v1140
  %v1143 = vadd.f32 %v1139, %v1141
  %v1144 = vmax.f32 %v1142, 1e-08
  %v1145 = vmax.f32 %v1143, 1e-08
  %v1146 = vsel %vm173, %v1144, 0.0
  %1147 = vadd.xlane.f32.xlu0 %v1146
  %v1148 = vpop.xlane.xlu0 %1147
  %v1149 = vsel %vm173, %v1145, 0.0
  %1150 = vadd.xlane.f32.xlu0 %v1149
  %v1151 = vpop.xlane.xlu0 %1150
  %v1152 = vmul.f32 %v1148, %v180
  %v1153 = vmul.f32 %v1151, %v180
  %v1154 = vrsqrt.pop %v1152
  %v1155 = vrsqrt.pop %v1153
  %v1156 = vmul.f32 %v1086, %v1154
  %v1157 = vmul.f32 %v1087, %v1155
  %v1158 = vmul.f32 %v1088, %v1154
  %v1159 = vmul.f32 %v1089, %v1155
  %v1160 = vmul.f32 %v1090, %v1154
  %v1161 = vmul.f32 %v1091, %v1155
  %1162 = vst.msk [vmem:[%s18] sm:$0xff] %vm117, %v1132
  %1163 = vst.msk [vmem:[%s18 + $0x8] sm:$0xff] %vm117, %v1133
  %1164 = vst.msk [vmem:[%s19] sm:$0xff] %vm173, %v1156
  %1165 = vst.msk [vmem:[%s19 + $0x8] sm:$0xff] %vm173, %v1157
  %1166 = vst.msk [vmem:[%s19 + $0x10] sm:$0xff] %vm173, %v1158
  %1167 = vst.msk [vmem:[%s19 + $0x18] sm:$0xff] %vm173, %v1159
  %1168 = vst.msk [vmem:[%s19 + $0x20] sm:$0xff] %vm173, %v1160
  %1169 = vst.msk [vmem:[%s19 + $0x28] sm:$0xff] %vm173, %v1161
  // Predicated region
  $region74: #{closed_call.12} parent=0 // pred_check
    _
  $region75: #{closed_call.12} parent=0 // pred_check_branch
    %1171 = sbr.rel (0) target = $region77
  $region76: #{closed_call.12} parent=0 // pred_region
    _
  $region77: #{closed_call.12} parent=0 // pred_fallthru
    _
  // Predicated region
  $region78: #{closed_call.12} parent=0 // pred_check
    _
  $region79: #{closed_call.12} parent=0 // pred_check_branch
    %1173 = sbr.rel (0) target = $region81
  $region80: #{closed_call.12} parent=0 // pred_region
    _
  $region81: #{closed_call.12} parent=0 // pred_fallthru
    _
  // Predicated region
  $region82: #{closed_call.12} parent=0 // pred_check
    _
  $region83: #{closed_call.12} parent=0 // pred_check_branch
    %1175 = sbr.rel (0) target = $region85
  $region84: #{closed_call.12} parent=0 // pred_region
    _
  $region85: #{closed_call.12} parent=0 // pred_fallthru
    _
  // Predicated region
  $region86: #{closed_call.12} parent=0 // pred_check
    _
  $region87: #{closed_call.12} parent=0 // pred_check_branch
    %1177 = sbr.rel (0) target = $region89
  $region88: #{closed_call.12} parent=0 // pred_region
    _
  $region89: #{closed_call.12} parent=0 // pred_fallthru
    _

</llo_original>
